<compile_context>
chip_gen: v7x
topology: tpu7x:2x2x1
jax: 0.10.0
libtpu: 0.0.40
codegen_flags: <defaults>
</compile_context>

<pallas_src>
import jax
import jax.numpy as jnp
from jax.experimental import pallas as pl
from jax.experimental.pallas import tpu as pltpu


# ----------------------------------------------------------------------------
# shared in-kernel helpers
# ----------------------------------------------------------------------------
def _fill_padded(xp_ref, x):
    """Zero-pad x (H, W, C) by 1 on each spatial side into VMEM scratch xp_ref."""
    H, W = x.shape[0], x.shape[1]
    xp_ref[...] = jnp.zeros_like(xp_ref)
    xp_ref[1:H + 1, 1:W + 1, :] = x.astype(xp_ref.dtype)


def _im2col(xp_ref, H, W, Cin):
    """(H*W, 9*Cin) im2col matrix from a padded (H+2, W+2, Cin) VMEM scratch.

    Column order is (dy, dx, cin), matching w.reshape(9*Cin, Cout)."""
    cols = []
    for dy in range(3):
        for dx in range(3):
            cols.append(xp_ref[dy:dy + H, dx:dx + W, :].reshape(H * W, Cin))
    return jnp.concatenate(cols, axis=-1)


def _prelu(x, a):
    return jnp.where(x >= 0, x, a * x)


# ----------------------------------------------------------------------------
# Kernel 1: conv_block1 (3->32 + PReLU) fused with infoGen-proxy 1x1 projection
# ----------------------------------------------------------------------------
def _conv1_tp_kernel(x_ref, w1_ref, b1_ref, wtp_ref, btp_ref, a_ref,
                     feat_ref, tp_ref, xp):
    H, W = feat_ref.shape[1], feat_ref.shape[2]
    Cin = x_ref.shape[3]
    _fill_padded(xp, x_ref[0])
    patches = _im2col(xp, H, W, Cin).astype(jnp.bfloat16)          # (H*W, 9*Cin)
    acc = jnp.dot(patches, w1_ref[...], preferred_element_type=jnp.float32)
    feat = _prelu(acc + b1_ref[0, :][None, :], a_ref[0])           # (H*W, 32) f32
    feat_ref[0] = feat.reshape(H, W, -1)
    # infoGen proxy: 1x1 channel projection riding in the same kernel's MXU slack
    tp = jnp.dot(feat.astype(wtp_ref.dtype), wtp_ref[...],
                 preferred_element_type=jnp.float32)
    tp_ref[0] = _prelu(tp + btp_ref[0, :][None, :], a_ref[1]).reshape(H, W, -1)


def conv1_tp(x, w1, b1, w_tp, b_tp, alphas):
    N, H, W, Cin = x.shape
    C = w1.shape[-1]
    return pl.pallas_call(
        _conv1_tp_kernel,
        out_shape=(jax.ShapeDtypeStruct((N, H, W, C), jnp.float32),
                   jax.ShapeDtypeStruct((N, H, W, C), jnp.float32)),
        grid=(N,),
        in_specs=[
            pl.BlockSpec((1, H, W, Cin), lambda n: (n, 0, 0, 0)),
            pl.BlockSpec((9 * Cin, C), lambda n: (0, 0)),
            pl.BlockSpec((1, C), lambda n: (0, 0)),
            pl.BlockSpec((C, C), lambda n: (0, 0)),
            pl.BlockSpec((1, C), lambda n: (0, 0)),
            pl.BlockSpec(memory_space=pltpu.MemorySpace.SMEM),
        ],
        out_specs=(pl.BlockSpec((1, H, W, C), lambda n: (n, 0, 0, 0)),
                   pl.BlockSpec((1, H, W, C), lambda n: (n, 0, 0, 0))),
        scratch_shapes=[pltpu.VMEM((H + 2, W + 2, Cin), jnp.float32)],
        compiler_params=pltpu.CompilerParams(dimension_semantics=("parallel",)),
    )(x,
      w1.reshape(9 * Cin, C).astype(jnp.bfloat16),
      b1.reshape(1, C),
      w_tp.astype(jnp.bfloat16),
      b_tp.reshape(1, C),
      alphas)


# ----------------------------------------------------------------------------
# Kernel 2: conv_block2 conv (32->32) + per-batch-element channel statistics
# ----------------------------------------------------------------------------
def _conv2_stats_kernel(x_ref, w_ref, b_ref, o_ref, stats_ref, xp):
    H, W = o_ref.shape[1], o_ref.shape[2]
    Cin = x_ref.shape[3]
    _fill_padded(xp, x_ref[0])
    patches = _im2col(xp, H, W, Cin).astype(jnp.bfloat16)          # (H*W, 288)
    acc = jnp.dot(patches, w_ref[...], preferred_element_type=jnp.float32)
    acc = acc + b_ref[0, :][None, :]
    o_ref[0] = acc.reshape(H, W, -1)
    # per-batch-element channel sums for training-mode BatchNorm (batch stats)
    stats_ref[0, 0:1, :] = jnp.sum(acc, axis=0, keepdims=True)
    stats_ref[0, 1:2, :] = jnp.sum(acc * acc, axis=0, keepdims=True)


def conv2_stats(x, w2, b2):
    N, H, W, Cin = x.shape
    C = w2.shape[-1]
    return pl.pallas_call(
        _conv2_stats_kernel,
        out_shape=(jax.ShapeDtypeStruct((N, H, W, C), jnp.float32),
                   jax.ShapeDtypeStruct((N, 2, C), jnp.float32)),
        grid=(N,),
        in_specs=[
            pl.BlockSpec((1, H, W, Cin), lambda n: (n, 0, 0, 0)),
            pl.BlockSpec((9 * Cin, C), lambda n: (0, 0)),
            pl.BlockSpec((1, C), lambda n: (0, 0)),
        ],
        out_specs=(pl.BlockSpec((1, H, W, C), lambda n: (n, 0, 0, 0)),
                   pl.BlockSpec((1, 2, C), lambda n: (n, 0, 0))),
        scratch_shapes=[pltpu.VMEM((H + 2, W + 2, Cin), jnp.float32)],
        compiler_params=pltpu.CompilerParams(dimension_semantics=("parallel",)),
    )(x, w2.reshape(9 * Cin, C).astype(jnp.bfloat16), b2.reshape(1, C))


# ----------------------------------------------------------------------------
# Kernel 3: BN-apply + residual add + Upsample conv + PixelShuffle + PReLU
#           + conv_block3 + tanh, fully fused (polyphase pixel shuffle).
# ----------------------------------------------------------------------------
def _bn_up_ps_conv3_kernel(x_ref, res_ref, sc_ref, sh_ref, wup_ref, bup_ref,
                           w3_ref, b3_ref, a_ref, o_ref, xp, pp):
    H, W = x_ref.shape[1], x_ref.shape[2]
    Cps = pp.shape[3]  # channels per pixel-shuffle phase (= num_feat = 32)
    # conv_block2 epilogue: BatchNorm affine (precomputed scale/shift) + skip add
    x = (x_ref[0] * sc_ref[0, :][None, None, :]
         + sh_ref[0, :][None, None, :] + res_ref[0])
    _fill_padded(xp, x)
    patches = _im2col(xp, H, W, x_ref.shape[3]).astype(jnp.bfloat16)
    acc = jnp.dot(patches, wup_ref[...], preferred_element_type=jnp.float32)
    acc = _prelu(acc + bup_ref[0, :][None, :], a_ref[0])            # (H*W, 4*Cps)
    acc = acc.reshape(H, W, -1)
    # PixelShuffle: phase g = 2*i + j occupies lanes [g*Cps, (g+1)*Cps) because
    # the upsample-conv weight columns were permuted group-major in the wrapper.
    pp[...] = jnp.zeros_like(pp)
    for g in range(4):
        pp[g, 1:H + 1, 1:W + 1, :] = acc[:, :, g * Cps:(g + 1) * Cps].astype(pp.dtype)
    # conv_block3 (3x3, tanh) computed per output phase directly on the
    # un-interleaved phase images (polyphase form of conv-on-upsampled-image);
    # the (2H, 2W, 32) shuffled tensor is never materialized.
    for oi in range(2):
        for oj in range(2):
            cols = []
            for dy in range(3):
                e = oi + dy - 1
                si = e % 2                 # source row phase
                oh = (e - si) // 2         # row offset inside the phase image
                for dx in range(3):
                    f = oj + dx - 1
                    sj = f % 2
                    ow = (f - sj) // 2
                    g = si * 2 + sj
                    cols.append(pp[g, 1 + oh:1 + oh + H, 1 + ow:1 + ow + W, :]
                                .reshape(H * W, Cps))
            p3 = jnp.concatenate(cols, axis=-1).astype(jnp.bfloat16)  # (H*W, 288)
            y = jnp.dot(p3, w3_ref[...], preferred_element_type=jnp.float32)
            y = jnp.tanh(y + b3_ref[0, :][None, :])
            o_ref[0, 2 * oi + oj] = y.reshape(H, W, -1)


def bn_up_ps_conv3(x, res, scale, shift, w_up, b_up, a_up, w3, b3):
    N, H, W, C = x.shape
    Cup = w_up.shape[-1]        # 4 * num_feat = 128
    Cps = Cup // 4              # num_feat = 32 (channels per shuffle phase)
    Cout = w3.shape[-1]         # 3
    # Permute upsample-conv output channels to pixel-shuffle group-major order:
    # new column g*Cps + c  <-  old column c*4 + g  (g = 2*i + j).
    wup = (w_up.reshape(3, 3, C, Cps, 4).transpose(0, 1, 2, 4, 3)
                .reshape(9 * C, Cup).astype(jnp.bfloat16))
    bup = b_up.reshape(Cps, 4).transpose(1, 0).reshape(1, Cup)
    return pl.pallas_call(
        _bn_up_ps_conv3_kernel,
        out_shape=jax.ShapeDtypeStruct((N, 4, H, W, Cout), jnp.float32),
        grid=(N,),
        in_specs=[
            pl.BlockSpec((1, H, W, C), lambda n: (n, 0, 0, 0)),
            pl.BlockSpec((1, H, W, C), lambda n: (n, 0, 0, 0)),
            pl.BlockSpec((1, C), lambda n: (0, 0)),
            pl.BlockSpec((1, C), lambda n: (0, 0)),
            pl.BlockSpec((9 * C, Cup), lambda n: (0, 0)),
            pl.BlockSpec((1, Cup), lambda n: (0, 0)),
            pl.BlockSpec((9 * Cps, Cout), lambda n: (0, 0)),
            pl.BlockSpec((1, Cout), lambda n: (0, 0)),
            pl.BlockSpec(memory_space=pltpu.MemorySpace.SMEM),
        ],
        out_specs=pl.BlockSpec((1, 4, H, W, Cout), lambda n: (n, 0, 0, 0, 0)),
        scratch_shapes=[pltpu.VMEM((H + 2, W + 2, C), jnp.float32),
                        pltpu.VMEM((4, H + 2, W + 2, Cps), jnp.float32)],
        compiler_params=pltpu.CompilerParams(dimension_semantics=("parallel",)),
    )(x, res, scale.reshape(1, C), shift.reshape(1, C),
      wup, bup,
      w3.reshape(9 * Cps, Cout).astype(jnp.bfloat16), b3.reshape(1, Cout),
      jnp.asarray(a_up, jnp.float32).reshape(1,))


# ----------------------------------------------------------------------------
# Parameters + forward pass
# ----------------------------------------------------------------------------
def init_params(key):
    ks = jax.random.split(key, 6)

    def conv_w(k, cin, cout):
        return jax.random.normal(k, (3, 3, cin, cout), jnp.float32) * 0.05

    p = {}
    # conv_block1: Conv2d(3 -> 32, k3, pad1) + PReLU
    p["w1"], p["b1"], p["a1"] = conv_w(ks[0], 3, 32), jnp.zeros((32,), jnp.float32), 0.25
    # infoGen proxy: 1x1 channel projection 32 -> 32 + PReLU (out_text_channels = 32)
    p["w_tp"] = jax.random.normal(ks[1], (32, 32), jnp.float32) * 0.05
    p["b_tp"], p["a_tp"] = jnp.zeros((32,), jnp.float32), 0.25
    # conv_block2: Conv2d(32 -> 32, k3, pad1) + BatchNorm2d(32)
    p["w2"], p["b2"] = conv_w(ks[2], 32, 32), jnp.zeros((32,), jnp.float32)
    p["bn_g"], p["bn_b"] = jnp.ones((32,), jnp.float32), jnp.zeros((32,), jnp.float32)
    # Upsample(scale=2): Conv2d(32 -> 128, k3, pad1) + PixelShuffle(2) + PReLU
    p["w_up"], p["b_up"], p["a_up"] = conv_w(ks[3], 32, 128), jnp.zeros((128,), jnp.float32), 0.25
    # conv_block3: Conv2d(32 -> 3, k3, pad1) + Tanh
    p["w3"], p["b3"] = conv_w(ks[4], 32, 3), jnp.zeros((3,), jnp.float32)
    return p


def mynet_forward(params, lr_imgs_nchw, tp=None):
    x = jnp.transpose(lr_imgs_nchw, (0, 2, 3, 1)).astype(jnp.float32)  # NCHW -> NHWC
    N, H, W, _ = x.shape

    # conv_block1 + infoGen proxy, fused into one kernel with two outputs.
    # TODO(synk): sklearn PCA.fit_transform (data-dependent CPU fit) and the
    # InfoTransformer / PositionalEncoding classes are not defined in the source;
    # tp_map is approximated by a learned 1x1 channel projection + PReLU of the
    # image features (same output shape); `tp` is unused here.
    alphas = jnp.asarray([params["a1"], params["a_tp"]], jnp.float32)
    feat, tp_map = conv1_tp(x, params["w1"], params["b1"],
                            params["w_tp"], params["b_tp"], alphas)

    residual = feat

    # residual_blocks: 7 x MobileViTResidualBlock
    # TODO(synk): MobileViTBlock class is not provided in the source; treated as identity.
    out = tp_map

    # conv_block2 conv + per-batch channel stats (sum, sum of squares).
    conv2_raw, stats = conv2_stats(out, params["w2"], params["b2"])

    # Training-mode BatchNorm (batch statistics, biased variance) folded into a
    # per-channel scale/shift — ~64 floats of XLA math.
    cnt = jnp.float32(N * H * W)
    mean = jnp.sum(stats[:, 0, :], axis=0) / cnt
    var = jnp.sum(stats[:, 1, :], axis=0) / cnt - mean * mean
    scale = params["bn_g"] * jax.lax.rsqrt(var + 1e-5)
    shift = params["bn_b"] - mean * scale

    # BN-apply + skip add + Upsample conv + PixelShuffle + PReLU + conv_block3
    # + tanh fused in one kernel; output is per pixel-shuffle phase (N,4,H,W,3).
    # (Shared-scalar PReLU commutes with the shuffle, so it is applied pre-shuffle.)
    phases = bn_up_ps_conv3(conv2_raw, residual, scale, shift,
                            params["w_up"], params["b_up"], params["a_up"],
                            params["w3"], params["b3"])

    # Interleave the 4 phases into the SR image; this only touches the small
    # final (N, 3, 2H, 2W) tensor (the (N, 2H, 2W, 32) activation never hit HBM).
    ph = phases.reshape(N, 2, 2, H, W, 3)
    sr = jnp.transpose(ph, (0, 5, 3, 1, 4, 2)).reshape(N, 3, 2 * H, 2 * W)
    return sr


if __name__ == "__main__":
    key = jax.random.PRNGKey(0)
    kp, kx, kt = jax.random.split(key, 3)
    params = init_params(kp)

    # Small shapes consistent with the module: lr_imgs (N, 3, H, W), scale=2.
    lr_imgs = jax.random.normal(kx, (2, 3, 8, 8), jnp.float32)       # NCHW
    tp = jax.random.normal(kt, (2, 8, 7937), jnp.float32)            # text_emb=7937 (proxy-unused)

    fwd = jax.jit(mynet_forward)
    sr_imgs = fwd(params, lr_imgs, tp)
    jax.block_until_ready(sr_imgs)
    assert sr_imgs.shape == (2, 3, 16, 16), sr_imgs.shape
    print("KERNEL_OK")
</pallas_src>

<mosaic_0001>
module attributes {stable_mosaic.version = 11 : i64} {
  func.func @_conv1_tp_kernel(%arg0: i32, %arg1: memref<1x8x8x3xf32, #tpu.memory_space<vmem>>, %arg2: memref<27x32xbf16, #tpu.memory_space<vmem>>, %arg3: memref<1x32xf32, #tpu.memory_space<vmem>>, %arg4: memref<32x32xbf16, #tpu.memory_space<vmem>>, %arg5: memref<1x32xf32, #tpu.memory_space<vmem>>, %arg6: memref<2xf32, #tpu.memory_space<smem>>, %arg7: memref<1x8x8x32xf32, #tpu.memory_space<vmem>>, %arg8: memref<1x8x8x32xf32, #tpu.memory_space<vmem>>, %arg9: memref<10x10x3xf32, #tpu.memory_space<vmem>>) attributes {dimension_semantics = [#tpu.dimension_semantics<parallel>], iteration_bounds = array<i64: 2>, scalar_prefetch = 0 : i64, scratch_operands = 1 : i64, tpu.core_type = #tpu.core_type<tc>, window_params = [{transform_indices = @transform_0, window_bounds = array<i64: 1, 8, 8, 3>}, {pipeline_mode = #tpu.pipeline_mode<synchronous>, transform_indices = @transform_1, window_bounds = array<i64: 27, 32>}, {pipeline_mode = #tpu.pipeline_mode<synchronous>, transform_indices = @transform_2, window_bounds = array<i64: 1, 32>}, {pipeline_mode = #tpu.pipeline_mode<synchronous>, transform_indices = @transform_3, window_bounds = array<i64: 32, 32>}, {pipeline_mode = #tpu.pipeline_mode<synchronous>, transform_indices = @transform_4, window_bounds = array<i64: 1, 32>}, {transform_indices = @transform_5, window_bounds = array<i64: 2>}, {transform_indices = @transform_6, window_bounds = array<i64: 1, 8, 8, 32>}, {transform_indices = @transform_7, window_bounds = array<i64: 1, 8, 8, 32>}]} {
    %c0 = arith.constant 0 : index
    %c0_0 = arith.constant 0 : index
    %c0_1 = arith.constant 0 : index
    %c0_2 = arith.constant 0 : index
    %0 = vector.load %arg1[%c0, %c0_0, %c0_1, %c0_2] : memref<1x8x8x3xf32, #tpu.memory_space<vmem>>, vector<1x8x8x3xf32>
    %1 = vector.shape_cast %0 : vector<1x8x8x3xf32> to vector<8x8x3xf32>
    %cst = arith.constant 0.000000e+00 : f32
    %2 = vector.broadcast %cst : f32 to vector<10x10x3xf32>
    %c0_3 = arith.constant 0 : index
    %c0_4 = arith.constant 0 : index
    %c0_5 = arith.constant 0 : index
    %3 = vector.load %arg9[%c0_3, %c0_4, %c0_5] : memref<10x10x3xf32, #tpu.memory_space<vmem>>, vector<10x10x3xf32>
    tpu.vector_store %arg9[%c0_3, %c0_4, %c0_5], %2 {strides = array<i32>} : memref<10x10x3xf32, #tpu.memory_space<vmem>>, vector<10x10x3xf32>,
    %c1 = arith.constant 1 : index
    %c1_6 = arith.constant 1 : index
    %c0_7 = arith.constant 0 : index
    %4 = vector.load %arg9[%c1, %c1_6, %c0_7] : memref<10x10x3xf32, #tpu.memory_space<vmem>>, vector<8x8x3xf32>
    tpu.vector_store %arg9[%c1, %c1_6, %c0_7], %1 {strides = array<i32>} : memref<10x10x3xf32, #tpu.memory_space<vmem>>, vector<8x8x3xf32>,
    %c0_8 = arith.constant 0 : index
    %c0_9 = arith.constant 0 : index
    %c0_10 = arith.constant 0 : index
    %5 = vector.load %arg9[%c0_8, %c0_9, %c0_10] : memref<10x10x3xf32, #tpu.memory_space<vmem>>, vector<8x8x3xf32>
    %6 = vector.shape_cast %5 : vector<8x8x3xf32> to vector<64x3xf32>
    %c0_11 = arith.constant 0 : index
    %c1_12 = arith.constant 1 : index
    %c0_13 = arith.constant 0 : index
    %7 = vector.load %arg9[%c0_11, %c1_12, %c0_13] : memref<10x10x3xf32, #tpu.memory_space<vmem>>, vector<8x8x3xf32>
    %8 = vector.shape_cast %7 : vector<8x8x3xf32> to vector<64x3xf32>
    %c0_14 = arith.constant 0 : index
    %c2 = arith.constant 2 : index
    %c0_15 = arith.constant 0 : index
    %9 = vector.load %arg9[%c0_14, %c2, %c0_15] : memref<10x10x3xf32, #tpu.memory_space<vmem>>, vector<8x8x3xf32>
    %10 = vector.shape_cast %9 : vector<8x8x3xf32> to vector<64x3xf32>
    %c1_16 = arith.constant 1 : index
    %c0_17 = arith.constant 0 : index
    %c0_18 = arith.constant 0 : index
    %11 = vector.load %arg9[%c1_16, %c0_17, %c0_18] : memref<10x10x3xf32, #tpu.memory_space<vmem>>, vector<8x8x3xf32>
    %12 = vector.shape_cast %11 : vector<8x8x3xf32> to vector<64x3xf32>
    %c1_19 = arith.constant 1 : index
    %c1_20 = arith.constant 1 : index
    %c0_21 = arith.constant 0 : index
    %13 = vector.load %arg9[%c1_19, %c1_20, %c0_21] : memref<10x10x3xf32, #tpu.memory_space<vmem>>, vector<8x8x3xf32>
    %14 = vector.shape_cast %13 : vector<8x8x3xf32> to vector<64x3xf32>
    %c1_22 = arith.constant 1 : index
    %c2_23 = arith.constant 2 : index
    %c0_24 = arith.constant 0 : index
    %15 = vector.load %arg9[%c1_22, %c2_23, %c0_24] : memref<10x10x3xf32, #tpu.memory_space<vmem>>, vector<8x8x3xf32>
    %16 = vector.shape_cast %15 : vector<8x8x3xf32> to vector<64x3xf32>
    %c2_25 = arith.constant 2 : index
    %c0_26 = arith.constant 0 : index
    %c0_27 = arith.constant 0 : index
    %17 = vector.load %arg9[%c2_25, %c0_26, %c0_27] : memref<10x10x3xf32, #tpu.memory_space<vmem>>, vector<8x8x3xf32>
    %18 = vector.shape_cast %17 : vector<8x8x3xf32> to vector<64x3xf32>
    %c2_28 = arith.constant 2 : index
    %c1_29 = arith.constant 1 : index
    %c0_30 = arith.constant 0 : index
    %19 = vector.load %arg9[%c2_28, %c1_29, %c0_30] : memref<10x10x3xf32, #tpu.memory_space<vmem>>, vector<8x8x3xf32>
    %20 = vector.shape_cast %19 : vector<8x8x3xf32> to vector<64x3xf32>
    %c2_31 = arith.constant 2 : index
    %c2_32 = arith.constant 2 : index
    %c0_33 = arith.constant 0 : index
    %21 = vector.load %arg9[%c2_31, %c2_32, %c0_33] : memref<10x10x3xf32, #tpu.memory_space<vmem>>, vector<8x8x3xf32>
    %22 = vector.shape_cast %21 : vector<8x8x3xf32> to vector<64x3xf32>
    %23 = tpu.concatenate %6, %8, %10, %12, %14, %16, %18, %20, %22 in 1 : vector<64x3xf32>, vector<64x3xf32>, vector<64x3xf32>, vector<64x3xf32>, vector<64x3xf32>, vector<64x3xf32>, vector<64x3xf32>, vector<64x3xf32>, vector<64x3xf32> -> vector<64x27xf32>
    %24 = arith.truncf %23 : vector<64x27xf32> to vector<64x27xbf16>
    %c0_34 = arith.constant 0 : index
    %c0_35 = arith.constant 0 : index
    %25 = vector.load %arg2[%c0_34, %c0_35] : memref<27x32xbf16, #tpu.memory_space<vmem>>, vector<27x32xbf16>
    %cst_36 = arith.constant dense<0.000000e+00> : vector<64x32xf32>
    %26 = tpu.matmul %24, %25, %cst_36 {dimension_numbers = #tpu.dot_dimension_numbers<[1], [0], [0], [1], [0, 0, 1, 1], [], []>} : vector<64x27xbf16>, vector<27x32xbf16>, vector<64x32xf32> -> vector<64x32xf32>
    %c0_37 = arith.constant 0 : index
    %c0_38 = arith.constant 0 : index
    %27 = vector.load %arg3[%c0_37, %c0_38] : memref<1x32xf32, #tpu.memory_space<vmem>>, vector<1x32xf32>
    %28 = vector.shape_cast %27 : vector<1x32xf32> to vector<32xf32>
    %29 = vector.shape_cast %28 : vector<32xf32> to vector<1x32xf32>
    %30 = vector.broadcast %29 : vector<1x32xf32> to vector<64x32xf32>
    %31 = arith.addf %26, %30 : vector<64x32xf32>
    %c0_39 = arith.constant 0 : index
    %32 = memref.load %arg6[%c0_39] : memref<2xf32, #tpu.memory_space<smem>>
    %cst_40 = arith.constant 0.000000e+00 : f32
    %33 = vector.broadcast %cst_40 : f32 to vector<64x32xf32>
    %34 = arith.cmpf oge, %31, %33 : vector<64x32xf32>
    %35 = vector.broadcast %32 : f32 to vector<64x32xf32>
    %36 = arith.mulf %35, %31 : vector<64x32xf32>
    %37 = arith.select %34, %31, %36 : vector<64x32xi1>, vector<64x32xf32>
    %38 = vector.shape_cast %37 : vector<64x32xf32> to vector<8x8x32xf32>
    %c0_41 = arith.constant 0 : index
    %c0_42 = arith.constant 0 : index
    %c0_43 = arith.constant 0 : index
    %c0_44 = arith.constant 0 : index
    %39 = vector.load %arg7[%c0_41, %c0_42, %c0_43, %c0_44] : memref<1x8x8x32xf32, #tpu.memory_space<vmem>>, vector<1x8x8x32xf32>
    %40 = vector.shape_cast %39 : vector<1x8x8x32xf32> to vector<8x8x32xf32>
    %41 = vector.shape_cast %38 : vector<8x8x32xf32> to vector<1x8x8x32xf32>
    tpu.vector_store %arg7[%c0_41, %c0_42, %c0_43, %c0_44], %41 {strides = array<i32>} : memref<1x8x8x32xf32, #tpu.memory_space<vmem>>, vector<1x8x8x32xf32>,
    %42 = arith.truncf %37 : vector<64x32xf32> to vector<64x32xbf16>
    %c0_45 = arith.constant 0 : index
    %c0_46 = arith.constant 0 : index
    %43 = vector.load %arg4[%c0_45, %c0_46] : memref<32x32xbf16, #tpu.memory_space<vmem>>, vector<32x32xbf16>
    %cst_47 = arith.constant dense<0.000000e+00> : vector<64x32xf32>
    %44 = tpu.matmul %42, %43, %cst_47 {dimension_numbers = #tpu.dot_dimension_numbers<[1], [0], [0], [1], [0, 0, 1, 1], [], []>} : vector<64x32xbf16>, vector<32x32xbf16>, vector<64x32xf32> -> vector<64x32xf32>
    %c0_48 = arith.constant 0 : index
    %c0_49 = arith.constant 0 : index
    %45 = vector.load %arg5[%c0_48, %c0_49] : memref<1x32xf32, #tpu.memory_space<vmem>>, vector<1x32xf32>
    %46 = vector.shape_cast %45 : vector<1x32xf32> to vector<32xf32>
    %47 = vector.shape_cast %46 : vector<32xf32> to vector<1x32xf32>
    %48 = vector.broadcast %47 : vector<1x32xf32> to vector<64x32xf32>
    %49 = arith.addf %44, %48 : vector<64x32xf32>
    %c1_50 = arith.constant 1 : index
    %50 = memref.load %arg6[%c1_50] : memref<2xf32, #tpu.memory_space<smem>>
    %cst_51 = arith.constant 0.000000e+00 : f32
    %51 = vector.broadcast %cst_51 : f32 to vector<64x32xf32>
    %52 = arith.cmpf oge, %49, %51 : vector<64x32xf32>
    %53 = vector.broadcast %50 : f32 to vector<64x32xf32>
    %54 = arith.mulf %53, %49 : vector<64x32xf32>
    %55 = arith.select %52, %49, %54 : vector<64x32xi1>, vector<64x32xf32>
    %56 = vector.shape_cast %55 : vector<64x32xf32> to vector<8x8x32xf32>
    %c0_52 = arith.constant 0 : index
    %c0_53 = arith.constant 0 : index
    %c0_54 = arith.constant 0 : index
    %c0_55 = arith.constant 0 : index
    %57 = vector.load %arg8[%c0_52, %c0_53, %c0_54, %c0_55] : memref<1x8x8x32xf32, #tpu.memory_space<vmem>>, vector<1x8x8x32xf32>
    %58 = vector.shape_cast %57 : vector<1x8x8x32xf32> to vector<8x8x32xf32>
    %59 = vector.shape_cast %56 : vector<8x8x32xf32> to vector<1x8x8x32xf32>
    tpu.vector_store %arg8[%c0_52, %c0_53, %c0_54, %c0_55], %59 {strides = array<i32>} : memref<1x8x8x32xf32, #tpu.memory_space<vmem>>, vector<1x8x8x32xf32>,
    return
  }
  func.func @transform_0(%arg0: i32) -> (i32, i32, i32, i32) {
    %c0_i32 = arith.constant 0 : i32
    %c0_i32_0 = arith.constant 0 : i32
    %c0_i32_1 = arith.constant 0 : i32
    %c0_i32_2 = arith.constant 0 : i32
    return %arg0, %c0_i32, %c0_i32_0, %c0_i32_1 : i32, i32, i32, i32
  }
  func.func @transform_1(%arg0: i32) -> (i32, i32) {
    %c0_i32 = arith.constant 0 : i32
    %c0_i32_0 = arith.constant 0 : i32
    %c0_i32_1 = arith.constant 0 : i32
    return %c0_i32, %c0_i32_0 : i32, i32
  }
  func.func @transform_2(%arg0: i32) -> (i32, i32) {
    %c0_i32 = arith.constant 0 : i32
    %c0_i32_0 = arith.constant 0 : i32
    %c0_i32_1 = arith.constant 0 : i32
    return %c0_i32, %c0_i32_0 : i32, i32
  }
  func.func @transform_3(%arg0: i32) -> (i32, i32) {
    %c0_i32 = arith.constant 0 : i32
    %c0_i32_0 = arith.constant 0 : i32
    %c0_i32_1 = arith.constant 0 : i32
    return %c0_i32, %c0_i32_0 : i32, i32
  }
  func.func @transform_4(%arg0: i32) -> (i32, i32) {
    %c0_i32 = arith.constant 0 : i32
    %c0_i32_0 = arith.constant 0 : i32
    %c0_i32_1 = arith.constant 0 : i32
    return %c0_i32, %c0_i32_0 : i32, i32
  }
  func.func @transform_5(%arg0: i32) -> i32 {
    %c0_i32 = arith.constant 0 : i32
    %c0_i32_0 = arith.constant 0 : i32
    return %c0_i32 : i32
  }
  func.func @transform_6(%arg0: i32) -> (i32, i32, i32, i32) {
    %c0_i32 = arith.constant 0 : i32
    %c0_i32_0 = arith.constant 0 : i32
    %c0_i32_1 = arith.constant 0 : i32
    %c0_i32_2 = arith.constant 0 : i32
    return %arg0, %c0_i32, %c0_i32_0, %c0_i32_1 : i32, i32, i32, i32
  }
  func.func @transform_7(%arg0: i32) -> (i32, i32, i32, i32) {
    %c0_i32 = arith.constant 0 : i32
    %c0_i32_0 = arith.constant 0 : i32
    %c0_i32_1 = arith.constant 0 : i32
    %c0_i32_2 = arith.constant 0 : i32
    return %arg0, %c0_i32, %c0_i32_0, %c0_i32_1 : i32, i32, i32, i32
  }
}

module attributes {stable_mosaic.version = 11 : i64} {
  func.func @_conv2_stats_kernel(%arg0: i32, %arg1: memref<1x8x8x32xf32, #tpu.memory_space<vmem>>, %arg2: memref<288x32xbf16, #tpu.memory_space<vmem>>, %arg3: memref<1x32xf32, #tpu.memory_space<vmem>>, %arg4: memref<1x8x8x32xf32, #tpu.memory_space<vmem>>, %arg5: memref<1x2x32xf32, #tpu.memory_space<vmem>>, %arg6: memref<10x10x32xf32, #tpu.memory_space<vmem>>) attributes {dimension_semantics = [#tpu.dimension_semantics<parallel>], iteration_bounds = array<i64: 2>, scalar_prefetch = 0 : i64, scratch_operands = 1 : i64, tpu.core_type = #tpu.core_type<tc>, window_params = [{transform_indices = @transform_0, window_bounds = array<i64: 1, 8, 8, 32>}, {pipeline_mode = #tpu.pipeline_mode<synchronous>, transform_indices = @transform_1, window_bounds = array<i64: 288, 32>}, {pipeline_mode = #tpu.pipeline_mode<synchronous>, transform_indices = @transform_2, window_bounds = array<i64: 1, 32>}, {transform_indices = @transform_3, window_bounds = array<i64: 1, 8, 8, 32>}, {transform_indices = @transform_4, window_bounds = array<i64: 1, 2, 32>}]} {
    %c0 = arith.constant 0 : index
    %c0_0 = arith.constant 0 : index
    %c0_1 = arith.constant 0 : index
    %c0_2 = arith.constant 0 : index
    %0 = vector.load %arg1[%c0, %c0_0, %c0_1, %c0_2] : memref<1x8x8x32xf32, #tpu.memory_space<vmem>>, vector<1x8x8x32xf32>
    %1 = vector.shape_cast %0 : vector<1x8x8x32xf32> to vector<8x8x32xf32>
    %cst = arith.constant 0.000000e+00 : f32
    %2 = vector.broadcast %cst : f32 to vector<10x10x32xf32>
    %c0_3 = arith.constant 0 : index
    %c0_4 = arith.constant 0 : index
    %c0_5 = arith.constant 0 : index
    %3 = vector.load %arg6[%c0_3, %c0_4, %c0_5] : memref<10x10x32xf32, #tpu.memory_space<vmem>>, vector<10x10x32xf32>
    tpu.vector_store %arg6[%c0_3, %c0_4, %c0_5], %2 {strides = array<i32>} : memref<10x10x32xf32, #tpu.memory_space<vmem>>, vector<10x10x32xf32>,
    %c1 = arith.constant 1 : index
    %c1_6 = arith.constant 1 : index
    %c0_7 = arith.constant 0 : index
    %4 = vector.load %arg6[%c1, %c1_6, %c0_7] : memref<10x10x32xf32, #tpu.memory_space<vmem>>, vector<8x8x32xf32>
    tpu.vector_store %arg6[%c1, %c1_6, %c0_7], %1 {strides = array<i32>} : memref<10x10x32xf32, #tpu.memory_space<vmem>>, vector<8x8x32xf32>,
    %c0_8 = arith.constant 0 : index
    %c0_9 = arith.constant 0 : index
    %c0_10 = arith.constant 0 : index
    %5 = vector.load %arg6[%c0_8, %c0_9, %c0_10] : memref<10x10x32xf32, #tpu.memory_space<vmem>>, vector<8x8x32xf32>
    %6 = vector.shape_cast %5 : vector<8x8x32xf32> to vector<64x32xf32>
    %c0_11 = arith.constant 0 : index
    %c1_12 = arith.constant 1 : index
    %c0_13 = arith.constant 0 : index
    %7 = vector.load %arg6[%c0_11, %c1_12, %c0_13] : memref<10x10x32xf32, #tpu.memory_space<vmem>>, vector<8x8x32xf32>
    %8 = vector.shape_cast %7 : vector<8x8x32xf32> to vector<64x32xf32>
    %c0_14 = arith.constant 0 : index
    %c2 = arith.constant 2 : index
    %c0_15 = arith.constant 0 : index
    %9 = vector.load %arg6[%c0_14, %c2, %c0_15] : memref<10x10x32xf32, #tpu.memory_space<vmem>>, vector<8x8x32xf32>
    %10 = vector.shape_cast %9 : vector<8x8x32xf32> to vector<64x32xf32>
    %c1_16 = arith.constant 1 : index
    %c0_17 = arith.constant 0 : index
    %c0_18 = arith.constant 0 : index
    %11 = vector.load %arg6[%c1_16, %c0_17, %c0_18] : memref<10x10x32xf32, #tpu.memory_space<vmem>>, vector<8x8x32xf32>
    %12 = vector.shape_cast %11 : vector<8x8x32xf32> to vector<64x32xf32>
    %c1_19 = arith.constant 1 : index
    %c1_20 = arith.constant 1 : index
    %c0_21 = arith.constant 0 : index
    %13 = vector.load %arg6[%c1_19, %c1_20, %c0_21] : memref<10x10x32xf32, #tpu.memory_space<vmem>>, vector<8x8x32xf32>
    %14 = vector.shape_cast %13 : vector<8x8x32xf32> to vector<64x32xf32>
    %c1_22 = arith.constant 1 : index
    %c2_23 = arith.constant 2 : index
    %c0_24 = arith.constant 0 : index
    %15 = vector.load %arg6[%c1_22, %c2_23, %c0_24] : memref<10x10x32xf32, #tpu.memory_space<vmem>>, vector<8x8x32xf32>
    %16 = vector.shape_cast %15 : vector<8x8x32xf32> to vector<64x32xf32>
    %c2_25 = arith.constant 2 : index
    %c0_26 = arith.constant 0 : index
    %c0_27 = arith.constant 0 : index
    %17 = vector.load %arg6[%c2_25, %c0_26, %c0_27] : memref<10x10x32xf32, #tpu.memory_space<vmem>>, vector<8x8x32xf32>
    %18 = vector.shape_cast %17 : vector<8x8x32xf32> to vector<64x32xf32>
    %c2_28 = arith.constant 2 : index
    %c1_29 = arith.constant 1 : index
    %c0_30 = arith.constant 0 : index
    %19 = vector.load %arg6[%c2_28, %c1_29, %c0_30] : memref<10x10x32xf32, #tpu.memory_space<vmem>>, vector<8x8x32xf32>
    %20 = vector.shape_cast %19 : vector<8x8x32xf32> to vector<64x32xf32>
    %c2_31 = arith.constant 2 : index
    %c2_32 = arith.constant 2 : index
    %c0_33 = arith.constant 0 : index
    %21 = vector.load %arg6[%c2_31, %c2_32, %c0_33] : memref<10x10x32xf32, #tpu.memory_space<vmem>>, vector<8x8x32xf32>
    %22 = vector.shape_cast %21 : vector<8x8x32xf32> to vector<64x32xf32>
    %23 = tpu.concatenate %6, %8, %10, %12, %14, %16, %18, %20, %22 in 1 : vector<64x32xf32>, vector<64x32xf32>, vector<64x32xf32>, vector<64x32xf32>, vector<64x32xf32>, vector<64x32xf32>, vector<64x32xf32>, vector<64x32xf32>, vector<64x32xf32> -> vector<64x288xf32>
    %24 = arith.truncf %23 : vector<64x288xf32> to vector<64x288xbf16>
    %c0_34 = arith.constant 0 : index
    %c0_35 = arith.constant 0 : index
    %25 = vector.load %arg2[%c0_34, %c0_35] : memref<288x32xbf16, #tpu.memory_space<vmem>>, vector<288x32xbf16>
    %cst_36 = arith.constant dense<0.000000e+00> : vector<64x32xf32>
    %26 = tpu.matmul %24, %25, %cst_36 {dimension_numbers = #tpu.dot_dimension_numbers<[1], [0], [0], [1], [0, 0, 1, 1], [], []>} : vector<64x288xbf16>, vector<288x32xbf16>, vector<64x32xf32> -> vector<64x32xf32>
    %c0_37 = arith.constant 0 : index
    %c0_38 = arith.constant 0 : index
    %27 = vector.load %arg3[%c0_37, %c0_38] : memref<1x32xf32, #tpu.memory_space<vmem>>, vector<1x32xf32>
    %28 = vector.shape_cast %27 : vector<1x32xf32> to vector<32xf32>
    %29 = vector.shape_cast %28 : vector<32xf32> to vector<1x32xf32>
    %30 = vector.broadcast %29 : vector<1x32xf32> to vector<64x32xf32>
    %31 = arith.addf %26, %30 : vector<64x32xf32>
    %32 = vector.shape_cast %31 : vector<64x32xf32> to vector<8x8x32xf32>
    %c0_39 = arith.constant 0 : index
    %c0_40 = arith.constant 0 : index
    %c0_41 = arith.constant 0 : index
    %c0_42 = arith.constant 0 : index
    %33 = vector.load %arg4[%c0_39, %c0_40, %c0_41, %c0_42] : memref<1x8x8x32xf32, #tpu.memory_space<vmem>>, vector<1x8x8x32xf32>
    %34 = vector.shape_cast %33 : vector<1x8x8x32xf32> to vector<8x8x32xf32>
    %35 = vector.shape_cast %32 : vector<8x8x32xf32> to vector<1x8x8x32xf32>
    tpu.vector_store %arg4[%c0_39, %c0_40, %c0_41, %c0_42], %35 {strides = array<i32>} : memref<1x8x8x32xf32, #tpu.memory_space<vmem>>, vector<1x8x8x32xf32>,
    %cst_43 = arith.constant dense<0.000000e+00> : vector<32xf32>
    %36 = vector.multi_reduction <add>, %31, %cst_43 [0] : vector<64x32xf32> to vector<32xf32>
    %37 = vector.shape_cast %36 : vector<32xf32> to vector<1x32xf32>
    %c0_44 = arith.constant 0 : index
    %c0_45 = arith.constant 0 : index
    %c0_46 = arith.constant 0 : index
    %38 = vector.load %arg5[%c0_44, %c0_45, %c0_46] : memref<1x2x32xf32, #tpu.memory_space<vmem>>, vector<1x1x32xf32>
    %39 = vector.shape_cast %38 : vector<1x1x32xf32> to vector<1x32xf32>
    %40 = vector.shape_cast %37 : vector<1x32xf32> to vector<1x1x32xf32>
    tpu.vector_store %arg5[%c0_44, %c0_45, %c0_46], %40 {strides = array<i32>} : memref<1x2x32xf32, #tpu.memory_space<vmem>>, vector<1x1x32xf32>,
    %41 = arith.mulf %31, %31 : vector<64x32xf32>
    %cst_47 = arith.constant dense<0.000000e+00> : vector<32xf32>
    %42 = vector.multi_reduction <add>, %41, %cst_47 [0] : vector<64x32xf32> to vector<32xf32>
    %43 = vector.shape_cast %42 : vector<32xf32> to vector<1x32xf32>
    %c0_48 = arith.constant 0 : index
    %c1_49 = arith.constant 1 : index
    %c0_50 = arith.constant 0 : index
    %44 = vector.load %arg5[%c0_48, %c1_49, %c0_50] : memref<1x2x32xf32, #tpu.memory_space<vmem>>, vector<1x1x32xf32>
    %45 = vector.shape_cast %44 : vector<1x1x32xf32> to vector<1x32xf32>
    %46 = vector.shape_cast %43 : vector<1x32xf32> to vector<1x1x32xf32>
    tpu.vector_store %arg5[%c0_48, %c1_49, %c0_50], %46 {strides = array<i32>} : memref<1x2x32xf32, #tpu.memory_space<vmem>>, vector<1x1x32xf32>,
    return
  }
  func.func @transform_0(%arg0: i32) -> (i32, i32, i32, i32) {
    %c0_i32 = arith.constant 0 : i32
    %c0_i32_0 = arith.constant 0 : i32
    %c0_i32_1 = arith.constant 0 : i32
    %c0_i32_2 = arith.constant 0 : i32
    return %arg0, %c0_i32, %c0_i32_0, %c0_i32_1 : i32, i32, i32, i32
  }
  func.func @transform_1(%arg0: i32) -> (i32, i32) {
    %c0_i32 = arith.constant 0 : i32
    %c0_i32_0 = arith.constant 0 : i32
    %c0_i32_1 = arith.constant 0 : i32
    return %c0_i32, %c0_i32_0 : i32, i32
  }
  func.func @transform_2(%arg0: i32) -> (i32, i32) {
    %c0_i32 = arith.constant 0 : i32
    %c0_i32_0 = arith.constant 0 : i32
    %c0_i32_1 = arith.constant 0 : i32
    return %c0_i32, %c0_i32_0 : i32, i32
  }
  func.func @transform_3(%arg0: i32) -> (i32, i32, i32, i32) {
    %c0_i32 = arith.constant 0 : i32
    %c0_i32_0 = arith.constant 0 : i32
    %c0_i32_1 = arith.constant 0 : i32
    %c0_i32_2 = arith.constant 0 : i32
    return %arg0, %c0_i32, %c0_i32_0, %c0_i32_1 : i32, i32, i32, i32
  }
  func.func @transform_4(%arg0: i32) -> (i32, i32, i32) {
    %c0_i32 = arith.constant 0 : i32
    %c0_i32_0 = arith.constant 0 : i32
    %c0_i32_1 = arith.constant 0 : i32
    return %arg0, %c0_i32, %c0_i32_0 : i32, i32, i32
  }
}

module attributes {stable_mosaic.version = 11 : i64} {
  func.func @_bn_up_ps_conv3_kernel(%arg0: i32, %arg1: memref<1x8x8x32xf32, #tpu.memory_space<vmem>>, %arg2: memref<1x8x8x32xf32, #tpu.memory_space<vmem>>, %arg3: memref<1x32xf32, #tpu.memory_space<vmem>>, %arg4: memref<1x32xf32, #tpu.memory_space<vmem>>, %arg5: memref<288x128xbf16, #tpu.memory_space<vmem>>, %arg6: memref<1x128xf32, #tpu.memory_space<vmem>>, %arg7: memref<288x3xbf16, #tpu.memory_space<vmem>>, %arg8: memref<1x3xf32, #tpu.memory_space<vmem>>, %arg9: memref<1xf32, #tpu.memory_space<smem>>, %arg10: memref<1x4x8x8x3xf32, #tpu.memory_space<vmem>>, %arg11: memref<10x10x32xf32, #tpu.memory_space<vmem>>, %arg12: memref<4x10x10x32xf32, #tpu.memory_space<vmem>>) attributes {dimension_semantics = [#tpu.dimension_semantics<parallel>], iteration_bounds = array<i64: 2>, scalar_prefetch = 0 : i64, scratch_operands = 2 : i64, tpu.core_type = #tpu.core_type<tc>, window_params = [{transform_indices = @transform_0, window_bounds = array<i64: 1, 8, 8, 32>}, {transform_indices = @transform_1, window_bounds = array<i64: 1, 8, 8, 32>}, {pipeline_mode = #tpu.pipeline_mode<synchronous>, transform_indices = @transform_2, window_bounds = array<i64: 1, 32>}, {pipeline_mode = #tpu.pipeline_mode<synchronous>, transform_indices = @transform_3, window_bounds = array<i64: 1, 32>}, {pipeline_mode = #tpu.pipeline_mode<synchronous>, transform_indices = @transform_4, window_bounds = array<i64: 288, 128>}, {pipeline_mode = #tpu.pipeline_mode<synchronous>, transform_indices = @transform_5, window_bounds = array<i64: 1, 128>}, {pipeline_mode = #tpu.pipeline_mode<synchronous>, transform_indices = @transform_6, window_bounds = array<i64: 288, 3>}, {pipeline_mode = #tpu.pipeline_mode<synchronous>, transform_indices = @transform_7, window_bounds = array<i64: 1, 3>}, {transform_indices = @transform_8, window_bounds = array<i64: 1>}, {transform_indices = @transform_9, window_bounds = array<i64: 1, 4, 8, 8, 3>}]} {
    %c0 = arith.constant 0 : index
    %c0_0 = arith.constant 0 : index
    %c0_1 = arith.constant 0 : index
    %c0_2 = arith.constant 0 : index
    %0 = vector.load %arg1[%c0, %c0_0, %c0_1, %c0_2] : memref<1x8x8x32xf32, #tpu.memory_space<vmem>>, vector<1x8x8x32xf32>
    %1 = vector.shape_cast %0 : vector<1x8x8x32xf32> to vector<8x8x32xf32>
    %c0_3 = arith.constant 0 : index
    %c0_4 = arith.constant 0 : index
    %2 = vector.load %arg3[%c0_3, %c0_4] : memref<1x32xf32, #tpu.memory_space<vmem>>, vector<1x32xf32>
    %3 = vector.shape_cast %2 : vector<1x32xf32> to vector<32xf32>
    %4 = vector.shape_cast %3 : vector<32xf32> to vector<1x1x32xf32>
    %5 = vector.broadcast %4 : vector<1x1x32xf32> to vector<8x8x32xf32>
    %6 = arith.mulf %1, %5 : vector<8x8x32xf32>
    %c0_5 = arith.constant 0 : index
    %c0_6 = arith.constant 0 : index
    %7 = vector.load %arg4[%c0_5, %c0_6] : memref<1x32xf32, #tpu.memory_space<vmem>>, vector<1x32xf32>
    %8 = vector.shape_cast %7 : vector<1x32xf32> to vector<32xf32>
    %9 = vector.shape_cast %8 : vector<32xf32> to vector<1x1x32xf32>
    %10 = vector.broadcast %9 : vector<1x1x32xf32> to vector<8x8x32xf32>
    %11 = arith.addf %6, %10 : vector<8x8x32xf32>
    %c0_7 = arith.constant 0 : index
    %c0_8 = arith.constant 0 : index
    %c0_9 = arith.constant 0 : index
    %c0_10 = arith.constant 0 : index
    %12 = vector.load %arg2[%c0_7, %c0_8, %c0_9, %c0_10] : memref<1x8x8x32xf32, #tpu.memory_space<vmem>>, vector<1x8x8x32xf32>
    %13 = vector.shape_cast %12 : vector<1x8x8x32xf32> to vector<8x8x32xf32>
    %14 = arith.addf %11, %13 : vector<8x8x32xf32>
    %cst = arith.constant 0.000000e+00 : f32
    %15 = vector.broadcast %cst : f32 to vector<10x10x32xf32>
    %c0_11 = arith.constant 0 : index
    %c0_12 = arith.constant 0 : index
    %c0_13 = arith.constant 0 : index
    %16 = vector.load %arg11[%c0_11, %c0_12, %c0_13] : memref<10x10x32xf32, #tpu.memory_space<vmem>>, vector<10x10x32xf32>
    tpu.vector_store %arg11[%c0_11, %c0_12, %c0_13], %15 {strides = array<i32>} : memref<10x10x32xf32, #tpu.memory_space<vmem>>, vector<10x10x32xf32>,
    %c1 = arith.constant 1 : index
    %c1_14 = arith.constant 1 : index
    %c0_15 = arith.constant 0 : index
    %17 = vector.load %arg11[%c1, %c1_14, %c0_15] : memref<10x10x32xf32, #tpu.memory_space<vmem>>, vector<8x8x32xf32>
    tpu.vector_store %arg11[%c1, %c1_14, %c0_15], %14 {strides = array<i32>} : memref<10x10x32xf32, #tpu.memory_space<vmem>>, vector<8x8x32xf32>,
    %c0_16 = arith.constant 0 : index
    %c0_17 = arith.constant 0 : index
    %c0_18 = arith.constant 0 : index
    %18 = vector.load %arg11[%c0_16, %c0_17, %c0_18] : memref<10x10x32xf32, #tpu.memory_space<vmem>>, vector<8x8x32xf32>
    %19 = vector.shape_cast %18 : vector<8x8x32xf32> to vector<64x32xf32>
    %c0_19 = arith.constant 0 : index
    %c1_20 = arith.constant 1 : index
    %c0_21 = arith.constant 0 : index
    %20 = vector.load %arg11[%c0_19, %c1_20, %c0_21] : memref<10x10x32xf32, #tpu.memory_space<vmem>>, vector<8x8x32xf32>
    %21 = vector.shape_cast %20 : vector<8x8x32xf32> to vector<64x32xf32>
    %c0_22 = arith.constant 0 : index
    %c2 = arith.constant 2 : index
    %c0_23 = arith.constant 0 : index
    %22 = vector.load %arg11[%c0_22, %c2, %c0_23] : memref<10x10x32xf32, #tpu.memory_space<vmem>>, vector<8x8x32xf32>
    %23 = vector.shape_cast %22 : vector<8x8x32xf32> to vector<64x32xf32>
    %c1_24 = arith.constant 1 : index
    %c0_25 = arith.constant 0 : index
    %c0_26 = arith.constant 0 : index
    %24 = vector.load %arg11[%c1_24, %c0_25, %c0_26] : memref<10x10x32xf32, #tpu.memory_space<vmem>>, vector<8x8x32xf32>
    %25 = vector.shape_cast %24 : vector<8x8x32xf32> to vector<64x32xf32>
    %c1_27 = arith.constant 1 : index
    %c1_28 = arith.constant 1 : index
    %c0_29 = arith.constant 0 : index
    %26 = vector.load %arg11[%c1_27, %c1_28, %c0_29] : memref<10x10x32xf32, #tpu.memory_space<vmem>>, vector<8x8x32xf32>
    %27 = vector.shape_cast %26 : vector<8x8x32xf32> to vector<64x32xf32>
    %c1_30 = arith.constant 1 : index
    %c2_31 = arith.constant 2 : index
    %c0_32 = arith.constant 0 : index
    %28 = vector.load %arg11[%c1_30, %c2_31, %c0_32] : memref<10x10x32xf32, #tpu.memory_space<vmem>>, vector<8x8x32xf32>
    %29 = vector.shape_cast %28 : vector<8x8x32xf32> to vector<64x32xf32>
    %c2_33 = arith.constant 2 : index
    %c0_34 = arith.constant 0 : index
    %c0_35 = arith.constant 0 : index
    %30 = vector.load %arg11[%c2_33, %c0_34, %c0_35] : memref<10x10x32xf32, #tpu.memory_space<vmem>>, vector<8x8x32xf32>
    %31 = vector.shape_cast %30 : vector<8x8x32xf32> to vector<64x32xf32>
    %c2_36 = arith.constant 2 : index
    %c1_37 = arith.constant 1 : index
    %c0_38 = arith.constant 0 : index
    %32 = vector.load %arg11[%c2_36, %c1_37, %c0_38] : memref<10x10x32xf32, #tpu.memory_space<vmem>>, vector<8x8x32xf32>
    %33 = vector.shape_cast %32 : vector<8x8x32xf32> to vector<64x32xf32>
    %c2_39 = arith.constant 2 : index
    %c2_40 = arith.constant 2 : index
    %c0_41 = arith.constant 0 : index
    %34 = vector.load %arg11[%c2_39, %c2_40, %c0_41] : memref<10x10x32xf32, #tpu.memory_space<vmem>>, vector<8x8x32xf32>
    %35 = vector.shape_cast %34 : vector<8x8x32xf32> to vector<64x32xf32>
    %36 = tpu.concatenate %19, %21, %23, %25, %27, %29, %31, %33, %35 in 1 : vector<64x32xf32>, vector<64x32xf32>, vector<64x32xf32>, vector<64x32xf32>, vector<64x32xf32>, vector<64x32xf32>, vector<64x32xf32>, vector<64x32xf32>, vector<64x32xf32> -> vector<64x288xf32>
    %37 = arith.truncf %36 : vector<64x288xf32> to vector<64x288xbf16>
    %c0_42 = arith.constant 0 : index
    %c0_43 = arith.constant 0 : index
    %38 = vector.load %arg5[%c0_42, %c0_43] : memref<288x128xbf16, #tpu.memory_space<vmem>>, vector<288x128xbf16>
    %cst_44 = arith.constant dense<0.000000e+00> : vector<64x128xf32>
    %39 = tpu.matmul %37, %38, %cst_44 {dimension_numbers = #tpu.dot_dimension_numbers<[1], [0], [0], [1], [0, 0, 1, 1], [], []>} : vector<64x288xbf16>, vector<288x128xbf16>, vector<64x128xf32> -> vector<64x128xf32>
    %c0_45 = arith.constant 0 : index
    %c0_46 = arith.constant 0 : index
    %40 = vector.load %arg6[%c0_45, %c0_46] : memref<1x128xf32, #tpu.memory_space<vmem>>, vector<1x128xf32>
    %41 = vector.shape_cast %40 : vector<1x128xf32> to vector<128xf32>
    %42 = vector.shape_cast %41 : vector<128xf32> to vector<1x128xf32>
    %43 = vector.broadcast %42 : vector<1x128xf32> to vector<64x128xf32>
    %44 = arith.addf %39, %43 : vector<64x128xf32>
    %c0_47 = arith.constant 0 : index
    %45 = memref.load %arg9[%c0_47] : memref<1xf32, #tpu.memory_space<smem>>
    %cst_48 = arith.constant 0.000000e+00 : f32
    %46 = vector.broadcast %cst_48 : f32 to vector<64x128xf32>
    %47 = arith.cmpf oge, %44, %46 : vector<64x128xf32>
    %48 = vector.broadcast %45 : f32 to vector<64x128xf32>
    %49 = arith.mulf %48, %44 : vector<64x128xf32>
    %50 = arith.select %47, %44, %49 : vector<64x128xi1>, vector<64x128xf32>
    %51 = vector.shape_cast %50 : vector<64x128xf32> to vector<8x8x128xf32>
    %cst_49 = arith.constant 0.000000e+00 : f32
    %52 = vector.broadcast %cst_49 : f32 to vector<4x10x10x32xf32>
    %c0_50 = arith.constant 0 : index
    %c0_51 = arith.constant 0 : index
    %c0_52 = arith.constant 0 : index
    %c0_53 = arith.constant 0 : index
    %53 = vector.load %arg12[%c0_50, %c0_51, %c0_52, %c0_53] : memref<4x10x10x32xf32, #tpu.memory_space<vmem>>, vector<4x10x10x32xf32>
    tpu.vector_store %arg12[%c0_50, %c0_51, %c0_52, %c0_53], %52 {strides = array<i32>} : memref<4x10x10x32xf32, #tpu.memory_space<vmem>>, vector<4x10x10x32xf32>,
    %54 = vector.extract_strided_slice %51 {offsets = [0, 0, 0], sizes = [8, 8, 32], strides = [1, 1, 1]} : vector<8x8x128xf32> to vector<8x8x32xf32>
    %c0_54 = arith.constant 0 : index
    %c1_55 = arith.constant 1 : index
    %c1_56 = arith.constant 1 : index
    %c0_57 = arith.constant 0 : index
    %55 = vector.load %arg12[%c0_54, %c1_55, %c1_56, %c0_57] : memref<4x10x10x32xf32, #tpu.memory_space<vmem>>, vector<1x8x8x32xf32>
    %56 = vector.shape_cast %55 : vector<1x8x8x32xf32> to vector<8x8x32xf32>
    %57 = vector.shape_cast %54 : vector<8x8x32xf32> to vector<1x8x8x32xf32>
    tpu.vector_store %arg12[%c0_54, %c1_55, %c1_56, %c0_57], %57 {strides = array<i32>} : memref<4x10x10x32xf32, #tpu.memory_space<vmem>>, vector<1x8x8x32xf32>,
    %58 = vector.extract_strided_slice %51 {offsets = [0, 0, 32], sizes = [8, 8, 32], strides = [1, 1, 1]} : vector<8x8x128xf32> to vector<8x8x32xf32>
    %c1_58 = arith.constant 1 : index
    %c1_59 = arith.constant 1 : index
    %c1_60 = arith.constant 1 : index
    %c0_61 = arith.constant 0 : index
    %59 = vector.load %arg12[%c1_58, %c1_59, %c1_60, %c0_61] : memref<4x10x10x32xf32, #tpu.memory_space<vmem>>, vector<1x8x8x32xf32>
    %60 = vector.shape_cast %59 : vector<1x8x8x32xf32> to vector<8x8x32xf32>
    %61 = vector.shape_cast %58 : vector<8x8x32xf32> to vector<1x8x8x32xf32>
    tpu.vector_store %arg12[%c1_58, %c1_59, %c1_60, %c0_61], %61 {strides = array<i32>} : memref<4x10x10x32xf32, #tpu.memory_space<vmem>>, vector<1x8x8x32xf32>,
    %62 = vector.extract_strided_slice %51 {offsets = [0, 0, 64], sizes = [8, 8, 32], strides = [1, 1, 1]} : vector<8x8x128xf32> to vector<8x8x32xf32>
    %c2_62 = arith.constant 2 : index
    %c1_63 = arith.constant 1 : index
    %c1_64 = arith.constant 1 : index
    %c0_65 = arith.constant 0 : index
    %63 = vector.load %arg12[%c2_62, %c1_63, %c1_64, %c0_65] : memref<4x10x10x32xf32, #tpu.memory_space<vmem>>, vector<1x8x8x32xf32>
    %64 = vector.shape_cast %63 : vector<1x8x8x32xf32> to vector<8x8x32xf32>
    %65 = vector.shape_cast %62 : vector<8x8x32xf32> to vector<1x8x8x32xf32>
    tpu.vector_store %arg12[%c2_62, %c1_63, %c1_64, %c0_65], %65 {strides = array<i32>} : memref<4x10x10x32xf32, #tpu.memory_space<vmem>>, vector<1x8x8x32xf32>,
    %66 = vector.extract_strided_slice %51 {offsets = [0, 0, 96], sizes = [8, 8, 32], strides = [1, 1, 1]} : vector<8x8x128xf32> to vector<8x8x32xf32>
    %c3 = arith.constant 3 : index
    %c1_66 = arith.constant 1 : index
    %c1_67 = arith.constant 1 : index
    %c0_68 = arith.constant 0 : index
    %67 = vector.load %arg12[%c3, %c1_66, %c1_67, %c0_68] : memref<4x10x10x32xf32, #tpu.memory_space<vmem>>, vector<1x8x8x32xf32>
    %68 = vector.shape_cast %67 : vector<1x8x8x32xf32> to vector<8x8x32xf32>
    %69 = vector.shape_cast %66 : vector<8x8x32xf32> to vector<1x8x8x32xf32>
    tpu.vector_store %arg12[%c3, %c1_66, %c1_67, %c0_68], %69 {strides = array<i32>} : memref<4x10x10x32xf32, #tpu.memory_space<vmem>>, vector<1x8x8x32xf32>,
    %c3_69 = arith.constant 3 : index
    %c0_70 = arith.constant 0 : index
    %c0_71 = arith.constant 0 : index
    %c0_72 = arith.constant 0 : index
    %70 = vector.load %arg12[%c3_69, %c0_70, %c0_71, %c0_72] : memref<4x10x10x32xf32, #tpu.memory_space<vmem>>, vector<1x8x8x32xf32>
    %71 = vector.shape_cast %70 : vector<1x8x8x32xf32> to vector<8x8x32xf32>
    %72 = vector.shape_cast %71 : vector<8x8x32xf32> to vector<64x32xf32>
    %c2_73 = arith.constant 2 : index
    %c0_74 = arith.constant 0 : index
    %c1_75 = arith.constant 1 : index
    %c0_76 = arith.constant 0 : index
    %73 = vector.load %arg12[%c2_73, %c0_74, %c1_75, %c0_76] : memref<4x10x10x32xf32, #tpu.memory_space<vmem>>, vector<1x8x8x32xf32>
    %74 = vector.shape_cast %73 : vector<1x8x8x32xf32> to vector<8x8x32xf32>
    %75 = vector.shape_cast %74 : vector<8x8x32xf32> to vector<64x32xf32>
    %c3_77 = arith.constant 3 : index
    %c0_78 = arith.constant 0 : index
    %c1_79 = arith.constant 1 : index
    %c0_80 = arith.constant 0 : index
    %76 = vector.load %arg12[%c3_77, %c0_78, %c1_79, %c0_80] : memref<4x10x10x32xf32, #tpu.memory_space<vmem>>, vector<1x8x8x32xf32>
    %77 = vector.shape_cast %76 : vector<1x8x8x32xf32> to vector<8x8x32xf32>
    %78 = vector.shape_cast %77 : vector<8x8x32xf32> to vector<64x32xf32>
    %c1_81 = arith.constant 1 : index
    %c1_82 = arith.constant 1 : index
    %c0_83 = arith.constant 0 : index
    %c0_84 = arith.constant 0 : index
    %79 = vector.load %arg12[%c1_81, %c1_82, %c0_83, %c0_84] : memref<4x10x10x32xf32, #tpu.memory_space<vmem>>, vector<1x8x8x32xf32>
    %80 = vector.shape_cast %79 : vector<1x8x8x32xf32> to vector<8x8x32xf32>
    %81 = vector.shape_cast %80 : vector<8x8x32xf32> to vector<64x32xf32>
    %c0_85 = arith.constant 0 : index
    %c1_86 = arith.constant 1 : index
    %c1_87 = arith.constant 1 : index
    %c0_88 = arith.constant 0 : index
    %82 = vector.load %arg12[%c0_85, %c1_86, %c1_87, %c0_88] : memref<4x10x10x32xf32, #tpu.memory_space<vmem>>, vector<1x8x8x32xf32>
    %83 = vector.shape_cast %82 : vector<1x8x8x32xf32> to vector<8x8x32xf32>
    %84 = vector.shape_cast %83 : vector<8x8x32xf32> to vector<64x32xf32>
    %c1_89 = arith.constant 1 : index
    %c1_90 = arith.constant 1 : index
    %c1_91 = arith.constant 1 : index
    %c0_92 = arith.constant 0 : index
    %85 = vector.load %arg12[%c1_89, %c1_90, %c1_91, %c0_92] : memref<4x10x10x32xf32, #tpu.memory_space<vmem>>, vector<1x8x8x32xf32>
    %86 = vector.shape_cast %85 : vector<1x8x8x32xf32> to vector<8x8x32xf32>
    %87 = vector.shape_cast %86 : vector<8x8x32xf32> to vector<64x32xf32>
    %c3_93 = arith.constant 3 : index
    %c1_94 = arith.constant 1 : index
    %c0_95 = arith.constant 0 : index
    %c0_96 = arith.constant 0 : index
    %88 = vector.load %arg12[%c3_93, %c1_94, %c0_95, %c0_96] : memref<4x10x10x32xf32, #tpu.memory_space<vmem>>, vector<1x8x8x32xf32>
    %89 = vector.shape_cast %88 : vector<1x8x8x32xf32> to vector<8x8x32xf32>
    %90 = vector.shape_cast %89 : vector<8x8x32xf32> to vector<64x32xf32>
    %c2_97 = arith.constant 2 : index
    %c1_98 = arith.constant 1 : index
    %c1_99 = arith.constant 1 : index
    %c0_100 = arith.constant 0 : index
    %91 = vector.load %arg12[%c2_97, %c1_98, %c1_99, %c0_100] : memref<4x10x10x32xf32, #tpu.memory_space<vmem>>, vector<1x8x8x32xf32>
    %92 = vector.shape_cast %91 : vector<1x8x8x32xf32> to vector<8x8x32xf32>
    %93 = vector.shape_cast %92 : vector<8x8x32xf32> to vector<64x32xf32>
    %c3_101 = arith.constant 3 : index
    %c1_102 = arith.constant 1 : index
    %c1_103 = arith.constant 1 : index
    %c0_104 = arith.constant 0 : index
    %94 = vector.load %arg12[%c3_101, %c1_102, %c1_103, %c0_104] : memref<4x10x10x32xf32, #tpu.memory_space<vmem>>, vector<1x8x8x32xf32>
    %95 = vector.shape_cast %94 : vector<1x8x8x32xf32> to vector<8x8x32xf32>
    %96 = vector.shape_cast %95 : vector<8x8x32xf32> to vector<64x32xf32>
    %97 = tpu.concatenate %72, %75, %78, %81, %84, %87, %90, %93, %96 in 1 : vector<64x32xf32>, vector<64x32xf32>, vector<64x32xf32>, vector<64x32xf32>, vector<64x32xf32>, vector<64x32xf32>, vector<64x32xf32>, vector<64x32xf32>, vector<64x32xf32> -> vector<64x288xf32>
    %98 = arith.truncf %97 : vector<64x288xf32> to vector<64x288xbf16>
    %c0_105 = arith.constant 0 : index
    %c0_106 = arith.constant 0 : index
    %99 = vector.load %arg7[%c0_105, %c0_106] : memref<288x3xbf16, #tpu.memory_space<vmem>>, vector<288x3xbf16>
    %cst_107 = arith.constant dense<0.000000e+00> : vector<64x3xf32>
    %100 = tpu.matmul %98, %99, %cst_107 {dimension_numbers = #tpu.dot_dimension_numbers<[1], [0], [0], [1], [0, 0, 1, 1], [], []>} : vector<64x288xbf16>, vector<288x3xbf16>, vector<64x3xf32> -> vector<64x3xf32>
    %c0_108 = arith.constant 0 : index
    %c0_109 = arith.constant 0 : index
    %101 = vector.load %arg8[%c0_108, %c0_109] : memref<1x3xf32, #tpu.memory_space<vmem>>, vector<1x3xf32>
    %102 = vector.shape_cast %101 : vector<1x3xf32> to vector<3xf32>
    %103 = vector.shape_cast %102 : vector<3xf32> to vector<1x3xf32>
    %104 = vector.broadcast %103 : vector<1x3xf32> to vector<64x3xf32>
    %105 = arith.addf %100, %104 : vector<64x3xf32>
    %106 = math.tanh %105 : vector<64x3xf32>
    %107 = vector.shape_cast %106 : vector<64x3xf32> to vector<8x8x3xf32>
    %c0_110 = arith.constant 0 : index
    %c0_111 = arith.constant 0 : index
    %c0_112 = arith.constant 0 : index
    %c0_113 = arith.constant 0 : index
    %c0_114 = arith.constant 0 : index
    %108 = vector.load %arg10[%c0_110, %c0_111, %c0_112, %c0_113, %c0_114] : memref<1x4x8x8x3xf32, #tpu.memory_space<vmem>>, vector<1x1x8x8x3xf32>
    %109 = vector.shape_cast %108 : vector<1x1x8x8x3xf32> to vector<8x8x3xf32>
    %110 = vector.shape_cast %107 : vector<8x8x3xf32> to vector<1x1x8x8x3xf32>
    tpu.vector_store %arg10[%c0_110, %c0_111, %c0_112, %c0_113, %c0_114], %110 {strides = array<i32>} : memref<1x4x8x8x3xf32, #tpu.memory_space<vmem>>, vector<1x1x8x8x3xf32>,
    %c2_115 = arith.constant 2 : index
    %c0_116 = arith.constant 0 : index
    %c1_117 = arith.constant 1 : index
    %c0_118 = arith.constant 0 : index
    %111 = vector.load %arg12[%c2_115, %c0_116, %c1_117, %c0_118] : memref<4x10x10x32xf32, #tpu.memory_space<vmem>>, vector<1x8x8x32xf32>
    %112 = vector.shape_cast %111 : vector<1x8x8x32xf32> to vector<8x8x32xf32>
    %113 = vector.shape_cast %112 : vector<8x8x32xf32> to vector<64x32xf32>
    %c3_119 = arith.constant 3 : index
    %c0_120 = arith.constant 0 : index
    %c1_121 = arith.constant 1 : index
    %c0_122 = arith.constant 0 : index
    %114 = vector.load %arg12[%c3_119, %c0_120, %c1_121, %c0_122] : memref<4x10x10x32xf32, #tpu.memory_space<vmem>>, vector<1x8x8x32xf32>
    %115 = vector.shape_cast %114 : vector<1x8x8x32xf32> to vector<8x8x32xf32>
    %116 = vector.shape_cast %115 : vector<8x8x32xf32> to vector<64x32xf32>
    %c2_123 = arith.constant 2 : index
    %c0_124 = arith.constant 0 : index
    %c2_125 = arith.constant 2 : index
    %c0_126 = arith.constant 0 : index
    %117 = vector.load %arg12[%c2_123, %c0_124, %c2_125, %c0_126] : memref<4x10x10x32xf32, #tpu.memory_space<vmem>>, vector<1x8x8x32xf32>
    %118 = vector.shape_cast %117 : vector<1x8x8x32xf32> to vector<8x8x32xf32>
    %119 = vector.shape_cast %118 : vector<8x8x32xf32> to vector<64x32xf32>
    %c0_127 = arith.constant 0 : index
    %c1_128 = arith.constant 1 : index
    %c1_129 = arith.constant 1 : index
    %c0_130 = arith.constant 0 : index
    %120 = vector.load %arg12[%c0_127, %c1_128, %c1_129, %c0_130] : memref<4x10x10x32xf32, #tpu.memory_space<vmem>>, vector<1x8x8x32xf32>
    %121 = vector.shape_cast %120 : vector<1x8x8x32xf32> to vector<8x8x32xf32>
    %122 = vector.shape_cast %121 : vector<8x8x32xf32> to vector<64x32xf32>
    %c1_131 = arith.constant 1 : index
    %c1_132 = arith.constant 1 : index
    %c1_133 = arith.constant 1 : index
    %c0_134 = arith.constant 0 : index
    %123 = vector.load %arg12[%c1_131, %c1_132, %c1_133, %c0_134] : memref<4x10x10x32xf32, #tpu.memory_space<vmem>>, vector<1x8x8x32xf32>
    %124 = vector.shape_cast %123 : vector<1x8x8x32xf32> to vector<8x8x32xf32>
    %125 = vector.shape_cast %124 : vector<8x8x32xf32> to vector<64x32xf32>
    %c0_135 = arith.constant 0 : index
    %c1_136 = arith.constant 1 : index
    %c2_137 = arith.constant 2 : index
    %c0_138 = arith.constant 0 : index
    %126 = vector.load %arg12[%c0_135, %c1_136, %c2_137, %c0_138] : memref<4x10x10x32xf32, #tpu.memory_space<vmem>>, vector<1x8x8x32xf32>
    %127 = vector.shape_cast %126 : vector<1x8x8x32xf32> to vector<8x8x32xf32>
    %128 = vector.shape_cast %127 : vector<8x8x32xf32> to vector<64x32xf32>
    %c2_139 = arith.constant 2 : index
    %c1_140 = arith.constant 1 : index
    %c1_141 = arith.constant 1 : index
    %c0_142 = arith.constant 0 : index
    %129 = vector.load %arg12[%c2_139, %c1_140, %c1_141, %c0_142] : memref<4x10x10x32xf32, #tpu.memory_space<vmem>>, vector<1x8x8x32xf32>
    %130 = vector.shape_cast %129 : vector<1x8x8x32xf32> to vector<8x8x32xf32>
    %131 = vector.shape_cast %130 : vector<8x8x32xf32> to vector<64x32xf32>
    %c3_143 = arith.constant 3 : index
    %c1_144 = arith.constant 1 : index
    %c1_145 = arith.constant 1 : index
    %c0_146 = arith.constant 0 : index
    %132 = vector.load %arg12[%c3_143, %c1_144, %c1_145, %c0_146] : memref<4x10x10x32xf32, #tpu.memory_space<vmem>>, vector<1x8x8x32xf32>
    %133 = vector.shape_cast %132 : vector<1x8x8x32xf32> to vector<8x8x32xf32>
    %134 = vector.shape_cast %133 : vector<8x8x32xf32> to vector<64x32xf32>
    %c2_147 = arith.constant 2 : index
    %c1_148 = arith.constant 1 : index
    %c2_149 = arith.constant 2 : index
    %c0_150 = arith.constant 0 : index
    %135 = vector.load %arg12[%c2_147, %c1_148, %c2_149, %c0_150] : memref<4x10x10x32xf32, #tpu.memory_space<vmem>>, vector<1x8x8x32xf32>
    %136 = vector.shape_cast %135 : vector<1x8x8x32xf32> to vector<8x8x32xf32>
    %137 = vector.shape_cast %136 : vector<8x8x32xf32> to vector<64x32xf32>
    %138 = tpu.concatenate %113, %116, %119, %122, %125, %128, %131, %134, %137 in 1 : vector<64x32xf32>, vector<64x32xf32>, vector<64x32xf32>, vector<64x32xf32>, vector<64x32xf32>, vector<64x32xf32>, vector<64x32xf32>, vector<64x32xf32>, vector<64x32xf32> -> vector<64x288xf32>
    %139 = arith.truncf %138 : vector<64x288xf32> to vector<64x288xbf16>
    %c0_151 = arith.constant 0 : index
    %c0_152 = arith.constant 0 : index
    %140 = vector.load %arg7[%c0_151, %c0_152] : memref<288x3xbf16, #tpu.memory_space<vmem>>, vector<288x3xbf16>
    %cst_153 = arith.constant dense<0.000000e+00> : vector<64x3xf32>
    %141 = tpu.matmul %139, %140, %cst_153 {dimension_numbers = #tpu.dot_dimension_numbers<[1], [0], [0], [1], [0, 0, 1, 1], [], []>} : vector<64x288xbf16>, vector<288x3xbf16>, vector<64x3xf32> -> vector<64x3xf32>
    %c0_154 = arith.constant 0 : index
    %c0_155 = arith.constant 0 : index
    %142 = vector.load %arg8[%c0_154, %c0_155] : memref<1x3xf32, #tpu.memory_space<vmem>>, vector<1x3xf32>
    %143 = vector.shape_cast %142 : vector<1x3xf32> to vector<3xf32>
    %144 = vector.shape_cast %143 : vector<3xf32> to vector<1x3xf32>
    %145 = vector.broadcast %144 : vector<1x3xf32> to vector<64x3xf32>
    %146 = arith.addf %141, %145 : vector<64x3xf32>
    %147 = math.tanh %146 : vector<64x3xf32>
    %148 = vector.shape_cast %147 : vector<64x3xf32> to vector<8x8x3xf32>
    %c0_156 = arith.constant 0 : index
    %c1_157 = arith.constant 1 : index
    %c0_158 = arith.constant 0 : index
    %c0_159 = arith.constant 0 : index
    %c0_160 = arith.constant 0 : index
    %149 = vector.load %arg10[%c0_156, %c1_157, %c0_158, %c0_159, %c0_160] : memref<1x4x8x8x3xf32, #tpu.memory_space<vmem>>, vector<1x1x8x8x3xf32>
    %150 = vector.shape_cast %149 : vector<1x1x8x8x3xf32> to vector<8x8x3xf32>
    %151 = vector.shape_cast %148 : vector<8x8x3xf32> to vector<1x1x8x8x3xf32>
    tpu.vector_store %arg10[%c0_156, %c1_157, %c0_158, %c0_159, %c0_160], %151 {strides = array<i32>} : memref<1x4x8x8x3xf32, #tpu.memory_space<vmem>>, vector<1x1x8x8x3xf32>,
    %c1_161 = arith.constant 1 : index
    %c1_162 = arith.constant 1 : index
    %c0_163 = arith.constant 0 : index
    %c0_164 = arith.constant 0 : index
    %152 = vector.load %arg12[%c1_161, %c1_162, %c0_163, %c0_164] : memref<4x10x10x32xf32, #tpu.memory_space<vmem>>, vector<1x8x8x32xf32>
    %153 = vector.shape_cast %152 : vector<1x8x8x32xf32> to vector<8x8x32xf32>
    %154 = vector.shape_cast %153 : vector<8x8x32xf32> to vector<64x32xf32>
    %c0_165 = arith.constant 0 : index
    %c1_166 = arith.constant 1 : index
    %c1_167 = arith.constant 1 : index
    %c0_168 = arith.constant 0 : index
    %155 = vector.load %arg12[%c0_165, %c1_166, %c1_167, %c0_168] : memref<4x10x10x32xf32, #tpu.memory_space<vmem>>, vector<1x8x8x32xf32>
    %156 = vector.shape_cast %155 : vector<1x8x8x32xf32> to vector<8x8x32xf32>
    %157 = vector.shape_cast %156 : vector<8x8x32xf32> to vector<64x32xf32>
    %c1_169 = arith.constant 1 : index
    %c1_170 = arith.constant 1 : index
    %c1_171 = arith.constant 1 : index
    %c0_172 = arith.constant 0 : index
    %158 = vector.load %arg12[%c1_169, %c1_170, %c1_171, %c0_172] : memref<4x10x10x32xf32, #tpu.memory_space<vmem>>, vector<1x8x8x32xf32>
    %159 = vector.shape_cast %158 : vector<1x8x8x32xf32> to vector<8x8x32xf32>
    %160 = vector.shape_cast %159 : vector<8x8x32xf32> to vector<64x32xf32>
    %c3_173 = arith.constant 3 : index
    %c1_174 = arith.constant 1 : index
    %c0_175 = arith.constant 0 : index
    %c0_176 = arith.constant 0 : index
    %161 = vector.load %arg12[%c3_173, %c1_174, %c0_175, %c0_176] : memref<4x10x10x32xf32, #tpu.memory_space<vmem>>, vector<1x8x8x32xf32>
    %162 = vector.shape_cast %161 : vector<1x8x8x32xf32> to vector<8x8x32xf32>
    %163 = vector.shape_cast %162 : vector<8x8x32xf32> to vector<64x32xf32>
    %c2_177 = arith.constant 2 : index
    %c1_178 = arith.constant 1 : index
    %c1_179 = arith.constant 1 : index
    %c0_180 = arith.constant 0 : index
    %164 = vector.load %arg12[%c2_177, %c1_178, %c1_179, %c0_180] : memref<4x10x10x32xf32, #tpu.memory_space<vmem>>, vector<1x8x8x32xf32>
    %165 = vector.shape_cast %164 : vector<1x8x8x32xf32> to vector<8x8x32xf32>
    %166 = vector.shape_cast %165 : vector<8x8x32xf32> to vector<64x32xf32>
    %c3_181 = arith.constant 3 : index
    %c1_182 = arith.constant 1 : index
    %c1_183 = arith.constant 1 : index
    %c0_184 = arith.constant 0 : index
    %167 = vector.load %arg12[%c3_181, %c1_182, %c1_183, %c0_184] : memref<4x10x10x32xf32, #tpu.memory_space<vmem>>, vector<1x8x8x32xf32>
    %168 = vector.shape_cast %167 : vector<1x8x8x32xf32> to vector<8x8x32xf32>
    %169 = vector.shape_cast %168 : vector<8x8x32xf32> to vector<64x32xf32>
    %c1_185 = arith.constant 1 : index
    %c2_186 = arith.constant 2 : index
    %c0_187 = arith.constant 0 : index
    %c0_188 = arith.constant 0 : index
    %170 = vector.load %arg12[%c1_185, %c2_186, %c0_187, %c0_188] : memref<4x10x10x32xf32, #tpu.memory_space<vmem>>, vector<1x8x8x32xf32>
    %171 = vector.shape_cast %170 : vector<1x8x8x32xf32> to vector<8x8x32xf32>
    %172 = vector.shape_cast %171 : vector<8x8x32xf32> to vector<64x32xf32>
    %c0_189 = arith.constant 0 : index
    %c2_190 = arith.constant 2 : index
    %c1_191 = arith.constant 1 : index
    %c0_192 = arith.constant 0 : index
    %173 = vector.load %arg12[%c0_189, %c2_190, %c1_191, %c0_192] : memref<4x10x10x32xf32, #tpu.memory_space<vmem>>, vector<1x8x8x32xf32>
    %174 = vector.shape_cast %173 : vector<1x8x8x32xf32> to vector<8x8x32xf32>
    %175 = vector.shape_cast %174 : vector<8x8x32xf32> to vector<64x32xf32>
    %c1_193 = arith.constant 1 : index
    %c2_194 = arith.constant 2 : index
    %c1_195 = arith.constant 1 : index
    %c0_196 = arith.constant 0 : index
    %176 = vector.load %arg12[%c1_193, %c2_194, %c1_195, %c0_196] : memref<4x10x10x32xf32, #tpu.memory_space<vmem>>, vector<1x8x8x32xf32>
    %177 = vector.shape_cast %176 : vector<1x8x8x32xf32> to vector<8x8x32xf32>
    %178 = vector.shape_cast %177 : vector<8x8x32xf32> to vector<64x32xf32>
    %179 = tpu.concatenate %154, %157, %160, %163, %166, %169, %172, %175, %178 in 1 : vector<64x32xf32>, vector<64x32xf32>, vector<64x32xf32>, vector<64x32xf32>, vector<64x32xf32>, vector<64x32xf32>, vector<64x32xf32>, vector<64x32xf32>, vector<64x32xf32> -> vector<64x288xf32>
    %180 = arith.truncf %179 : vector<64x288xf32> to vector<64x288xbf16>
    %c0_197 = arith.constant 0 : index
    %c0_198 = arith.constant 0 : index
    %181 = vector.load %arg7[%c0_197, %c0_198] : memref<288x3xbf16, #tpu.memory_space<vmem>>, vector<288x3xbf16>
    %cst_199 = arith.constant dense<0.000000e+00> : vector<64x3xf32>
    %182 = tpu.matmul %180, %181, %cst_199 {dimension_numbers = #tpu.dot_dimension_numbers<[1], [0], [0], [1], [0, 0, 1, 1], [], []>} : vector<64x288xbf16>, vector<288x3xbf16>, vector<64x3xf32> -> vector<64x3xf32>
    %c0_200 = arith.constant 0 : index
    %c0_201 = arith.constant 0 : index
    %183 = vector.load %arg8[%c0_200, %c0_201] : memref<1x3xf32, #tpu.memory_space<vmem>>, vector<1x3xf32>
    %184 = vector.shape_cast %183 : vector<1x3xf32> to vector<3xf32>
    %185 = vector.shape_cast %184 : vector<3xf32> to vector<1x3xf32>
    %186 = vector.broadcast %185 : vector<1x3xf32> to vector<64x3xf32>
    %187 = arith.addf %182, %186 : vector<64x3xf32>
    %188 = math.tanh %187 : vector<64x3xf32>
    %189 = vector.shape_cast %188 : vector<64x3xf32> to vector<8x8x3xf32>
    %c0_202 = arith.constant 0 : index
    %c2_203 = arith.constant 2 : index
    %c0_204 = arith.constant 0 : index
    %c0_205 = arith.constant 0 : index
    %c0_206 = arith.constant 0 : index
    %190 = vector.load %arg10[%c0_202, %c2_203, %c0_204, %c0_205, %c0_206] : memref<1x4x8x8x3xf32, #tpu.memory_space<vmem>>, vector<1x1x8x8x3xf32>
    %191 = vector.shape_cast %190 : vector<1x1x8x8x3xf32> to vector<8x8x3xf32>
    %192 = vector.shape_cast %189 : vector<8x8x3xf32> to vector<1x1x8x8x3xf32>
    tpu.vector_store %arg10[%c0_202, %c2_203, %c0_204, %c0_205, %c0_206], %192 {strides = array<i32>} : memref<1x4x8x8x3xf32, #tpu.memory_space<vmem>>, vector<1x1x8x8x3xf32>,
    %c0_207 = arith.constant 0 : index
    %c1_208 = arith.constant 1 : index
    %c1_209 = arith.constant 1 : index
    %c0_210 = arith.constant 0 : index
    %193 = vector.load %arg12[%c0_207, %c1_208, %c1_209, %c0_210] : memref<4x10x10x32xf32, #tpu.memory_space<vmem>>, vector<1x8x8x32xf32>
    %194 = vector.shape_cast %193 : vector<1x8x8x32xf32> to vector<8x8x32xf32>
    %195 = vector.shape_cast %194 : vector<8x8x32xf32> to vector<64x32xf32>
    %c1_211 = arith.constant 1 : index
    %c1_212 = arith.constant 1 : index
    %c1_213 = arith.constant 1 : index
    %c0_214 = arith.constant 0 : index
    %196 = vector.load %arg12[%c1_211, %c1_212, %c1_213, %c0_214] : memref<4x10x10x32xf32, #tpu.memory_space<vmem>>, vector<1x8x8x32xf32>
    %197 = vector.shape_cast %196 : vector<1x8x8x32xf32> to vector<8x8x32xf32>
    %198 = vector.shape_cast %197 : vector<8x8x32xf32> to vector<64x32xf32>
    %c0_215 = arith.constant 0 : index
    %c1_216 = arith.constant 1 : index
    %c2_217 = arith.constant 2 : index
    %c0_218 = arith.constant 0 : index
    %199 = vector.load %arg12[%c0_215, %c1_216, %c2_217, %c0_218] : memref<4x10x10x32xf32, #tpu.memory_space<vmem>>, vector<1x8x8x32xf32>
    %200 = vector.shape_cast %199 : vector<1x8x8x32xf32> to vector<8x8x32xf32>
    %201 = vector.shape_cast %200 : vector<8x8x32xf32> to vector<64x32xf32>
    %c2_219 = arith.constant 2 : index
    %c1_220 = arith.constant 1 : index
    %c1_221 = arith.constant 1 : index
    %c0_222 = arith.constant 0 : index
    %202 = vector.load %arg12[%c2_219, %c1_220, %c1_221, %c0_222] : memref<4x10x10x32xf32, #tpu.memory_space<vmem>>, vector<1x8x8x32xf32>
    %203 = vector.shape_cast %202 : vector<1x8x8x32xf32> to vector<8x8x32xf32>
    %204 = vector.shape_cast %203 : vector<8x8x32xf32> to vector<64x32xf32>
    %c3_223 = arith.constant 3 : index
    %c1_224 = arith.constant 1 : index
    %c1_225 = arith.constant 1 : index
    %c0_226 = arith.constant 0 : index
    %205 = vector.load %arg12[%c3_223, %c1_224, %c1_225, %c0_226] : memref<4x10x10x32xf32, #tpu.memory_space<vmem>>, vector<1x8x8x32xf32>
    %206 = vector.shape_cast %205 : vector<1x8x8x32xf32> to vector<8x8x32xf32>
    %207 = vector.shape_cast %206 : vector<8x8x32xf32> to vector<64x32xf32>
    %c2_227 = arith.constant 2 : index
    %c1_228 = arith.constant 1 : index
    %c2_229 = arith.constant 2 : index
    %c0_230 = arith.constant 0 : index
    %208 = vector.load %arg12[%c2_227, %c1_228, %c2_229, %c0_230] : memref<4x10x10x32xf32, #tpu.memory_space<vmem>>, vector<1x8x8x32xf32>
    %209 = vector.shape_cast %208 : vector<1x8x8x32xf32> to vector<8x8x32xf32>
    %210 = vector.shape_cast %209 : vector<8x8x32xf32> to vector<64x32xf32>
    %c0_231 = arith.constant 0 : index
    %c2_232 = arith.constant 2 : index
    %c1_233 = arith.constant 1 : index
    %c0_234 = arith.constant 0 : index
    %211 = vector.load %arg12[%c0_231, %c2_232, %c1_233, %c0_234] : memref<4x10x10x32xf32, #tpu.memory_space<vmem>>, vector<1x8x8x32xf32>
    %212 = vector.shape_cast %211 : vector<1x8x8x32xf32> to vector<8x8x32xf32>
    %213 = vector.shape_cast %212 : vector<8x8x32xf32> to vector<64x32xf32>
    %c1_235 = arith.constant 1 : index
    %c2_236 = arith.constant 2 : index
    %c1_237 = arith.constant 1 : index
    %c0_238 = arith.constant 0 : index
    %214 = vector.load %arg12[%c1_235, %c2_236, %c1_237, %c0_238] : memref<4x10x10x32xf32, #tpu.memory_space<vmem>>, vector<1x8x8x32xf32>
    %215 = vector.shape_cast %214 : vector<1x8x8x32xf32> to vector<8x8x32xf32>
    %216 = vector.shape_cast %215 : vector<8x8x32xf32> to vector<64x32xf32>
    %c0_239 = arith.constant 0 : index
    %c2_240 = arith.constant 2 : index
    %c2_241 = arith.constant 2 : index
    %c0_242 = arith.constant 0 : index
    %217 = vector.load %arg12[%c0_239, %c2_240, %c2_241, %c0_242] : memref<4x10x10x32xf32, #tpu.memory_space<vmem>>, vector<1x8x8x32xf32>
    %218 = vector.shape_cast %217 : vector<1x8x8x32xf32> to vector<8x8x32xf32>
    %219 = vector.shape_cast %218 : vector<8x8x32xf32> to vector<64x32xf32>
    %220 = tpu.concatenate %195, %198, %201, %204, %207, %210, %213, %216, %219 in 1 : vector<64x32xf32>, vector<64x32xf32>, vector<64x32xf32>, vector<64x32xf32>, vector<64x32xf32>, vector<64x32xf32>, vector<64x32xf32>, vector<64x32xf32>, vector<64x32xf32> -> vector<64x288xf32>
    %221 = arith.truncf %220 : vector<64x288xf32> to vector<64x288xbf16>
    %c0_243 = arith.constant 0 : index
    %c0_244 = arith.constant 0 : index
    %222 = vector.load %arg7[%c0_243, %c0_244] : memref<288x3xbf16, #tpu.memory_space<vmem>>, vector<288x3xbf16>
    %cst_245 = arith.constant dense<0.000000e+00> : vector<64x3xf32>
    %223 = tpu.matmul %221, %222, %cst_245 {dimension_numbers = #tpu.dot_dimension_numbers<[1], [0], [0], [1], [0, 0, 1, 1], [], []>} : vector<64x288xbf16>, vector<288x3xbf16>, vector<64x3xf32> -> vector<64x3xf32>
    %c0_246 = arith.constant 0 : index
    %c0_247 = arith.constant 0 : index
    %224 = vector.load %arg8[%c0_246, %c0_247] : memref<1x3xf32, #tpu.memory_space<vmem>>, vector<1x3xf32>
    %225 = vector.shape_cast %224 : vector<1x3xf32> to vector<3xf32>
    %226 = vector.shape_cast %225 : vector<3xf32> to vector<1x3xf32>
    %227 = vector.broadcast %226 : vector<1x3xf32> to vector<64x3xf32>
    %228 = arith.addf %223, %227 : vector<64x3xf32>
    %229 = math.tanh %228 : vector<64x3xf32>
    %230 = vector.shape_cast %229 : vector<64x3xf32> to vector<8x8x3xf32>
    %c0_248 = arith.constant 0 : index
    %c3_249 = arith.constant 3 : index
    %c0_250 = arith.constant 0 : index
    %c0_251 = arith.constant 0 : index
    %c0_252 = arith.constant 0 : index
    %231 = vector.load %arg10[%c0_248, %c3_249, %c0_250, %c0_251, %c0_252] : memref<1x4x8x8x3xf32, #tpu.memory_space<vmem>>, vector<1x1x8x8x3xf32>
    %232 = vector.shape_cast %231 : vector<1x1x8x8x3xf32> to vector<8x8x3xf32>
    %233 = vector.shape_cast %230 : vector<8x8x3xf32> to vector<1x1x8x8x3xf32>
    tpu.vector_store %arg10[%c0_248, %c3_249, %c0_250, %c0_251, %c0_252], %233 {strides = array<i32>} : memref<1x4x8x8x3xf32, #tpu.memory_space<vmem>>, vector<1x1x8x8x3xf32>,
    return
  }
  func.func @transform_0(%arg0: i32) -> (i32, i32, i32, i32) {
    %c0_i32 = arith.constant 0 : i32
    %c0_i32_0 = arith.constant 0 : i32
    %c0_i32_1 = arith.constant 0 : i32
    %c0_i32_2 = arith.constant 0 : i32
    return %arg0, %c0_i32, %c0_i32_0, %c0_i32_1 : i32, i32, i32, i32
  }
  func.func @transform_1(%arg0: i32) -> (i32, i32, i32, i32) {
    %c0_i32 = arith.constant 0 : i32
    %c0_i32_0 = arith.constant 0 : i32
    %c0_i32_1 = arith.constant 0 : i32
    %c0_i32_2 = arith.constant 0 : i32
    return %arg0, %c0_i32, %c0_i32_0, %c0_i32_1 : i32, i32, i32, i32
  }
  func.func @transform_2(%arg0: i32) -> (i32, i32) {
    %c0_i32 = arith.constant 0 : i32
    %c0_i32_0 = arith.constant 0 : i32
    %c0_i32_1 = arith.constant 0 : i32
    return %c0_i32, %c0_i32_0 : i32, i32
  }
  func.func @transform_3(%arg0: i32) -> (i32, i32) {
    %c0_i32 = arith.constant 0 : i32
    %c0_i32_0 = arith.constant 0 : i32
    %c0_i32_1 = arith.constant 0 : i32
    return %c0_i32, %c0_i32_0 : i32, i32
  }
  func.func @transform_4(%arg0: i32) -> (i32, i32) {
    %c0_i32 = arith.constant 0 : i32
    %c0_i32_0 = arith.constant 0 : i32
    %c0_i32_1 = arith.constant 0 : i32
    return %c0_i32, %c0_i32_0 : i32, i32
  }
  func.func @transform_5(%arg0: i32) -> (i32, i32) {
    %c0_i32 = arith.constant 0 : i32
    %c0_i32_0 = arith.constant 0 : i32
    %c0_i32_1 = arith.constant 0 : i32
    return %c0_i32, %c0_i32_0 : i32, i32
  }
  func.func @transform_6(%arg0: i32) -> (i32, i32) {
    %c0_i32 = arith.constant 0 : i32
    %c0_i32_0 = arith.constant 0 : i32
    %c0_i32_1 = arith.constant 0 : i32
    return %c0_i32, %c0_i32_0 : i32, i32
  }
  func.func @transform_7(%arg0: i32) -> (i32, i32) {
    %c0_i32 = arith.constant 0 : i32
    %c0_i32_0 = arith.constant 0 : i32
    %c0_i32_1 = arith.constant 0 : i32
    return %c0_i32, %c0_i32_0 : i32, i32
  }
  func.func @transform_8(%arg0: i32) -> i32 {
    %c0_i32 = arith.constant 0 : i32
    %c0_i32_0 = arith.constant 0 : i32
    return %c0_i32 : i32
  }
  func.func @transform_9(%arg0: i32) -> (i32, i32, i32, i32, i32) {
    %c0_i32 = arith.constant 0 : i32
    %c0_i32_0 = arith.constant 0 : i32
    %c0_i32_1 = arith.constant 0 : i32
    %c0_i32_2 = arith.constant 0 : i32
    %c0_i32_3 = arith.constant 0 : i32
    return %arg0, %c0_i32, %c0_i32_0, %c0_i32_1, %c0_i32_2 : i32, i32, i32, i32, i32
  }
}

</mosaic_0001>

<llo_original>
// kernel: mynet_forward.3
$region0: #{mynet_forward.3}
  #allocation0 [shape = 'u32[]', space=smem, size = 0x4, offset = 0x4, fixed_abs, tag = 'smem constant byte address 0x4 - core index']
  #allocation1 [shape = 'u32[144,128]{1,0:T(1,128)}', space=vmem, size = 0x12000, scoped, tag = 'internal scratch']
  #allocation2 [shape = 'f32[10,10,3]{2,1,0:T(8,128)}', space=vmem, size = 0x14000, scoped, tag = 'scratch operand']
  %s0 = inlined_call_operand.vmem [shape: f32[2,8,8,3], index: 0, kind: input, shape index: {}]
  %s1 = inlined_call_operand.vmem [shape: bf16[27,32], index: 1, kind: input, shape index: {}]
  %s2 = inlined_call_operand.vmem [shape: f32[1,32], index: 2, kind: input, shape index: {}]
  %s3 = inlined_call_operand.vmem [shape: bf16[32,32], index: 3, kind: input, shape index: {}]
  %s4 = inlined_call_operand.vmem [shape: f32[1,32], index: 4, kind: input, shape index: {}]
  %s5 = inlined_call_operand.vmem [shape: f32[2], index: 5, kind: input, shape index: {}]
  %s6 = inlined_call_operand.vmem [shape: f32[2,8,8,32], index: 6, kind: output, shape index: {0}]
  %s7 = inlined_call_operand.vmem [shape: f32[2,8,8,32], index: 7, kind: output, shape index: {1}]
  %8 = xla_tuple %s6, %s7
  %s9 = sld [smem:[#allocation0]]
  $region69: #{mynet_forward.3} parent=0
    _
  %s11 = ssub.s32 1, %s9
  %s12 = scalar_select 0, %s11, %s9
  $region1: #{mynet_forward.3} parent=0
    #allocation3 [shape = 'u8[512]{0}', space=smem, size = 0x200, scoped, tag = 'input window, operand 5, single buffered']
    #allocation4 [shape = 's32[2]{0}', space=sflag, size = 0x8, scoped, tag = 'scoped memory for mynet_forward.3']
    %13 = vsyncpa [#allocation4], 0
    loop: start=0, step=1, limit=4
    $region2: #{mynet_forward.3} parent=1 // loop_pre_header
      _
    $region3: #{mynet_forward.3} parent=1 // loop_header
      %s15 = sphi 0, %s19
      %p16 = scmp.ge.s32.totalorder %s15, 4
      %s25 = sphi 0, %s27
      %s28 = sphi 0, %s25
      %s29 = sphi 0, %s28
      %s45 = sphi 0, %s29
      %s49 = sphi 0, %s49
      %s51 = sphi 0, %s49
      %s52 = sphi 0, %s51
      %s66 = sphi 0, %s52
      %s70 = sphi 0, %s70
      %s72 = sphi 0, %s70
      %s73 = sphi 0, %s72
      %s87 = sphi 0, %s73
      %s91 = sphi 0, %s91
      %s93 = sphi 0, %s91
      %s94 = sphi 0, %s93
      %s108 = sphi 0, %s94
      %s112 = sphi 0, %s112
      %s114 = sphi 0, %s112
      %s115 = sphi 0, %s114
      %s129 = sphi 0, %s115
      %s133 = sphi 0, %s133
      %s135 = sphi 0, %s133
      %s136 = sphi 0, %s135
      %s150 = sphi 0, %s136
      %s156 = sphi 0, %s158
      %s159 = sphi 0, %s156
      %s160 = sphi 0, %s159
      %s176 = sphi 0, %s160
      %s182 = sphi 0, %s184
      %s185 = sphi 0, %s182
      %s186 = sphi 0, %s185
      %s202 = sphi 0, %s186
    $region4: #{mynet_forward.3} parent=1 // loop_header_branch
      %18 = sbr.rel (%p16) target = $region8
    $region5: #{mynet_forward.3} parent=1 // loop_body
      %s20 = ssub.s32 %s15, 1
      %s21 = ssub.s32 %s15, 2
      %s22 = sadd.s32 %s15, 1
      %s23 = ssub.s32 %s15, %s22
      %p24 = scmp.eq.s32.totalorder %s23, 0
      %s26 = sadd.s32 %s25, 1
      %s27 = scalar_select %p24, %s25, %s26
      %p30 = pneg %p24
      %p31 = scmp.eq.s32.totalorder %s15, 1
      %p32 = por %p30, %p31
      %p33 = scmp.ne.s32.totalorder %s25, %s28
      %p34 = scmp.eq.s32.totalorder %s15, 0
      %p35 = por %p33, %p34
      %p36 = scmp.ne.s32.totalorder %s25, %s28
      %p37 = scmp.eq.s32.totalorder %s20, 1
      %p38 = por %p36, %p37
      %p39 = scmp.ne.s32.totalorder %s28, %s29
      %p40 = scmp.eq.s32.totalorder %s20, 0
      %p41 = por %p39, %p40
      %p42 = scmp.ne.s32.totalorder %s28, %s29
      %p43 = scmp.eq.s32.totalorder %s21, 1
      %p44 = por %p42, %p43
      %p46 = scmp.ne.s32.totalorder %s29, %s45
      %p47 = scmp.eq.s32.totalorder %s21, 0
      %p48 = por %p46, %p47
      %s50 = sadd.s32 %s49, 1
      %p53 = scmp.eq.s32.totalorder %s15, 1
      %p54 = scmp.ne.s32.totalorder %s49, %s51
      %p55 = scmp.eq.s32.totalorder %s15, 0
      %p56 = por %p54, %p55
      %p57 = scmp.ne.s32.totalorder %s49, %s51
      %p58 = scmp.eq.s32.totalorder %s20, 1
      %p59 = por %p57, %p58
      %p60 = scmp.ne.s32.totalorder %s51, %s52
      %p61 = scmp.eq.s32.totalorder %s20, 0
      %p62 = por %p60, %p61
      %p63 = scmp.ne.s32.totalorder %s51, %s52
      %p64 = scmp.eq.s32.totalorder %s21, 1
      %p65 = por %p63, %p64
      %p67 = scmp.ne.s32.totalorder %s52, %s66
      %p68 = scmp.eq.s32.totalorder %s21, 0
      %p69 = por %p67, %p68
      %s71 = sadd.s32 %s70, 1
      %p74 = scmp.eq.s32.totalorder %s15, 1
      %p75 = scmp.ne.s32.totalorder %s70, %s72
      %p76 = scmp.eq.s32.totalorder %s15, 0
      %p77 = por %p75, %p76
      %p78 = scmp.ne.s32.totalorder %s70, %s72
      %p79 = scmp.eq.s32.totalorder %s20, 1
      %p80 = por %p78, %p79
      %p81 = scmp.ne.s32.totalorder %s72, %s73
      %p82 = scmp.eq.s32.totalorder %s20, 0
      %p83 = por %p81, %p82
      %p84 = scmp.ne.s32.totalorder %s72, %s73
      %p85 = scmp.eq.s32.totalorder %s21, 1
      %p86 = por %p84, %p85
      %p88 = scmp.ne.s32.totalorder %s73, %s87
      %p89 = scmp.eq.s32.totalorder %s21, 0
      %p90 = por %p88, %p89
      %s92 = sadd.s32 %s91, 1
      %p95 = scmp.eq.s32.totalorder %s15, 1
      %p96 = scmp.ne.s32.totalorder %s91, %s93
      %p97 = scmp.eq.s32.totalorder %s15, 0
      %p98 = por %p96, %p97
      %p99 = scmp.ne.s32.totalorder %s91, %s93
      %p100 = scmp.eq.s32.totalorder %s20, 1
      %p101 = por %p99, %p100
      %p102 = scmp.ne.s32.totalorder %s93, %s94
      %p103 = scmp.eq.s32.totalorder %s20, 0
      %p104 = por %p102, %p103
      %p105 = scmp.ne.s32.totalorder %s93, %s94
      %p106 = scmp.eq.s32.totalorder %s21, 1
      %p107 = por %p105, %p106
      %p109 = scmp.ne.s32.totalorder %s94, %s108
      %p110 = scmp.eq.s32.totalorder %s21, 0
      %p111 = por %p109, %p110
      %s113 = sadd.s32 %s112, 1
      %p116 = scmp.eq.s32.totalorder %s15, 1
      %p117 = scmp.ne.s32.totalorder %s112, %s114
      %p118 = scmp.eq.s32.totalorder %s15, 0
      %p119 = por %p117, %p118
      %p120 = scmp.ne.s32.totalorder %s112, %s114
      %p121 = scmp.eq.s32.totalorder %s20, 1
      %p122 = por %p120, %p121
      %p123 = scmp.ne.s32.totalorder %s114, %s115
      %p124 = scmp.eq.s32.totalorder %s20, 0
      %p125 = por %p123, %p124
      %p126 = scmp.ne.s32.totalorder %s114, %s115
      %p127 = scmp.eq.s32.totalorder %s21, 1
      %p128 = por %p126, %p127
      %p130 = scmp.ne.s32.totalorder %s115, %s129
      %p131 = scmp.eq.s32.totalorder %s21, 0
      %p132 = por %p130, %p131
      %s134 = sadd.s32 %s133, 1
      %p137 = scmp.eq.s32.totalorder %s15, 1
      %p138 = scmp.ne.s32.totalorder %s133, %s135
      %p139 = scmp.eq.s32.totalorder %s15, 0
      %p140 = por %p138, %p139
      %p141 = scmp.ne.s32.totalorder %s133, %s135
      %p142 = scmp.eq.s32.totalorder %s20, 1
      %p143 = por %p141, %p142
      %p144 = scmp.ne.s32.totalorder %s135, %s136
      %p145 = scmp.eq.s32.totalorder %s20, 0
      %p146 = por %p144, %p145
      %p147 = scmp.ne.s32.totalorder %s135, %s136
      %p148 = scmp.eq.s32.totalorder %s21, 1
      %p149 = por %p147, %p148
      %p151 = scmp.ne.s32.totalorder %s136, %s150
      %p152 = scmp.eq.s32.totalorder %s21, 0
      %p153 = por %p151, %p152
      %s154 = ssub.s32 %s15, %s22
      %p155 = scmp.eq.s32.totalorder %s154, 0
      %s157 = sadd.s32 %s156, 1
      %s158 = scalar_select %p155, %s156, %s157
      %p161 = pneg %p155
      %p162 = scmp.eq.s32.totalorder %s15, 1
      %p163 = por %p161, %p162
      %p164 = scmp.ne.s32.totalorder %s156, %s159
      %p165 = scmp.eq.s32.totalorder %s15, 0
      %p166 = por %p164, %p165
      %p167 = scmp.ne.s32.totalorder %s156, %s159
      %p168 = scmp.eq.s32.totalorder %s20, 1
      %p169 = por %p167, %p168
      %p170 = scmp.ne.s32.totalorder %s159, %s160
      %p171 = scmp.eq.s32.totalorder %s20, 0
      %p172 = por %p170, %p171
      %p173 = scmp.ne.s32.totalorder %s159, %s160
      %p174 = scmp.eq.s32.totalorder %s21, 1
      %p175 = por %p173, %p174
      %p177 = scmp.ne.s32.totalorder %s160, %s176
      %p178 = scmp.eq.s32.totalorder %s21, 0
      %p179 = por %p177, %p178
      %s180 = ssub.s32 %s15, %s22
      %p181 = scmp.eq.s32.totalorder %s180, 0
      %s183 = sadd.s32 %s182, 1
      %s184 = scalar_select %p181, %s182, %s183
      %p187 = pneg %p181
      %p188 = scmp.eq.s32.totalorder %s15, 1
      %p189 = por %p187, %p188
      %p190 = scmp.ne.s32.totalorder %s182, %s185
      %p191 = scmp.eq.s32.totalorder %s15, 0
      %p192 = por %p190, %p191
      %p193 = scmp.ne.s32.totalorder %s182, %s185
      %p194 = scmp.eq.s32.totalorder %s20, 1
      %p195 = por %p193, %p194
      %p196 = scmp.ne.s32.totalorder %s185, %s186
      %p197 = scmp.eq.s32.totalorder %s20, 0
      %p198 = por %p196, %p197
      %p199 = scmp.ne.s32.totalorder %s185, %s186
      %p200 = scmp.eq.s32.totalorder %s21, 1
      %p201 = por %p199, %p200
      %p203 = scmp.ne.s32.totalorder %s186, %s202
      %p204 = scmp.eq.s32.totalorder %s21, 0
      %p205 = por %p203, %p204
      %p206 = scmp.le.s32.totalorder 1, %s15
      %p207 = scmp.lt.s32.totalorder %s15, 3
      %p208 = pnand %p206, %p207
      %p209 = pneg %p208
      // Predicated region
      $region9: #{mynet_forward.3} parent=5 // pred_check
        _
      $region10: #{mynet_forward.3} parent=5 // pred_check_branch
        %211 = sbr.rel (%p208) target = $region12
      $region11: #{mynet_forward.3} parent=5 // pred_region
        %s212 = ssub.s32 %s15, 1
        // Predicated region
        $region13: #{mynet_forward.3} parent=11 // pred_check
          %p213 = pneg %p62
        $region14: #{mynet_forward.3} parent=11 // pred_check_branch
          %215 = sbr.rel (%p213) target = $region16
        $region15: #{mynet_forward.3} parent=11 // pred_region
          _
        $region16: #{mynet_forward.3} parent=11 // pred_fallthru
          _
        // Predicated region
        $region17: #{mynet_forward.3} parent=11 // pred_check
          %p216 = pneg %p83
        $region18: #{mynet_forward.3} parent=11 // pred_check_branch
          %218 = sbr.rel (%p216) target = $region20
        $region19: #{mynet_forward.3} parent=11 // pred_region
          _
        $region20: #{mynet_forward.3} parent=11 // pred_fallthru
          _
        // Predicated region
        $region21: #{mynet_forward.3} parent=11 // pred_check
          %p219 = pneg %p104
        $region22: #{mynet_forward.3} parent=11 // pred_check_branch
          %221 = sbr.rel (%p219) target = $region24
        $region23: #{mynet_forward.3} parent=11 // pred_region
          _
        $region24: #{mynet_forward.3} parent=11 // pred_fallthru
          _
        // Predicated region
        $region25: #{mynet_forward.3} parent=11 // pred_check
          %p222 = pneg %p125
        $region26: #{mynet_forward.3} parent=11 // pred_check_branch
          %224 = sbr.rel (%p222) target = $region28
        $region27: #{mynet_forward.3} parent=11 // pred_region
          _
        $region28: #{mynet_forward.3} parent=11 // pred_fallthru
          _
        // Predicated region
        $region29: #{mynet_forward.3} parent=11 // pred_check
          %p225 = pneg %p146
        $region30: #{mynet_forward.3} parent=11 // pred_check_branch
          %227 = sbr.rel (%p225) target = $region32
        $region31: #{mynet_forward.3} parent=11 // pred_region
          %s229 = ssub.s32 16, 16
          %230 = vsyncadd [#allocation4], %s229
          %s232 = sshll.u32 %s5, 4
          %s233 = int_to_ptr.vmem [resolvable:$true] %s232
          %235 = dma.vmem_to_smem %s233, 16, [#allocation3], [#allocation4]
        $region32: #{mynet_forward.3} parent=11 // pred_fallthru
          _
      $region12: #{mynet_forward.3} parent=5 // pred_fallthru
        _
      %p236 = scmp.lt.s32.totalorder %s15, 2
      // Predicated region
      $region33: #{mynet_forward.3} parent=5 // pred_check
        %p237 = pneg %p236
      $region34: #{mynet_forward.3} parent=5 // pred_check_branch
        %239 = sbr.rel (%p237) target = $region36
      $region35: #{mynet_forward.3} parent=5 // pred_region
        // Predicated region
        $region37: #{mynet_forward.3} parent=35 // pred_check
          %p240 = pneg %p35
        $region38: #{mynet_forward.3} parent=35 // pred_check_branch
          %242 = sbr.rel (%p240) target = $region40
        $region39: #{mynet_forward.3} parent=35 // pred_region
          %p243 = scmp.lt.s32.totalorder %s15, 1
          %s244 = scalar_select %p243, %s15, 1
          %s245 = smul.addr %s244, 8
          %s246 = smul.addr %s245, 8
          %s247 = scalar_lea.vmem %s0, %s246
        $region40: #{mynet_forward.3} parent=35 // pred_fallthru
          _
      $region36: #{mynet_forward.3} parent=5 // pred_fallthru
        _
      %p248 = scmp.le.s32.totalorder 1, %s15
      %p249 = scmp.lt.s32.totalorder %s15, 3
      %p250 = pnand %p248, %p249
      %p251 = pneg %p250
      // Predicated region
      $region41: #{mynet_forward.3} parent=5 // pred_check
        _
      $region42: #{mynet_forward.3} parent=5 // pred_check_branch
        %253 = sbr.rel (%p250) target = $region44
      $region43: #{mynet_forward.3} parent=5 // pred_region
        %s254 = ssub.s32 %s15, 1
        // Predicated region
        $region45: #{mynet_forward.3} parent=43 // pred_check
          %p255 = pneg %p146
        $region46: #{mynet_forward.3} parent=43 // pred_check_branch
          %257 = sbr.rel (%p255) target = $region48
        $region47: #{mynet_forward.3} parent=43 // pred_region
          %258 = dma.done [#allocation4], 16
        $region48: #{mynet_forward.3} parent=43 // pred_fallthru
          _
        %259 = sfence
        %p260 = scmp.lt.s32.totalorder %s20, 1
        %s261 = scalar_select %p260, %s20, 1
        %s262 = smul.addr %s261, 8
        %s263 = smul.addr %s262, 8
        %s264 = scalar_lea.vmem %s0, %s263
        %p265 = pneg %p41
        %p266 = pneg %p38
        %p267 = pneg %p62
        %p268 = pneg %p59
        %p269 = pneg %p83
        %p270 = pneg %p80
        %p271 = pneg %p104
        %p272 = pneg %p101
        %p273 = pneg %p125
        %p274 = pneg %p122
        %p275 = pneg %p146
        %p276 = pneg %p143
        %p277 = pneg %p172
        %p278 = pneg %p169
        %p279 = scmp.lt.s32.totalorder %s20, 1
        %s280 = scalar_select %p279, %s20, 1
        %s281 = smul.addr %s280, 8
        %s282 = smul.addr %s281, 8
        %s283 = scalar_lea.vmem %s6, %s282
        %p284 = pneg %p198
        %p285 = pneg %p195
        %p286 = scmp.lt.s32.totalorder %s20, 1
        %s287 = scalar_select %p286, %s20, 1
        %s288 = smul.addr %s287, 8
        %s289 = smul.addr %s288, 8
        %s290 = scalar_lea.vmem %s7, %s289
        %p291 = scmp.lt.s32.totalorder %s20, 1
        %s292 = scalar_select %p291, %s20, 1
        %s293 = smul.addr %s292, 8
        %s294 = smul.addr %s293, 8
        %s295 = scalar_lea.vmem %s0, %s294
        %p296 = scmp.lt.s32.totalorder %s20, 1
        %s297 = scalar_select %p296, %s20, 1
        %s298 = smul.addr %s297, 8
        %s299 = smul.addr %s298, 8
        %s300 = scalar_lea.vmem %s6, %s299
        %p301 = scmp.lt.s32.totalorder %s20, 1
        %s302 = scalar_select %p301, %s20, 1
        %s303 = smul.addr %s302, 8
        %s304 = smul.addr %s303, 8
        %s305 = scalar_lea.vmem %s7, %s304
        %v307 = vld [vmem:[%s295] sm:$0xff]
        %v308 = vld [vmem:[%s295 + $0x8] sm:$0xff]
        %v309 = vld [vmem:[%s295 + $0x10] sm:$0xff]
        %v310 = vld [vmem:[%s295 + $0x18] sm:$0xff]
        %v311 = vld [vmem:[%s295 + $0x20] sm:$0xff]
        %v312 = vld [vmem:[%s295 + $0x28] sm:$0xff]
        %v313 = vld [vmem:[%s295 + $0x30] sm:$0xff]
        %v314 = vld [vmem:[%s295 + $0x38] sm:$0xff]
        %vm315 = vcmask 23552
        %316 = vst.msk [vmem:[#allocation2] sm:$0xff] %vm315, 0.0
        %vm317 = vcmask 17408
        %318 = vst.msk [vmem:[#allocation2 + $0x8] sm:$0x3] %vm317, 0.0
        %319 = vst.msk [vmem:[#allocation2 + $0x10] sm:$0xff] %vm315, 0.0
        %320 = vst.msk [vmem:[#allocation2 + $0x18] sm:$0x3] %vm317, 0.0
        %321 = vst.msk [vmem:[#allocation2 + $0x20] sm:$0xff] %vm315, 0.0
        %322 = vst.msk [vmem:[#allocation2 + $0x28] sm:$0x3] %vm317, 0.0
        %323 = vst.msk [vmem:[#allocation2 + $0x30] sm:$0xff] %vm315, 0.0
        %324 = vst.msk [vmem:[#allocation2 + $0x38] sm:$0x3] %vm317, 0.0
        %325 = vst.msk [vmem:[#allocation2 + $0x40] sm:$0xff] %vm315, 0.0
        %326 = vst.msk [vmem:[#allocation2 + $0x48] sm:$0x3] %vm317, 0.0
        %327 = vst.msk [vmem:[#allocation2 + $0x50] sm:$0xff] %vm315, 0.0
        %328 = vst.msk [vmem:[#allocation2 + $0x58] sm:$0x3] %vm317, 0.0
        %329 = vst.msk [vmem:[#allocation2 + $0x60] sm:$0xff] %vm315, 0.0
        %330 = vst.msk [vmem:[#allocation2 + $0x68] sm:$0x3] %vm317, 0.0
        %331 = vst.msk [vmem:[#allocation2 + $0x70] sm:$0xff] %vm315, 0.0
        %332 = vst.msk [vmem:[#allocation2 + $0x78] sm:$0x3] %vm317, 0.0
        %333 = vst.msk [vmem:[#allocation2 + $0x80] sm:$0xff] %vm315, 0.0
        %334 = vst.msk [vmem:[#allocation2 + $0x88] sm:$0x3] %vm317, 0.0
        %335 = vst.msk [vmem:[#allocation2 + $0x90] sm:$0xff] %vm315, 0.0
        %336 = vst.msk [vmem:[#allocation2 + $0x98] sm:$0x3] %vm317, 0.0
        %s337 = scalar_lea.vmem [#allocation2], 16
        %338 = vst.msk [vmem:[%s337 + $0x1] sm:$0xff] %vm315, %v307
        %339 = vst.msk [vmem:[%s337 + $0x11] sm:$0xff] %vm315, %v308
        %340 = vst.msk [vmem:[%s337 + $0x21] sm:$0xff] %vm315, %v309
        %341 = vst.msk [vmem:[%s337 + $0x31] sm:$0xff] %vm315, %v310
        %342 = vst.msk [vmem:[%s337 + $0x41] sm:$0xff] %vm315, %v311
        %343 = vst.msk [vmem:[%s337 + $0x51] sm:$0xff] %vm315, %v312
        %344 = vst.msk [vmem:[%s337 + $0x61] sm:$0xff] %vm315, %v313
        %345 = vst.msk [vmem:[%s337 + $0x71] sm:$0xff] %vm315, %v314
        %v346 = vld [vmem:[#allocation2] sm:$0xff]
        %v347 = vld [vmem:[#allocation2 + $0x10] sm:$0xff]
        %v348 = vld [vmem:[#allocation2 + $0x20] sm:$0xff]
        %v349 = vld [vmem:[#allocation2 + $0x30] sm:$0xff]
        %v350 = vld [vmem:[#allocation2 + $0x40] sm:$0xff]
        %v351 = vld [vmem:[#allocation2 + $0x50] sm:$0xff]
        %v352 = vld [vmem:[#allocation2 + $0x60] sm:$0xff]
        %v353 = vld [vmem:[#allocation2 + $0x70] sm:$0xff]
        %v354 = vld [vmem:[#allocation2 + $0x1] sm:$0xff]
        %v355 = vld [vmem:[#allocation2 + $0x11] sm:$0xff]
        %v356 = vld [vmem:[#allocation2 + $0x21] sm:$0xff]
        %v357 = vld [vmem:[#allocation2 + $0x31] sm:$0xff]
        %v358 = vld [vmem:[#allocation2 + $0x41] sm:$0xff]
        %v359 = vld [vmem:[#allocation2 + $0x51] sm:$0xff]
        %v360 = vld [vmem:[#allocation2 + $0x61] sm:$0xff]
        %v361 = vld [vmem:[#allocation2 + $0x71] sm:$0xff]
        %v362 = vld [vmem:[#allocation2 + $0x2] sm:$0xff]
        %v363 = vld [vmem:[#allocation2 + $0x12] sm:$0xff]
        %v364 = vld [vmem:[#allocation2 + $0x22] sm:$0xff]
        %v365 = vld [vmem:[#allocation2 + $0x32] sm:$0xff]
        %v366 = vld [vmem:[#allocation2 + $0x42] sm:$0xff]
        %v367 = vld [vmem:[#allocation2 + $0x52] sm:$0xff]
        %v368 = vld [vmem:[#allocation2 + $0x62] sm:$0xff]
        %v369 = vld [vmem:[#allocation2 + $0x72] sm:$0xff]
        %v370 = vld [vmem:[%s337] sm:$0xff]
        %v371 = vld [vmem:[%s337 + $0x10] sm:$0xff]
        %v372 = vld [vmem:[%s337 + $0x20] sm:$0xff]
        %v373 = vld [vmem:[%s337 + $0x30] sm:$0xff]
        %v374 = vld [vmem:[%s337 + $0x40] sm:$0xff]
        %v375 = vld [vmem:[%s337 + $0x50] sm:$0xff]
        %v376 = vld [vmem:[%s337 + $0x60] sm:$0xff]
        %v377 = vld [vmem:[%s337 + $0x70] sm:$0xff]
        %v378 = vld [vmem:[%s337 + $0x1] sm:$0xff]
        %v379 = vld [vmem:[%s337 + $0x11] sm:$0xff]
        %v380 = vld [vmem:[%s337 + $0x21] sm:$0xff]
        %v381 = vld [vmem:[%s337 + $0x31] sm:$0xff]
        %v382 = vld [vmem:[%s337 + $0x41] sm:$0xff]
        %v383 = vld [vmem:[%s337 + $0x51] sm:$0xff]
        %v384 = vld [vmem:[%s337 + $0x61] sm:$0xff]
        %v385 = vld [vmem:[%s337 + $0x71] sm:$0xff]
        %v386 = vld [vmem:[%s337 + $0x2] sm:$0xff]
        %v387 = vld [vmem:[%s337 + $0x12] sm:$0xff]
        %v388 = vld [vmem:[%s337 + $0x22] sm:$0xff]
        %v389 = vld [vmem:[%s337 + $0x32] sm:$0xff]
        %v390 = vld [vmem:[%s337 + $0x42] sm:$0xff]
        %v391 = vld [vmem:[%s337 + $0x52] sm:$0xff]
        %v392 = vld [vmem:[%s337 + $0x62] sm:$0xff]
        %v393 = vld [vmem:[%s337 + $0x72] sm:$0xff]
        %s394 = scalar_lea.vmem [#allocation2], 32
        %v395 = vld [vmem:[%s394] sm:$0xff]
        %v396 = vld [vmem:[%s394 + $0x10] sm:$0xff]
        %v397 = vld [vmem:[%s394 + $0x20] sm:$0xff]
        %v398 = vld [vmem:[%s394 + $0x30] sm:$0xff]
        %v399 = vld [vmem:[%s394 + $0x40] sm:$0xff]
        %v400 = vld [vmem:[%s394 + $0x50] sm:$0xff]
        %v401 = vld [vmem:[%s394 + $0x60] sm:$0xff]
        %v402 = vld [vmem:[%s394 + $0x70] sm:$0xff]
        %v403 = vld [vmem:[%s394 + $0x1] sm:$0xff]
        %v404 = vld [vmem:[%s394 + $0x11] sm:$0xff]
        %v405 = vld [vmem:[%s394 + $0x21] sm:$0xff]
        %v406 = vld [vmem:[%s394 + $0x31] sm:$0xff]
        %v407 = vld [vmem:[%s394 + $0x41] sm:$0xff]
        %v408 = vld [vmem:[%s394 + $0x51] sm:$0xff]
        %v409 = vld [vmem:[%s394 + $0x61] sm:$0xff]
        %v410 = vld [vmem:[%s394 + $0x71] sm:$0xff]
        %v411 = vld [vmem:[%s394 + $0x2] sm:$0xff]
        %v412 = vld [vmem:[%s394 + $0x12] sm:$0xff]
        %v413 = vld [vmem:[%s394 + $0x22] sm:$0xff]
        %v414 = vld [vmem:[%s394 + $0x32] sm:$0xff]
        %v415 = vld [vmem:[%s394 + $0x42] sm:$0xff]
        %v416 = vld [vmem:[%s394 + $0x52] sm:$0xff]
        %v417 = vld [vmem:[%s394 + $0x62] sm:$0xff]
        %v418 = vld [vmem:[%s394 + $0x72] sm:$0xff]
        %427 = vrot.lane.b32.xlu0 %v354, 3
        %v428 = vpop.permute.xlu0 %427
        %429 = vrot.lane.b32.xlu0 %v355, 3
        %v430 = vpop.permute.xlu0 %429
        %431 = vrot.lane.b32.xlu0 %v356, 3
        %v432 = vpop.permute.xlu0 %431
        %433 = vrot.lane.b32.xlu0 %v357, 3
        %v434 = vpop.permute.xlu0 %433
        %435 = vrot.lane.b32.xlu0 %v358, 3
        %v436 = vpop.permute.xlu0 %435
        %437 = vrot.lane.b32.xlu0 %v359, 3
        %v438 = vpop.permute.xlu0 %437
        %439 = vrot.lane.b32.xlu0 %v360, 3
        %v440 = vpop.permute.xlu0 %439
        %441 = vrot.lane.b32.xlu0 %v361, 3
        %v442 = vpop.permute.xlu0 %441
        %459 = vrot.lane.b32.xlu0 %v362, 6
        %v460 = vpop.permute.xlu0 %459
        %461 = vrot.lane.b32.xlu0 %v363, 6
        %v462 = vpop.permute.xlu0 %461
        %463 = vrot.lane.b32.xlu0 %v364, 6
        %v464 = vpop.permute.xlu0 %463
        %465 = vrot.lane.b32.xlu0 %v365, 6
        %v466 = vpop.permute.xlu0 %465
        %467 = vrot.lane.b32.xlu0 %v366, 6
        %v468 = vpop.permute.xlu0 %467
        %469 = vrot.lane.b32.xlu0 %v367, 6
        %v470 = vpop.permute.xlu0 %469
        %471 = vrot.lane.b32.xlu0 %v368, 6
        %v472 = vpop.permute.xlu0 %471
        %473 = vrot.lane.b32.xlu0 %v369, 6
        %v474 = vpop.permute.xlu0 %473
        %491 = vrot.lane.b32.xlu0 %v370, 9
        %v492 = vpop.permute.xlu0 %491
        %493 = vrot.lane.b32.xlu0 %v371, 9
        %v494 = vpop.permute.xlu0 %493
        %495 = vrot.lane.b32.xlu0 %v372, 9
        %v496 = vpop.permute.xlu0 %495
        %497 = vrot.lane.b32.xlu0 %v373, 9
        %v498 = vpop.permute.xlu0 %497
        %499 = vrot.lane.b32.xlu0 %v374, 9
        %v500 = vpop.permute.xlu0 %499
        %501 = vrot.lane.b32.xlu0 %v375, 9
        %v502 = vpop.permute.xlu0 %501
        %503 = vrot.lane.b32.xlu0 %v376, 9
        %v504 = vpop.permute.xlu0 %503
        %505 = vrot.lane.b32.xlu0 %v377, 9
        %v506 = vpop.permute.xlu0 %505
        %523 = vrot.lane.b32.xlu0 %v378, 12
        %v524 = vpop.permute.xlu0 %523
        %525 = vrot.lane.b32.xlu0 %v379, 12
        %v526 = vpop.permute.xlu0 %525
        %527 = vrot.lane.b32.xlu0 %v380, 12
        %v528 = vpop.permute.xlu0 %527
        %529 = vrot.lane.b32.xlu0 %v381, 12
        %v530 = vpop.permute.xlu0 %529
        %531 = vrot.lane.b32.xlu0 %v382, 12
        %v532 = vpop.permute.xlu0 %531
        %533 = vrot.lane.b32.xlu0 %v383, 12
        %v534 = vpop.permute.xlu0 %533
        %535 = vrot.lane.b32.xlu0 %v384, 12
        %v536 = vpop.permute.xlu0 %535
        %537 = vrot.lane.b32.xlu0 %v385, 12
        %v538 = vpop.permute.xlu0 %537
        %555 = vrot.lane.b32.xlu0 %v386, 15
        %v556 = vpop.permute.xlu0 %555
        %557 = vrot.lane.b32.xlu0 %v387, 15
        %v558 = vpop.permute.xlu0 %557
        %559 = vrot.lane.b32.xlu0 %v388, 15
        %v560 = vpop.permute.xlu0 %559
        %561 = vrot.lane.b32.xlu0 %v389, 15
        %v562 = vpop.permute.xlu0 %561
        %563 = vrot.lane.b32.xlu0 %v390, 15
        %v564 = vpop.permute.xlu0 %563
        %565 = vrot.lane.b32.xlu0 %v391, 15
        %v566 = vpop.permute.xlu0 %565
        %567 = vrot.lane.b32.xlu0 %v392, 15
        %v568 = vpop.permute.xlu0 %567
        %569 = vrot.lane.b32.xlu0 %v393, 15
        %v570 = vpop.permute.xlu0 %569
        %587 = vrot.lane.b32.xlu0 %v395, 18
        %v588 = vpop.permute.xlu0 %587
        %589 = vrot.lane.b32.xlu0 %v396, 18
        %v590 = vpop.permute.xlu0 %589
        %591 = vrot.lane.b32.xlu0 %v397, 18
        %v592 = vpop.permute.xlu0 %591
        %593 = vrot.lane.b32.xlu0 %v398, 18
        %v594 = vpop.permute.xlu0 %593
        %595 = vrot.lane.b32.xlu0 %v399, 18
        %v596 = vpop.permute.xlu0 %595
        %597 = vrot.lane.b32.xlu0 %v400, 18
        %v598 = vpop.permute.xlu0 %597
        %599 = vrot.lane.b32.xlu0 %v401, 18
        %v600 = vpop.permute.xlu0 %599
        %601 = vrot.lane.b32.xlu0 %v402, 18
        %v602 = vpop.permute.xlu0 %601
        %619 = vrot.lane.b32.xlu0 %v403, 21
        %v620 = vpop.permute.xlu0 %619
        %621 = vrot.lane.b32.xlu0 %v404, 21
        %v622 = vpop.permute.xlu0 %621
        %623 = vrot.lane.b32.xlu0 %v405, 21
        %v624 = vpop.permute.xlu0 %623
        %625 = vrot.lane.b32.xlu0 %v406, 21
        %v626 = vpop.permute.xlu0 %625
        %627 = vrot.lane.b32.xlu0 %v407, 21
        %v628 = vpop.permute.xlu0 %627
        %629 = vrot.lane.b32.xlu0 %v408, 21
        %v630 = vpop.permute.xlu0 %629
        %631 = vrot.lane.b32.xlu0 %v409, 21
        %v632 = vpop.permute.xlu0 %631
        %633 = vrot.lane.b32.xlu0 %v410, 21
        %v634 = vpop.permute.xlu0 %633
        %651 = vrot.lane.b32.xlu0 %v411, 24
        %v652 = vpop.permute.xlu0 %651
        %653 = vrot.lane.b32.xlu0 %v412, 24
        %v654 = vpop.permute.xlu0 %653
        %655 = vrot.lane.b32.xlu0 %v413, 24
        %v656 = vpop.permute.xlu0 %655
        %657 = vrot.lane.b32.xlu0 %v414, 24
        %v658 = vpop.permute.xlu0 %657
        %659 = vrot.lane.b32.xlu0 %v415, 24
        %v660 = vpop.permute.xlu0 %659
        %661 = vrot.lane.b32.xlu0 %v416, 24
        %v662 = vpop.permute.xlu0 %661
        %663 = vrot.lane.b32.xlu0 %v417, 24
        %v664 = vpop.permute.xlu0 %663
        %665 = vrot.lane.b32.xlu0 %v418, 24
        %v666 = vpop.permute.xlu0 %665
        %v675 = vsel %vm315, %v346, %v428
        %v676 = vsel %vm315, %v347, %v430
        %v677 = vsel %vm315, %v348, %v432
        %v678 = vsel %vm315, %v349, %v434
        %v679 = vsel %vm315, %v350, %v436
        %v680 = vsel %vm315, %v351, %v438
        %v681 = vsel %vm315, %v352, %v440
        %v682 = vsel %vm315, %v353, %v442
        %vm683 = vcmask 48128
        %v684 = vsel %vm683, %v675, %v460
        %v685 = vsel %vm683, %v676, %v462
        %v686 = vsel %vm683, %v677, %v464
        %v687 = vsel %vm683, %v678, %v466
        %v688 = vsel %vm683, %v679, %v468
        %v689 = vsel %vm683, %v680, %v470
        %v690 = vsel %vm683, %v681, %v472
        %v691 = vsel %vm683, %v682, %v474
        %vm692 = vcmask 72704
        %v693 = vsel %vm692, %v684, %v492
        %v694 = vsel %vm692, %v685, %v494
        %v695 = vsel %vm692, %v686, %v496
        %v696 = vsel %vm692, %v687, %v498
        %v697 = vsel %vm692, %v688, %v500
        %v698 = vsel %vm692, %v689, %v502
        %v699 = vsel %vm692, %v690, %v504
        %v700 = vsel %vm692, %v691, %v506
        %vm701 = vcmask 97280
        %v702 = vsel %vm701, %v693, %v524
        %v703 = vsel %vm701, %v694, %v526
        %v704 = vsel %vm701, %v695, %v528
        %v705 = vsel %vm701, %v696, %v530
        %v706 = vsel %vm701, %v697, %v532
        %v707 = vsel %vm701, %v698, %v534
        %v708 = vsel %vm701, %v699, %v536
        %v709 = vsel %vm701, %v700, %v538
        %vm710 = vcmask 121856
        %v711 = vsel %vm710, %v702, %v556
        %v712 = vsel %vm710, %v703, %v558
        %v713 = vsel %vm710, %v704, %v560
        %v714 = vsel %vm710, %v705, %v562
        %v715 = vsel %vm710, %v706, %v564
        %v716 = vsel %vm710, %v707, %v566
        %v717 = vsel %vm710, %v708, %v568
        %v718 = vsel %vm710, %v709, %v570
        %vm719 = vcmask 146432
        %v720 = vsel %vm719, %v711, %v588
        %v721 = vsel %vm719, %v712, %v590
        %v722 = vsel %vm719, %v713, %v592
        %v723 = vsel %vm719, %v714, %v594
        %v724 = vsel %vm719, %v715, %v596
        %v725 = vsel %vm719, %v716, %v598
        %v726 = vsel %vm719, %v717, %v600
        %v727 = vsel %vm719, %v718, %v602
        %vm728 = vcmask 171008
        %v729 = vsel %vm728, %v720, %v620
        %v730 = vsel %vm728, %v721, %v622
        %v731 = vsel %vm728, %v722, %v624
        %v732 = vsel %vm728, %v723, %v626
        %v733 = vsel %vm728, %v724, %v628
        %v734 = vsel %vm728, %v725, %v630
        %v735 = vsel %vm728, %v726, %v632
        %v736 = vsel %vm728, %v727, %v634
        %vm737 = vcmask 195584
        %v738 = vsel %vm737, %v729, %v652
        %v739 = vsel %vm737, %v730, %v654
        %v740 = vsel %vm737, %v731, %v656
        %v741 = vsel %vm737, %v732, %v658
        %v742 = vsel %vm737, %v733, %v660
        %v743 = vsel %vm737, %v734, %v662
        %v744 = vsel %vm737, %v735, %v664
        %v745 = vsel %vm737, %v736, %v666
        %v746 = vpack.c.bf16 %v739, %v738
        %v747 = vpack.c.bf16 %v741, %v740
        %v748 = vpack.c.bf16 %v743, %v742
        %v749 = vpack.c.bf16 %v745, %v744
        %v750 = vld [vmem:[%s1] sm:$0xf]
        %v751 = vld [vmem:[%s1 + $0x4] sm:$0xf]
        %v752 = vld [vmem:[%s1 + $0x8] sm:$0xf]
        %v753 = vld [vmem:[%s1 + $0xc] sm:$0x3]
        %v754 = vld [vmem:[%s2] sm:$0x1]
        %v756 = vlaneseq
        %v757 = vshrl.u32 %v756, 7
        %v758 = vsub.s32 0, %v757
        %v759 = vrot.slane %v754, %v758
        %v765 = vunpack.c.l.b16 %v750
        %v766 = vunpack.c.l.b16 %v751
        %v767 = vunpack.c.l.b16 %v752
        %v768 = vunpack.c.l.b16 %v753
        %v769 = vpack.c.b16 %v766, %v765
        %v770 = vpack.c.b16 %v768, %v767
        %vm772 = vcmask 220160
        %v774 = vsel %vm772, %v746, 0
        %v777 = vsel %vm772, %v747, 0
        %v780 = vsel %vm772, %v748, 0
        %v783 = vsel %vm772, %v749, 0
        %vm785 = vcmask 1044480
        %vm786 = vcmask 1045504
        %v787 = vsel %vm785, 4294967295, 65535
        %v788 = vsel %vm786, %v787, 0
        %v790 = vand.u32 %v770, %v788
        %792 = vmatprep.subr.bf16.mxu0 0
        %793 = vmatpush1.bf16.msra.mxu0 %v769
        %794 = vmatprep.subr.bf16.mxu0 0
        %795 = vmatpush1.bf16.msra.mxu0 %v790
        %796 = vmatprep.subr.bf16.mxu0 0
        %797 = vmatpush1.bf16.msra.mxu0 0
        %798 = vmatprep.subr.bf16.mxu0 0
        %799 = vmatpush1.bf16.msra.mxu0 0
        %800 = vmatprep.subr.bf16.mxu0 0
        %801 = vmatpush1.bf16.msra.mxu0 0
        %802 = vmatprep.subr.bf16.mxu0 0
        %803 = vmatpush1.bf16.msra.mxu0 0
        %804 = vmatprep.subr.bf16.mxu0 0
        %805 = vmatpush1.bf16.msra.mxu0 0
        %806 = vmatprep.subr.bf16.mxu0 0
        %807 = vmatpush1.bf16.msra.mxu0 0
        %808 = vmatprep.subr.bf16.mxu0 0
        %809 = vmatpush1.bf16.msra.mxu0 0
        %810 = vmatprep.subr.bf16.mxu0 0
        %811 = vmatpush1.bf16.msra.mxu0 0
        %812 = vmatprep.subr.bf16.mxu0 0
        %813 = vmatpush1.bf16.msra.mxu0 0
        %814 = vmatprep.subr.bf16.mxu0 0
        %815 = vmatpush1.bf16.msra.mxu0 0
        %816 = vmatprep.subr.bf16.mxu0 0
        %817 = vmatpush1.bf16.msra.mxu0 0
        %818 = vmatprep.subr.bf16.mxu0 0
        %819 = vmatpush1.bf16.msra.mxu0 0
        %820 = vmatprep.subr.bf16.mxu0 0
        %821 = vmatpush1.bf16.msra.mxu0 0
        %822 = vmatprep.subr.bf16.mxu0 0
        %823 = vmatpush1.bf16.msra.mxu0 0
        %824 = vmatprep.mubr.bf16.mxu0 0
        %825 = vmatmul.mubr.bf16.gmra.mrb[0].mxu0 %v774
        %v826 = vpop.f32.mrb[0].mxu0
        %v827 = vadd.f32 %v759, %v826
        %v828 = vpop.f32.mrb[0].mxu0
        %v829 = vpop.f32.mrb[0].mxu0
        %v830 = vadd.f32 %v759, %v829
        %v831 = vpop.f32.mrb[0].mxu0
        %832 = vmatprep.mubr.bf16.mxu0 0
        %833 = vmatmul.mubr.bf16.gmra.mrb[0].mxu0 %v777
        %v834 = vpop.f32.mrb[0].mxu0
        %v835 = vadd.f32 %v759, %v834
        %v836 = vpop.f32.mrb[0].mxu0
        %v837 = vpop.f32.mrb[0].mxu0
        %v838 = vadd.f32 %v759, %v837
        %v839 = vpop.f32.mrb[0].mxu0
        %840 = vmatprep.mubr.bf16.mxu0 0
        %841 = vmatmul.mubr.bf16.gmra.mrb[0].mxu0 %v780
        %v842 = vpop.f32.mrb[0].mxu0
        %v843 = vadd.f32 %v759, %v842
        %v844 = vpop.f32.mrb[0].mxu0
        %v845 = vpop.f32.mrb[0].mxu0
        %v846 = vadd.f32 %v759, %v845
        %v847 = vpop.f32.mrb[0].mxu0
        %848 = vmatprep.mubr.bf16.mxu0 0
        %849 = vmatmul.mubr.bf16.gmra.mrb[0].mxu0 %v783
        %v850 = vpop.f32.mrb[0].mxu0
        %v851 = vadd.f32 %v759, %v850
        %v852 = vpop.f32.mrb[0].mxu0
        %v853 = vpop.f32.mrb[0].mxu0
        %v854 = vadd.f32 %v759, %v853
        %v855 = vpop.f32.mrb[0].mxu0
        %856 = vdwg.mxu0
        %s857 = sld [smem:[#allocation3]]
        %vm858 = vcmp.ge.f32.partialorder %v827, 0.0
        %vm859 = vcmp.ge.f32.partialorder %v830, 0.0
        %vm860 = vcmp.ge.f32.partialorder %v835, 0.0
        %vm861 = vcmp.ge.f32.partialorder %v838, 0.0
        %vm862 = vcmp.ge.f32.partialorder %v843, 0.0
        %vm863 = vcmp.ge.f32.partialorder %v846, 0.0
        %vm864 = vcmp.ge.f32.partialorder %v851, 0.0
        %vm865 = vcmp.ge.f32.partialorder %v854, 0.0
        %v866 = vstv %s857
        %v867 = vmul.f32 %v866, %v827
        %v868 = vmul.f32 %v866, %v830
        %v869 = vmul.f32 %v866, %v835
        %v870 = vmul.f32 %v866, %v838
        %v871 = vmul.f32 %v866, %v843
        %v872 = vmul.f32 %v866, %v846
        %v873 = vmul.f32 %v866, %v851
        %v874 = vmul.f32 %v866, %v854
        %v875 = vsel %vm858, %v827, %v867
        %v876 = vsel %vm859, %v830, %v868
        %v877 = vsel %vm860, %v835, %v869
        %v878 = vsel %vm861, %v838, %v870
        %v879 = vsel %vm862, %v843, %v871
        %v880 = vsel %vm863, %v846, %v872
        %v881 = vsel %vm864, %v851, %v873
        %v882 = vsel %vm865, %v854, %v874
        %vm883 = vcmask 261120
        %884 = vst.msk [vmem:[%s300] sm:$0xff] %vm883, %v875
        %885 = vst.msk [vmem:[%s300 + $0x8] sm:$0xff] %vm883, %v876
        %886 = vst.msk [vmem:[%s300 + $0x10] sm:$0xff] %vm883, %v877
        %887 = vst.msk [vmem:[%s300 + $0x18] sm:$0xff] %vm883, %v878
        %888 = vst.msk [vmem:[%s300 + $0x20] sm:$0xff] %vm883, %v879
        %889 = vst.msk [vmem:[%s300 + $0x28] sm:$0xff] %vm883, %v880
        %890 = vst.msk [vmem:[%s300 + $0x30] sm:$0xff] %vm883, %v881
        %891 = vst.msk [vmem:[%s300 + $0x38] sm:$0xff] %vm883, %v882
        %v892 = vpack.c.bf16 %v876, %v875
        %v893 = vpack.c.bf16 %v878, %v877
        %v894 = vpack.c.bf16 %v880, %v879
        %v895 = vpack.c.bf16 %v882, %v881
        %v896 = vld [vmem:[%s3] sm:$0xf]
        %v897 = vld [vmem:[%s3 + $0x4] sm:$0xf]
        %v898 = vld [vmem:[%s3 + $0x8] sm:$0xf]
        %v899 = vld [vmem:[%s3 + $0xc] sm:$0xf]
        %v900 = vld [vmem:[%s4] sm:$0x1]
        %v902 = vlaneseq
        %v903 = vshrl.u32 %v902, 7
        %v904 = vsub.s32 0, %v903
        %v905 = vrot.slane %v900, %v904
        %v911 = vunpack.c.l.b16 %v896
        %v912 = vunpack.c.l.b16 %v897
        %v913 = vunpack.c.l.b16 %v898
        %v914 = vunpack.c.l.b16 %v899
        %v915 = vpack.c.b16 %v912, %v911
        %v916 = vpack.c.b16 %v914, %v913
        %v920 = vsel %vm883, %v892, 0
        %v923 = vsel %vm883, %v893, 0
        %v926 = vsel %vm883, %v894, 0
        %v929 = vsel %vm883, %v895, 0
        %931 = vmatprep.subr.bf16.mxu0 0
        %932 = vmatpush1.bf16.msra.mxu0 %v915
        %933 = vmatprep.subr.bf16.mxu0 0
        %934 = vmatpush1.bf16.msra.mxu0 %v916
        %935 = vmatprep.subr.bf16.mxu0 0
        %936 = vmatpush1.bf16.msra.mxu0 0
        %937 = vmatprep.subr.bf16.mxu0 0
        %938 = vmatpush1.bf16.msra.mxu0 0
        %939 = vmatprep.subr.bf16.mxu0 0
        %940 = vmatpush1.bf16.msra.mxu0 0
        %941 = vmatprep.subr.bf16.mxu0 0
        %942 = vmatpush1.bf16.msra.mxu0 0
        %943 = vmatprep.subr.bf16.mxu0 0
        %944 = vmatpush1.bf16.msra.mxu0 0
        %945 = vmatprep.subr.bf16.mxu0 0
        %946 = vmatpush1.bf16.msra.mxu0 0
        %947 = vmatprep.subr.bf16.mxu0 0
        %948 = vmatpush1.bf16.msra.mxu0 0
        %949 = vmatprep.subr.bf16.mxu0 0
        %950 = vmatpush1.bf16.msra.mxu0 0
        %951 = vmatprep.subr.bf16.mxu0 0
        %952 = vmatpush1.bf16.msra.mxu0 0
        %953 = vmatprep.subr.bf16.mxu0 0
        %954 = vmatpush1.bf16.msra.mxu0 0
        %955 = vmatprep.subr.bf16.mxu0 0
        %956 = vmatpush1.bf16.msra.mxu0 0
        %957 = vmatprep.subr.bf16.mxu0 0
        %958 = vmatpush1.bf16.msra.mxu0 0
        %959 = vmatprep.subr.bf16.mxu0 0
        %960 = vmatpush1.bf16.msra.mxu0 0
        %961 = vmatprep.subr.bf16.mxu0 0
        %962 = vmatpush1.bf16.msra.mxu0 0
        %963 = vmatprep.mubr.bf16.mxu0 0
        %964 = vmatmul.mubr.bf16.gmra.mrb[0].mxu0 %v920
        %v965 = vpop.f32.mrb[0].mxu0
        %v966 = vadd.f32 %v905, %v965
        %v967 = vpop.f32.mrb[0].mxu0
        %v968 = vpop.f32.mrb[0].mxu0
        %v969 = vadd.f32 %v905, %v968
        %v970 = vpop.f32.mrb[0].mxu0
        %971 = vmatprep.mubr.bf16.mxu0 0
        %972 = vmatmul.mubr.bf16.gmra.mrb[0].mxu0 %v923
        %v973 = vpop.f32.mrb[0].mxu0
        %v974 = vadd.f32 %v905, %v973
        %v975 = vpop.f32.mrb[0].mxu0
        %v976 = vpop.f32.mrb[0].mxu0
        %v977 = vadd.f32 %v905, %v976
        %v978 = vpop.f32.mrb[0].mxu0
        %979 = vmatprep.mubr.bf16.mxu0 0
        %980 = vmatmul.mubr.bf16.gmra.mrb[0].mxu0 %v926
        %v981 = vpop.f32.mrb[0].mxu0
        %v982 = vadd.f32 %v905, %v981
        %v983 = vpop.f32.mrb[0].mxu0
        %v984 = vpop.f32.mrb[0].mxu0
        %v985 = vadd.f32 %v905, %v984
        %v986 = vpop.f32.mrb[0].mxu0
        %987 = vmatprep.mubr.bf16.mxu0 0
        %988 = vmatmul.mubr.bf16.gmra.mrb[0].mxu0 %v929
        %v989 = vpop.f32.mrb[0].mxu0
        %v990 = vadd.f32 %v905, %v989
        %v991 = vpop.f32.mrb[0].mxu0
        %v992 = vpop.f32.mrb[0].mxu0
        %v993 = vadd.f32 %v905, %v992
        %v994 = vpop.f32.mrb[0].mxu0
        %995 = vdwg.mxu0
        %s996 = sld [smem:[#allocation3 + $0x1]]
        %vm997 = vcmp.ge.f32.partialorder %v966, 0.0
        %vm998 = vcmp.ge.f32.partialorder %v969, 0.0
        %vm999 = vcmp.ge.f32.partialorder %v974, 0.0
        %vm1000 = vcmp.ge.f32.partialorder %v977, 0.0
        %vm1001 = vcmp.ge.f32.partialorder %v982, 0.0
        %vm1002 = vcmp.ge.f32.partialorder %v985, 0.0
        %vm1003 = vcmp.ge.f32.partialorder %v990, 0.0
        %vm1004 = vcmp.ge.f32.partialorder %v993, 0.0
        %v1005 = vstv %s996
        %v1006 = vmul.f32 %v1005, %v966
        %v1007 = vmul.f32 %v1005, %v969
        %v1008 = vmul.f32 %v1005, %v974
        %v1009 = vmul.f32 %v1005, %v977
        %v1010 = vmul.f32 %v1005, %v982
        %v1011 = vmul.f32 %v1005, %v985
        %v1012 = vmul.f32 %v1005, %v990
        %v1013 = vmul.f32 %v1005, %v993
        %v1014 = vsel %vm997, %v966, %v1006
        %v1015 = vsel %vm998, %v969, %v1007
        %v1016 = vsel %vm999, %v974, %v1008
        %v1017 = vsel %vm1000, %v977, %v1009
        %v1018 = vsel %vm1001, %v982, %v1010
        %v1019 = vsel %vm1002, %v985, %v1011
        %v1020 = vsel %vm1003, %v990, %v1012
        %v1021 = vsel %vm1004, %v993, %v1013
        %1022 = vst.msk [vmem:[%s305] sm:$0xff] %vm883, %v1014
        %1023 = vst.msk [vmem:[%s305 + $0x8] sm:$0xff] %vm883, %v1015
        %1024 = vst.msk [vmem:[%s305 + $0x10] sm:$0xff] %vm883, %v1016
        %1025 = vst.msk [vmem:[%s305 + $0x18] sm:$0xff] %vm883, %v1017
        %1026 = vst.msk [vmem:[%s305 + $0x20] sm:$0xff] %vm883, %v1018
        %1027 = vst.msk [vmem:[%s305 + $0x28] sm:$0xff] %vm883, %v1019
        %1028 = vst.msk [vmem:[%s305 + $0x30] sm:$0xff] %vm883, %v1020
        %1029 = vst.msk [vmem:[%s305 + $0x38] sm:$0xff] %vm883, %v1021
        %p1030 = scmp.lt.s32.totalorder %s20, 1
        %s1031 = scalar_select %p1030, %s20, 1
        %s1032 = smul.addr %s1031, 8
        %s1033 = smul.addr %s1032, 8
        %s1034 = scalar_lea.vmem %s6, %s1033
        %p1035 = scmp.lt.s32.totalorder %s20, 1
        %s1036 = scalar_select %p1035, %s20, 1
        %s1037 = smul.addr %s1036, 8
        %s1038 = smul.addr %s1037, 8
        %s1039 = scalar_lea.vmem %s7, %s1038
        // Predicated region
        $region49: #{mynet_forward.3} parent=43 // pred_check
          %p1040 = pneg %p169
        $region50: #{mynet_forward.3} parent=43 // pred_check_branch
          %1042 = sbr.rel (%p1040) target = $region52
        $region51: #{mynet_forward.3} parent=43 // pred_region
          _
        $region52: #{mynet_forward.3} parent=43 // pred_fallthru
          _
        // Predicated region
        $region53: #{mynet_forward.3} parent=43 // pred_check
          %p1043 = pneg %p195
        $region54: #{mynet_forward.3} parent=43 // pred_check_branch
          %1045 = sbr.rel (%p1043) target = $region56
        $region55: #{mynet_forward.3} parent=43 // pred_region
          _
        $region56: #{mynet_forward.3} parent=43 // pred_fallthru
          _
      $region44: #{mynet_forward.3} parent=5 // pred_fallthru
        _
      %p1046 = scmp.le.s32.totalorder 2, %s15
      // Predicated region
      $region57: #{mynet_forward.3} parent=5 // pred_check
        %p1047 = pneg %p1046
      $region58: #{mynet_forward.3} parent=5 // pred_check_branch
        %1049 = sbr.rel (%p1047) target = $region60
      $region59: #{mynet_forward.3} parent=5 // pred_region
        %s1050 = ssub.s32 %s15, 2
        // Predicated region
        $region61: #{mynet_forward.3} parent=59 // pred_check
          %p1051 = pneg %p175
        $region62: #{mynet_forward.3} parent=59 // pred_check_branch
          %1053 = sbr.rel (%p1051) target = $region64
        $region63: #{mynet_forward.3} parent=59 // pred_region
          %p1054 = scmp.lt.s32.totalorder %s21, 1
          %s1055 = scalar_select %p1054, %s21, 1
          %s1056 = smul.addr %s1055, 8
          %s1057 = smul.addr %s1056, 8
          %s1058 = scalar_lea.vmem %s6, %s1057
        $region64: #{mynet_forward.3} parent=59 // pred_fallthru
          _
        // Predicated region
        $region65: #{mynet_forward.3} parent=59 // pred_check
          %p1059 = pneg %p201
        $region66: #{mynet_forward.3} parent=59 // pred_check_branch
          %1061 = sbr.rel (%p1059) target = $region68
        $region67: #{mynet_forward.3} parent=59 // pred_region
          %p1062 = scmp.lt.s32.totalorder %s21, 1
          %s1063 = scalar_select %p1062, %s21, 1
          %s1064 = smul.addr %s1063, 8
          %s1065 = smul.addr %s1064, 8
          %s1066 = scalar_lea.vmem %s7, %s1065
        $region68: #{mynet_forward.3} parent=59 // pred_fallthru
          _
      $region60: #{mynet_forward.3} parent=5 // pred_fallthru
        _
    $region6: #{mynet_forward.3} parent=1 // loop_footer
      %s19 = sadd.s32 1, %s15
    $region7: #{mynet_forward.3} parent=1 // loop_footer_branch
      %14 = sbr.rel target = $region3
    $region8: #{mynet_forward.3} parent=1 // loop_exit
      _
    %1067 = vsyncpa [#allocation4], 1
    %s1068 = scalar_lea.sflag [#allocation4], 1
    %1069 = vsyncpa %s1068, 1

// kernel: mynet_forward.4
$region0: #{mynet_forward.4}
  #allocation0 [shape = 'u32[]', space=smem, size = 0x4, offset = 0x4, fixed_abs, tag = 'smem constant byte address 0x4 - core index']
  #allocation1 [shape = 'u32[144,128]{1,0:T(1,128)}', space=vmem, size = 0x12000, scoped, tag = 'internal scratch']
  #allocation2 [shape = 'f32[10,10,32]{2,1,0:T(8,128)}', space=vmem, size = 0x14000, scoped, tag = 'scratch operand']
  %s0 = inlined_call_operand.vmem [shape: f32[2,8,8,32], index: 0, kind: input, shape index: {}]
  %s1 = inlined_call_operand.vmem [shape: bf16[288,32], index: 1, kind: input, shape index: {}]
  %s2 = inlined_call_operand.vmem [shape: f32[1,32], index: 2, kind: input, shape index: {}]
  %s3 = inlined_call_operand.vmem [shape: f32[2,8,8,32], index: 3, kind: output, shape index: {0}]
  %s4 = inlined_call_operand.vmem [shape: f32[2,2,32], index: 4, kind: output, shape index: {1}]
  %5 = xla_tuple %s3, %s4
  %s6 = sld [smem:[#allocation0]]
  $region53: #{mynet_forward.4} parent=0
    _
  %s8 = ssub.s32 1, %s6
  %s9 = scalar_select 0, %s8, %s6
  loop: start=0, step=1, limit=4
  $region2: #{mynet_forward.4} parent=0 // loop_pre_header
    _
  $region3: #{mynet_forward.4} parent=0 // loop_header
    %s11 = sphi 0, %s15
    %p12 = scmp.ge.s32.totalorder %s11, 4
    %s21 = sphi 0, %s23
    %s24 = sphi 0, %s21
    %s25 = sphi 0, %s24
    %s41 = sphi 0, %s25
    %s45 = sphi 0, %s45
    %s47 = sphi 0, %s45
    %s48 = sphi 0, %s47
    %s62 = sphi 0, %s48
    %s66 = sphi 0, %s66
    %s68 = sphi 0, %s66
    %s69 = sphi 0, %s68
    %s83 = sphi 0, %s69
    %s89 = sphi 0, %s91
    %s92 = sphi 0, %s89
    %s93 = sphi 0, %s92
    %s109 = sphi 0, %s93
    %s115 = sphi 0, %s117
    %s118 = sphi 0, %s115
    %s119 = sphi 0, %s118
    %s135 = sphi 0, %s119
  $region4: #{mynet_forward.4} parent=0 // loop_header_branch
    %14 = sbr.rel (%p12) target = $region8
  $region5: #{mynet_forward.4} parent=0 // loop_body
    %s16 = ssub.s32 %s11, 1
    %s17 = ssub.s32 %s11, 2
    %s18 = sadd.s32 %s11, 1
    %s19 = ssub.s32 %s11, %s18
    %p20 = scmp.eq.s32.totalorder %s19, 0
    %s22 = sadd.s32 %s21, 1
    %s23 = scalar_select %p20, %s21, %s22
    %p26 = pneg %p20
    %p27 = scmp.eq.s32.totalorder %s11, 1
    %p28 = por %p26, %p27
    %p29 = scmp.ne.s32.totalorder %s21, %s24
    %p30 = scmp.eq.s32.totalorder %s11, 0
    %p31 = por %p29, %p30
    %p32 = scmp.ne.s32.totalorder %s21, %s24
    %p33 = scmp.eq.s32.totalorder %s16, 1
    %p34 = por %p32, %p33
    %p35 = scmp.ne.s32.totalorder %s24, %s25
    %p36 = scmp.eq.s32.totalorder %s16, 0
    %p37 = por %p35, %p36
    %p38 = scmp.ne.s32.totalorder %s24, %s25
    %p39 = scmp.eq.s32.totalorder %s17, 1
    %p40 = por %p38, %p39
    %p42 = scmp.ne.s32.totalorder %s25, %s41
    %p43 = scmp.eq.s32.totalorder %s17, 0
    %p44 = por %p42, %p43
    %s46 = sadd.s32 %s45, 1
    %p49 = scmp.eq.s32.totalorder %s11, 1
    %p50 = scmp.ne.s32.totalorder %s45, %s47
    %p51 = scmp.eq.s32.totalorder %s11, 0
    %p52 = por %p50, %p51
    %p53 = scmp.ne.s32.totalorder %s45, %s47
    %p54 = scmp.eq.s32.totalorder %s16, 1
    %p55 = por %p53, %p54
    %p56 = scmp.ne.s32.totalorder %s47, %s48
    %p57 = scmp.eq.s32.totalorder %s16, 0
    %p58 = por %p56, %p57
    %p59 = scmp.ne.s32.totalorder %s47, %s48
    %p60 = scmp.eq.s32.totalorder %s17, 1
    %p61 = por %p59, %p60
    %p63 = scmp.ne.s32.totalorder %s48, %s62
    %p64 = scmp.eq.s32.totalorder %s17, 0
    %p65 = por %p63, %p64
    %s67 = sadd.s32 %s66, 1
    %p70 = scmp.eq.s32.totalorder %s11, 1
    %p71 = scmp.ne.s32.totalorder %s66, %s68
    %p72 = scmp.eq.s32.totalorder %s11, 0
    %p73 = por %p71, %p72
    %p74 = scmp.ne.s32.totalorder %s66, %s68
    %p75 = scmp.eq.s32.totalorder %s16, 1
    %p76 = por %p74, %p75
    %p77 = scmp.ne.s32.totalorder %s68, %s69
    %p78 = scmp.eq.s32.totalorder %s16, 0
    %p79 = por %p77, %p78
    %p80 = scmp.ne.s32.totalorder %s68, %s69
    %p81 = scmp.eq.s32.totalorder %s17, 1
    %p82 = por %p80, %p81
    %p84 = scmp.ne.s32.totalorder %s69, %s83
    %p85 = scmp.eq.s32.totalorder %s17, 0
    %p86 = por %p84, %p85
    %s87 = ssub.s32 %s11, %s18
    %p88 = scmp.eq.s32.totalorder %s87, 0
    %s90 = sadd.s32 %s89, 1
    %s91 = scalar_select %p88, %s89, %s90
    %p94 = pneg %p88
    %p95 = scmp.eq.s32.totalorder %s11, 1
    %p96 = por %p94, %p95
    %p97 = scmp.ne.s32.totalorder %s89, %s92
    %p98 = scmp.eq.s32.totalorder %s11, 0
    %p99 = por %p97, %p98
    %p100 = scmp.ne.s32.totalorder %s89, %s92
    %p101 = scmp.eq.s32.totalorder %s16, 1
    %p102 = por %p100, %p101
    %p103 = scmp.ne.s32.totalorder %s92, %s93
    %p104 = scmp.eq.s32.totalorder %s16, 0
    %p105 = por %p103, %p104
    %p106 = scmp.ne.s32.totalorder %s92, %s93
    %p107 = scmp.eq.s32.totalorder %s17, 1
    %p108 = por %p106, %p107
    %p110 = scmp.ne.s32.totalorder %s93, %s109
    %p111 = scmp.eq.s32.totalorder %s17, 0
    %p112 = por %p110, %p111
    %s113 = ssub.s32 %s11, %s18
    %p114 = scmp.eq.s32.totalorder %s113, 0
    %s116 = sadd.s32 %s115, 1
    %s117 = scalar_select %p114, %s115, %s116
    %p120 = pneg %p114
    %p121 = scmp.eq.s32.totalorder %s11, 1
    %p122 = por %p120, %p121
    %p123 = scmp.ne.s32.totalorder %s115, %s118
    %p124 = scmp.eq.s32.totalorder %s11, 0
    %p125 = por %p123, %p124
    %p126 = scmp.ne.s32.totalorder %s115, %s118
    %p127 = scmp.eq.s32.totalorder %s16, 1
    %p128 = por %p126, %p127
    %p129 = scmp.ne.s32.totalorder %s118, %s119
    %p130 = scmp.eq.s32.totalorder %s16, 0
    %p131 = por %p129, %p130
    %p132 = scmp.ne.s32.totalorder %s118, %s119
    %p133 = scmp.eq.s32.totalorder %s17, 1
    %p134 = por %p132, %p133
    %p136 = scmp.ne.s32.totalorder %s119, %s135
    %p137 = scmp.eq.s32.totalorder %s17, 0
    %p138 = por %p136, %p137
    %p139 = scmp.le.s32.totalorder 1, %s11
    %p140 = scmp.lt.s32.totalorder %s11, 3
    %p141 = pnand %p139, %p140
    %p142 = pneg %p141
    // Predicated region
    $region9: #{mynet_forward.4} parent=5 // pred_check
      _
    $region10: #{mynet_forward.4} parent=5 // pred_check_branch
      %144 = sbr.rel (%p141) target = $region12
    $region11: #{mynet_forward.4} parent=5 // pred_region
      %s145 = ssub.s32 %s11, 1
      // Predicated region
      $region13: #{mynet_forward.4} parent=11 // pred_check
        %p146 = pneg %p58
      $region14: #{mynet_forward.4} parent=11 // pred_check_branch
        %148 = sbr.rel (%p146) target = $region16
      $region15: #{mynet_forward.4} parent=11 // pred_region
        _
      $region16: #{mynet_forward.4} parent=11 // pred_fallthru
        _
      // Predicated region
      $region17: #{mynet_forward.4} parent=11 // pred_check
        %p149 = pneg %p79
      $region18: #{mynet_forward.4} parent=11 // pred_check_branch
        %151 = sbr.rel (%p149) target = $region20
      $region19: #{mynet_forward.4} parent=11 // pred_region
        _
      $region20: #{mynet_forward.4} parent=11 // pred_fallthru
        _
    $region12: #{mynet_forward.4} parent=5 // pred_fallthru
      _
    %p152 = scmp.lt.s32.totalorder %s11, 2
    // Predicated region
    $region21: #{mynet_forward.4} parent=5 // pred_check
      %p153 = pneg %p152
    $region22: #{mynet_forward.4} parent=5 // pred_check_branch
      %155 = sbr.rel (%p153) target = $region24
    $region23: #{mynet_forward.4} parent=5 // pred_region
      // Predicated region
      $region25: #{mynet_forward.4} parent=23 // pred_check
        %p156 = pneg %p31
      $region26: #{mynet_forward.4} parent=23 // pred_check_branch
        %158 = sbr.rel (%p156) target = $region28
      $region27: #{mynet_forward.4} parent=23 // pred_region
        %p159 = scmp.lt.s32.totalorder %s11, 1
        %s160 = scalar_select %p159, %s11, 1
        %s161 = smul.addr %s160, 8
        %s162 = smul.addr %s161, 8
        %s163 = scalar_lea.vmem %s0, %s162
      $region28: #{mynet_forward.4} parent=23 // pred_fallthru
        _
    $region24: #{mynet_forward.4} parent=5 // pred_fallthru
      _
    %p164 = scmp.le.s32.totalorder 1, %s11
    %p165 = scmp.lt.s32.totalorder %s11, 3
    %p166 = pnand %p164, %p165
    %p167 = pneg %p166
    // Predicated region
    $region29: #{mynet_forward.4} parent=5 // pred_check
      _
    $region30: #{mynet_forward.4} parent=5 // pred_check_branch
      %169 = sbr.rel (%p166) target = $region32
    $region31: #{mynet_forward.4} parent=5 // pred_region
      %s170 = ssub.s32 %s11, 1
      %p171 = scmp.lt.s32.totalorder %s16, 1
      %s172 = scalar_select %p171, %s16, 1
      %s173 = smul.addr %s172, 8
      %s174 = smul.addr %s173, 8
      %s175 = scalar_lea.vmem %s0, %s174
      %p176 = pneg %p37
      %p177 = pneg %p34
      %p178 = pneg %p58
      %p179 = pneg %p55
      %p180 = pneg %p79
      %p181 = pneg %p76
      %p182 = pneg %p105
      %p183 = pneg %p102
      %p184 = scmp.lt.s32.totalorder %s16, 1
      %s185 = scalar_select %p184, %s16, 1
      %s186 = smul.addr %s185, 8
      %s187 = smul.addr %s186, 8
      %s188 = scalar_lea.vmem %s3, %s187
      %p189 = pneg %p131
      %p190 = pneg %p128
      %p191 = scmp.lt.s32.totalorder %s16, 1
      %s192 = scalar_select %p191, %s16, 1
      %s193 = smul.addr %s192, 2
      %s194 = scalar_lea.vmem %s4, %s193
      %p195 = scmp.lt.s32.totalorder %s16, 1
      %s196 = scalar_select %p195, %s16, 1
      %s197 = smul.addr %s196, 8
      %s198 = smul.addr %s197, 8
      %s199 = scalar_lea.vmem %s0, %s198
      %p200 = scmp.lt.s32.totalorder %s16, 1
      %s201 = scalar_select %p200, %s16, 1
      %s202 = smul.addr %s201, 8
      %s203 = smul.addr %s202, 8
      %s204 = scalar_lea.vmem %s3, %s203
      %p205 = scmp.lt.s32.totalorder %s16, 1
      %s206 = scalar_select %p205, %s16, 1
      %s207 = smul.addr %s206, 2
      %s208 = scalar_lea.vmem %s4, %s207
      %v210 = vld [vmem:[%s199] sm:$0xff]
      %v211 = vld [vmem:[%s199 + $0x8] sm:$0xff]
      %v212 = vld [vmem:[%s199 + $0x10] sm:$0xff]
      %v213 = vld [vmem:[%s199 + $0x18] sm:$0xff]
      %v214 = vld [vmem:[%s199 + $0x20] sm:$0xff]
      %v215 = vld [vmem:[%s199 + $0x28] sm:$0xff]
      %v216 = vld [vmem:[%s199 + $0x30] sm:$0xff]
      %v217 = vld [vmem:[%s199 + $0x38] sm:$0xff]
      %vm218 = vcmask 261120
      %219 = vst.msk [vmem:[#allocation2] sm:$0xff] %vm218, 0.0
      %vm220 = vcmask 254976
      %221 = vst.msk [vmem:[#allocation2 + $0x8] sm:$0x3] %vm220, 0.0
      %222 = vst.msk [vmem:[#allocation2 + $0x10] sm:$0xff] %vm218, 0.0
      %223 = vst.msk [vmem:[#allocation2 + $0x18] sm:$0x3] %vm220, 0.0
      %224 = vst.msk [vmem:[#allocation2 + $0x20] sm:$0xff] %vm218, 0.0
      %225 = vst.msk [vmem:[#allocation2 + $0x28] sm:$0x3] %vm220, 0.0
      %226 = vst.msk [vmem:[#allocation2 + $0x30] sm:$0xff] %vm218, 0.0
      %227 = vst.msk [vmem:[#allocation2 + $0x38] sm:$0x3] %vm220, 0.0
      %228 = vst.msk [vmem:[#allocation2 + $0x40] sm:$0xff] %vm218, 0.0
      %229 = vst.msk [vmem:[#allocation2 + $0x48] sm:$0x3] %vm220, 0.0
      %230 = vst.msk [vmem:[#allocation2 + $0x50] sm:$0xff] %vm218, 0.0
      %231 = vst.msk [vmem:[#allocation2 + $0x58] sm:$0x3] %vm220, 0.0
      %232 = vst.msk [vmem:[#allocation2 + $0x60] sm:$0xff] %vm218, 0.0
      %233 = vst.msk [vmem:[#allocation2 + $0x68] sm:$0x3] %vm220, 0.0
      %234 = vst.msk [vmem:[#allocation2 + $0x70] sm:$0xff] %vm218, 0.0
      %235 = vst.msk [vmem:[#allocation2 + $0x78] sm:$0x3] %vm220, 0.0
      %236 = vst.msk [vmem:[#allocation2 + $0x80] sm:$0xff] %vm218, 0.0
      %237 = vst.msk [vmem:[#allocation2 + $0x88] sm:$0x3] %vm220, 0.0
      %238 = vst.msk [vmem:[#allocation2 + $0x90] sm:$0xff] %vm218, 0.0
      %239 = vst.msk [vmem:[#allocation2 + $0x98] sm:$0x3] %vm220, 0.0
      %s240 = scalar_lea.vmem [#allocation2], 16
      %241 = vst.msk [vmem:[%s240 + $0x1] sm:$0xff] %vm218, %v210
      %242 = vst.msk [vmem:[%s240 + $0x11] sm:$0xff] %vm218, %v211
      %243 = vst.msk [vmem:[%s240 + $0x21] sm:$0xff] %vm218, %v212
      %244 = vst.msk [vmem:[%s240 + $0x31] sm:$0xff] %vm218, %v213
      %245 = vst.msk [vmem:[%s240 + $0x41] sm:$0xff] %vm218, %v214
      %246 = vst.msk [vmem:[%s240 + $0x51] sm:$0xff] %vm218, %v215
      %247 = vst.msk [vmem:[%s240 + $0x61] sm:$0xff] %vm218, %v216
      %248 = vst.msk [vmem:[%s240 + $0x71] sm:$0xff] %vm218, %v217
      %v249 = vld [vmem:[#allocation2] sm:$0xff]
      %v250 = vld [vmem:[#allocation2 + $0x10] sm:$0xff]
      %v251 = vld [vmem:[#allocation2 + $0x20] sm:$0xff]
      %v252 = vld [vmem:[#allocation2 + $0x30] sm:$0xff]
      %v253 = vld [vmem:[#allocation2 + $0x40] sm:$0xff]
      %v254 = vld [vmem:[#allocation2 + $0x50] sm:$0xff]
      %v255 = vld [vmem:[#allocation2 + $0x60] sm:$0xff]
      %v256 = vld [vmem:[#allocation2 + $0x70] sm:$0xff]
      %v257 = vld [vmem:[#allocation2 + $0x1] sm:$0xff]
      %v258 = vld [vmem:[#allocation2 + $0x11] sm:$0xff]
      %v259 = vld [vmem:[#allocation2 + $0x21] sm:$0xff]
      %v260 = vld [vmem:[#allocation2 + $0x31] sm:$0xff]
      %v261 = vld [vmem:[#allocation2 + $0x41] sm:$0xff]
      %v262 = vld [vmem:[#allocation2 + $0x51] sm:$0xff]
      %v263 = vld [vmem:[#allocation2 + $0x61] sm:$0xff]
      %v264 = vld [vmem:[#allocation2 + $0x71] sm:$0xff]
      %v265 = vld [vmem:[#allocation2 + $0x2] sm:$0xff]
      %v266 = vld [vmem:[#allocation2 + $0x12] sm:$0xff]
      %v267 = vld [vmem:[#allocation2 + $0x22] sm:$0xff]
      %v268 = vld [vmem:[#allocation2 + $0x32] sm:$0xff]
      %v269 = vld [vmem:[#allocation2 + $0x42] sm:$0xff]
      %v270 = vld [vmem:[#allocation2 + $0x52] sm:$0xff]
      %v271 = vld [vmem:[#allocation2 + $0x62] sm:$0xff]
      %v272 = vld [vmem:[#allocation2 + $0x72] sm:$0xff]
      %v273 = vld [vmem:[%s240] sm:$0xff]
      %v274 = vld [vmem:[%s240 + $0x10] sm:$0xff]
      %v275 = vld [vmem:[%s240 + $0x20] sm:$0xff]
      %v276 = vld [vmem:[%s240 + $0x30] sm:$0xff]
      %v277 = vld [vmem:[%s240 + $0x40] sm:$0xff]
      %v278 = vld [vmem:[%s240 + $0x50] sm:$0xff]
      %v279 = vld [vmem:[%s240 + $0x60] sm:$0xff]
      %v280 = vld [vmem:[%s240 + $0x70] sm:$0xff]
      %v281 = vld [vmem:[%s240 + $0x1] sm:$0xff]
      %v282 = vld [vmem:[%s240 + $0x11] sm:$0xff]
      %v283 = vld [vmem:[%s240 + $0x21] sm:$0xff]
      %v284 = vld [vmem:[%s240 + $0x31] sm:$0xff]
      %v285 = vld [vmem:[%s240 + $0x41] sm:$0xff]
      %v286 = vld [vmem:[%s240 + $0x51] sm:$0xff]
      %v287 = vld [vmem:[%s240 + $0x61] sm:$0xff]
      %v288 = vld [vmem:[%s240 + $0x71] sm:$0xff]
      %v289 = vld [vmem:[%s240 + $0x2] sm:$0xff]
      %v290 = vld [vmem:[%s240 + $0x12] sm:$0xff]
      %v291 = vld [vmem:[%s240 + $0x22] sm:$0xff]
      %v292 = vld [vmem:[%s240 + $0x32] sm:$0xff]
      %v293 = vld [vmem:[%s240 + $0x42] sm:$0xff]
      %v294 = vld [vmem:[%s240 + $0x52] sm:$0xff]
      %v295 = vld [vmem:[%s240 + $0x62] sm:$0xff]
      %v296 = vld [vmem:[%s240 + $0x72] sm:$0xff]
      %s297 = scalar_lea.vmem [#allocation2], 32
      %v298 = vld [vmem:[%s297] sm:$0xff]
      %v299 = vld [vmem:[%s297 + $0x10] sm:$0xff]
      %v300 = vld [vmem:[%s297 + $0x20] sm:$0xff]
      %v301 = vld [vmem:[%s297 + $0x30] sm:$0xff]
      %v302 = vld [vmem:[%s297 + $0x40] sm:$0xff]
      %v303 = vld [vmem:[%s297 + $0x50] sm:$0xff]
      %v304 = vld [vmem:[%s297 + $0x60] sm:$0xff]
      %v305 = vld [vmem:[%s297 + $0x70] sm:$0xff]
      %v306 = vld [vmem:[%s297 + $0x1] sm:$0xff]
      %v307 = vld [vmem:[%s297 + $0x11] sm:$0xff]
      %v308 = vld [vmem:[%s297 + $0x21] sm:$0xff]
      %v309 = vld [vmem:[%s297 + $0x31] sm:$0xff]
      %v310 = vld [vmem:[%s297 + $0x41] sm:$0xff]
      %v311 = vld [vmem:[%s297 + $0x51] sm:$0xff]
      %v312 = vld [vmem:[%s297 + $0x61] sm:$0xff]
      %v313 = vld [vmem:[%s297 + $0x71] sm:$0xff]
      %v314 = vld [vmem:[%s297 + $0x2] sm:$0xff]
      %v315 = vld [vmem:[%s297 + $0x12] sm:$0xff]
      %v316 = vld [vmem:[%s297 + $0x22] sm:$0xff]
      %v317 = vld [vmem:[%s297 + $0x32] sm:$0xff]
      %v318 = vld [vmem:[%s297 + $0x42] sm:$0xff]
      %v319 = vld [vmem:[%s297 + $0x52] sm:$0xff]
      %v320 = vld [vmem:[%s297 + $0x62] sm:$0xff]
      %v321 = vld [vmem:[%s297 + $0x72] sm:$0xff]
      %330 = vrot.lane.b32.xlu0 %v257, 32
      %v331 = vpop.permute.xlu0 %330
      %332 = vrot.lane.b32.xlu0 %v258, 32
      %v333 = vpop.permute.xlu0 %332
      %334 = vrot.lane.b32.xlu0 %v259, 32
      %v335 = vpop.permute.xlu0 %334
      %336 = vrot.lane.b32.xlu0 %v260, 32
      %v337 = vpop.permute.xlu0 %336
      %338 = vrot.lane.b32.xlu0 %v261, 32
      %v339 = vpop.permute.xlu0 %338
      %340 = vrot.lane.b32.xlu0 %v262, 32
      %v341 = vpop.permute.xlu0 %340
      %342 = vrot.lane.b32.xlu0 %v263, 32
      %v343 = vpop.permute.xlu0 %342
      %344 = vrot.lane.b32.xlu0 %v264, 32
      %v345 = vpop.permute.xlu0 %344
      %362 = vrot.lane.b32.xlu0 %v265, 64
      %v363 = vpop.permute.xlu0 %362
      %364 = vrot.lane.b32.xlu0 %v266, 64
      %v365 = vpop.permute.xlu0 %364
      %366 = vrot.lane.b32.xlu0 %v267, 64
      %v367 = vpop.permute.xlu0 %366
      %368 = vrot.lane.b32.xlu0 %v268, 64
      %v369 = vpop.permute.xlu0 %368
      %370 = vrot.lane.b32.xlu0 %v269, 64
      %v371 = vpop.permute.xlu0 %370
      %372 = vrot.lane.b32.xlu0 %v270, 64
      %v373 = vpop.permute.xlu0 %372
      %374 = vrot.lane.b32.xlu0 %v271, 64
      %v375 = vpop.permute.xlu0 %374
      %376 = vrot.lane.b32.xlu0 %v272, 64
      %v377 = vpop.permute.xlu0 %376
      %394 = vrot.lane.b32.xlu0 %v273, 96
      %v395 = vpop.permute.xlu0 %394
      %396 = vrot.lane.b32.xlu0 %v274, 96
      %v397 = vpop.permute.xlu0 %396
      %398 = vrot.lane.b32.xlu0 %v275, 96
      %v399 = vpop.permute.xlu0 %398
      %400 = vrot.lane.b32.xlu0 %v276, 96
      %v401 = vpop.permute.xlu0 %400
      %402 = vrot.lane.b32.xlu0 %v277, 96
      %v403 = vpop.permute.xlu0 %402
      %404 = vrot.lane.b32.xlu0 %v278, 96
      %v405 = vpop.permute.xlu0 %404
      %406 = vrot.lane.b32.xlu0 %v279, 96
      %v407 = vpop.permute.xlu0 %406
      %408 = vrot.lane.b32.xlu0 %v280, 96
      %v409 = vpop.permute.xlu0 %408
      %426 = vrot.lane.b32.xlu0 %v289, 32
      %v427 = vpop.permute.xlu0 %426
      %428 = vrot.lane.b32.xlu0 %v290, 32
      %v429 = vpop.permute.xlu0 %428
      %430 = vrot.lane.b32.xlu0 %v291, 32
      %v431 = vpop.permute.xlu0 %430
      %432 = vrot.lane.b32.xlu0 %v292, 32
      %v433 = vpop.permute.xlu0 %432
      %434 = vrot.lane.b32.xlu0 %v293, 32
      %v435 = vpop.permute.xlu0 %434
      %436 = vrot.lane.b32.xlu0 %v294, 32
      %v437 = vpop.permute.xlu0 %436
      %438 = vrot.lane.b32.xlu0 %v295, 32
      %v439 = vpop.permute.xlu0 %438
      %440 = vrot.lane.b32.xlu0 %v296, 32
      %v441 = vpop.permute.xlu0 %440
      %458 = vrot.lane.b32.xlu0 %v298, 64
      %v459 = vpop.permute.xlu0 %458
      %460 = vrot.lane.b32.xlu0 %v299, 64
      %v461 = vpop.permute.xlu0 %460
      %462 = vrot.lane.b32.xlu0 %v300, 64
      %v463 = vpop.permute.xlu0 %462
      %464 = vrot.lane.b32.xlu0 %v301, 64
      %v465 = vpop.permute.xlu0 %464
      %466 = vrot.lane.b32.xlu0 %v302, 64
      %v467 = vpop.permute.xlu0 %466
      %468 = vrot.lane.b32.xlu0 %v303, 64
      %v469 = vpop.permute.xlu0 %468
      %470 = vrot.lane.b32.xlu0 %v304, 64
      %v471 = vpop.permute.xlu0 %470
      %472 = vrot.lane.b32.xlu0 %v305, 64
      %v473 = vpop.permute.xlu0 %472
      %490 = vrot.lane.b32.xlu0 %v306, 96
      %v491 = vpop.permute.xlu0 %490
      %492 = vrot.lane.b32.xlu0 %v307, 96
      %v493 = vpop.permute.xlu0 %492
      %494 = vrot.lane.b32.xlu0 %v308, 96
      %v495 = vpop.permute.xlu0 %494
      %496 = vrot.lane.b32.xlu0 %v309, 96
      %v497 = vpop.permute.xlu0 %496
      %498 = vrot.lane.b32.xlu0 %v310, 96
      %v499 = vpop.permute.xlu0 %498
      %500 = vrot.lane.b32.xlu0 %v311, 96
      %v501 = vpop.permute.xlu0 %500
      %502 = vrot.lane.b32.xlu0 %v312, 96
      %v503 = vpop.permute.xlu0 %502
      %504 = vrot.lane.b32.xlu0 %v313, 96
      %v505 = vpop.permute.xlu0 %504
      %v514 = vsel %vm218, %v249, %v331
      %v515 = vsel %vm218, %v250, %v333
      %v516 = vsel %vm218, %v251, %v335
      %v517 = vsel %vm218, %v252, %v337
      %v518 = vsel %vm218, %v253, %v339
      %v519 = vsel %vm218, %v254, %v341
      %v520 = vsel %vm218, %v255, %v343
      %v521 = vsel %vm218, %v256, %v345
      %vm522 = vcmask 523264
      %v523 = vsel %vm522, %v514, %v363
      %v524 = vsel %vm522, %v515, %v365
      %v525 = vsel %vm522, %v516, %v367
      %v526 = vsel %vm522, %v517, %v369
      %v527 = vsel %vm522, %v518, %v371
      %v528 = vsel %vm522, %v519, %v373
      %v529 = vsel %vm522, %v520, %v375
      %v530 = vsel %vm522, %v521, %v377
      %vm531 = vcmask 785408
      %v532 = vsel %vm531, %v523, %v395
      %v533 = vsel %vm531, %v524, %v397
      %v534 = vsel %vm531, %v525, %v399
      %v535 = vsel %vm531, %v526, %v401
      %v536 = vsel %vm531, %v527, %v403
      %v537 = vsel %vm531, %v528, %v405
      %v538 = vsel %vm531, %v529, %v407
      %v539 = vsel %vm531, %v530, %v409
      %v540 = vsel %vm218, %v281, %v427
      %v541 = vsel %vm218, %v282, %v429
      %v542 = vsel %vm218, %v283, %v431
      %v543 = vsel %vm218, %v284, %v433
      %v544 = vsel %vm218, %v285, %v435
      %v545 = vsel %vm218, %v286, %v437
      %v546 = vsel %vm218, %v287, %v439
      %v547 = vsel %vm218, %v288, %v441
      %v548 = vsel %vm522, %v540, %v459
      %v549 = vsel %vm522, %v541, %v461
      %v550 = vsel %vm522, %v542, %v463
      %v551 = vsel %vm522, %v543, %v465
      %v552 = vsel %vm522, %v544, %v467
      %v553 = vsel %vm522, %v545, %v469
      %v554 = vsel %vm522, %v546, %v471
      %v555 = vsel %vm522, %v547, %v473
      %v556 = vsel %vm531, %v548, %v491
      %v557 = vsel %vm531, %v549, %v493
      %v558 = vsel %vm531, %v550, %v495
      %v559 = vsel %vm531, %v551, %v497
      %v560 = vsel %vm531, %v552, %v499
      %v561 = vsel %vm531, %v553, %v501
      %v562 = vsel %vm531, %v554, %v503
      %v563 = vsel %vm531, %v555, %v505
      %v564 = vpack.c.bf16 %v533, %v532
      %v565 = vpack.c.bf16 %v557, %v556
      %v566 = vpack.c.bf16 %v315, %v314
      %v567 = vpack.c.bf16 %v535, %v534
      %v568 = vpack.c.bf16 %v559, %v558
      %v569 = vpack.c.bf16 %v317, %v316
      %v570 = vpack.c.bf16 %v537, %v536
      %v571 = vpack.c.bf16 %v561, %v560
      %v572 = vpack.c.bf16 %v319, %v318
      %v573 = vpack.c.bf16 %v539, %v538
      %v574 = vpack.c.bf16 %v563, %v562
      %v575 = vpack.c.bf16 %v321, %v320
      %v576 = vld [vmem:[%s1] sm:$0xf]
      %v577 = vld [vmem:[%s1 + $0x4] sm:$0xf]
      %v578 = vld [vmem:[%s1 + $0x8] sm:$0xf]
      %v579 = vld [vmem:[%s1 + $0xc] sm:$0xf]
      %v580 = vld [vmem:[%s1 + $0x10] sm:$0xf]
      %v581 = vld [vmem:[%s1 + $0x14] sm:$0xf]
      %v582 = vld [vmem:[%s1 + $0x18] sm:$0xf]
      %v583 = vld [vmem:[%s1 + $0x1c] sm:$0xf]
      %v584 = vld [vmem:[%s1 + $0x20] sm:$0xf]
      %v585 = vld [vmem:[%s1 + $0x24] sm:$0xf]
      %v586 = vld [vmem:[%s1 + $0x28] sm:$0xf]
      %v587 = vld [vmem:[%s1 + $0x2c] sm:$0xf]
      %v588 = vld [vmem:[%s1 + $0x30] sm:$0xf]
      %v589 = vld [vmem:[%s1 + $0x34] sm:$0xf]
      %v590 = vld [vmem:[%s1 + $0x38] sm:$0xf]
      %v591 = vld [vmem:[%s1 + $0x3c] sm:$0xf]
      %v592 = vld [vmem:[%s1 + $0x40] sm:$0xf]
      %v593 = vld [vmem:[%s1 + $0x44] sm:$0xf]
      %v594 = vld [vmem:[%s1 + $0x48] sm:$0xf]
      %v595 = vld [vmem:[%s1 + $0x4c] sm:$0xf]
      %v596 = vld [vmem:[%s1 + $0x50] sm:$0xf]
      %v597 = vld [vmem:[%s1 + $0x54] sm:$0xf]
      %v598 = vld [vmem:[%s1 + $0x58] sm:$0xf]
      %v599 = vld [vmem:[%s1 + $0x5c] sm:$0xf]
      %v600 = vld [vmem:[%s1 + $0x60] sm:$0xf]
      %v601 = vld [vmem:[%s1 + $0x64] sm:$0xf]
      %v602 = vld [vmem:[%s1 + $0x68] sm:$0xf]
      %v603 = vld [vmem:[%s1 + $0x6c] sm:$0xf]
      %v604 = vld [vmem:[%s1 + $0x70] sm:$0xf]
      %v605 = vld [vmem:[%s1 + $0x74] sm:$0xf]
      %v606 = vld [vmem:[%s1 + $0x78] sm:$0xf]
      %v607 = vld [vmem:[%s1 + $0x7c] sm:$0xf]
      %v608 = vld [vmem:[%s1 + $0x80] sm:$0xf]
      %v609 = vld [vmem:[%s1 + $0x84] sm:$0xf]
      %v610 = vld [vmem:[%s1 + $0x88] sm:$0xf]
      %v611 = vld [vmem:[%s1 + $0x8c] sm:$0xf]
      %v612 = vld [vmem:[%s2] sm:$0x1]
      %v614 = vlaneseq
      %v615 = vshrl.u32 %v614, 7
      %v616 = vsub.s32 0, %v615
      %v617 = vrot.slane %v612, %v616
      %v655 = vunpack.c.l.b16 %v576
      %v656 = vunpack.c.l.b16 %v577
      %v657 = vunpack.c.l.b16 %v578
      %v658 = vunpack.c.l.b16 %v579
      %v659 = vunpack.c.l.b16 %v580
      %v660 = vunpack.c.l.b16 %v581
      %v661 = vunpack.c.l.b16 %v582
      %v662 = vunpack.c.l.b16 %v583
      %v663 = vunpack.c.l.b16 %v584
      %v664 = vunpack.c.l.b16 %v585
      %v665 = vunpack.c.l.b16 %v586
      %v666 = vunpack.c.l.b16 %v587
      %v667 = vunpack.c.l.b16 %v588
      %v668 = vunpack.c.l.b16 %v589
      %v669 = vunpack.c.l.b16 %v590
      %v670 = vunpack.c.l.b16 %v591
      %v671 = vunpack.c.l.b16 %v592
      %v672 = vunpack.c.l.b16 %v593
      %v673 = vunpack.c.l.b16 %v594
      %v674 = vunpack.c.l.b16 %v595
      %v675 = vunpack.c.l.b16 %v596
      %v676 = vunpack.c.l.b16 %v597
      %v677 = vunpack.c.l.b16 %v598
      %v678 = vunpack.c.l.b16 %v599
      %v679 = vunpack.c.l.b16 %v600
      %v680 = vunpack.c.l.b16 %v601
      %v681 = vunpack.c.l.b16 %v602
      %v682 = vunpack.c.l.b16 %v603
      %v683 = vunpack.c.l.b16 %v604
      %v684 = vunpack.c.l.b16 %v605
      %v685 = vunpack.c.l.b16 %v606
      %v686 = vunpack.c.l.b16 %v607
      %v687 = vunpack.c.l.b16 %v608
      %v688 = vunpack.c.l.b16 %v609
      %v689 = vunpack.c.l.b16 %v610
      %v690 = vunpack.c.l.b16 %v611
      %v691 = vpack.c.b16 %v656, %v655
      %v692 = vpack.c.b16 %v658, %v657
      %v693 = vpack.c.b16 %v660, %v659
      %v694 = vpack.c.b16 %v662, %v661
      %v695 = vpack.c.b16 %v664, %v663
      %v696 = vpack.c.b16 %v666, %v665
      %v697 = vpack.c.b16 %v668, %v667
      %v698 = vpack.c.b16 %v670, %v669
      %v699 = vpack.c.b16 %v672, %v671
      %v700 = vpack.c.b16 %v674, %v673
      %v701 = vpack.c.b16 %v676, %v675
      %v702 = vpack.c.b16 %v678, %v677
      %v703 = vpack.c.b16 %v680, %v679
      %v704 = vpack.c.b16 %v682, %v681
      %v705 = vpack.c.b16 %v684, %v683
      %v706 = vpack.c.b16 %v686, %v685
      %v707 = vpack.c.b16 %v688, %v687
      %v708 = vpack.c.b16 %v690, %v689
      %v728 = vsel %vm218, %v566, 0
      %v731 = vsel %vm218, %v569, 0
      %v734 = vsel %vm218, %v572, 0
      %v737 = vsel %vm218, %v575, 0
      %739 = vmatprep.subr.bf16.mxu0 0
      %740 = vmatpush1.bf16.msra.mxu0 %v691
      %741 = vmatprep.subr.bf16.mxu0 0
      %742 = vmatpush1.bf16.msra.mxu0 %v692
      %743 = vmatprep.subr.bf16.mxu0 0
      %744 = vmatpush1.bf16.msra.mxu0 %v693
      %745 = vmatprep.subr.bf16.mxu0 0
      %746 = vmatpush1.bf16.msra.mxu0 %v694
      %747 = vmatprep.subr.bf16.mxu0 0
      %748 = vmatpush1.bf16.msra.mxu0 %v695
      %749 = vmatprep.subr.bf16.mxu0 0
      %750 = vmatpush1.bf16.msra.mxu0 %v696
      %751 = vmatprep.subr.bf16.mxu0 0
      %752 = vmatpush1.bf16.msra.mxu0 %v697
      %753 = vmatprep.subr.bf16.mxu0 0
      %754 = vmatpush1.bf16.msra.mxu0 %v698
      %755 = vmatprep.subr.bf16.mxu0 0
      %756 = vmatpush1.bf16.msra.mxu0 %v699
      %757 = vmatprep.subr.bf16.mxu0 0
      %758 = vmatpush1.bf16.msra.mxu0 %v700
      %759 = vmatprep.subr.bf16.mxu0 0
      %760 = vmatpush1.bf16.msra.mxu0 %v701
      %761 = vmatprep.subr.bf16.mxu0 0
      %762 = vmatpush1.bf16.msra.mxu0 %v702
      %763 = vmatprep.subr.bf16.mxu0 0
      %764 = vmatpush1.bf16.msra.mxu0 %v703
      %765 = vmatprep.subr.bf16.mxu0 0
      %766 = vmatpush1.bf16.msra.mxu0 %v704
      %767 = vmatprep.subr.bf16.mxu0 0
      %768 = vmatpush1.bf16.msra.mxu0 %v705
      %769 = vmatprep.subr.bf16.mxu0 0
      %770 = vmatpush1.bf16.msra.mxu0 %v706
      %771 = vmatprep.mubr.bf16.mxu0 %v565
      %772 = vmatmul.mubr.bf16.gmra.mrb[0].mxu0 %v564
      %v773 = vpop.f32.mrb[0].mxu0
      %v774 = vadd.f32 %v617, %v773
      %v775 = vpop.f32.mrb[0].mxu0
      %v776 = vpop.f32.mrb[0].mxu0
      %v777 = vadd.f32 %v617, %v776
      %v778 = vpop.f32.mrb[0].mxu0
      %779 = vmatprep.mubr.bf16.mxu0 %v568
      %780 = vmatmul.mubr.bf16.gmra.mrb[0].mxu0 %v567
      %v781 = vpop.f32.mrb[0].mxu0
      %v782 = vadd.f32 %v617, %v781
      %v783 = vpop.f32.mrb[0].mxu0
      %v784 = vpop.f32.mrb[0].mxu0
      %v785 = vadd.f32 %v617, %v784
      %v786 = vpop.f32.mrb[0].mxu0
      %787 = vmatprep.mubr.bf16.mxu0 %v571
      %788 = vmatmul.mubr.bf16.gmra.mrb[0].mxu0 %v570
      %v789 = vpop.f32.mrb[0].mxu0
      %v790 = vadd.f32 %v617, %v789
      %v791 = vpop.f32.mrb[0].mxu0
      %v792 = vpop.f32.mrb[0].mxu0
      %v793 = vadd.f32 %v617, %v792
      %v794 = vpop.f32.mrb[0].mxu0
      %795 = vmatprep.mubr.bf16.mxu0 %v574
      %796 = vmatmul.mubr.bf16.gmra.mrb[0].mxu0 %v573
      %v797 = vpop.f32.mrb[0].mxu0
      %v798 = vadd.f32 %v617, %v797
      %v799 = vpop.f32.mrb[0].mxu0
      %v800 = vpop.f32.mrb[0].mxu0
      %v801 = vadd.f32 %v617, %v800
      %v802 = vpop.f32.mrb[0].mxu0
      %803 = vdwg.mxu0
      %804 = vmatprep.subr.bf16.mxu0 0
      %805 = vmatpush1.bf16.msra.mxu0 %v707
      %806 = vmatprep.subr.bf16.mxu0 0
      %807 = vmatpush1.bf16.msra.mxu0 %v708
      %808 = vmatprep.subr.bf16.mxu0 0
      %809 = vmatpush1.bf16.msra.mxu0 0
      %810 = vmatprep.subr.bf16.mxu0 0
      %811 = vmatpush1.bf16.msra.mxu0 0
      %812 = vmatprep.subr.bf16.mxu0 0
      %813 = vmatpush1.bf16.msra.mxu0 0
      %814 = vmatprep.subr.bf16.mxu0 0
      %815 = vmatpush1.bf16.msra.mxu0 0
      %816 = vmatprep.subr.bf16.mxu0 0
      %817 = vmatpush1.bf16.msra.mxu0 0
      %818 = vmatprep.subr.bf16.mxu0 0
      %819 = vmatpush1.bf16.msra.mxu0 0
      %820 = vmatprep.subr.bf16.mxu0 0
      %821 = vmatpush1.bf16.msra.mxu0 0
      %822 = vmatprep.subr.bf16.mxu0 0
      %823 = vmatpush1.bf16.msra.mxu0 0
      %824 = vmatprep.subr.bf16.mxu0 0
      %825 = vmatpush1.bf16.msra.mxu0 0
      %826 = vmatprep.subr.bf16.mxu0 0
      %827 = vmatpush1.bf16.msra.mxu0 0
      %828 = vmatprep.subr.bf16.mxu0 0
      %829 = vmatpush1.bf16.msra.mxu0 0
      %830 = vmatprep.subr.bf16.mxu0 0
      %831 = vmatpush1.bf16.msra.mxu0 0
      %832 = vmatprep.subr.bf16.mxu0 0
      %833 = vmatpush1.bf16.msra.mxu0 0
      %834 = vmatprep.subr.bf16.mxu0 0
      %835 = vmatpush1.bf16.msra.mxu0 0
      %836 = vmatprep.mubr.bf16.mxu0 0
      %837 = vmatmul.mubr.bf16.gmra.mrb[0].mxu0 %v728
      %v838 = vpop.f32.mrb[0].mxu0
      %v839 = vadd.f32 %v774, %v838
      %v840 = vpop.f32.mrb[0].mxu0
      %v841 = vpop.f32.mrb[0].mxu0
      %v842 = vadd.f32 %v777, %v841
      %v843 = vpop.f32.mrb[0].mxu0
      %844 = vmatprep.mubr.bf16.mxu0 0
      %845 = vmatmul.mubr.bf16.gmra.mrb[0].mxu0 %v731
      %v846 = vpop.f32.mrb[0].mxu0
      %v847 = vadd.f32 %v782, %v846
      %v848 = vpop.f32.mrb[0].mxu0
      %v849 = vpop.f32.mrb[0].mxu0
      %v850 = vadd.f32 %v785, %v849
      %v851 = vpop.f32.mrb[0].mxu0
      %852 = vmatprep.mubr.bf16.mxu0 0
      %853 = vmatmul.mubr.bf16.gmra.mrb[0].mxu0 %v734
      %v854 = vpop.f32.mrb[0].mxu0
      %v855 = vadd.f32 %v790, %v854
      %v856 = vpop.f32.mrb[0].mxu0
      %v857 = vpop.f32.mrb[0].mxu0
      %v858 = vadd.f32 %v793, %v857
      %v859 = vpop.f32.mrb[0].mxu0
      %860 = vmatprep.mubr.bf16.mxu0 0
      %861 = vmatmul.mubr.bf16.gmra.mrb[0].mxu0 %v737
      %v862 = vpop.f32.mrb[0].mxu0
      %v863 = vadd.f32 %v798, %v862
      %v864 = vpop.f32.mrb[0].mxu0
      %v865 = vpop.f32.mrb[0].mxu0
      %v866 = vadd.f32 %v801, %v865
      %v867 = vpop.f32.mrb[0].mxu0
      %868 = vdwg.mxu0
      %869 = vst.msk [vmem:[%s204] sm:$0xff] %vm218, %v839
      %870 = vst.msk [vmem:[%s204 + $0x8] sm:$0xff] %vm218, %v842
      %871 = vst.msk [vmem:[%s204 + $0x10] sm:$0xff] %vm218, %v847
      %872 = vst.msk [vmem:[%s204 + $0x18] sm:$0xff] %vm218, %v850
      %873 = vst.msk [vmem:[%s204 + $0x20] sm:$0xff] %vm218, %v855
      %874 = vst.msk [vmem:[%s204 + $0x28] sm:$0xff] %vm218, %v858
      %875 = vst.msk [vmem:[%s204 + $0x30] sm:$0xff] %vm218, %v863
      %876 = vst.msk [vmem:[%s204 + $0x38] sm:$0xff] %vm218, %v866
      %v877 = vsel %vm218, %v839, 0.0
      %v878 = vsel %vm218, %v842, 0.0
      %v879 = vadd.f32 %v877, %v878
      %v880 = vsel %vm218, %v847, 0.0
      %v881 = vadd.f32 %v879, %v880
      %v882 = vsel %vm218, %v850, 0.0
      %v883 = vadd.f32 %v881, %v882
      %v884 = vsel %vm218, %v855, 0.0
      %v885 = vadd.f32 %v883, %v884
      %v886 = vsel %vm218, %v858, 0.0
      %v887 = vadd.f32 %v885, %v886
      %v888 = vsel %vm218, %v863, 0.0
      %v889 = vadd.f32 %v887, %v888
      %v890 = vsel %vm218, %v866, 0.0
      %v891 = vadd.f32 %v889, %v890
      %v892 = vrot.slane %v891, 4
      %v893 = vadd.f32 %v891, %v892
      %v894 = vrot.slane %v893, 2
      %v895 = vadd.f32 %v893, %v894
      %v896 = vrot.slane %v895, 1
      %v897 = vadd.f32 %v895, %v896
      %vm898 = vcmask 253952
      %899 = vst.msk [vmem:[%s208] sm:$0x1] %vm898, %v897
      %v900 = vmul.f32 %v839, %v839
      %v901 = vmul.f32 %v842, %v842
      %v902 = vmul.f32 %v847, %v847
      %v903 = vmul.f32 %v850, %v850
      %v904 = vmul.f32 %v855, %v855
      %v905 = vmul.f32 %v858, %v858
      %v906 = vmul.f32 %v863, %v863
      %v907 = vmul.f32 %v866, %v866
      %v908 = vsel %vm218, %v900, 0.0
      %v909 = vsel %vm218, %v901, 0.0
      %v910 = vadd.f32 %v908, %v909
      %v911 = vsel %vm218, %v902, 0.0
      %v912 = vadd.f32 %v910, %v911
      %v913 = vsel %vm218, %v903, 0.0
      %v914 = vadd.f32 %v912, %v913
      %v915 = vsel %vm218, %v904, 0.0
      %v916 = vadd.f32 %v914, %v915
      %v917 = vsel %vm218, %v905, 0.0
      %v918 = vadd.f32 %v916, %v917
      %v919 = vsel %vm218, %v906, 0.0
      %v920 = vadd.f32 %v918, %v919
      %v921 = vsel %vm218, %v907, 0.0
      %v922 = vadd.f32 %v920, %v921
      %v923 = vrot.slane %v922, 4
      %v924 = vadd.f32 %v922, %v923
      %v925 = vrot.slane %v924, 2
      %v926 = vadd.f32 %v924, %v925
      %v927 = vrot.slane %v926, 1
      %v928 = vadd.f32 %v926, %v927
      %929 = vst.msk [vmem:[%s208 + $0x1] sm:$0x1] %vm898, %v928
      %p930 = scmp.lt.s32.totalorder %s16, 1
      %s931 = scalar_select %p930, %s16, 1
      %s932 = smul.addr %s931, 8
      %s933 = smul.addr %s932, 8
      %s934 = scalar_lea.vmem %s3, %s933
      %p935 = scmp.lt.s32.totalorder %s16, 1
      %s936 = scalar_select %p935, %s16, 1
      %s937 = smul.addr %s936, 2
      %s938 = scalar_lea.vmem %s4, %s937
      // Predicated region
      $region33: #{mynet_forward.4} parent=31 // pred_check
        %p939 = pneg %p102
      $region34: #{mynet_forward.4} parent=31 // pred_check_branch
        %941 = sbr.rel (%p939) target = $region36
      $region35: #{mynet_forward.4} parent=31 // pred_region
        _
      $region36: #{mynet_forward.4} parent=31 // pred_fallthru
        _
      // Predicated region
      $region37: #{mynet_forward.4} parent=31 // pred_check
        %p942 = pneg %p128
      $region38: #{mynet_forward.4} parent=31 // pred_check_branch
        %944 = sbr.rel (%p942) target = $region40
      $region39: #{mynet_forward.4} parent=31 // pred_region
        _
      $region40: #{mynet_forward.4} parent=31 // pred_fallthru
        _
    $region32: #{mynet_forward.4} parent=5 // pred_fallthru
      _
    %p945 = scmp.le.s32.totalorder 2, %s11
    // Predicated region
    $region41: #{mynet_forward.4} parent=5 // pred_check
      %p946 = pneg %p945
    $region42: #{mynet_forward.4} parent=5 // pred_check_branch
      %948 = sbr.rel (%p946) target = $region44
    $region43: #{mynet_forward.4} parent=5 // pred_region
      %s949 = ssub.s32 %s11, 2
      // Predicated region
      $region45: #{mynet_forward.4} parent=43 // pred_check
        %p950 = pneg %p108
      $region46: #{mynet_forward.4} parent=43 // pred_check_branch
        %952 = sbr.rel (%p950) target = $region48
      $region47: #{mynet_forward.4} parent=43 // pred_region
        %p953 = scmp.lt.s32.totalorder %s17, 1
        %s954 = scalar_select %p953, %s17, 1
        %s955 = smul.addr %s954, 8
        %s956 = smul.addr %s955, 8
        %s957 = scalar_lea.vmem %s3, %s956
      $region48: #{mynet_forward.4} parent=43 // pred_fallthru
        _
      // Predicated region
      $region49: #{mynet_forward.4} parent=43 // pred_check
        %p958 = pneg %p134
      $region50: #{mynet_forward.4} parent=43 // pred_check_branch
        %960 = sbr.rel (%p958) target = $region52
      $region51: #{mynet_forward.4} parent=43 // pred_region
        %p961 = scmp.lt.s32.totalorder %s17, 1
        %s962 = scalar_select %p961, %s17, 1
        %s963 = smul.addr %s962, 2
        %s964 = scalar_lea.vmem %s4, %s963
      $region52: #{mynet_forward.4} parent=43 // pred_fallthru
        _
    $region44: #{mynet_forward.4} parent=5 // pred_fallthru
      _
  $region6: #{mynet_forward.4} parent=0 // loop_footer
    %s15 = sadd.s32 1, %s11
  $region7: #{mynet_forward.4} parent=0 // loop_footer_branch
    %10 = sbr.rel target = $region3
  $region8: #{mynet_forward.4} parent=0 // loop_exit
    _

// kernel: mynet_forward.5
$region0: #{mynet_forward.5}
  #allocation0 [shape = 'u32[]', space=smem, size = 0x4, offset = 0x4, fixed_abs, tag = 'smem constant byte address 0x4 - core index']
  #allocation1 [shape = 'u32[144,128]{1,0:T(1,128)}', space=vmem, size = 0x12000, scoped, tag = 'internal scratch']
  #allocation2 [shape = 'f32[10,10,32]{2,1,0:T(8,128)}', space=vmem, size = 0x14000, scoped, tag = 'scratch operand']
  #allocation3 [shape = 'f32[4,10,10,32]{3,2,1,0:T(8,128)}', space=vmem, size = 0x50000, scoped, tag = 'scratch operand']
  #allocation4 [shape = 'f32[1]{0:T(128)S(6)}', space=smem, size = 0x200, scoped, tag = 'scoped memory for mynet_forward.5']
  %s0 = inlined_call_operand.vmem [shape: f32[2,8,8,32], index: 0, kind: input, shape index: {}]
  %s1 = inlined_call_operand.vmem [shape: f32[2,8,8,32], index: 1, kind: input, shape index: {}]
  %s2 = inlined_call_operand.vmem [shape: f32[1,32], index: 2, kind: input, shape index: {}]
  %s3 = inlined_call_operand.vmem [shape: f32[1,32], index: 3, kind: input, shape index: {}]
  %s4 = inlined_call_operand.vmem [shape: bf16[288,128], index: 4, kind: input, shape index: {}]
  %s5 = inlined_call_operand.vmem [shape: f32[1,128], index: 5, kind: input, shape index: {}]
  %s6 = inlined_call_operand.vmem [shape: bf16[288,3], index: 6, kind: input, shape index: {}]
  %s7 = inlined_call_operand.vmem [shape: f32[1,3], index: 7, kind: input, shape index: {}]
  %s8 = inlined_call_operand.<no memory space> [shape: f32[1], index: 8, kind: input, shape index: {}]
  %s9 = inlined_call_operand.vmem [shape: f32[2,4,8,8,3], index: 9, kind: output, shape index: {}]
  %s10 = sld [smem:[#allocation0]]
  $region69: #{mynet_forward.5} parent=0
    _
  %s12 = ssub.s32 1, %s10
  %s13 = scalar_select 0, %s12, %s10
  %14 = sst [smem:[#allocation4]] %s8
  loop: start=0, step=1, limit=4
  $region2: #{mynet_forward.5} parent=0 // loop_pre_header
    _
  $region3: #{mynet_forward.5} parent=0 // loop_header
    %s16 = sphi 0, %s20
    %p17 = scmp.ge.s32.totalorder %s16, 4
    %s26 = sphi 0, %s28
    %s29 = sphi 0, %s26
    %s30 = sphi 0, %s29
    %s46 = sphi 0, %s30
    %s52 = sphi 0, %s54
    %s55 = sphi 0, %s52
    %s56 = sphi 0, %s55
    %s72 = sphi 0, %s56
    %s76 = sphi 0, %s76
    %s78 = sphi 0, %s76
    %s79 = sphi 0, %s78
    %s93 = sphi 0, %s79
    %s97 = sphi 0, %s97
    %s99 = sphi 0, %s97
    %s100 = sphi 0, %s99
    %s114 = sphi 0, %s100
    %s118 = sphi 0, %s118
    %s120 = sphi 0, %s118
    %s121 = sphi 0, %s120
    %s135 = sphi 0, %s121
    %s139 = sphi 0, %s139
    %s141 = sphi 0, %s139
    %s142 = sphi 0, %s141
    %s156 = sphi 0, %s142
    %s160 = sphi 0, %s160
    %s162 = sphi 0, %s160
    %s163 = sphi 0, %s162
    %s177 = sphi 0, %s163
    %s181 = sphi 0, %s181
    %s183 = sphi 0, %s181
    %s184 = sphi 0, %s183
    %s198 = sphi 0, %s184
    %s202 = sphi 0, %s202
    %s204 = sphi 0, %s202
    %s205 = sphi 0, %s204
    %s219 = sphi 0, %s205
    %s225 = sphi 0, %s227
    %s228 = sphi 0, %s225
    %s229 = sphi 0, %s228
    %s245 = sphi 0, %s229
  $region4: #{mynet_forward.5} parent=0 // loop_header_branch
    %19 = sbr.rel (%p17) target = $region8
  $region5: #{mynet_forward.5} parent=0 // loop_body
    %s21 = ssub.s32 %s16, 1
    %s22 = ssub.s32 %s16, 2
    %s23 = sadd.s32 %s16, 1
    %s24 = ssub.s32 %s16, %s23
    %p25 = scmp.eq.s32.totalorder %s24, 0
    %s27 = sadd.s32 %s26, 1
    %s28 = scalar_select %p25, %s26, %s27
    %p31 = pneg %p25
    %p32 = scmp.eq.s32.totalorder %s16, 1
    %p33 = por %p31, %p32
    %p34 = scmp.ne.s32.totalorder %s26, %s29
    %p35 = scmp.eq.s32.totalorder %s16, 0
    %p36 = por %p34, %p35
    %p37 = scmp.ne.s32.totalorder %s26, %s29
    %p38 = scmp.eq.s32.totalorder %s21, 1
    %p39 = por %p37, %p38
    %p40 = scmp.ne.s32.totalorder %s29, %s30
    %p41 = scmp.eq.s32.totalorder %s21, 0
    %p42 = por %p40, %p41
    %p43 = scmp.ne.s32.totalorder %s29, %s30
    %p44 = scmp.eq.s32.totalorder %s22, 1
    %p45 = por %p43, %p44
    %p47 = scmp.ne.s32.totalorder %s30, %s46
    %p48 = scmp.eq.s32.totalorder %s22, 0
    %p49 = por %p47, %p48
    %s50 = ssub.s32 %s16, %s23
    %p51 = scmp.eq.s32.totalorder %s50, 0
    %s53 = sadd.s32 %s52, 1
    %s54 = scalar_select %p51, %s52, %s53
    %p57 = pneg %p51
    %p58 = scmp.eq.s32.totalorder %s16, 1
    %p59 = por %p57, %p58
    %p60 = scmp.ne.s32.totalorder %s52, %s55
    %p61 = scmp.eq.s32.totalorder %s16, 0
    %p62 = por %p60, %p61
    %p63 = scmp.ne.s32.totalorder %s52, %s55
    %p64 = scmp.eq.s32.totalorder %s21, 1
    %p65 = por %p63, %p64
    %p66 = scmp.ne.s32.totalorder %s55, %s56
    %p67 = scmp.eq.s32.totalorder %s21, 0
    %p68 = por %p66, %p67
    %p69 = scmp.ne.s32.totalorder %s55, %s56
    %p70 = scmp.eq.s32.totalorder %s22, 1
    %p71 = por %p69, %p70
    %p73 = scmp.ne.s32.totalorder %s56, %s72
    %p74 = scmp.eq.s32.totalorder %s22, 0
    %p75 = por %p73, %p74
    %s77 = sadd.s32 %s76, 1
    %p80 = scmp.eq.s32.totalorder %s16, 1
    %p81 = scmp.ne.s32.totalorder %s76, %s78
    %p82 = scmp.eq.s32.totalorder %s16, 0
    %p83 = por %p81, %p82
    %p84 = scmp.ne.s32.totalorder %s76, %s78
    %p85 = scmp.eq.s32.totalorder %s21, 1
    %p86 = por %p84, %p85
    %p87 = scmp.ne.s32.totalorder %s78, %s79
    %p88 = scmp.eq.s32.totalorder %s21, 0
    %p89 = por %p87, %p88
    %p90 = scmp.ne.s32.totalorder %s78, %s79
    %p91 = scmp.eq.s32.totalorder %s22, 1
    %p92 = por %p90, %p91
    %p94 = scmp.ne.s32.totalorder %s79, %s93
    %p95 = scmp.eq.s32.totalorder %s22, 0
    %p96 = por %p94, %p95
    %s98 = sadd.s32 %s97, 1
    %p101 = scmp.eq.s32.totalorder %s16, 1
    %p102 = scmp.ne.s32.totalorder %s97, %s99
    %p103 = scmp.eq.s32.totalorder %s16, 0
    %p104 = por %p102, %p103
    %p105 = scmp.ne.s32.totalorder %s97, %s99
    %p106 = scmp.eq.s32.totalorder %s21, 1
    %p107 = por %p105, %p106
    %p108 = scmp.ne.s32.totalorder %s99, %s100
    %p109 = scmp.eq.s32.totalorder %s21, 0
    %p110 = por %p108, %p109
    %p111 = scmp.ne.s32.totalorder %s99, %s100
    %p112 = scmp.eq.s32.totalorder %s22, 1
    %p113 = por %p111, %p112
    %p115 = scmp.ne.s32.totalorder %s100, %s114
    %p116 = scmp.eq.s32.totalorder %s22, 0
    %p117 = por %p115, %p116
    %s119 = sadd.s32 %s118, 1
    %p122 = scmp.eq.s32.totalorder %s16, 1
    %p123 = scmp.ne.s32.totalorder %s118, %s120
    %p124 = scmp.eq.s32.totalorder %s16, 0
    %p125 = por %p123, %p124
    %p126 = scmp.ne.s32.totalorder %s118, %s120
    %p127 = scmp.eq.s32.totalorder %s21, 1
    %p128 = por %p126, %p127
    %p129 = scmp.ne.s32.totalorder %s120, %s121
    %p130 = scmp.eq.s32.totalorder %s21, 0
    %p131 = por %p129, %p130
    %p132 = scmp.ne.s32.totalorder %s120, %s121
    %p133 = scmp.eq.s32.totalorder %s22, 1
    %p134 = por %p132, %p133
    %p136 = scmp.ne.s32.totalorder %s121, %s135
    %p137 = scmp.eq.s32.totalorder %s22, 0
    %p138 = por %p136, %p137
    %s140 = sadd.s32 %s139, 1
    %p143 = scmp.eq.s32.totalorder %s16, 1
    %p144 = scmp.ne.s32.totalorder %s139, %s141
    %p145 = scmp.eq.s32.totalorder %s16, 0
    %p146 = por %p144, %p145
    %p147 = scmp.ne.s32.totalorder %s139, %s141
    %p148 = scmp.eq.s32.totalorder %s21, 1
    %p149 = por %p147, %p148
    %p150 = scmp.ne.s32.totalorder %s141, %s142
    %p151 = scmp.eq.s32.totalorder %s21, 0
    %p152 = por %p150, %p151
    %p153 = scmp.ne.s32.totalorder %s141, %s142
    %p154 = scmp.eq.s32.totalorder %s22, 1
    %p155 = por %p153, %p154
    %p157 = scmp.ne.s32.totalorder %s142, %s156
    %p158 = scmp.eq.s32.totalorder %s22, 0
    %p159 = por %p157, %p158
    %s161 = sadd.s32 %s160, 1
    %p164 = scmp.eq.s32.totalorder %s16, 1
    %p165 = scmp.ne.s32.totalorder %s160, %s162
    %p166 = scmp.eq.s32.totalorder %s16, 0
    %p167 = por %p165, %p166
    %p168 = scmp.ne.s32.totalorder %s160, %s162
    %p169 = scmp.eq.s32.totalorder %s21, 1
    %p170 = por %p168, %p169
    %p171 = scmp.ne.s32.totalorder %s162, %s163
    %p172 = scmp.eq.s32.totalorder %s21, 0
    %p173 = por %p171, %p172
    %p174 = scmp.ne.s32.totalorder %s162, %s163
    %p175 = scmp.eq.s32.totalorder %s22, 1
    %p176 = por %p174, %p175
    %p178 = scmp.ne.s32.totalorder %s163, %s177
    %p179 = scmp.eq.s32.totalorder %s22, 0
    %p180 = por %p178, %p179
    %s182 = sadd.s32 %s181, 1
    %p185 = scmp.eq.s32.totalorder %s16, 1
    %p186 = scmp.ne.s32.totalorder %s181, %s183
    %p187 = scmp.eq.s32.totalorder %s16, 0
    %p188 = por %p186, %p187
    %p189 = scmp.ne.s32.totalorder %s181, %s183
    %p190 = scmp.eq.s32.totalorder %s21, 1
    %p191 = por %p189, %p190
    %p192 = scmp.ne.s32.totalorder %s183, %s184
    %p193 = scmp.eq.s32.totalorder %s21, 0
    %p194 = por %p192, %p193
    %p195 = scmp.ne.s32.totalorder %s183, %s184
    %p196 = scmp.eq.s32.totalorder %s22, 1
    %p197 = por %p195, %p196
    %p199 = scmp.ne.s32.totalorder %s184, %s198
    %p200 = scmp.eq.s32.totalorder %s22, 0
    %p201 = por %p199, %p200
    %s203 = sadd.s32 %s202, 1
    %p206 = scmp.eq.s32.totalorder %s16, 1
    %p207 = scmp.ne.s32.totalorder %s202, %s204
    %p208 = scmp.eq.s32.totalorder %s16, 0
    %p209 = por %p207, %p208
    %p210 = scmp.ne.s32.totalorder %s202, %s204
    %p211 = scmp.eq.s32.totalorder %s21, 1
    %p212 = por %p210, %p211
    %p213 = scmp.ne.s32.totalorder %s204, %s205
    %p214 = scmp.eq.s32.totalorder %s21, 0
    %p215 = por %p213, %p214
    %p216 = scmp.ne.s32.totalorder %s204, %s205
    %p217 = scmp.eq.s32.totalorder %s22, 1
    %p218 = por %p216, %p217
    %p220 = scmp.ne.s32.totalorder %s205, %s219
    %p221 = scmp.eq.s32.totalorder %s22, 0
    %p222 = por %p220, %p221
    %s223 = ssub.s32 %s16, %s23
    %p224 = scmp.eq.s32.totalorder %s223, 0
    %s226 = sadd.s32 %s225, 1
    %s227 = scalar_select %p224, %s225, %s226
    %p230 = pneg %p224
    %p231 = scmp.eq.s32.totalorder %s16, 1
    %p232 = por %p230, %p231
    %p233 = scmp.ne.s32.totalorder %s225, %s228
    %p234 = scmp.eq.s32.totalorder %s16, 0
    %p235 = por %p233, %p234
    %p236 = scmp.ne.s32.totalorder %s225, %s228
    %p237 = scmp.eq.s32.totalorder %s21, 1
    %p238 = por %p236, %p237
    %p239 = scmp.ne.s32.totalorder %s228, %s229
    %p240 = scmp.eq.s32.totalorder %s21, 0
    %p241 = por %p239, %p240
    %p242 = scmp.ne.s32.totalorder %s228, %s229
    %p243 = scmp.eq.s32.totalorder %s22, 1
    %p244 = por %p242, %p243
    %p246 = scmp.ne.s32.totalorder %s229, %s245
    %p247 = scmp.eq.s32.totalorder %s22, 0
    %p248 = por %p246, %p247
    %p249 = scmp.le.s32.totalorder 1, %s16
    %p250 = scmp.lt.s32.totalorder %s16, 3
    %p251 = pnand %p249, %p250
    %p252 = pneg %p251
    // Predicated region
    $region9: #{mynet_forward.5} parent=5 // pred_check
      _
    $region10: #{mynet_forward.5} parent=5 // pred_check_branch
      %254 = sbr.rel (%p251) target = $region12
    $region11: #{mynet_forward.5} parent=5 // pred_region
      %s255 = ssub.s32 %s16, 1
      // Predicated region
      $region13: #{mynet_forward.5} parent=11 // pred_check
        %p256 = pneg %p89
      $region14: #{mynet_forward.5} parent=11 // pred_check_branch
        %258 = sbr.rel (%p256) target = $region16
      $region15: #{mynet_forward.5} parent=11 // pred_region
        _
      $region16: #{mynet_forward.5} parent=11 // pred_fallthru
        _
      // Predicated region
      $region17: #{mynet_forward.5} parent=11 // pred_check
        %p259 = pneg %p110
      $region18: #{mynet_forward.5} parent=11 // pred_check_branch
        %261 = sbr.rel (%p259) target = $region20
      $region19: #{mynet_forward.5} parent=11 // pred_region
        _
      $region20: #{mynet_forward.5} parent=11 // pred_fallthru
        _
      // Predicated region
      $region21: #{mynet_forward.5} parent=11 // pred_check
        %p262 = pneg %p131
      $region22: #{mynet_forward.5} parent=11 // pred_check_branch
        %264 = sbr.rel (%p262) target = $region24
      $region23: #{mynet_forward.5} parent=11 // pred_region
        _
      $region24: #{mynet_forward.5} parent=11 // pred_fallthru
        _
      // Predicated region
      $region25: #{mynet_forward.5} parent=11 // pred_check
        %p265 = pneg %p152
      $region26: #{mynet_forward.5} parent=11 // pred_check_branch
        %267 = sbr.rel (%p265) target = $region28
      $region27: #{mynet_forward.5} parent=11 // pred_region
        _
      $region28: #{mynet_forward.5} parent=11 // pred_fallthru
        _
      // Predicated region
      $region29: #{mynet_forward.5} parent=11 // pred_check
        %p268 = pneg %p173
      $region30: #{mynet_forward.5} parent=11 // pred_check_branch
        %270 = sbr.rel (%p268) target = $region32
      $region31: #{mynet_forward.5} parent=11 // pred_region
        _
      $region32: #{mynet_forward.5} parent=11 // pred_fallthru
        _
      // Predicated region
      $region33: #{mynet_forward.5} parent=11 // pred_check
        %p271 = pneg %p194
      $region34: #{mynet_forward.5} parent=11 // pred_check_branch
        %273 = sbr.rel (%p271) target = $region36
      $region35: #{mynet_forward.5} parent=11 // pred_region
        _
      $region36: #{mynet_forward.5} parent=11 // pred_fallthru
        _
      // Predicated region
      $region37: #{mynet_forward.5} parent=11 // pred_check
        %p274 = pneg %p215
      $region38: #{mynet_forward.5} parent=11 // pred_check_branch
        %276 = sbr.rel (%p274) target = $region40
      $region39: #{mynet_forward.5} parent=11 // pred_region
        _
      $region40: #{mynet_forward.5} parent=11 // pred_fallthru
        _
    $region12: #{mynet_forward.5} parent=5 // pred_fallthru
      _
    %p277 = scmp.lt.s32.totalorder %s16, 2
    // Predicated region
    $region41: #{mynet_forward.5} parent=5 // pred_check
      %p278 = pneg %p277
    $region42: #{mynet_forward.5} parent=5 // pred_check_branch
      %280 = sbr.rel (%p278) target = $region44
    $region43: #{mynet_forward.5} parent=5 // pred_region
      // Predicated region
      $region45: #{mynet_forward.5} parent=43 // pred_check
        %p281 = pneg %p36
      $region46: #{mynet_forward.5} parent=43 // pred_check_branch
        %283 = sbr.rel (%p281) target = $region48
      $region47: #{mynet_forward.5} parent=43 // pred_region
        %p284 = scmp.lt.s32.totalorder %s16, 1
        %s285 = scalar_select %p284, %s16, 1
        %s286 = smul.addr %s285, 8
        %s287 = smul.addr %s286, 8
        %s288 = scalar_lea.vmem %s0, %s287
      $region48: #{mynet_forward.5} parent=43 // pred_fallthru
        _
      // Predicated region
      $region49: #{mynet_forward.5} parent=43 // pred_check
        %p289 = pneg %p62
      $region50: #{mynet_forward.5} parent=43 // pred_check_branch
        %291 = sbr.rel (%p289) target = $region52
      $region51: #{mynet_forward.5} parent=43 // pred_region
        %p292 = scmp.lt.s32.totalorder %s16, 1
        %s293 = scalar_select %p292, %s16, 1
        %s294 = smul.addr %s293, 8
        %s295 = smul.addr %s294, 8
        %s296 = scalar_lea.vmem %s1, %s295
      $region52: #{mynet_forward.5} parent=43 // pred_fallthru
        _
    $region44: #{mynet_forward.5} parent=5 // pred_fallthru
      _
    %p297 = scmp.le.s32.totalorder 1, %s16
    %p298 = scmp.lt.s32.totalorder %s16, 3
    %p299 = pnand %p297, %p298
    %p300 = pneg %p299
    // Predicated region
    $region53: #{mynet_forward.5} parent=5 // pred_check
      _
    $region54: #{mynet_forward.5} parent=5 // pred_check_branch
      %302 = sbr.rel (%p299) target = $region56
    $region55: #{mynet_forward.5} parent=5 // pred_region
      %s303 = ssub.s32 %s16, 1
      %p304 = scmp.lt.s32.totalorder %s21, 1
      %s305 = scalar_select %p304, %s21, 1
      %s306 = smul.addr %s305, 8
      %s307 = smul.addr %s306, 8
      %s308 = scalar_lea.vmem %s0, %s307
      %p309 = pneg %p42
      %p310 = pneg %p39
      %p311 = scmp.lt.s32.totalorder %s21, 1
      %s312 = scalar_select %p311, %s21, 1
      %s313 = smul.addr %s312, 8
      %s314 = smul.addr %s313, 8
      %s315 = scalar_lea.vmem %s1, %s314
      %p316 = pneg %p68
      %p317 = pneg %p65
      %p318 = pneg %p89
      %p319 = pneg %p86
      %p320 = pneg %p110
      %p321 = pneg %p107
      %p322 = pneg %p131
      %p323 = pneg %p128
      %p324 = pneg %p152
      %p325 = pneg %p149
      %p326 = pneg %p173
      %p327 = pneg %p170
      %p328 = pneg %p194
      %p329 = pneg %p191
      %p330 = pneg %p215
      %p331 = pneg %p212
      %p332 = pneg %p241
      %p333 = pneg %p238
      %p334 = scmp.lt.s32.totalorder %s21, 1
      %s335 = scalar_select %p334, %s21, 1
      %s336 = smul.addr %s335, 32
      %s337 = smul.addr %s336, 8
      %s338 = scalar_lea.vmem %s9, %s337
      %p339 = scmp.lt.s32.totalorder %s21, 1
      %s340 = scalar_select %p339, %s21, 1
      %s341 = smul.addr %s340, 8
      %s342 = smul.addr %s341, 8
      %s343 = scalar_lea.vmem %s0, %s342
      %p344 = scmp.lt.s32.totalorder %s21, 1
      %s345 = scalar_select %p344, %s21, 1
      %s346 = smul.addr %s345, 8
      %s347 = smul.addr %s346, 8
      %s348 = scalar_lea.vmem %s1, %s347
      %p349 = scmp.lt.s32.totalorder %s21, 1
      %s350 = scalar_select %p349, %s21, 1
      %s351 = smul.addr %s350, 32
      %s352 = smul.addr %s351, 8
      %s353 = scalar_lea.vmem %s9, %s352
      %v355 = vld [vmem:[%s343] sm:$0xff]
      %v356 = vld [vmem:[%s343 + $0x8] sm:$0xff]
      %v357 = vld [vmem:[%s343 + $0x10] sm:$0xff]
      %v358 = vld [vmem:[%s343 + $0x18] sm:$0xff]
      %v359 = vld [vmem:[%s343 + $0x20] sm:$0xff]
      %v360 = vld [vmem:[%s343 + $0x28] sm:$0xff]
      %v361 = vld [vmem:[%s343 + $0x30] sm:$0xff]
      %v362 = vld [vmem:[%s343 + $0x38] sm:$0xff]
      %v363 = vld [vmem:[%s2] sm:$0x1]
      %v365 = vlaneseq
      %v366 = vshrl.u32 %v365, 7
      %v367 = vsub.s32 0, %v366
      %v368 = vrot.slane %v363, %v367
      %v370 = vmul.f32 %v355, %v368
      %v371 = vmul.f32 %v356, %v368
      %v372 = vmul.f32 %v357, %v368
      %v373 = vmul.f32 %v358, %v368
      %v374 = vmul.f32 %v359, %v368
      %v375 = vmul.f32 %v360, %v368
      %v376 = vmul.f32 %v361, %v368
      %v377 = vmul.f32 %v362, %v368
      %v378 = vld [vmem:[%s3] sm:$0x1]
      %v380 = vlaneseq
      %v381 = vshrl.u32 %v380, 7
      %v382 = vsub.s32 0, %v381
      %v383 = vrot.slane %v378, %v382
      %v385 = vadd.f32 %v370, %v383
      %v386 = vadd.f32 %v371, %v383
      %v387 = vadd.f32 %v372, %v383
      %v388 = vadd.f32 %v373, %v383
      %v389 = vadd.f32 %v374, %v383
      %v390 = vadd.f32 %v375, %v383
      %v391 = vadd.f32 %v376, %v383
      %v392 = vadd.f32 %v377, %v383
      %v393 = vld [vmem:[%s348] sm:$0xff]
      %v394 = vld [vmem:[%s348 + $0x8] sm:$0xff]
      %v395 = vld [vmem:[%s348 + $0x10] sm:$0xff]
      %v396 = vld [vmem:[%s348 + $0x18] sm:$0xff]
      %v397 = vld [vmem:[%s348 + $0x20] sm:$0xff]
      %v398 = vld [vmem:[%s348 + $0x28] sm:$0xff]
      %v399 = vld [vmem:[%s348 + $0x30] sm:$0xff]
      %v400 = vld [vmem:[%s348 + $0x38] sm:$0xff]
      %v401 = vadd.f32 %v385, %v393
      %v402 = vadd.f32 %v386, %v394
      %v403 = vadd.f32 %v387, %v395
      %v404 = vadd.f32 %v388, %v396
      %v405 = vadd.f32 %v389, %v397
      %v406 = vadd.f32 %v390, %v398
      %v407 = vadd.f32 %v391, %v399
      %v408 = vadd.f32 %v392, %v400
      %vm409 = vcmask 261120
      %410 = vst.msk [vmem:[#allocation2] sm:$0xff] %vm409, 0.0
      %vm411 = vcmask 254976
      %412 = vst.msk [vmem:[#allocation2 + $0x8] sm:$0x3] %vm411, 0.0
      %413 = vst.msk [vmem:[#allocation2 + $0x10] sm:$0xff] %vm409, 0.0
      %414 = vst.msk [vmem:[#allocation2 + $0x18] sm:$0x3] %vm411, 0.0
      %415 = vst.msk [vmem:[#allocation2 + $0x20] sm:$0xff] %vm409, 0.0
      %416 = vst.msk [vmem:[#allocation2 + $0x28] sm:$0x3] %vm411, 0.0
      %417 = vst.msk [vmem:[#allocation2 + $0x30] sm:$0xff] %vm409, 0.0
      %418 = vst.msk [vmem:[#allocation2 + $0x38] sm:$0x3] %vm411, 0.0
      %419 = vst.msk [vmem:[#allocation2 + $0x40] sm:$0xff] %vm409, 0.0
      %420 = vst.msk [vmem:[#allocation2 + $0x48] sm:$0x3] %vm411, 0.0
      %421 = vst.msk [vmem:[#allocation2 + $0x50] sm:$0xff] %vm409, 0.0
      %422 = vst.msk [vmem:[#allocation2 + $0x58] sm:$0x3] %vm411, 0.0
      %423 = vst.msk [vmem:[#allocation2 + $0x60] sm:$0xff] %vm409, 0.0
      %424 = vst.msk [vmem:[#allocation2 + $0x68] sm:$0x3] %vm411, 0.0
      %425 = vst.msk [vmem:[#allocation2 + $0x70] sm:$0xff] %vm409, 0.0
      %426 = vst.msk [vmem:[#allocation2 + $0x78] sm:$0x3] %vm411, 0.0
      %427 = vst.msk [vmem:[#allocation2 + $0x80] sm:$0xff] %vm409, 0.0
      %428 = vst.msk [vmem:[#allocation2 + $0x88] sm:$0x3] %vm411, 0.0
      %429 = vst.msk [vmem:[#allocation2 + $0x90] sm:$0xff] %vm409, 0.0
      %430 = vst.msk [vmem:[#allocation2 + $0x98] sm:$0x3] %vm411, 0.0
      %s431 = scalar_lea.vmem [#allocation2], 16
      %432 = vst.msk [vmem:[%s431 + $0x1] sm:$0xff] %vm409, %v401
      %433 = vst.msk [vmem:[%s431 + $0x11] sm:$0xff] %vm409, %v402
      %434 = vst.msk [vmem:[%s431 + $0x21] sm:$0xff] %vm409, %v403
      %435 = vst.msk [vmem:[%s431 + $0x31] sm:$0xff] %vm409, %v404
      %436 = vst.msk [vmem:[%s431 + $0x41] sm:$0xff] %vm409, %v405
      %437 = vst.msk [vmem:[%s431 + $0x51] sm:$0xff] %vm409, %v406
      %438 = vst.msk [vmem:[%s431 + $0x61] sm:$0xff] %vm409, %v407
      %439 = vst.msk [vmem:[%s431 + $0x71] sm:$0xff] %vm409, %v408
      %v440 = vld [vmem:[#allocation2] sm:$0xff]
      %v441 = vld [vmem:[#allocation2 + $0x10] sm:$0xff]
      %v442 = vld [vmem:[#allocation2 + $0x20] sm:$0xff]
      %v443 = vld [vmem:[#allocation2 + $0x30] sm:$0xff]
      %v444 = vld [vmem:[#allocation2 + $0x40] sm:$0xff]
      %v445 = vld [vmem:[#allocation2 + $0x50] sm:$0xff]
      %v446 = vld [vmem:[#allocation2 + $0x60] sm:$0xff]
      %v447 = vld [vmem:[#allocation2 + $0x70] sm:$0xff]
      %v448 = vld [vmem:[#allocation2 + $0x1] sm:$0xff]
      %v449 = vld [vmem:[#allocation2 + $0x11] sm:$0xff]
      %v450 = vld [vmem:[#allocation2 + $0x21] sm:$0xff]
      %v451 = vld [vmem:[#allocation2 + $0x31] sm:$0xff]
      %v452 = vld [vmem:[#allocation2 + $0x41] sm:$0xff]
      %v453 = vld [vmem:[#allocation2 + $0x51] sm:$0xff]
      %v454 = vld [vmem:[#allocation2 + $0x61] sm:$0xff]
      %v455 = vld [vmem:[#allocation2 + $0x71] sm:$0xff]
      %v456 = vld [vmem:[#allocation2 + $0x2] sm:$0xff]
      %v457 = vld [vmem:[#allocation2 + $0x12] sm:$0xff]
      %v458 = vld [vmem:[#allocation2 + $0x22] sm:$0xff]
      %v459 = vld [vmem:[#allocation2 + $0x32] sm:$0xff]
      %v460 = vld [vmem:[#allocation2 + $0x42] sm:$0xff]
      %v461 = vld [vmem:[#allocation2 + $0x52] sm:$0xff]
      %v462 = vld [vmem:[#allocation2 + $0x62] sm:$0xff]
      %v463 = vld [vmem:[#allocation2 + $0x72] sm:$0xff]
      %v464 = vld [vmem:[%s431] sm:$0xff]
      %v465 = vld [vmem:[%s431 + $0x10] sm:$0xff]
      %v466 = vld [vmem:[%s431 + $0x20] sm:$0xff]
      %v467 = vld [vmem:[%s431 + $0x30] sm:$0xff]
      %v468 = vld [vmem:[%s431 + $0x40] sm:$0xff]
      %v469 = vld [vmem:[%s431 + $0x50] sm:$0xff]
      %v470 = vld [vmem:[%s431 + $0x60] sm:$0xff]
      %v471 = vld [vmem:[%s431 + $0x70] sm:$0xff]
      %v472 = vld [vmem:[%s431 + $0x1] sm:$0xff]
      %v473 = vld [vmem:[%s431 + $0x11] sm:$0xff]
      %v474 = vld [vmem:[%s431 + $0x21] sm:$0xff]
      %v475 = vld [vmem:[%s431 + $0x31] sm:$0xff]
      %v476 = vld [vmem:[%s431 + $0x41] sm:$0xff]
      %v477 = vld [vmem:[%s431 + $0x51] sm:$0xff]
      %v478 = vld [vmem:[%s431 + $0x61] sm:$0xff]
      %v479 = vld [vmem:[%s431 + $0x71] sm:$0xff]
      %v480 = vld [vmem:[%s431 + $0x2] sm:$0xff]
      %v481 = vld [vmem:[%s431 + $0x12] sm:$0xff]
      %v482 = vld [vmem:[%s431 + $0x22] sm:$0xff]
      %v483 = vld [vmem:[%s431 + $0x32] sm:$0xff]
      %v484 = vld [vmem:[%s431 + $0x42] sm:$0xff]
      %v485 = vld [vmem:[%s431 + $0x52] sm:$0xff]
      %v486 = vld [vmem:[%s431 + $0x62] sm:$0xff]
      %v487 = vld [vmem:[%s431 + $0x72] sm:$0xff]
      %s488 = scalar_lea.vmem [#allocation2], 32
      %v489 = vld [vmem:[%s488] sm:$0xff]
      %v490 = vld [vmem:[%s488 + $0x10] sm:$0xff]
      %v491 = vld [vmem:[%s488 + $0x20] sm:$0xff]
      %v492 = vld [vmem:[%s488 + $0x30] sm:$0xff]
      %v493 = vld [vmem:[%s488 + $0x40] sm:$0xff]
      %v494 = vld [vmem:[%s488 + $0x50] sm:$0xff]
      %v495 = vld [vmem:[%s488 + $0x60] sm:$0xff]
      %v496 = vld [vmem:[%s488 + $0x70] sm:$0xff]
      %v497 = vld [vmem:[%s488 + $0x1] sm:$0xff]
      %v498 = vld [vmem:[%s488 + $0x11] sm:$0xff]
      %v499 = vld [vmem:[%s488 + $0x21] sm:$0xff]
      %v500 = vld [vmem:[%s488 + $0x31] sm:$0xff]
      %v501 = vld [vmem:[%s488 + $0x41] sm:$0xff]
      %v502 = vld [vmem:[%s488 + $0x51] sm:$0xff]
      %v503 = vld [vmem:[%s488 + $0x61] sm:$0xff]
      %v504 = vld [vmem:[%s488 + $0x71] sm:$0xff]
      %v505 = vld [vmem:[%s488 + $0x2] sm:$0xff]
      %v506 = vld [vmem:[%s488 + $0x12] sm:$0xff]
      %v507 = vld [vmem:[%s488 + $0x22] sm:$0xff]
      %v508 = vld [vmem:[%s488 + $0x32] sm:$0xff]
      %v509 = vld [vmem:[%s488 + $0x42] sm:$0xff]
      %v510 = vld [vmem:[%s488 + $0x52] sm:$0xff]
      %v511 = vld [vmem:[%s488 + $0x62] sm:$0xff]
      %v512 = vld [vmem:[%s488 + $0x72] sm:$0xff]
      %521 = vrot.lane.b32.xlu0 %v448, 32
      %v522 = vpop.permute.xlu0 %521
      %523 = vrot.lane.b32.xlu0 %v449, 32
      %v524 = vpop.permute.xlu0 %523
      %525 = vrot.lane.b32.xlu0 %v450, 32
      %v526 = vpop.permute.xlu0 %525
      %527 = vrot.lane.b32.xlu0 %v451, 32
      %v528 = vpop.permute.xlu0 %527
      %529 = vrot.lane.b32.xlu0 %v452, 32
      %v530 = vpop.permute.xlu0 %529
      %531 = vrot.lane.b32.xlu0 %v453, 32
      %v532 = vpop.permute.xlu0 %531
      %533 = vrot.lane.b32.xlu0 %v454, 32
      %v534 = vpop.permute.xlu0 %533
      %535 = vrot.lane.b32.xlu0 %v455, 32
      %v536 = vpop.permute.xlu0 %535
      %553 = vrot.lane.b32.xlu0 %v456, 64
      %v554 = vpop.permute.xlu0 %553
      %555 = vrot.lane.b32.xlu0 %v457, 64
      %v556 = vpop.permute.xlu0 %555
      %557 = vrot.lane.b32.xlu0 %v458, 64
      %v558 = vpop.permute.xlu0 %557
      %559 = vrot.lane.b32.xlu0 %v459, 64
      %v560 = vpop.permute.xlu0 %559
      %561 = vrot.lane.b32.xlu0 %v460, 64
      %v562 = vpop.permute.xlu0 %561
      %563 = vrot.lane.b32.xlu0 %v461, 64
      %v564 = vpop.permute.xlu0 %563
      %565 = vrot.lane.b32.xlu0 %v462, 64
      %v566 = vpop.permute.xlu0 %565
      %567 = vrot.lane.b32.xlu0 %v463, 64
      %v568 = vpop.permute.xlu0 %567
      %585 = vrot.lane.b32.xlu0 %v464, 96
      %v586 = vpop.permute.xlu0 %585
      %587 = vrot.lane.b32.xlu0 %v465, 96
      %v588 = vpop.permute.xlu0 %587
      %589 = vrot.lane.b32.xlu0 %v466, 96
      %v590 = vpop.permute.xlu0 %589
      %591 = vrot.lane.b32.xlu0 %v467, 96
      %v592 = vpop.permute.xlu0 %591
      %593 = vrot.lane.b32.xlu0 %v468, 96
      %v594 = vpop.permute.xlu0 %593
      %595 = vrot.lane.b32.xlu0 %v469, 96
      %v596 = vpop.permute.xlu0 %595
      %597 = vrot.lane.b32.xlu0 %v470, 96
      %v598 = vpop.permute.xlu0 %597
      %599 = vrot.lane.b32.xlu0 %v471, 96
      %v600 = vpop.permute.xlu0 %599
      %617 = vrot.lane.b32.xlu0 %v480, 32
      %v618 = vpop.permute.xlu0 %617
      %619 = vrot.lane.b32.xlu0 %v481, 32
      %v620 = vpop.permute.xlu0 %619
      %621 = vrot.lane.b32.xlu0 %v482, 32
      %v622 = vpop.permute.xlu0 %621
      %623 = vrot.lane.b32.xlu0 %v483, 32
      %v624 = vpop.permute.xlu0 %623
      %625 = vrot.lane.b32.xlu0 %v484, 32
      %v626 = vpop.permute.xlu0 %625
      %627 = vrot.lane.b32.xlu0 %v485, 32
      %v628 = vpop.permute.xlu0 %627
      %629 = vrot.lane.b32.xlu0 %v486, 32
      %v630 = vpop.permute.xlu0 %629
      %631 = vrot.lane.b32.xlu0 %v487, 32
      %v632 = vpop.permute.xlu0 %631
      %649 = vrot.lane.b32.xlu0 %v489, 64
      %v650 = vpop.permute.xlu0 %649
      %651 = vrot.lane.b32.xlu0 %v490, 64
      %v652 = vpop.permute.xlu0 %651
      %653 = vrot.lane.b32.xlu0 %v491, 64
      %v654 = vpop.permute.xlu0 %653
      %655 = vrot.lane.b32.xlu0 %v492, 64
      %v656 = vpop.permute.xlu0 %655
      %657 = vrot.lane.b32.xlu0 %v493, 64
      %v658 = vpop.permute.xlu0 %657
      %659 = vrot.lane.b32.xlu0 %v494, 64
      %v660 = vpop.permute.xlu0 %659
      %661 = vrot.lane.b32.xlu0 %v495, 64
      %v662 = vpop.permute.xlu0 %661
      %663 = vrot.lane.b32.xlu0 %v496, 64
      %v664 = vpop.permute.xlu0 %663
      %681 = vrot.lane.b32.xlu0 %v497, 96
      %v682 = vpop.permute.xlu0 %681
      %683 = vrot.lane.b32.xlu0 %v498, 96
      %v684 = vpop.permute.xlu0 %683
      %685 = vrot.lane.b32.xlu0 %v499, 96
      %v686 = vpop.permute.xlu0 %685
      %687 = vrot.lane.b32.xlu0 %v500, 96
      %v688 = vpop.permute.xlu0 %687
      %689 = vrot.lane.b32.xlu0 %v501, 96
      %v690 = vpop.permute.xlu0 %689
      %691 = vrot.lane.b32.xlu0 %v502, 96
      %v692 = vpop.permute.xlu0 %691
      %693 = vrot.lane.b32.xlu0 %v503, 96
      %v694 = vpop.permute.xlu0 %693
      %695 = vrot.lane.b32.xlu0 %v504, 96
      %v696 = vpop.permute.xlu0 %695
      %v705 = vsel %vm409, %v440, %v522
      %v706 = vsel %vm409, %v441, %v524
      %v707 = vsel %vm409, %v442, %v526
      %v708 = vsel %vm409, %v443, %v528
      %v709 = vsel %vm409, %v444, %v530
      %v710 = vsel %vm409, %v445, %v532
      %v711 = vsel %vm409, %v446, %v534
      %v712 = vsel %vm409, %v447, %v536
      %vm713 = vcmask 523264
      %v714 = vsel %vm713, %v705, %v554
      %v715 = vsel %vm713, %v706, %v556
      %v716 = vsel %vm713, %v707, %v558
      %v717 = vsel %vm713, %v708, %v560
      %v718 = vsel %vm713, %v709, %v562
      %v719 = vsel %vm713, %v710, %v564
      %v720 = vsel %vm713, %v711, %v566
      %v721 = vsel %vm713, %v712, %v568
      %vm722 = vcmask 785408
      %v723 = vsel %vm722, %v714, %v586
      %v724 = vsel %vm722, %v715, %v588
      %v725 = vsel %vm722, %v716, %v590
      %v726 = vsel %vm722, %v717, %v592
      %v727 = vsel %vm722, %v718, %v594
      %v728 = vsel %vm722, %v719, %v596
      %v729 = vsel %vm722, %v720, %v598
      %v730 = vsel %vm722, %v721, %v600
      %v731 = vsel %vm409, %v472, %v618
      %v732 = vsel %vm409, %v473, %v620
      %v733 = vsel %vm409, %v474, %v622
      %v734 = vsel %vm409, %v475, %v624
      %v735 = vsel %vm409, %v476, %v626
      %v736 = vsel %vm409, %v477, %v628
      %v737 = vsel %vm409, %v478, %v630
      %v738 = vsel %vm409, %v479, %v632
      %v739 = vsel %vm713, %v731, %v650
      %v740 = vsel %vm713, %v732, %v652
      %v741 = vsel %vm713, %v733, %v654
      %v742 = vsel %vm713, %v734, %v656
      %v743 = vsel %vm713, %v735, %v658
      %v744 = vsel %vm713, %v736, %v660
      %v745 = vsel %vm713, %v737, %v662
      %v746 = vsel %vm713, %v738, %v664
      %v747 = vsel %vm722, %v739, %v682
      %v748 = vsel %vm722, %v740, %v684
      %v749 = vsel %vm722, %v741, %v686
      %v750 = vsel %vm722, %v742, %v688
      %v751 = vsel %vm722, %v743, %v690
      %v752 = vsel %vm722, %v744, %v692
      %v753 = vsel %vm722, %v745, %v694
      %v754 = vsel %vm722, %v746, %v696
      %v755 = vpack.c.bf16 %v724, %v723
      %v756 = vpack.c.bf16 %v748, %v747
      %v757 = vpack.c.bf16 %v506, %v505
      %v758 = vpack.c.bf16 %v726, %v725
      %v759 = vpack.c.bf16 %v750, %v749
      %v760 = vpack.c.bf16 %v508, %v507
      %v761 = vpack.c.bf16 %v728, %v727
      %v762 = vpack.c.bf16 %v752, %v751
      %v763 = vpack.c.bf16 %v510, %v509
      %v764 = vpack.c.bf16 %v730, %v729
      %v765 = vpack.c.bf16 %v754, %v753
      %v766 = vpack.c.bf16 %v512, %v511
      %v767 = vld [vmem:[%s4] sm:$0xf]
      %v768 = vld [vmem:[%s4 + $0x4] sm:$0xf]
      %v769 = vld [vmem:[%s4 + $0x8] sm:$0xf]
      %v770 = vld [vmem:[%s4 + $0xc] sm:$0xf]
      %v771 = vld [vmem:[%s4 + $0x10] sm:$0xf]
      %v772 = vld [vmem:[%s4 + $0x14] sm:$0xf]
      %v773 = vld [vmem:[%s4 + $0x18] sm:$0xf]
      %v774 = vld [vmem:[%s4 + $0x1c] sm:$0xf]
      %v775 = vld [vmem:[%s4 + $0x20] sm:$0xf]
      %v776 = vld [vmem:[%s4 + $0x24] sm:$0xf]
      %v777 = vld [vmem:[%s4 + $0x28] sm:$0xf]
      %v778 = vld [vmem:[%s4 + $0x2c] sm:$0xf]
      %v779 = vld [vmem:[%s4 + $0x30] sm:$0xf]
      %v780 = vld [vmem:[%s4 + $0x34] sm:$0xf]
      %v781 = vld [vmem:[%s4 + $0x38] sm:$0xf]
      %v782 = vld [vmem:[%s4 + $0x3c] sm:$0xf]
      %v783 = vld [vmem:[%s4 + $0x40] sm:$0xf]
      %v784 = vld [vmem:[%s4 + $0x44] sm:$0xf]
      %v785 = vld [vmem:[%s4 + $0x48] sm:$0xf]
      %v786 = vld [vmem:[%s4 + $0x4c] sm:$0xf]
      %v787 = vld [vmem:[%s4 + $0x50] sm:$0xf]
      %v788 = vld [vmem:[%s4 + $0x54] sm:$0xf]
      %v789 = vld [vmem:[%s4 + $0x58] sm:$0xf]
      %v790 = vld [vmem:[%s4 + $0x5c] sm:$0xf]
      %v791 = vld [vmem:[%s4 + $0x60] sm:$0xf]
      %v792 = vld [vmem:[%s4 + $0x64] sm:$0xf]
      %v793 = vld [vmem:[%s4 + $0x68] sm:$0xf]
      %v794 = vld [vmem:[%s4 + $0x6c] sm:$0xf]
      %v795 = vld [vmem:[%s4 + $0x70] sm:$0xf]
      %v796 = vld [vmem:[%s4 + $0x74] sm:$0xf]
      %v797 = vld [vmem:[%s4 + $0x78] sm:$0xf]
      %v798 = vld [vmem:[%s4 + $0x7c] sm:$0xf]
      %v799 = vld [vmem:[%s4 + $0x80] sm:$0xf]
      %v800 = vld [vmem:[%s4 + $0x84] sm:$0xf]
      %v801 = vld [vmem:[%s4 + $0x88] sm:$0xf]
      %v802 = vld [vmem:[%s4 + $0x8c] sm:$0xf]
      %v803 = vld [vmem:[%s5] sm:$0x1]
      %v805 = vlaneseq
      %v806 = vshrl.u32 %v805, 7
      %v807 = vsub.s32 0, %v806
      %v808 = vrot.slane %v803, %v807
      %v846 = vunpack.c.l.b16 %v767
      %v847 = vunpack.c.l.b16 %v768
      %v848 = vunpack.c.l.b16 %v769
      %v849 = vunpack.c.l.b16 %v770
      %v850 = vunpack.c.l.b16 %v771
      %v851 = vunpack.c.l.b16 %v772
      %v852 = vunpack.c.l.b16 %v773
      %v853 = vunpack.c.l.b16 %v774
      %v854 = vunpack.c.l.b16 %v775
      %v855 = vunpack.c.l.b16 %v776
      %v856 = vunpack.c.l.b16 %v777
      %v857 = vunpack.c.l.b16 %v778
      %v858 = vunpack.c.l.b16 %v779
      %v859 = vunpack.c.l.b16 %v780
      %v860 = vunpack.c.l.b16 %v781
      %v861 = vunpack.c.l.b16 %v782
      %v862 = vunpack.c.l.b16 %v783
      %v863 = vunpack.c.l.b16 %v784
      %v864 = vunpack.c.l.b16 %v785
      %v865 = vunpack.c.l.b16 %v786
      %v866 = vunpack.c.l.b16 %v787
      %v867 = vunpack.c.l.b16 %v788
      %v868 = vunpack.c.l.b16 %v789
      %v869 = vunpack.c.l.b16 %v790
      %v870 = vunpack.c.l.b16 %v791
      %v871 = vunpack.c.l.b16 %v792
      %v872 = vunpack.c.l.b16 %v793
      %v873 = vunpack.c.l.b16 %v794
      %v874 = vunpack.c.l.b16 %v795
      %v875 = vunpack.c.l.b16 %v796
      %v876 = vunpack.c.l.b16 %v797
      %v877 = vunpack.c.l.b16 %v798
      %v878 = vunpack.c.l.b16 %v799
      %v879 = vunpack.c.l.b16 %v800
      %v880 = vunpack.c.l.b16 %v801
      %v881 = vunpack.c.l.b16 %v802
      %v882 = vpack.c.b16 %v847, %v846
      %v883 = vpack.c.b16 %v849, %v848
      %v884 = vpack.c.b16 %v851, %v850
      %v885 = vpack.c.b16 %v853, %v852
      %v886 = vpack.c.b16 %v855, %v854
      %v887 = vpack.c.b16 %v857, %v856
      %v888 = vpack.c.b16 %v859, %v858
      %v889 = vpack.c.b16 %v861, %v860
      %v890 = vpack.c.b16 %v863, %v862
      %v891 = vpack.c.b16 %v865, %v864
      %v892 = vpack.c.b16 %v867, %v866
      %v893 = vpack.c.b16 %v869, %v868
      %v894 = vpack.c.b16 %v871, %v870
      %v895 = vpack.c.b16 %v873, %v872
      %v896 = vpack.c.b16 %v875, %v874
      %v897 = vpack.c.b16 %v877, %v876
      %v898 = vpack.c.b16 %v879, %v878
      %v899 = vpack.c.b16 %v881, %v880
      %v919 = vsel %vm409, %v757, 0
      %v922 = vsel %vm409, %v760, 0
      %v925 = vsel %vm409, %v763, 0
      %v928 = vsel %vm409, %v766, 0
      %930 = vmatprep.subr.bf16.mxu0 0
      %931 = vmatpush1.bf16.msra.mxu0 %v882
      %932 = vmatprep.subr.bf16.mxu0 0
      %933 = vmatpush1.bf16.msra.mxu0 %v883
      %934 = vmatprep.subr.bf16.mxu0 0
      %935 = vmatpush1.bf16.msra.mxu0 %v884
      %936 = vmatprep.subr.bf16.mxu0 0
      %937 = vmatpush1.bf16.msra.mxu0 %v885
      %938 = vmatprep.subr.bf16.mxu0 0
      %939 = vmatpush1.bf16.msra.mxu0 %v886
      %940 = vmatprep.subr.bf16.mxu0 0
      %941 = vmatpush1.bf16.msra.mxu0 %v887
      %942 = vmatprep.subr.bf16.mxu0 0
      %943 = vmatpush1.bf16.msra.mxu0 %v888
      %944 = vmatprep.subr.bf16.mxu0 0
      %945 = vmatpush1.bf16.msra.mxu0 %v889
      %946 = vmatprep.subr.bf16.mxu0 0
      %947 = vmatpush1.bf16.msra.mxu0 %v890
      %948 = vmatprep.subr.bf16.mxu0 0
      %949 = vmatpush1.bf16.msra.mxu0 %v891
      %950 = vmatprep.subr.bf16.mxu0 0
      %951 = vmatpush1.bf16.msra.mxu0 %v892
      %952 = vmatprep.subr.bf16.mxu0 0
      %953 = vmatpush1.bf16.msra.mxu0 %v893
      %954 = vmatprep.subr.bf16.mxu0 0
      %955 = vmatpush1.bf16.msra.mxu0 %v894
      %956 = vmatprep.subr.bf16.mxu0 0
      %957 = vmatpush1.bf16.msra.mxu0 %v895
      %958 = vmatprep.subr.bf16.mxu0 0
      %959 = vmatpush1.bf16.msra.mxu0 %v896
      %960 = vmatprep.subr.bf16.mxu0 0
      %961 = vmatpush1.bf16.msra.mxu0 %v897
      %962 = vmatprep.mubr.bf16.mxu0 %v756
      %963 = vmatmul.mubr.bf16.gmra.mrb[0].mxu0 %v755
      %v964 = vpop.f32.mrb[0].mxu0
      %v965 = vadd.f32 %v808, %v964
      %v966 = vpop.f32.mrb[0].mxu0
      %v967 = vpop.f32.mrb[0].mxu0
      %v968 = vadd.f32 %v808, %v967
      %v969 = vpop.f32.mrb[0].mxu0
      %970 = vmatprep.mubr.bf16.mxu0 %v759
      %971 = vmatmul.mubr.bf16.gmra.mrb[0].mxu0 %v758
      %v972 = vpop.f32.mrb[0].mxu0
      %v973 = vadd.f32 %v808, %v972
      %v974 = vpop.f32.mrb[0].mxu0
      %v975 = vpop.f32.mrb[0].mxu0
      %v976 = vadd.f32 %v808, %v975
      %v977 = vpop.f32.mrb[0].mxu0
      %978 = vmatprep.mubr.bf16.mxu0 %v762
      %979 = vmatmul.mubr.bf16.gmra.mrb[0].mxu0 %v761
      %v980 = vpop.f32.mrb[0].mxu0
      %v981 = vadd.f32 %v808, %v980
      %v982 = vpop.f32.mrb[0].mxu0
      %v983 = vpop.f32.mrb[0].mxu0
      %v984 = vadd.f32 %v808, %v983
      %v985 = vpop.f32.mrb[0].mxu0
      %986 = vmatprep.mubr.bf16.mxu0 %v765
      %987 = vmatmul.mubr.bf16.gmra.mrb[0].mxu0 %v764
      %v988 = vpop.f32.mrb[0].mxu0
      %v989 = vadd.f32 %v808, %v988
      %v990 = vpop.f32.mrb[0].mxu0
      %v991 = vpop.f32.mrb[0].mxu0
      %v992 = vadd.f32 %v808, %v991
      %v993 = vpop.f32.mrb[0].mxu0
      %994 = vdwg.mxu0
      %995 = vmatprep.subr.bf16.mxu0 0
      %996 = vmatpush1.bf16.msra.mxu0 %v898
      %997 = vmatprep.subr.bf16.mxu0 0
      %998 = vmatpush1.bf16.msra.mxu0 %v899
      %999 = vmatprep.subr.bf16.mxu0 0
      %1000 = vmatpush1.bf16.msra.mxu0 0
      %1001 = vmatprep.subr.bf16.mxu0 0
      %1002 = vmatpush1.bf16.msra.mxu0 0
      %1003 = vmatprep.subr.bf16.mxu0 0
      %1004 = vmatpush1.bf16.msra.mxu0 0
      %1005 = vmatprep.subr.bf16.mxu0 0
      %1006 = vmatpush1.bf16.msra.mxu0 0
      %1007 = vmatprep.subr.bf16.mxu0 0
      %1008 = vmatpush1.bf16.msra.mxu0 0
      %1009 = vmatprep.subr.bf16.mxu0 0
      %1010 = vmatpush1.bf16.msra.mxu0 0
      %1011 = vmatprep.subr.bf16.mxu0 0
      %1012 = vmatpush1.bf16.msra.mxu0 0
      %1013 = vmatprep.subr.bf16.mxu0 0
      %1014 = vmatpush1.bf16.msra.mxu0 0
      %1015 = vmatprep.subr.bf16.mxu0 0
      %1016 = vmatpush1.bf16.msra.mxu0 0
      %1017 = vmatprep.subr.bf16.mxu0 0
      %1018 = vmatpush1.bf16.msra.mxu0 0
      %1019 = vmatprep.subr.bf16.mxu0 0
      %1020 = vmatpush1.bf16.msra.mxu0 0
      %1021 = vmatprep.subr.bf16.mxu0 0
      %1022 = vmatpush1.bf16.msra.mxu0 0
      %1023 = vmatprep.subr.bf16.mxu0 0
      %1024 = vmatpush1.bf16.msra.mxu0 0
      %1025 = vmatprep.subr.bf16.mxu0 0
      %1026 = vmatpush1.bf16.msra.mxu0 0
      %1027 = vmatprep.mubr.bf16.mxu0 0
      %1028 = vmatmul.mubr.bf16.gmra.mrb[0].mxu0 %v919
      %v1029 = vpop.f32.mrb[0].mxu0
      %v1030 = vadd.f32 %v965, %v1029
      %v1031 = vpop.f32.mrb[0].mxu0
      %v1032 = vpop.f32.mrb[0].mxu0
      %v1033 = vadd.f32 %v968, %v1032
      %v1034 = vpop.f32.mrb[0].mxu0
      %1035 = vmatprep.mubr.bf16.mxu0 0
      %1036 = vmatmul.mubr.bf16.gmra.mrb[0].mxu0 %v922
      %v1037 = vpop.f32.mrb[0].mxu0
      %v1038 = vadd.f32 %v973, %v1037
      %v1039 = vpop.f32.mrb[0].mxu0
      %v1040 = vpop.f32.mrb[0].mxu0
      %v1041 = vadd.f32 %v976, %v1040
      %v1042 = vpop.f32.mrb[0].mxu0
      %1043 = vmatprep.mubr.bf16.mxu0 0
      %1044 = vmatmul.mubr.bf16.gmra.mrb[0].mxu0 %v925
      %v1045 = vpop.f32.mrb[0].mxu0
      %v1046 = vadd.f32 %v981, %v1045
      %v1047 = vpop.f32.mrb[0].mxu0
      %v1048 = vpop.f32.mrb[0].mxu0
      %v1049 = vadd.f32 %v984, %v1048
      %v1050 = vpop.f32.mrb[0].mxu0
      %1051 = vmatprep.mubr.bf16.mxu0 0
      %1052 = vmatmul.mubr.bf16.gmra.mrb[0].mxu0 %v928
      %v1053 = vpop.f32.mrb[0].mxu0
      %v1054 = vadd.f32 %v989, %v1053
      %v1055 = vpop.f32.mrb[0].mxu0
      %v1056 = vpop.f32.mrb[0].mxu0
      %v1057 = vadd.f32 %v992, %v1056
      %v1058 = vpop.f32.mrb[0].mxu0
      %1059 = vdwg.mxu0
      %s1060 = sld [smem:[#allocation4]]
      %vm1061 = vcmp.ge.f32.partialorder %v1030, 0.0
      %vm1062 = vcmp.ge.f32.partialorder %v1033, 0.0
      %vm1063 = vcmp.ge.f32.partialorder %v1038, 0.0
      %vm1064 = vcmp.ge.f32.partialorder %v1041, 0.0
      %vm1065 = vcmp.ge.f32.partialorder %v1046, 0.0
      %vm1066 = vcmp.ge.f32.partialorder %v1049, 0.0
      %vm1067 = vcmp.ge.f32.partialorder %v1054, 0.0
      %vm1068 = vcmp.ge.f32.partialorder %v1057, 0.0
      %v1069 = vstv %s1060
      %v1070 = vmul.f32 %v1069, %v1030
      %v1071 = vmul.f32 %v1069, %v1033
      %v1072 = vmul.f32 %v1069, %v1038
      %v1073 = vmul.f32 %v1069, %v1041
      %v1074 = vmul.f32 %v1069, %v1046
      %v1075 = vmul.f32 %v1069, %v1049
      %v1076 = vmul.f32 %v1069, %v1054
      %v1077 = vmul.f32 %v1069, %v1057
      %v1078 = vsel %vm1061, %v1030, %v1070
      %v1079 = vsel %vm1062, %v1033, %v1071
      %v1080 = vsel %vm1063, %v1038, %v1072
      %v1081 = vsel %vm1064, %v1041, %v1073
      %v1082 = vsel %vm1065, %v1046, %v1074
      %v1083 = vsel %vm1066, %v1049, %v1075
      %v1084 = vsel %vm1067, %v1054, %v1076
      %v1085 = vsel %vm1068, %v1057, %v1077
      %1086 = vst.msk [vmem:[#allocation3] sm:$0xff] %vm409, 0.0
      %1087 = vst.msk [vmem:[#allocation3 + $0x8] sm:$0x3] %vm411, 0.0
      %1088 = vst.msk [vmem:[#allocation3 + $0x10] sm:$0xff] %vm409, 0.0
      %1089 = vst.msk [vmem:[#allocation3 + $0x18] sm:$0x3] %vm411, 0.0
      %1090 = vst.msk [vmem:[#allocation3 + $0x20] sm:$0xff] %vm409, 0.0
      %1091 = vst.msk [vmem:[#allocation3 + $0x28] sm:$0x3] %vm411, 0.0
      %1092 = vst.msk [vmem:[#allocation3 + $0x30] sm:$0xff] %vm409, 0.0
      %1093 = vst.msk [vmem:[#allocation3 + $0x38] sm:$0x3] %vm411, 0.0
      %1094 = vst.msk [vmem:[#allocation3 + $0x40] sm:$0xff] %vm409, 0.0
      %1095 = vst.msk [vmem:[#allocation3 + $0x48] sm:$0x3] %vm411, 0.0
      %1096 = vst.msk [vmem:[#allocation3 + $0x50] sm:$0xff] %vm409, 0.0
      %1097 = vst.msk [vmem:[#allocation3 + $0x58] sm:$0x3] %vm411, 0.0
      %1098 = vst.msk [vmem:[#allocation3 + $0x60] sm:$0xff] %vm409, 0.0
      %1099 = vst.msk [vmem:[#allocation3 + $0x68] sm:$0x3] %vm411, 0.0
      %1100 = vst.msk [vmem:[#allocation3 + $0x70] sm:$0xff] %vm409, 0.0
      %1101 = vst.msk [vmem:[#allocation3 + $0x78] sm:$0x3] %vm411, 0.0
      %1102 = vst.msk [vmem:[#allocation3 + $0x80] sm:$0xff] %vm409, 0.0
      %1103 = vst.msk [vmem:[#allocation3 + $0x88] sm:$0x3] %vm411, 0.0
      %1104 = vst.msk [vmem:[#allocation3 + $0x90] sm:$0xff] %vm409, 0.0
      %1105 = vst.msk [vmem:[#allocation3 + $0x98] sm:$0x3] %vm411, 0.0
      %1106 = vst.msk [vmem:[#allocation3 + $0xa0] sm:$0xff] %vm409, 0.0
      %1107 = vst.msk [vmem:[#allocation3 + $0xa8] sm:$0x3] %vm411, 0.0
      %1108 = vst.msk [vmem:[#allocation3 + $0xb0] sm:$0xff] %vm409, 0.0
      %1109 = vst.msk [vmem:[#allocation3 + $0xb8] sm:$0x3] %vm411, 0.0
      %1110 = vst.msk [vmem:[#allocation3 + $0xc0] sm:$0xff] %vm409, 0.0
      %1111 = vst.msk [vmem:[#allocation3 + $0xc8] sm:$0x3] %vm411, 0.0
      %1112 = vst.msk [vmem:[#allocation3 + $0xd0] sm:$0xff] %vm409, 0.0
      %1113 = vst.msk [vmem:[#allocation3 + $0xd8] sm:$0x3] %vm411, 0.0
      %1114 = vst.msk [vmem:[#allocation3 + $0xe0] sm:$0xff] %vm409, 0.0
      %1115 = vst.msk [vmem:[#allocation3 + $0xe8] sm:$0x3] %vm411, 0.0
      %1116 = vst.msk [vmem:[#allocation3 + $0xf0] sm:$0xff] %vm409, 0.0
      %1117 = vst.msk [vmem:[#allocation3 + $0xf8] sm:$0x3] %vm411, 0.0
      %1118 = vst.msk [vmem:[#allocation3 + $0x100] sm:$0xff] %vm409, 0.0
      %1119 = vst.msk [vmem:[#allocation3 + $0x108] sm:$0x3] %vm411, 0.0
      %1120 = vst.msk [vmem:[#allocation3 + $0x110] sm:$0xff] %vm409, 0.0
      %1121 = vst.msk [vmem:[#allocation3 + $0x118] sm:$0x3] %vm411, 0.0
      %1122 = vst.msk [vmem:[#allocation3 + $0x120] sm:$0xff] %vm409, 0.0
      %1123 = vst.msk [vmem:[#allocation3 + $0x128] sm:$0x3] %vm411, 0.0
      %1124 = vst.msk [vmem:[#allocation3 + $0x130] sm:$0xff] %vm409, 0.0
      %1125 = vst.msk [vmem:[#allocation3 + $0x138] sm:$0x3] %vm411, 0.0
      %1126 = vst.msk [vmem:[#allocation3 + $0x140] sm:$0xff] %vm409, 0.0
      %1127 = vst.msk [vmem:[#allocation3 + $0x148] sm:$0x3] %vm411, 0.0
      %1128 = vst.msk [vmem:[#allocation3 + $0x150] sm:$0xff] %vm409, 0.0
      %1129 = vst.msk [vmem:[#allocation3 + $0x158] sm:$0x3] %vm411, 0.0
      %1130 = vst.msk [vmem:[#allocation3 + $0x160] sm:$0xff] %vm409, 0.0
      %1131 = vst.msk [vmem:[#allocation3 + $0x168] sm:$0x3] %vm411, 0.0
      %1132 = vst.msk [vmem:[#allocation3 + $0x170] sm:$0xff] %vm409, 0.0
      %1133 = vst.msk [vmem:[#allocation3 + $0x178] sm:$0x3] %vm411, 0.0
      %1134 = vst.msk [vmem:[#allocation3 + $0x180] sm:$0xff] %vm409, 0.0
      %1135 = vst.msk [vmem:[#allocation3 + $0x188] sm:$0x3] %vm411, 0.0
      %1136 = vst.msk [vmem:[#allocation3 + $0x190] sm:$0xff] %vm409, 0.0
      %1137 = vst.msk [vmem:[#allocation3 + $0x198] sm:$0x3] %vm411, 0.0
      %1138 = vst.msk [vmem:[#allocation3 + $0x1a0] sm:$0xff] %vm409, 0.0
      %1139 = vst.msk [vmem:[#allocation3 + $0x1a8] sm:$0x3] %vm411, 0.0
      %1140 = vst.msk [vmem:[#allocation3 + $0x1b0] sm:$0xff] %vm409, 0.0
      %1141 = vst.msk [vmem:[#allocation3 + $0x1b8] sm:$0x3] %vm411, 0.0
      %1142 = vst.msk [vmem:[#allocation3 + $0x1c0] sm:$0xff] %vm409, 0.0
      %1143 = vst.msk [vmem:[#allocation3 + $0x1c8] sm:$0x3] %vm411, 0.0
      %1144 = vst.msk [vmem:[#allocation3 + $0x1d0] sm:$0xff] %vm409, 0.0
      %1145 = vst.msk [vmem:[#allocation3 + $0x1d8] sm:$0x3] %vm411, 0.0
      %1146 = vst.msk [vmem:[#allocation3 + $0x1e0] sm:$0xff] %vm409, 0.0
      %1147 = vst.msk [vmem:[#allocation3 + $0x1e8] sm:$0x3] %vm411, 0.0
      %1148 = vst.msk [vmem:[#allocation3 + $0x1f0] sm:$0xff] %vm409, 0.0
      %1149 = vst.msk [vmem:[#allocation3 + $0x1f8] sm:$0x3] %vm411, 0.0
      %1150 = vst.msk [vmem:[#allocation3 + $0x200] sm:$0xff] %vm409, 0.0
      %1151 = vst.msk [vmem:[#allocation3 + $0x208] sm:$0x3] %vm411, 0.0
      %1152 = vst.msk [vmem:[#allocation3 + $0x210] sm:$0xff] %vm409, 0.0
      %1153 = vst.msk [vmem:[#allocation3 + $0x218] sm:$0x3] %vm411, 0.0
      %1154 = vst.msk [vmem:[#allocation3 + $0x220] sm:$0xff] %vm409, 0.0
      %1155 = vst.msk [vmem:[#allocation3 + $0x228] sm:$0x3] %vm411, 0.0
      %1156 = vst.msk [vmem:[#allocation3 + $0x230] sm:$0xff] %vm409, 0.0
      %1157 = vst.msk [vmem:[#allocation3 + $0x238] sm:$0x3] %vm411, 0.0
      %1158 = vst.msk [vmem:[#allocation3 + $0x240] sm:$0xff] %vm409, 0.0
      %1159 = vst.msk [vmem:[#allocation3 + $0x248] sm:$0x3] %vm411, 0.0
      %1160 = vst.msk [vmem:[#allocation3 + $0x250] sm:$0xff] %vm409, 0.0
      %1161 = vst.msk [vmem:[#allocation3 + $0x258] sm:$0x3] %vm411, 0.0
      %1162 = vst.msk [vmem:[#allocation3 + $0x260] sm:$0xff] %vm409, 0.0
      %1163 = vst.msk [vmem:[#allocation3 + $0x268] sm:$0x3] %vm411, 0.0
      %1164 = vst.msk [vmem:[#allocation3 + $0x270] sm:$0xff] %vm409, 0.0
      %1165 = vst.msk [vmem:[#allocation3 + $0x278] sm:$0x3] %vm411, 0.0
      %s1166 = scalar_lea.vmem [#allocation3], 16
      %1167 = vst.msk [vmem:[%s1166 + $0x1] sm:$0xff] %vm409, %v1078
      %1168 = vst.msk [vmem:[%s1166 + $0x11] sm:$0xff] %vm409, %v1079
      %1169 = vst.msk [vmem:[%s1166 + $0x21] sm:$0xff] %vm409, %v1080
      %1170 = vst.msk [vmem:[%s1166 + $0x31] sm:$0xff] %vm409, %v1081
      %1171 = vst.msk [vmem:[%s1166 + $0x41] sm:$0xff] %vm409, %v1082
      %1172 = vst.msk [vmem:[%s1166 + $0x51] sm:$0xff] %vm409, %v1083
      %1173 = vst.msk [vmem:[%s1166 + $0x61] sm:$0xff] %vm409, %v1084
      %1174 = vst.msk [vmem:[%s1166 + $0x71] sm:$0xff] %vm409, %v1085
      %1183 = vrot.lane.b32.xlu0 %v1078, 96
      %v1184 = vpop.permute.xlu0 %1183
      %1185 = vrot.lane.b32.xlu0 %v1079, 96
      %v1186 = vpop.permute.xlu0 %1185
      %1187 = vrot.lane.b32.xlu0 %v1080, 96
      %v1188 = vpop.permute.xlu0 %1187
      %1189 = vrot.lane.b32.xlu0 %v1081, 96
      %v1190 = vpop.permute.xlu0 %1189
      %1191 = vrot.lane.b32.xlu0 %v1082, 96
      %v1192 = vpop.permute.xlu0 %1191
      %1193 = vrot.lane.b32.xlu0 %v1083, 96
      %v1194 = vpop.permute.xlu0 %1193
      %1195 = vrot.lane.b32.xlu0 %v1084, 96
      %v1196 = vpop.permute.xlu0 %1195
      %1197 = vrot.lane.b32.xlu0 %v1085, 96
      %v1198 = vpop.permute.xlu0 %1197
      %s1207 = scalar_lea.vmem [#allocation3], 176
      %1208 = vst.msk [vmem:[%s1207 + $0x1] sm:$0xff] %vm409, %v1184
      %1209 = vst.msk [vmem:[%s1207 + $0x11] sm:$0xff] %vm409, %v1186
      %1210 = vst.msk [vmem:[%s1207 + $0x21] sm:$0xff] %vm409, %v1188
      %1211 = vst.msk [vmem:[%s1207 + $0x31] sm:$0xff] %vm409, %v1190
      %1212 = vst.msk [vmem:[%s1207 + $0x41] sm:$0xff] %vm409, %v1192
      %1213 = vst.msk [vmem:[%s1207 + $0x51] sm:$0xff] %vm409, %v1194
      %1214 = vst.msk [vmem:[%s1207 + $0x61] sm:$0xff] %vm409, %v1196
      %1215 = vst.msk [vmem:[%s1207 + $0x71] sm:$0xff] %vm409, %v1198
      %1216 = vrot.lane.b32.xlu0 %v1078, 64
      %v1217 = vpop.permute.xlu0 %1216
      %1218 = vrot.lane.b32.xlu0 %v1079, 64
      %v1219 = vpop.permute.xlu0 %1218
      %1220 = vrot.lane.b32.xlu0 %v1080, 64
      %v1221 = vpop.permute.xlu0 %1220
      %1222 = vrot.lane.b32.xlu0 %v1081, 64
      %v1223 = vpop.permute.xlu0 %1222
      %1224 = vrot.lane.b32.xlu0 %v1082, 64
      %v1225 = vpop.permute.xlu0 %1224
      %1226 = vrot.lane.b32.xlu0 %v1083, 64
      %v1227 = vpop.permute.xlu0 %1226
      %1228 = vrot.lane.b32.xlu0 %v1084, 64
      %v1229 = vpop.permute.xlu0 %1228
      %1230 = vrot.lane.b32.xlu0 %v1085, 64
      %v1231 = vpop.permute.xlu0 %1230
      %s1240 = scalar_lea.vmem [#allocation3], 336
      %1241 = vst.msk [vmem:[%s1240 + $0x1] sm:$0xff] %vm409, %v1217
      %1242 = vst.msk [vmem:[%s1240 + $0x11] sm:$0xff] %vm409, %v1219
      %1243 = vst.msk [vmem:[%s1240 + $0x21] sm:$0xff] %vm409, %v1221
      %1244 = vst.msk [vmem:[%s1240 + $0x31] sm:$0xff] %vm409, %v1223
      %1245 = vst.msk [vmem:[%s1240 + $0x41] sm:$0xff] %vm409, %v1225
      %1246 = vst.msk [vmem:[%s1240 + $0x51] sm:$0xff] %vm409, %v1227
      %1247 = vst.msk [vmem:[%s1240 + $0x61] sm:$0xff] %vm409, %v1229
      %1248 = vst.msk [vmem:[%s1240 + $0x71] sm:$0xff] %vm409, %v1231
      %1249 = vrot.lane.b32.xlu0 %v1078, 32
      %v1250 = vpop.permute.xlu0 %1249
      %1251 = vrot.lane.b32.xlu0 %v1079, 32
      %v1252 = vpop.permute.xlu0 %1251
      %1253 = vrot.lane.b32.xlu0 %v1080, 32
      %v1254 = vpop.permute.xlu0 %1253
      %1255 = vrot.lane.b32.xlu0 %v1081, 32
      %v1256 = vpop.permute.xlu0 %1255
      %1257 = vrot.lane.b32.xlu0 %v1082, 32
      %v1258 = vpop.permute.xlu0 %1257
      %1259 = vrot.lane.b32.xlu0 %v1083, 32
      %v1260 = vpop.permute.xlu0 %1259
      %1261 = vrot.lane.b32.xlu0 %v1084, 32
      %v1262 = vpop.permute.xlu0 %1261
      %1263 = vrot.lane.b32.xlu0 %v1085, 32
      %v1264 = vpop.permute.xlu0 %1263
      %s1273 = scalar_lea.vmem [#allocation3], 496
      %1274 = vst.msk [vmem:[%s1273 + $0x1] sm:$0xff] %vm409, %v1250
      %1275 = vst.msk [vmem:[%s1273 + $0x11] sm:$0xff] %vm409, %v1252
      %1276 = vst.msk [vmem:[%s1273 + $0x21] sm:$0xff] %vm409, %v1254
      %1277 = vst.msk [vmem:[%s1273 + $0x31] sm:$0xff] %vm409, %v1256
      %1278 = vst.msk [vmem:[%s1273 + $0x41] sm:$0xff] %vm409, %v1258
      %1279 = vst.msk [vmem:[%s1273 + $0x51] sm:$0xff] %vm409, %v1260
      %1280 = vst.msk [vmem:[%s1273 + $0x61] sm:$0xff] %vm409, %v1262
      %1281 = vst.msk [vmem:[%s1273 + $0x71] sm:$0xff] %vm409, %v1264
      %s1282 = scalar_lea.vmem [#allocation3], 480
      %v1283 = vld [vmem:[%s1282] sm:$0xff]
      %v1284 = vld [vmem:[%s1282 + $0x10] sm:$0xff]
      %v1285 = vld [vmem:[%s1282 + $0x20] sm:$0xff]
      %v1286 = vld [vmem:[%s1282 + $0x30] sm:$0xff]
      %v1287 = vld [vmem:[%s1282 + $0x40] sm:$0xff]
      %v1288 = vld [vmem:[%s1282 + $0x50] sm:$0xff]
      %v1289 = vld [vmem:[%s1282 + $0x60] sm:$0xff]
      %v1290 = vld [vmem:[%s1282 + $0x70] sm:$0xff]
      %s1291 = scalar_lea.vmem [#allocation3], 320
      %v1292 = vld [vmem:[%s1291 + $0x1] sm:$0xff]
      %v1293 = vld [vmem:[%s1291 + $0x11] sm:$0xff]
      %v1294 = vld [vmem:[%s1291 + $0x21] sm:$0xff]
      %v1295 = vld [vmem:[%s1291 + $0x31] sm:$0xff]
      %v1296 = vld [vmem:[%s1291 + $0x41] sm:$0xff]
      %v1297 = vld [vmem:[%s1291 + $0x51] sm:$0xff]
      %v1298 = vld [vmem:[%s1291 + $0x61] sm:$0xff]
      %v1299 = vld [vmem:[%s1291 + $0x71] sm:$0xff]
      %v1300 = vld [vmem:[%s1282 + $0x1] sm:$0xff]
      %v1301 = vld [vmem:[%s1282 + $0x11] sm:$0xff]
      %v1302 = vld [vmem:[%s1282 + $0x21] sm:$0xff]
      %v1303 = vld [vmem:[%s1282 + $0x31] sm:$0xff]
      %v1304 = vld [vmem:[%s1282 + $0x41] sm:$0xff]
      %v1305 = vld [vmem:[%s1282 + $0x51] sm:$0xff]
      %v1306 = vld [vmem:[%s1282 + $0x61] sm:$0xff]
      %v1307 = vld [vmem:[%s1282 + $0x71] sm:$0xff]
      %v1308 = vld [vmem:[%s1207] sm:$0xff]
      %v1309 = vld [vmem:[%s1207 + $0x10] sm:$0xff]
      %v1310 = vld [vmem:[%s1207 + $0x20] sm:$0xff]
      %v1311 = vld [vmem:[%s1207 + $0x30] sm:$0xff]
      %v1312 = vld [vmem:[%s1207 + $0x40] sm:$0xff]
      %v1313 = vld [vmem:[%s1207 + $0x50] sm:$0xff]
      %v1314 = vld [vmem:[%s1207 + $0x60] sm:$0xff]
      %v1315 = vld [vmem:[%s1207 + $0x70] sm:$0xff]
      %v1316 = vld [vmem:[%s1166 + $0x1] sm:$0xff]
      %v1317 = vld [vmem:[%s1166 + $0x11] sm:$0xff]
      %v1318 = vld [vmem:[%s1166 + $0x21] sm:$0xff]
      %v1319 = vld [vmem:[%s1166 + $0x31] sm:$0xff]
      %v1320 = vld [vmem:[%s1166 + $0x41] sm:$0xff]
      %v1321 = vld [vmem:[%s1166 + $0x51] sm:$0xff]
      %v1322 = vld [vmem:[%s1166 + $0x61] sm:$0xff]
      %v1323 = vld [vmem:[%s1166 + $0x71] sm:$0xff]
      %v1324 = vld [vmem:[%s1207 + $0x1] sm:$0xff]
      %v1325 = vld [vmem:[%s1207 + $0x11] sm:$0xff]
      %v1326 = vld [vmem:[%s1207 + $0x21] sm:$0xff]
      %v1327 = vld [vmem:[%s1207 + $0x31] sm:$0xff]
      %v1328 = vld [vmem:[%s1207 + $0x41] sm:$0xff]
      %v1329 = vld [vmem:[%s1207 + $0x51] sm:$0xff]
      %v1330 = vld [vmem:[%s1207 + $0x61] sm:$0xff]
      %v1331 = vld [vmem:[%s1207 + $0x71] sm:$0xff]
      %v1332 = vld [vmem:[%s1273] sm:$0xff]
      %v1333 = vld [vmem:[%s1273 + $0x10] sm:$0xff]
      %v1334 = vld [vmem:[%s1273 + $0x20] sm:$0xff]
      %v1335 = vld [vmem:[%s1273 + $0x30] sm:$0xff]
      %v1336 = vld [vmem:[%s1273 + $0x40] sm:$0xff]
      %v1337 = vld [vmem:[%s1273 + $0x50] sm:$0xff]
      %v1338 = vld [vmem:[%s1273 + $0x60] sm:$0xff]
      %v1339 = vld [vmem:[%s1273 + $0x70] sm:$0xff]
      %v1340 = vld [vmem:[%s1240 + $0x1] sm:$0xff]
      %v1341 = vld [vmem:[%s1240 + $0x11] sm:$0xff]
      %v1342 = vld [vmem:[%s1240 + $0x21] sm:$0xff]
      %v1343 = vld [vmem:[%s1240 + $0x31] sm:$0xff]
      %v1344 = vld [vmem:[%s1240 + $0x41] sm:$0xff]
      %v1345 = vld [vmem:[%s1240 + $0x51] sm:$0xff]
      %v1346 = vld [vmem:[%s1240 + $0x61] sm:$0xff]
      %v1347 = vld [vmem:[%s1240 + $0x71] sm:$0xff]
      %v1348 = vld [vmem:[%s1273 + $0x1] sm:$0xff]
      %v1349 = vld [vmem:[%s1273 + $0x11] sm:$0xff]
      %v1350 = vld [vmem:[%s1273 + $0x21] sm:$0xff]
      %v1351 = vld [vmem:[%s1273 + $0x31] sm:$0xff]
      %v1352 = vld [vmem:[%s1273 + $0x41] sm:$0xff]
      %v1353 = vld [vmem:[%s1273 + $0x51] sm:$0xff]
      %v1354 = vld [vmem:[%s1273 + $0x61] sm:$0xff]
      %v1355 = vld [vmem:[%s1273 + $0x71] sm:$0xff]
      %1364 = vrot.lane.b32.xlu0 %v1292, 32
      %v1365 = vpop.permute.xlu0 %1364
      %1366 = vrot.lane.b32.xlu0 %v1293, 32
      %v1367 = vpop.permute.xlu0 %1366
      %1368 = vrot.lane.b32.xlu0 %v1294, 32
      %v1369 = vpop.permute.xlu0 %1368
      %1370 = vrot.lane.b32.xlu0 %v1295, 32
      %v1371 = vpop.permute.xlu0 %1370
      %1372 = vrot.lane.b32.xlu0 %v1296, 32
      %v1373 = vpop.permute.xlu0 %1372
      %1374 = vrot.lane.b32.xlu0 %v1297, 32
      %v1375 = vpop.permute.xlu0 %1374
      %1376 = vrot.lane.b32.xlu0 %v1298, 32
      %v1377 = vpop.permute.xlu0 %1376
      %1378 = vrot.lane.b32.xlu0 %v1299, 32
      %v1379 = vpop.permute.xlu0 %1378
      %1396 = vrot.lane.b32.xlu0 %v1300, 64
      %v1397 = vpop.permute.xlu0 %1396
      %1398 = vrot.lane.b32.xlu0 %v1301, 64
      %v1399 = vpop.permute.xlu0 %1398
      %1400 = vrot.lane.b32.xlu0 %v1302, 64
      %v1401 = vpop.permute.xlu0 %1400
      %1402 = vrot.lane.b32.xlu0 %v1303, 64
      %v1403 = vpop.permute.xlu0 %1402
      %1404 = vrot.lane.b32.xlu0 %v1304, 64
      %v1405 = vpop.permute.xlu0 %1404
      %1406 = vrot.lane.b32.xlu0 %v1305, 64
      %v1407 = vpop.permute.xlu0 %1406
      %1408 = vrot.lane.b32.xlu0 %v1306, 64
      %v1409 = vpop.permute.xlu0 %1408
      %1410 = vrot.lane.b32.xlu0 %v1307, 64
      %v1411 = vpop.permute.xlu0 %1410
      %1428 = vrot.lane.b32.xlu0 %v1308, 96
      %v1429 = vpop.permute.xlu0 %1428
      %1430 = vrot.lane.b32.xlu0 %v1309, 96
      %v1431 = vpop.permute.xlu0 %1430
      %1432 = vrot.lane.b32.xlu0 %v1310, 96
      %v1433 = vpop.permute.xlu0 %1432
      %1434 = vrot.lane.b32.xlu0 %v1311, 96
      %v1435 = vpop.permute.xlu0 %1434
      %1436 = vrot.lane.b32.xlu0 %v1312, 96
      %v1437 = vpop.permute.xlu0 %1436
      %1438 = vrot.lane.b32.xlu0 %v1313, 96
      %v1439 = vpop.permute.xlu0 %1438
      %1440 = vrot.lane.b32.xlu0 %v1314, 96
      %v1441 = vpop.permute.xlu0 %1440
      %1442 = vrot.lane.b32.xlu0 %v1315, 96
      %v1443 = vpop.permute.xlu0 %1442
      %1460 = vrot.lane.b32.xlu0 %v1324, 32
      %v1461 = vpop.permute.xlu0 %1460
      %1462 = vrot.lane.b32.xlu0 %v1325, 32
      %v1463 = vpop.permute.xlu0 %1462
      %1464 = vrot.lane.b32.xlu0 %v1326, 32
      %v1465 = vpop.permute.xlu0 %1464
      %1466 = vrot.lane.b32.xlu0 %v1327, 32
      %v1467 = vpop.permute.xlu0 %1466
      %1468 = vrot.lane.b32.xlu0 %v1328, 32
      %v1469 = vpop.permute.xlu0 %1468
      %1470 = vrot.lane.b32.xlu0 %v1329, 32
      %v1471 = vpop.permute.xlu0 %1470
      %1472 = vrot.lane.b32.xlu0 %v1330, 32
      %v1473 = vpop.permute.xlu0 %1472
      %1474 = vrot.lane.b32.xlu0 %v1331, 32
      %v1475 = vpop.permute.xlu0 %1474
      %1492 = vrot.lane.b32.xlu0 %v1332, 64
      %v1493 = vpop.permute.xlu0 %1492
      %1494 = vrot.lane.b32.xlu0 %v1333, 64
      %v1495 = vpop.permute.xlu0 %1494
      %1496 = vrot.lane.b32.xlu0 %v1334, 64
      %v1497 = vpop.permute.xlu0 %1496
      %1498 = vrot.lane.b32.xlu0 %v1335, 64
      %v1499 = vpop.permute.xlu0 %1498
      %1500 = vrot.lane.b32.xlu0 %v1336, 64
      %v1501 = vpop.permute.xlu0 %1500
      %1502 = vrot.lane.b32.xlu0 %v1337, 64
      %v1503 = vpop.permute.xlu0 %1502
      %1504 = vrot.lane.b32.xlu0 %v1338, 64
      %v1505 = vpop.permute.xlu0 %1504
      %1506 = vrot.lane.b32.xlu0 %v1339, 64
      %v1507 = vpop.permute.xlu0 %1506
      %1524 = vrot.lane.b32.xlu0 %v1340, 96
      %v1525 = vpop.permute.xlu0 %1524
      %1526 = vrot.lane.b32.xlu0 %v1341, 96
      %v1527 = vpop.permute.xlu0 %1526
      %1528 = vrot.lane.b32.xlu0 %v1342, 96
      %v1529 = vpop.permute.xlu0 %1528
      %1530 = vrot.lane.b32.xlu0 %v1343, 96
      %v1531 = vpop.permute.xlu0 %1530
      %1532 = vrot.lane.b32.xlu0 %v1344, 96
      %v1533 = vpop.permute.xlu0 %1532
      %1534 = vrot.lane.b32.xlu0 %v1345, 96
      %v1535 = vpop.permute.xlu0 %1534
      %1536 = vrot.lane.b32.xlu0 %v1346, 96
      %v1537 = vpop.permute.xlu0 %1536
      %1538 = vrot.lane.b32.xlu0 %v1347, 96
      %v1539 = vpop.permute.xlu0 %1538
      %v1548 = vsel %vm409, %v1283, %v1365
      %v1549 = vsel %vm409, %v1284, %v1367
      %v1550 = vsel %vm409, %v1285, %v1369
      %v1551 = vsel %vm409, %v1286, %v1371
      %v1552 = vsel %vm409, %v1287, %v1373
      %v1553 = vsel %vm409, %v1288, %v1375
      %v1554 = vsel %vm409, %v1289, %v1377
      %v1555 = vsel %vm409, %v1290, %v1379
      %v1556 = vsel %vm713, %v1548, %v1397
      %v1557 = vsel %vm713, %v1549, %v1399
      %v1558 = vsel %vm713, %v1550, %v1401
      %v1559 = vsel %vm713, %v1551, %v1403
      %v1560 = vsel %vm713, %v1552, %v1405
      %v1561 = vsel %vm713, %v1553, %v1407
      %v1562 = vsel %vm713, %v1554, %v1409
      %v1563 = vsel %vm713, %v1555, %v1411
      %v1564 = vsel %vm722, %v1556, %v1429
      %v1565 = vsel %vm722, %v1557, %v1431
      %v1566 = vsel %vm722, %v1558, %v1433
      %v1567 = vsel %vm722, %v1559, %v1435
      %v1568 = vsel %vm722, %v1560, %v1437
      %v1569 = vsel %vm722, %v1561, %v1439
      %v1570 = vsel %vm722, %v1562, %v1441
      %v1571 = vsel %vm722, %v1563, %v1443
      %v1572 = vsel %vm409, %v1316, %v1461
      %v1573 = vsel %vm409, %v1317, %v1463
      %v1574 = vsel %vm409, %v1318, %v1465
      %v1575 = vsel %vm409, %v1319, %v1467
      %v1576 = vsel %vm409, %v1320, %v1469
      %v1577 = vsel %vm409, %v1321, %v1471
      %v1578 = vsel %vm409, %v1322, %v1473
      %v1579 = vsel %vm409, %v1323, %v1475
      %v1580 = vsel %vm713, %v1572, %v1493
      %v1581 = vsel %vm713, %v1573, %v1495
      %v1582 = vsel %vm713, %v1574, %v1497
      %v1583 = vsel %vm713, %v1575, %v1499
      %v1584 = vsel %vm713, %v1576, %v1501
      %v1585 = vsel %vm713, %v1577, %v1503
      %v1586 = vsel %vm713, %v1578, %v1505
      %v1587 = vsel %vm713, %v1579, %v1507
      %v1588 = vsel %vm722, %v1580, %v1525
      %v1589 = vsel %vm722, %v1581, %v1527
      %v1590 = vsel %vm722, %v1582, %v1529
      %v1591 = vsel %vm722, %v1583, %v1531
      %v1592 = vsel %vm722, %v1584, %v1533
      %v1593 = vsel %vm722, %v1585, %v1535
      %v1594 = vsel %vm722, %v1586, %v1537
      %v1595 = vsel %vm722, %v1587, %v1539
      %v1596 = vpack.c.bf16 %v1565, %v1564
      %v1597 = vpack.c.bf16 %v1589, %v1588
      %v1598 = vpack.c.bf16 %v1349, %v1348
      %v1599 = vpack.c.bf16 %v1567, %v1566
      %v1600 = vpack.c.bf16 %v1591, %v1590
      %v1601 = vpack.c.bf16 %v1351, %v1350
      %v1602 = vpack.c.bf16 %v1569, %v1568
      %v1603 = vpack.c.bf16 %v1593, %v1592
      %v1604 = vpack.c.bf16 %v1353, %v1352
      %v1605 = vpack.c.bf16 %v1571, %v1570
      %v1606 = vpack.c.bf16 %v1595, %v1594
      %v1607 = vpack.c.bf16 %v1355, %v1354
      %v1608 = vld [vmem:[%s6] sm:$0xf]
      %v1609 = vld [vmem:[%s6 + $0x4] sm:$0xf]
      %v1610 = vld [vmem:[%s6 + $0x8] sm:$0xf]
      %v1611 = vld [vmem:[%s6 + $0xc] sm:$0xf]
      %v1612 = vld [vmem:[%s6 + $0x10] sm:$0xf]
      %v1613 = vld [vmem:[%s6 + $0x14] sm:$0xf]
      %v1614 = vld [vmem:[%s6 + $0x18] sm:$0xf]
      %v1615 = vld [vmem:[%s6 + $0x1c] sm:$0xf]
      %v1616 = vld [vmem:[%s6 + $0x20] sm:$0xf]
      %v1617 = vld [vmem:[%s6 + $0x24] sm:$0xf]
      %v1618 = vld [vmem:[%s6 + $0x28] sm:$0xf]
      %v1619 = vld [vmem:[%s6 + $0x2c] sm:$0xf]
      %v1620 = vld [vmem:[%s6 + $0x30] sm:$0xf]
      %v1621 = vld [vmem:[%s6 + $0x34] sm:$0xf]
      %v1622 = vld [vmem:[%s6 + $0x38] sm:$0xf]
      %v1623 = vld [vmem:[%s6 + $0x3c] sm:$0xf]
      %v1624 = vld [vmem:[%s6 + $0x40] sm:$0xf]
      %v1625 = vld [vmem:[%s6 + $0x44] sm:$0xf]
      %v1626 = vld [vmem:[%s6 + $0x48] sm:$0xf]
      %v1627 = vld [vmem:[%s6 + $0x4c] sm:$0xf]
      %v1628 = vld [vmem:[%s6 + $0x50] sm:$0xf]
      %v1629 = vld [vmem:[%s6 + $0x54] sm:$0xf]
      %v1630 = vld [vmem:[%s6 + $0x58] sm:$0xf]
      %v1631 = vld [vmem:[%s6 + $0x5c] sm:$0xf]
      %v1632 = vld [vmem:[%s6 + $0x60] sm:$0xf]
      %v1633 = vld [vmem:[%s6 + $0x64] sm:$0xf]
      %v1634 = vld [vmem:[%s6 + $0x68] sm:$0xf]
      %v1635 = vld [vmem:[%s6 + $0x6c] sm:$0xf]
      %v1636 = vld [vmem:[%s6 + $0x70] sm:$0xf]
      %v1637 = vld [vmem:[%s6 + $0x74] sm:$0xf]
      %v1638 = vld [vmem:[%s6 + $0x78] sm:$0xf]
      %v1639 = vld [vmem:[%s6 + $0x7c] sm:$0xf]
      %v1640 = vld [vmem:[%s6 + $0x80] sm:$0xf]
      %v1641 = vld [vmem:[%s6 + $0x84] sm:$0xf]
      %v1642 = vld [vmem:[%s6 + $0x88] sm:$0xf]
      %v1643 = vld [vmem:[%s6 + $0x8c] sm:$0xf]
      %v1644 = vld [vmem:[%s7] sm:$0x1]
      %v1646 = vlaneseq
      %v1647 = vshrl.u32 %v1646, 7
      %v1648 = vsub.s32 0, %v1647
      %v1649 = vrot.slane %v1644, %v1648
      %v1687 = vunpack.c.l.b16 %v1608
      %v1688 = vunpack.c.l.b16 %v1609
      %v1689 = vunpack.c.l.b16 %v1610
      %v1690 = vunpack.c.l.b16 %v1611
      %v1691 = vunpack.c.l.b16 %v1612
      %v1692 = vunpack.c.l.b16 %v1613
      %v1693 = vunpack.c.l.b16 %v1614
      %v1694 = vunpack.c.l.b16 %v1615
      %v1695 = vunpack.c.l.b16 %v1616
      %v1696 = vunpack.c.l.b16 %v1617
      %v1697 = vunpack.c.l.b16 %v1618
      %v1698 = vunpack.c.l.b16 %v1619
      %v1699 = vunpack.c.l.b16 %v1620
      %v1700 = vunpack.c.l.b16 %v1621
      %v1701 = vunpack.c.l.b16 %v1622
      %v1702 = vunpack.c.l.b16 %v1623
      %v1703 = vunpack.c.l.b16 %v1624
      %v1704 = vunpack.c.l.b16 %v1625
      %v1705 = vunpack.c.l.b16 %v1626
      %v1706 = vunpack.c.l.b16 %v1627
      %v1707 = vunpack.c.l.b16 %v1628
      %v1708 = vunpack.c.l.b16 %v1629
      %v1709 = vunpack.c.l.b16 %v1630
      %v1710 = vunpack.c.l.b16 %v1631
      %v1711 = vunpack.c.l.b16 %v1632
      %v1712 = vunpack.c.l.b16 %v1633
      %v1713 = vunpack.c.l.b16 %v1634
      %v1714 = vunpack.c.l.b16 %v1635
      %v1715 = vunpack.c.l.b16 %v1636
      %v1716 = vunpack.c.l.b16 %v1637
      %v1717 = vunpack.c.l.b16 %v1638
      %v1718 = vunpack.c.l.b16 %v1639
      %v1719 = vunpack.c.l.b16 %v1640
      %v1720 = vunpack.c.l.b16 %v1641
      %v1721 = vunpack.c.l.b16 %v1642
      %v1722 = vunpack.c.l.b16 %v1643
      %v1723 = vpack.c.b16 %v1688, %v1687
      %v1724 = vpack.c.b16 %v1690, %v1689
      %v1725 = vpack.c.b16 %v1692, %v1691
      %v1726 = vpack.c.b16 %v1694, %v1693
      %v1727 = vpack.c.b16 %v1696, %v1695
      %v1728 = vpack.c.b16 %v1698, %v1697
      %v1729 = vpack.c.b16 %v1700, %v1699
      %v1730 = vpack.c.b16 %v1702, %v1701
      %v1731 = vpack.c.b16 %v1704, %v1703
      %v1732 = vpack.c.b16 %v1706, %v1705
      %v1733 = vpack.c.b16 %v1708, %v1707
      %v1734 = vpack.c.b16 %v1710, %v1709
      %v1735 = vpack.c.b16 %v1712, %v1711
      %v1736 = vpack.c.b16 %v1714, %v1713
      %v1737 = vpack.c.b16 %v1716, %v1715
      %v1738 = vpack.c.b16 %v1718, %v1717
      %v1739 = vpack.c.b16 %v1720, %v1719
      %v1740 = vpack.c.b16 %v1722, %v1721
      %v1760 = vsel %vm409, %v1598, 0
      %v1763 = vsel %vm409, %v1601, 0
      %v1766 = vsel %vm409, %v1604, 0
      %v1769 = vsel %vm409, %v1607, 0
      %1771 = vmatprep.subr.bf16.mxu0 0
      %1772 = vmatpush1.bf16.msra.mxu0 %v1723
      %1773 = vmatprep.subr.bf16.mxu0 0
      %1774 = vmatpush1.bf16.msra.mxu0 %v1724
      %1775 = vmatprep.subr.bf16.mxu0 0
      %1776 = vmatpush1.bf16.msra.mxu0 %v1725
      %1777 = vmatprep.subr.bf16.mxu0 0
      %1778 = vmatpush1.bf16.msra.mxu0 %v1726
      %1779 = vmatprep.subr.bf16.mxu0 0
      %1780 = vmatpush1.bf16.msra.mxu0 %v1727
      %1781 = vmatprep.subr.bf16.mxu0 0
      %1782 = vmatpush1.bf16.msra.mxu0 %v1728
      %1783 = vmatprep.subr.bf16.mxu0 0
      %1784 = vmatpush1.bf16.msra.mxu0 %v1729
      %1785 = vmatprep.subr.bf16.mxu0 0
      %1786 = vmatpush1.bf16.msra.mxu0 %v1730
      %1787 = vmatprep.subr.bf16.mxu0 0
      %1788 = vmatpush1.bf16.msra.mxu0 %v1731
      %1789 = vmatprep.subr.bf16.mxu0 0
      %1790 = vmatpush1.bf16.msra.mxu0 %v1732
      %1791 = vmatprep.subr.bf16.mxu0 0
      %1792 = vmatpush1.bf16.msra.mxu0 %v1733
      %1793 = vmatprep.subr.bf16.mxu0 0
      %1794 = vmatpush1.bf16.msra.mxu0 %v1734
      %1795 = vmatprep.subr.bf16.mxu0 0
      %1796 = vmatpush1.bf16.msra.mxu0 %v1735
      %1797 = vmatprep.subr.bf16.mxu0 0
      %1798 = vmatpush1.bf16.msra.mxu0 %v1736
      %1799 = vmatprep.subr.bf16.mxu0 0
      %1800 = vmatpush1.bf16.msra.mxu0 %v1737
      %1801 = vmatprep.subr.bf16.mxu0 0
      %1802 = vmatpush1.bf16.msra.mxu0 %v1738
      %1803 = vmatprep.mubr.bf16.mxu0 %v1597
      %1804 = vmatmul.mubr.bf16.gmra.mrb[0].mxu0 %v1596
      %v1805 = vpop.f32.mrb[0].mxu0
      %v1806 = vadd.f32 %v1649, %v1805
      %v1807 = vpop.f32.mrb[0].mxu0
      %v1808 = vpop.f32.mrb[0].mxu0
      %v1809 = vadd.f32 %v1649, %v1808
      %v1810 = vpop.f32.mrb[0].mxu0
      %1811 = vmatprep.mubr.bf16.mxu0 %v1600
      %1812 = vmatmul.mubr.bf16.gmra.mrb[0].mxu0 %v1599
      %v1813 = vpop.f32.mrb[0].mxu0
      %v1814 = vadd.f32 %v1649, %v1813
      %v1815 = vpop.f32.mrb[0].mxu0
      %v1816 = vpop.f32.mrb[0].mxu0
      %v1817 = vadd.f32 %v1649, %v1816
      %v1818 = vpop.f32.mrb[0].mxu0
      %1819 = vmatprep.mubr.bf16.mxu0 %v1603
      %1820 = vmatmul.mubr.bf16.gmra.mrb[0].mxu0 %v1602
      %v1821 = vpop.f32.mrb[0].mxu0
      %v1822 = vadd.f32 %v1649, %v1821
      %v1823 = vpop.f32.mrb[0].mxu0
      %v1824 = vpop.f32.mrb[0].mxu0
      %v1825 = vadd.f32 %v1649, %v1824
      %v1826 = vpop.f32.mrb[0].mxu0
      %1827 = vmatprep.mubr.bf16.mxu0 %v1606
      %1828 = vmatmul.mubr.bf16.gmra.mrb[0].mxu0 %v1605
      %v1829 = vpop.f32.mrb[0].mxu0
      %v1830 = vadd.f32 %v1649, %v1829
      %v1831 = vpop.f32.mrb[0].mxu0
      %v1832 = vpop.f32.mrb[0].mxu0
      %v1833 = vadd.f32 %v1649, %v1832
      %v1834 = vpop.f32.mrb[0].mxu0
      %1835 = vdwg.mxu0
      %1836 = vmatprep.subr.bf16.mxu0 0
      %1837 = vmatpush1.bf16.msra.mxu0 %v1739
      %1838 = vmatprep.subr.bf16.mxu0 0
      %1839 = vmatpush1.bf16.msra.mxu0 %v1740
      %1840 = vmatprep.subr.bf16.mxu0 0
      %1841 = vmatpush1.bf16.msra.mxu0 0
      %1842 = vmatprep.subr.bf16.mxu0 0
      %1843 = vmatpush1.bf16.msra.mxu0 0
      %1844 = vmatprep.subr.bf16.mxu0 0
      %1845 = vmatpush1.bf16.msra.mxu0 0
      %1846 = vmatprep.subr.bf16.mxu0 0
      %1847 = vmatpush1.bf16.msra.mxu0 0
      %1848 = vmatprep.subr.bf16.mxu0 0
      %1849 = vmatpush1.bf16.msra.mxu0 0
      %1850 = vmatprep.subr.bf16.mxu0 0
      %1851 = vmatpush1.bf16.msra.mxu0 0
      %1852 = vmatprep.subr.bf16.mxu0 0
      %1853 = vmatpush1.bf16.msra.mxu0 0
      %1854 = vmatprep.subr.bf16.mxu0 0
      %1855 = vmatpush1.bf16.msra.mxu0 0
      %1856 = vmatprep.subr.bf16.mxu0 0
      %1857 = vmatpush1.bf16.msra.mxu0 0
      %1858 = vmatprep.subr.bf16.mxu0 0
      %1859 = vmatpush1.bf16.msra.mxu0 0
      %1860 = vmatprep.subr.bf16.mxu0 0
      %1861 = vmatpush1.bf16.msra.mxu0 0
      %1862 = vmatprep.subr.bf16.mxu0 0
      %1863 = vmatpush1.bf16.msra.mxu0 0
      %1864 = vmatprep.subr.bf16.mxu0 0
      %1865 = vmatpush1.bf16.msra.mxu0 0
      %1866 = vmatprep.subr.bf16.mxu0 0
      %1867 = vmatpush1.bf16.msra.mxu0 0
      %1868 = vmatprep.mubr.bf16.mxu0 0
      %1869 = vmatmul.mubr.bf16.gmra.mrb[0].mxu0 %v1760
      %v1870 = vpop.f32.mrb[0].mxu0
      %v1871 = vadd.f32 %v1806, %v1870
      %v1872 = vpop.f32.mrb[0].mxu0
      %v1873 = vpop.f32.mrb[0].mxu0
      %v1874 = vadd.f32 %v1809, %v1873
      %v1875 = vpop.f32.mrb[0].mxu0
      %1876 = vmatprep.mubr.bf16.mxu0 0
      %1877 = vmatmul.mubr.bf16.gmra.mrb[0].mxu0 %v1763
      %v1878 = vpop.f32.mrb[0].mxu0
      %v1879 = vadd.f32 %v1814, %v1878
      %v1880 = vpop.f32.mrb[0].mxu0
      %v1881 = vpop.f32.mrb[0].mxu0
      %v1882 = vadd.f32 %v1817, %v1881
      %v1883 = vpop.f32.mrb[0].mxu0
      %1884 = vmatprep.mubr.bf16.mxu0 0
      %1885 = vmatmul.mubr.bf16.gmra.mrb[0].mxu0 %v1766
      %v1886 = vpop.f32.mrb[0].mxu0
      %v1887 = vadd.f32 %v1822, %v1886
      %v1888 = vpop.f32.mrb[0].mxu0
      %v1889 = vpop.f32.mrb[0].mxu0
      %v1890 = vadd.f32 %v1825, %v1889
      %v1891 = vpop.f32.mrb[0].mxu0
      %1892 = vmatprep.mubr.bf16.mxu0 0
      %1893 = vmatmul.mubr.bf16.gmra.mrb[0].mxu0 %v1769
      %v1894 = vpop.f32.mrb[0].mxu0
      %v1895 = vadd.f32 %v1830, %v1894
      %v1896 = vpop.f32.mrb[0].mxu0
      %v1897 = vpop.f32.mrb[0].mxu0
      %v1898 = vadd.f32 %v1833, %v1897
      %v1899 = vpop.f32.mrb[0].mxu0
      %1900 = vdwg.mxu0
      %v1901 = vtanh.pop %v1871
      %v1902 = vtanh.pop %v1874
      %v1903 = vtanh.pop %v1879
      %v1904 = vtanh.pop %v1882
      %v1905 = vtanh.pop %v1887
      %v1906 = vtanh.pop %v1890
      %v1907 = vtanh.pop %v1895
      %v1908 = vtanh.pop %v1898
      %vm1909 = vcmask 23552
      %1910 = vst.msk [vmem:[%s353] sm:$0xff] %vm1909, %v1901
      %1911 = vst.msk [vmem:[%s353 + $0x8] sm:$0xff] %vm1909, %v1902
      %1912 = vst.msk [vmem:[%s353 + $0x10] sm:$0xff] %vm1909, %v1903
      %1913 = vst.msk [vmem:[%s353 + $0x18] sm:$0xff] %vm1909, %v1904
      %1914 = vst.msk [vmem:[%s353 + $0x20] sm:$0xff] %vm1909, %v1905
      %1915 = vst.msk [vmem:[%s353 + $0x28] sm:$0xff] %vm1909, %v1906
      %1916 = vst.msk [vmem:[%s353 + $0x30] sm:$0xff] %vm1909, %v1907
      %1917 = vst.msk [vmem:[%s353 + $0x38] sm:$0xff] %vm1909, %v1908
      %v1918 = vld [vmem:[%s1291 + $0x1] sm:$0xff]
      %v1919 = vld [vmem:[%s1291 + $0x11] sm:$0xff]
      %v1920 = vld [vmem:[%s1291 + $0x21] sm:$0xff]
      %v1921 = vld [vmem:[%s1291 + $0x31] sm:$0xff]
      %v1922 = vld [vmem:[%s1291 + $0x41] sm:$0xff]
      %v1923 = vld [vmem:[%s1291 + $0x51] sm:$0xff]
      %v1924 = vld [vmem:[%s1291 + $0x61] sm:$0xff]
      %v1925 = vld [vmem:[%s1291 + $0x71] sm:$0xff]
      %v1926 = vld [vmem:[%s1282 + $0x1] sm:$0xff]
      %v1927 = vld [vmem:[%s1282 + $0x11] sm:$0xff]
      %v1928 = vld [vmem:[%s1282 + $0x21] sm:$0xff]
      %v1929 = vld [vmem:[%s1282 + $0x31] sm:$0xff]
      %v1930 = vld [vmem:[%s1282 + $0x41] sm:$0xff]
      %v1931 = vld [vmem:[%s1282 + $0x51] sm:$0xff]
      %v1932 = vld [vmem:[%s1282 + $0x61] sm:$0xff]
      %v1933 = vld [vmem:[%s1282 + $0x71] sm:$0xff]
      %v1934 = vld [vmem:[%s1291 + $0x2] sm:$0xff]
      %v1935 = vld [vmem:[%s1291 + $0x12] sm:$0xff]
      %v1936 = vld [vmem:[%s1291 + $0x22] sm:$0xff]
      %v1937 = vld [vmem:[%s1291 + $0x32] sm:$0xff]
      %v1938 = vld [vmem:[%s1291 + $0x42] sm:$0xff]
      %v1939 = vld [vmem:[%s1291 + $0x52] sm:$0xff]
      %v1940 = vld [vmem:[%s1291 + $0x62] sm:$0xff]
      %v1941 = vld [vmem:[%s1291 + $0x72] sm:$0xff]
      %v1942 = vld [vmem:[%s1166 + $0x1] sm:$0xff]
      %v1943 = vld [vmem:[%s1166 + $0x11] sm:$0xff]
      %v1944 = vld [vmem:[%s1166 + $0x21] sm:$0xff]
      %v1945 = vld [vmem:[%s1166 + $0x31] sm:$0xff]
      %v1946 = vld [vmem:[%s1166 + $0x41] sm:$0xff]
      %v1947 = vld [vmem:[%s1166 + $0x51] sm:$0xff]
      %v1948 = vld [vmem:[%s1166 + $0x61] sm:$0xff]
      %v1949 = vld [vmem:[%s1166 + $0x71] sm:$0xff]
      %v1950 = vld [vmem:[%s1207 + $0x1] sm:$0xff]
      %v1951 = vld [vmem:[%s1207 + $0x11] sm:$0xff]
      %v1952 = vld [vmem:[%s1207 + $0x21] sm:$0xff]
      %v1953 = vld [vmem:[%s1207 + $0x31] sm:$0xff]
      %v1954 = vld [vmem:[%s1207 + $0x41] sm:$0xff]
      %v1955 = vld [vmem:[%s1207 + $0x51] sm:$0xff]
      %v1956 = vld [vmem:[%s1207 + $0x61] sm:$0xff]
      %v1957 = vld [vmem:[%s1207 + $0x71] sm:$0xff]
      %v1958 = vld [vmem:[%s1166 + $0x2] sm:$0xff]
      %v1959 = vld [vmem:[%s1166 + $0x12] sm:$0xff]
      %v1960 = vld [vmem:[%s1166 + $0x22] sm:$0xff]
      %v1961 = vld [vmem:[%s1166 + $0x32] sm:$0xff]
      %v1962 = vld [vmem:[%s1166 + $0x42] sm:$0xff]
      %v1963 = vld [vmem:[%s1166 + $0x52] sm:$0xff]
      %v1964 = vld [vmem:[%s1166 + $0x62] sm:$0xff]
      %v1965 = vld [vmem:[%s1166 + $0x72] sm:$0xff]
      %v1966 = vld [vmem:[%s1240 + $0x1] sm:$0xff]
      %v1967 = vld [vmem:[%s1240 + $0x11] sm:$0xff]
      %v1968 = vld [vmem:[%s1240 + $0x21] sm:$0xff]
      %v1969 = vld [vmem:[%s1240 + $0x31] sm:$0xff]
      %v1970 = vld [vmem:[%s1240 + $0x41] sm:$0xff]
      %v1971 = vld [vmem:[%s1240 + $0x51] sm:$0xff]
      %v1972 = vld [vmem:[%s1240 + $0x61] sm:$0xff]
      %v1973 = vld [vmem:[%s1240 + $0x71] sm:$0xff]
      %v1974 = vld [vmem:[%s1273 + $0x1] sm:$0xff]
      %v1975 = vld [vmem:[%s1273 + $0x11] sm:$0xff]
      %v1976 = vld [vmem:[%s1273 + $0x21] sm:$0xff]
      %v1977 = vld [vmem:[%s1273 + $0x31] sm:$0xff]
      %v1978 = vld [vmem:[%s1273 + $0x41] sm:$0xff]
      %v1979 = vld [vmem:[%s1273 + $0x51] sm:$0xff]
      %v1980 = vld [vmem:[%s1273 + $0x61] sm:$0xff]
      %v1981 = vld [vmem:[%s1273 + $0x71] sm:$0xff]
      %v1982 = vld [vmem:[%s1240 + $0x2] sm:$0xff]
      %v1983 = vld [vmem:[%s1240 + $0x12] sm:$0xff]
      %v1984 = vld [vmem:[%s1240 + $0x22] sm:$0xff]
      %v1985 = vld [vmem:[%s1240 + $0x32] sm:$0xff]
      %v1986 = vld [vmem:[%s1240 + $0x42] sm:$0xff]
      %v1987 = vld [vmem:[%s1240 + $0x52] sm:$0xff]
      %v1988 = vld [vmem:[%s1240 + $0x62] sm:$0xff]
      %v1989 = vld [vmem:[%s1240 + $0x72] sm:$0xff]
      %1998 = vrot.lane.b32.xlu0 %v1926, 32
      %v1999 = vpop.permute.xlu0 %1998
      %2000 = vrot.lane.b32.xlu0 %v1927, 32
      %v2001 = vpop.permute.xlu0 %2000
      %2002 = vrot.lane.b32.xlu0 %v1928, 32
      %v2003 = vpop.permute.xlu0 %2002
      %2004 = vrot.lane.b32.xlu0 %v1929, 32
      %v2005 = vpop.permute.xlu0 %2004
      %2006 = vrot.lane.b32.xlu0 %v1930, 32
      %v2007 = vpop.permute.xlu0 %2006
      %2008 = vrot.lane.b32.xlu0 %v1931, 32
      %v2009 = vpop.permute.xlu0 %2008
      %2010 = vrot.lane.b32.xlu0 %v1932, 32
      %v2011 = vpop.permute.xlu0 %2010
      %2012 = vrot.lane.b32.xlu0 %v1933, 32
      %v2013 = vpop.permute.xlu0 %2012
      %2030 = vrot.lane.b32.xlu0 %v1934, 64
      %v2031 = vpop.permute.xlu0 %2030
      %2032 = vrot.lane.b32.xlu0 %v1935, 64
      %v2033 = vpop.permute.xlu0 %2032
      %2034 = vrot.lane.b32.xlu0 %v1936, 64
      %v2035 = vpop.permute.xlu0 %2034
      %2036 = vrot.lane.b32.xlu0 %v1937, 64
      %v2037 = vpop.permute.xlu0 %2036
      %2038 = vrot.lane.b32.xlu0 %v1938, 64
      %v2039 = vpop.permute.xlu0 %2038
      %2040 = vrot.lane.b32.xlu0 %v1939, 64
      %v2041 = vpop.permute.xlu0 %2040
      %2042 = vrot.lane.b32.xlu0 %v1940, 64
      %v2043 = vpop.permute.xlu0 %2042
      %2044 = vrot.lane.b32.xlu0 %v1941, 64
      %v2045 = vpop.permute.xlu0 %2044
      %2062 = vrot.lane.b32.xlu0 %v1942, 96
      %v2063 = vpop.permute.xlu0 %2062
      %2064 = vrot.lane.b32.xlu0 %v1943, 96
      %v2065 = vpop.permute.xlu0 %2064
      %2066 = vrot.lane.b32.xlu0 %v1944, 96
      %v2067 = vpop.permute.xlu0 %2066
      %2068 = vrot.lane.b32.xlu0 %v1945, 96
      %v2069 = vpop.permute.xlu0 %2068
      %2070 = vrot.lane.b32.xlu0 %v1946, 96
      %v2071 = vpop.permute.xlu0 %2070
      %2072 = vrot.lane.b32.xlu0 %v1947, 96
      %v2073 = vpop.permute.xlu0 %2072
      %2074 = vrot.lane.b32.xlu0 %v1948, 96
      %v2075 = vpop.permute.xlu0 %2074
      %2076 = vrot.lane.b32.xlu0 %v1949, 96
      %v2077 = vpop.permute.xlu0 %2076
      %2094 = vrot.lane.b32.xlu0 %v1958, 32
      %v2095 = vpop.permute.xlu0 %2094
      %2096 = vrot.lane.b32.xlu0 %v1959, 32
      %v2097 = vpop.permute.xlu0 %2096
      %2098 = vrot.lane.b32.xlu0 %v1960, 32
      %v2099 = vpop.permute.xlu0 %2098
      %2100 = vrot.lane.b32.xlu0 %v1961, 32
      %v2101 = vpop.permute.xlu0 %2100
      %2102 = vrot.lane.b32.xlu0 %v1962, 32
      %v2103 = vpop.permute.xlu0 %2102
      %2104 = vrot.lane.b32.xlu0 %v1963, 32
      %v2105 = vpop.permute.xlu0 %2104
      %2106 = vrot.lane.b32.xlu0 %v1964, 32
      %v2107 = vpop.permute.xlu0 %2106
      %2108 = vrot.lane.b32.xlu0 %v1965, 32
      %v2109 = vpop.permute.xlu0 %2108
      %2126 = vrot.lane.b32.xlu0 %v1966, 64
      %v2127 = vpop.permute.xlu0 %2126
      %2128 = vrot.lane.b32.xlu0 %v1967, 64
      %v2129 = vpop.permute.xlu0 %2128
      %2130 = vrot.lane.b32.xlu0 %v1968, 64
      %v2131 = vpop.permute.xlu0 %2130
      %2132 = vrot.lane.b32.xlu0 %v1969, 64
      %v2133 = vpop.permute.xlu0 %2132
      %2134 = vrot.lane.b32.xlu0 %v1970, 64
      %v2135 = vpop.permute.xlu0 %2134
      %2136 = vrot.lane.b32.xlu0 %v1971, 64
      %v2137 = vpop.permute.xlu0 %2136
      %2138 = vrot.lane.b32.xlu0 %v1972, 64
      %v2139 = vpop.permute.xlu0 %2138
      %2140 = vrot.lane.b32.xlu0 %v1973, 64
      %v2141 = vpop.permute.xlu0 %2140
      %2158 = vrot.lane.b32.xlu0 %v1974, 96
      %v2159 = vpop.permute.xlu0 %2158
      %2160 = vrot.lane.b32.xlu0 %v1975, 96
      %v2161 = vpop.permute.xlu0 %2160
      %2162 = vrot.lane.b32.xlu0 %v1976, 96
      %v2163 = vpop.permute.xlu0 %2162
      %2164 = vrot.lane.b32.xlu0 %v1977, 96
      %v2165 = vpop.permute.xlu0 %2164
      %2166 = vrot.lane.b32.xlu0 %v1978, 96
      %v2167 = vpop.permute.xlu0 %2166
      %2168 = vrot.lane.b32.xlu0 %v1979, 96
      %v2169 = vpop.permute.xlu0 %2168
      %2170 = vrot.lane.b32.xlu0 %v1980, 96
      %v2171 = vpop.permute.xlu0 %2170
      %2172 = vrot.lane.b32.xlu0 %v1981, 96
      %v2173 = vpop.permute.xlu0 %2172
      %v2182 = vsel %vm409, %v1918, %v1999
      %v2183 = vsel %vm409, %v1919, %v2001
      %v2184 = vsel %vm409, %v1920, %v2003
      %v2185 = vsel %vm409, %v1921, %v2005
      %v2186 = vsel %vm409, %v1922, %v2007
      %v2187 = vsel %vm409, %v1923, %v2009
      %v2188 = vsel %vm409, %v1924, %v2011
      %v2189 = vsel %vm409, %v1925, %v2013
      %v2190 = vsel %vm713, %v2182, %v2031
      %v2191 = vsel %vm713, %v2183, %v2033
      %v2192 = vsel %vm713, %v2184, %v2035
      %v2193 = vsel %vm713, %v2185, %v2037
      %v2194 = vsel %vm713, %v2186, %v2039
      %v2195 = vsel %vm713, %v2187, %v2041
      %v2196 = vsel %vm713, %v2188, %v2043
      %v2197 = vsel %vm713, %v2189, %v2045
      %v2198 = vsel %vm722, %v2190, %v2063
      %v2199 = vsel %vm722, %v2191, %v2065
      %v2200 = vsel %vm722, %v2192, %v2067
      %v2201 = vsel %vm722, %v2193, %v2069
      %v2202 = vsel %vm722, %v2194, %v2071
      %v2203 = vsel %vm722, %v2195, %v2073
      %v2204 = vsel %vm722, %v2196, %v2075
      %v2205 = vsel %vm722, %v2197, %v2077
      %v2206 = vsel %vm409, %v1950, %v2095
      %v2207 = vsel %vm409, %v1951, %v2097
      %v2208 = vsel %vm409, %v1952, %v2099
      %v2209 = vsel %vm409, %v1953, %v2101
      %v2210 = vsel %vm409, %v1954, %v2103
      %v2211 = vsel %vm409, %v1955, %v2105
      %v2212 = vsel %vm409, %v1956, %v2107
      %v2213 = vsel %vm409, %v1957, %v2109
      %v2214 = vsel %vm713, %v2206, %v2127
      %v2215 = vsel %vm713, %v2207, %v2129
      %v2216 = vsel %vm713, %v2208, %v2131
      %v2217 = vsel %vm713, %v2209, %v2133
      %v2218 = vsel %vm713, %v2210, %v2135
      %v2219 = vsel %vm713, %v2211, %v2137
      %v2220 = vsel %vm713, %v2212, %v2139
      %v2221 = vsel %vm713, %v2213, %v2141
      %v2222 = vsel %vm722, %v2214, %v2159
      %v2223 = vsel %vm722, %v2215, %v2161
      %v2224 = vsel %vm722, %v2216, %v2163
      %v2225 = vsel %vm722, %v2217, %v2165
      %v2226 = vsel %vm722, %v2218, %v2167
      %v2227 = vsel %vm722, %v2219, %v2169
      %v2228 = vsel %vm722, %v2220, %v2171
      %v2229 = vsel %vm722, %v2221, %v2173
      %v2230 = vpack.c.bf16 %v2199, %v2198
      %v2231 = vpack.c.bf16 %v2223, %v2222
      %v2232 = vpack.c.bf16 %v1983, %v1982
      %v2233 = vpack.c.bf16 %v2201, %v2200
      %v2234 = vpack.c.bf16 %v2225, %v2224
      %v2235 = vpack.c.bf16 %v1985, %v1984
      %v2236 = vpack.c.bf16 %v2203, %v2202
      %v2237 = vpack.c.bf16 %v2227, %v2226
      %v2238 = vpack.c.bf16 %v1987, %v1986
      %v2239 = vpack.c.bf16 %v2205, %v2204
      %v2240 = vpack.c.bf16 %v2229, %v2228
      %v2241 = vpack.c.bf16 %v1989, %v1988
      %v2242 = vld [vmem:[%s6] sm:$0xf]
      %v2243 = vld [vmem:[%s6 + $0x4] sm:$0xf]
      %v2244 = vld [vmem:[%s6 + $0x8] sm:$0xf]
      %v2245 = vld [vmem:[%s6 + $0xc] sm:$0xf]
      %v2246 = vld [vmem:[%s6 + $0x10] sm:$0xf]
      %v2247 = vld [vmem:[%s6 + $0x14] sm:$0xf]
      %v2248 = vld [vmem:[%s6 + $0x18] sm:$0xf]
      %v2249 = vld [vmem:[%s6 + $0x1c] sm:$0xf]
      %v2250 = vld [vmem:[%s6 + $0x20] sm:$0xf]
      %v2251 = vld [vmem:[%s6 + $0x24] sm:$0xf]
      %v2252 = vld [vmem:[%s6 + $0x28] sm:$0xf]
      %v2253 = vld [vmem:[%s6 + $0x2c] sm:$0xf]
      %v2254 = vld [vmem:[%s6 + $0x30] sm:$0xf]
      %v2255 = vld [vmem:[%s6 + $0x34] sm:$0xf]
      %v2256 = vld [vmem:[%s6 + $0x38] sm:$0xf]
      %v2257 = vld [vmem:[%s6 + $0x3c] sm:$0xf]
      %v2258 = vld [vmem:[%s6 + $0x40] sm:$0xf]
      %v2259 = vld [vmem:[%s6 + $0x44] sm:$0xf]
      %v2260 = vld [vmem:[%s6 + $0x48] sm:$0xf]
      %v2261 = vld [vmem:[%s6 + $0x4c] sm:$0xf]
      %v2262 = vld [vmem:[%s6 + $0x50] sm:$0xf]
      %v2263 = vld [vmem:[%s6 + $0x54] sm:$0xf]
      %v2264 = vld [vmem:[%s6 + $0x58] sm:$0xf]
      %v2265 = vld [vmem:[%s6 + $0x5c] sm:$0xf]
      %v2266 = vld [vmem:[%s6 + $0x60] sm:$0xf]
      %v2267 = vld [vmem:[%s6 + $0x64] sm:$0xf]
      %v2268 = vld [vmem:[%s6 + $0x68] sm:$0xf]
      %v2269 = vld [vmem:[%s6 + $0x6c] sm:$0xf]
      %v2270 = vld [vmem:[%s6 + $0x70] sm:$0xf]
      %v2271 = vld [vmem:[%s6 + $0x74] sm:$0xf]
      %v2272 = vld [vmem:[%s6 + $0x78] sm:$0xf]
      %v2273 = vld [vmem:[%s6 + $0x7c] sm:$0xf]
      %v2274 = vld [vmem:[%s6 + $0x80] sm:$0xf]
      %v2275 = vld [vmem:[%s6 + $0x84] sm:$0xf]
      %v2276 = vld [vmem:[%s6 + $0x88] sm:$0xf]
      %v2277 = vld [vmem:[%s6 + $0x8c] sm:$0xf]
      %v2278 = vld [vmem:[%s7] sm:$0x1]
      %v2280 = vlaneseq
      %v2281 = vshrl.u32 %v2280, 7
      %v2282 = vsub.s32 0, %v2281
      %v2283 = vrot.slane %v2278, %v2282
      %v2321 = vunpack.c.l.b16 %v2242
      %v2322 = vunpack.c.l.b16 %v2243
      %v2323 = vunpack.c.l.b16 %v2244
      %v2324 = vunpack.c.l.b16 %v2245
      %v2325 = vunpack.c.l.b16 %v2246
      %v2326 = vunpack.c.l.b16 %v2247
      %v2327 = vunpack.c.l.b16 %v2248
      %v2328 = vunpack.c.l.b16 %v2249
      %v2329 = vunpack.c.l.b16 %v2250
      %v2330 = vunpack.c.l.b16 %v2251
      %v2331 = vunpack.c.l.b16 %v2252
      %v2332 = vunpack.c.l.b16 %v2253
      %v2333 = vunpack.c.l.b16 %v2254
      %v2334 = vunpack.c.l.b16 %v2255
      %v2335 = vunpack.c.l.b16 %v2256
      %v2336 = vunpack.c.l.b16 %v2257
      %v2337 = vunpack.c.l.b16 %v2258
      %v2338 = vunpack.c.l.b16 %v2259
      %v2339 = vunpack.c.l.b16 %v2260
      %v2340 = vunpack.c.l.b16 %v2261
      %v2341 = vunpack.c.l.b16 %v2262
      %v2342 = vunpack.c.l.b16 %v2263
      %v2343 = vunpack.c.l.b16 %v2264
      %v2344 = vunpack.c.l.b16 %v2265
      %v2345 = vunpack.c.l.b16 %v2266
      %v2346 = vunpack.c.l.b16 %v2267
      %v2347 = vunpack.c.l.b16 %v2268
      %v2348 = vunpack.c.l.b16 %v2269
      %v2349 = vunpack.c.l.b16 %v2270
      %v2350 = vunpack.c.l.b16 %v2271
      %v2351 = vunpack.c.l.b16 %v2272
      %v2352 = vunpack.c.l.b16 %v2273
      %v2353 = vunpack.c.l.b16 %v2274
      %v2354 = vunpack.c.l.b16 %v2275
      %v2355 = vunpack.c.l.b16 %v2276
      %v2356 = vunpack.c.l.b16 %v2277
      %v2357 = vpack.c.b16 %v2322, %v2321
      %v2358 = vpack.c.b16 %v2324, %v2323
      %v2359 = vpack.c.b16 %v2326, %v2325
      %v2360 = vpack.c.b16 %v2328, %v2327
      %v2361 = vpack.c.b16 %v2330, %v2329
      %v2362 = vpack.c.b16 %v2332, %v2331
      %v2363 = vpack.c.b16 %v2334, %v2333
      %v2364 = vpack.c.b16 %v2336, %v2335
      %v2365 = vpack.c.b16 %v2338, %v2337
      %v2366 = vpack.c.b16 %v2340, %v2339
      %v2367 = vpack.c.b16 %v2342, %v2341
      %v2368 = vpack.c.b16 %v2344, %v2343
      %v2369 = vpack.c.b16 %v2346, %v2345
      %v2370 = vpack.c.b16 %v2348, %v2347
      %v2371 = vpack.c.b16 %v2350, %v2349
      %v2372 = vpack.c.b16 %v2352, %v2351
      %v2373 = vpack.c.b16 %v2354, %v2353
      %v2374 = vpack.c.b16 %v2356, %v2355
      %v2394 = vsel %vm409, %v2232, 0
      %v2397 = vsel %vm409, %v2235, 0
      %v2400 = vsel %vm409, %v2238, 0
      %v2403 = vsel %vm409, %v2241, 0
      %2405 = vmatprep.subr.bf16.mxu0 0
      %2406 = vmatpush1.bf16.msra.mxu0 %v2357
      %2407 = vmatprep.subr.bf16.mxu0 0
      %2408 = vmatpush1.bf16.msra.mxu0 %v2358
      %2409 = vmatprep.subr.bf16.mxu0 0
      %2410 = vmatpush1.bf16.msra.mxu0 %v2359
      %2411 = vmatprep.subr.bf16.mxu0 0
      %2412 = vmatpush1.bf16.msra.mxu0 %v2360
      %2413 = vmatprep.subr.bf16.mxu0 0
      %2414 = vmatpush1.bf16.msra.mxu0 %v2361
      %2415 = vmatprep.subr.bf16.mxu0 0
      %2416 = vmatpush1.bf16.msra.mxu0 %v2362
      %2417 = vmatprep.subr.bf16.mxu0 0
      %2418 = vmatpush1.bf16.msra.mxu0 %v2363
      %2419 = vmatprep.subr.bf16.mxu0 0
      %2420 = vmatpush1.bf16.msra.mxu0 %v2364
      %2421 = vmatprep.subr.bf16.mxu0 0
      %2422 = vmatpush1.bf16.msra.mxu0 %v2365
      %2423 = vmatprep.subr.bf16.mxu0 0
      %2424 = vmatpush1.bf16.msra.mxu0 %v2366
      %2425 = vmatprep.subr.bf16.mxu0 0
      %2426 = vmatpush1.bf16.msra.mxu0 %v2367
      %2427 = vmatprep.subr.bf16.mxu0 0
      %2428 = vmatpush1.bf16.msra.mxu0 %v2368
      %2429 = vmatprep.subr.bf16.mxu0 0
      %2430 = vmatpush1.bf16.msra.mxu0 %v2369
      %2431 = vmatprep.subr.bf16.mxu0 0
      %2432 = vmatpush1.bf16.msra.mxu0 %v2370
      %2433 = vmatprep.subr.bf16.mxu0 0
      %2434 = vmatpush1.bf16.msra.mxu0 %v2371
      %2435 = vmatprep.subr.bf16.mxu0 0
      %2436 = vmatpush1.bf16.msra.mxu0 %v2372
      %2437 = vmatprep.mubr.bf16.mxu0 %v2231
      %2438 = vmatmul.mubr.bf16.gmra.mrb[0].mxu0 %v2230
      %v2439 = vpop.f32.mrb[0].mxu0
      %v2440 = vadd.f32 %v2283, %v2439
      %v2441 = vpop.f32.mrb[0].mxu0
      %v2442 = vpop.f32.mrb[0].mxu0
      %v2443 = vadd.f32 %v2283, %v2442
      %v2444 = vpop.f32.mrb[0].mxu0
      %2445 = vmatprep.mubr.bf16.mxu0 %v2234
      %2446 = vmatmul.mubr.bf16.gmra.mrb[0].mxu0 %v2233
      %v2447 = vpop.f32.mrb[0].mxu0
      %v2448 = vadd.f32 %v2283, %v2447
      %v2449 = vpop.f32.mrb[0].mxu0
      %v2450 = vpop.f32.mrb[0].mxu0
      %v2451 = vadd.f32 %v2283, %v2450
      %v2452 = vpop.f32.mrb[0].mxu0
      %2453 = vmatprep.mubr.bf16.mxu0 %v2237
      %2454 = vmatmul.mubr.bf16.gmra.mrb[0].mxu0 %v2236
      %v2455 = vpop.f32.mrb[0].mxu0
      %v2456 = vadd.f32 %v2283, %v2455
      %v2457 = vpop.f32.mrb[0].mxu0
      %v2458 = vpop.f32.mrb[0].mxu0
      %v2459 = vadd.f32 %v2283, %v2458
      %v2460 = vpop.f32.mrb[0].mxu0
      %2461 = vmatprep.mubr.bf16.mxu0 %v2240
      %2462 = vmatmul.mubr.bf16.gmra.mrb[0].mxu0 %v2239
      %v2463 = vpop.f32.mrb[0].mxu0
      %v2464 = vadd.f32 %v2283, %v2463
      %v2465 = vpop.f32.mrb[0].mxu0
      %v2466 = vpop.f32.mrb[0].mxu0
      %v2467 = vadd.f32 %v2283, %v2466
      %v2468 = vpop.f32.mrb[0].mxu0
      %2469 = vdwg.mxu0
      %2470 = vmatprep.subr.bf16.mxu0 0
      %2471 = vmatpush1.bf16.msra.mxu0 %v2373
      %2472 = vmatprep.subr.bf16.mxu0 0
      %2473 = vmatpush1.bf16.msra.mxu0 %v2374
      %2474 = vmatprep.subr.bf16.mxu0 0
      %2475 = vmatpush1.bf16.msra.mxu0 0
      %2476 = vmatprep.subr.bf16.mxu0 0
      %2477 = vmatpush1.bf16.msra.mxu0 0
      %2478 = vmatprep.subr.bf16.mxu0 0
      %2479 = vmatpush1.bf16.msra.mxu0 0
      %2480 = vmatprep.subr.bf16.mxu0 0
      %2481 = vmatpush1.bf16.msra.mxu0 0
      %2482 = vmatprep.subr.bf16.mxu0 0
      %2483 = vmatpush1.bf16.msra.mxu0 0
      %2484 = vmatprep.subr.bf16.mxu0 0
      %2485 = vmatpush1.bf16.msra.mxu0 0
      %2486 = vmatprep.subr.bf16.mxu0 0
      %2487 = vmatpush1.bf16.msra.mxu0 0
      %2488 = vmatprep.subr.bf16.mxu0 0
      %2489 = vmatpush1.bf16.msra.mxu0 0
      %2490 = vmatprep.subr.bf16.mxu0 0
      %2491 = vmatpush1.bf16.msra.mxu0 0
      %2492 = vmatprep.subr.bf16.mxu0 0
      %2493 = vmatpush1.bf16.msra.mxu0 0
      %2494 = vmatprep.subr.bf16.mxu0 0
      %2495 = vmatpush1.bf16.msra.mxu0 0
      %2496 = vmatprep.subr.bf16.mxu0 0
      %2497 = vmatpush1.bf16.msra.mxu0 0
      %2498 = vmatprep.subr.bf16.mxu0 0
      %2499 = vmatpush1.bf16.msra.mxu0 0
      %2500 = vmatprep.subr.bf16.mxu0 0
      %2501 = vmatpush1.bf16.msra.mxu0 0
      %2502 = vmatprep.mubr.bf16.mxu0 0
      %2503 = vmatmul.mubr.bf16.gmra.mrb[0].mxu0 %v2394
      %v2504 = vpop.f32.mrb[0].mxu0
      %v2505 = vadd.f32 %v2440, %v2504
      %v2506 = vpop.f32.mrb[0].mxu0
      %v2507 = vpop.f32.mrb[0].mxu0
      %v2508 = vadd.f32 %v2443, %v2507
      %v2509 = vpop.f32.mrb[0].mxu0
      %2510 = vmatprep.mubr.bf16.mxu0 0
      %2511 = vmatmul.mubr.bf16.gmra.mrb[0].mxu0 %v2397
      %v2512 = vpop.f32.mrb[0].mxu0
      %v2513 = vadd.f32 %v2448, %v2512
      %v2514 = vpop.f32.mrb[0].mxu0
      %v2515 = vpop.f32.mrb[0].mxu0
      %v2516 = vadd.f32 %v2451, %v2515
      %v2517 = vpop.f32.mrb[0].mxu0
      %2518 = vmatprep.mubr.bf16.mxu0 0
      %2519 = vmatmul.mubr.bf16.gmra.mrb[0].mxu0 %v2400
      %v2520 = vpop.f32.mrb[0].mxu0
      %v2521 = vadd.f32 %v2456, %v2520
      %v2522 = vpop.f32.mrb[0].mxu0
      %v2523 = vpop.f32.mrb[0].mxu0
      %v2524 = vadd.f32 %v2459, %v2523
      %v2525 = vpop.f32.mrb[0].mxu0
      %2526 = vmatprep.mubr.bf16.mxu0 0
      %2527 = vmatmul.mubr.bf16.gmra.mrb[0].mxu0 %v2403
      %v2528 = vpop.f32.mrb[0].mxu0
      %v2529 = vadd.f32 %v2464, %v2528
      %v2530 = vpop.f32.mrb[0].mxu0
      %v2531 = vpop.f32.mrb[0].mxu0
      %v2532 = vadd.f32 %v2467, %v2531
      %v2533 = vpop.f32.mrb[0].mxu0
      %2534 = vdwg.mxu0
      %v2535 = vtanh.pop %v2505
      %v2536 = vtanh.pop %v2508
      %v2537 = vtanh.pop %v2513
      %v2538 = vtanh.pop %v2516
      %v2539 = vtanh.pop %v2521
      %v2540 = vtanh.pop %v2524
      %v2541 = vtanh.pop %v2529
      %v2542 = vtanh.pop %v2532
      %s2543 = scalar_lea.vmem %s353, 64
      %2544 = vst.msk [vmem:[%s2543] sm:$0xff] %vm1909, %v2535
      %2545 = vst.msk [vmem:[%s2543 + $0x8] sm:$0xff] %vm1909, %v2536
      %2546 = vst.msk [vmem:[%s2543 + $0x10] sm:$0xff] %vm1909, %v2537
      %2547 = vst.msk [vmem:[%s2543 + $0x18] sm:$0xff] %vm1909, %v2538
      %2548 = vst.msk [vmem:[%s2543 + $0x20] sm:$0xff] %vm1909, %v2539
      %2549 = vst.msk [vmem:[%s2543 + $0x28] sm:$0xff] %vm1909, %v2540
      %2550 = vst.msk [vmem:[%s2543 + $0x30] sm:$0xff] %vm1909, %v2541
      %2551 = vst.msk [vmem:[%s2543 + $0x38] sm:$0xff] %vm1909, %v2542
      %v2552 = vld [vmem:[%s1207] sm:$0xff]
      %v2553 = vld [vmem:[%s1207 + $0x10] sm:$0xff]
      %v2554 = vld [vmem:[%s1207 + $0x20] sm:$0xff]
      %v2555 = vld [vmem:[%s1207 + $0x30] sm:$0xff]
      %v2556 = vld [vmem:[%s1207 + $0x40] sm:$0xff]
      %v2557 = vld [vmem:[%s1207 + $0x50] sm:$0xff]
      %v2558 = vld [vmem:[%s1207 + $0x60] sm:$0xff]
      %v2559 = vld [vmem:[%s1207 + $0x70] sm:$0xff]
      %v2560 = vld [vmem:[%s1166 + $0x1] sm:$0xff]
      %v2561 = vld [vmem:[%s1166 + $0x11] sm:$0xff]
      %v2562 = vld [vmem:[%s1166 + $0x21] sm:$0xff]
      %v2563 = vld [vmem:[%s1166 + $0x31] sm:$0xff]
      %v2564 = vld [vmem:[%s1166 + $0x41] sm:$0xff]
      %v2565 = vld [vmem:[%s1166 + $0x51] sm:$0xff]
      %v2566 = vld [vmem:[%s1166 + $0x61] sm:$0xff]
      %v2567 = vld [vmem:[%s1166 + $0x71] sm:$0xff]
      %v2568 = vld [vmem:[%s1207 + $0x1] sm:$0xff]
      %v2569 = vld [vmem:[%s1207 + $0x11] sm:$0xff]
      %v2570 = vld [vmem:[%s1207 + $0x21] sm:$0xff]
      %v2571 = vld [vmem:[%s1207 + $0x31] sm:$0xff]
      %v2572 = vld [vmem:[%s1207 + $0x41] sm:$0xff]
      %v2573 = vld [vmem:[%s1207 + $0x51] sm:$0xff]
      %v2574 = vld [vmem:[%s1207 + $0x61] sm:$0xff]
      %v2575 = vld [vmem:[%s1207 + $0x71] sm:$0xff]
      %v2576 = vld [vmem:[%s1273] sm:$0xff]
      %v2577 = vld [vmem:[%s1273 + $0x10] sm:$0xff]
      %v2578 = vld [vmem:[%s1273 + $0x20] sm:$0xff]
      %v2579 = vld [vmem:[%s1273 + $0x30] sm:$0xff]
      %v2580 = vld [vmem:[%s1273 + $0x40] sm:$0xff]
      %v2581 = vld [vmem:[%s1273 + $0x50] sm:$0xff]
      %v2582 = vld [vmem:[%s1273 + $0x60] sm:$0xff]
      %v2583 = vld [vmem:[%s1273 + $0x70] sm:$0xff]
      %v2584 = vld [vmem:[%s1240 + $0x1] sm:$0xff]
      %v2585 = vld [vmem:[%s1240 + $0x11] sm:$0xff]
      %v2586 = vld [vmem:[%s1240 + $0x21] sm:$0xff]
      %v2587 = vld [vmem:[%s1240 + $0x31] sm:$0xff]
      %v2588 = vld [vmem:[%s1240 + $0x41] sm:$0xff]
      %v2589 = vld [vmem:[%s1240 + $0x51] sm:$0xff]
      %v2590 = vld [vmem:[%s1240 + $0x61] sm:$0xff]
      %v2591 = vld [vmem:[%s1240 + $0x71] sm:$0xff]
      %v2592 = vld [vmem:[%s1273 + $0x1] sm:$0xff]
      %v2593 = vld [vmem:[%s1273 + $0x11] sm:$0xff]
      %v2594 = vld [vmem:[%s1273 + $0x21] sm:$0xff]
      %v2595 = vld [vmem:[%s1273 + $0x31] sm:$0xff]
      %v2596 = vld [vmem:[%s1273 + $0x41] sm:$0xff]
      %v2597 = vld [vmem:[%s1273 + $0x51] sm:$0xff]
      %v2598 = vld [vmem:[%s1273 + $0x61] sm:$0xff]
      %v2599 = vld [vmem:[%s1273 + $0x71] sm:$0xff]
      %s2600 = scalar_lea.vmem [#allocation3], 192
      %v2601 = vld [vmem:[%s2600] sm:$0xff]
      %v2602 = vld [vmem:[%s2600 + $0x10] sm:$0xff]
      %v2603 = vld [vmem:[%s2600 + $0x20] sm:$0xff]
      %v2604 = vld [vmem:[%s2600 + $0x30] sm:$0xff]
      %v2605 = vld [vmem:[%s2600 + $0x40] sm:$0xff]
      %v2606 = vld [vmem:[%s2600 + $0x50] sm:$0xff]
      %v2607 = vld [vmem:[%s2600 + $0x60] sm:$0xff]
      %v2608 = vld [vmem:[%s2600 + $0x70] sm:$0xff]
      %s2609 = scalar_lea.vmem [#allocation3], 32
      %v2610 = vld [vmem:[%s2609 + $0x1] sm:$0xff]
      %v2611 = vld [vmem:[%s2609 + $0x11] sm:$0xff]
      %v2612 = vld [vmem:[%s2609 + $0x21] sm:$0xff]
      %v2613 = vld [vmem:[%s2609 + $0x31] sm:$0xff]
      %v2614 = vld [vmem:[%s2609 + $0x41] sm:$0xff]
      %v2615 = vld [vmem:[%s2609 + $0x51] sm:$0xff]
      %v2616 = vld [vmem:[%s2609 + $0x61] sm:$0xff]
      %v2617 = vld [vmem:[%s2609 + $0x71] sm:$0xff]
      %v2618 = vld [vmem:[%s2600 + $0x1] sm:$0xff]
      %v2619 = vld [vmem:[%s2600 + $0x11] sm:$0xff]
      %v2620 = vld [vmem:[%s2600 + $0x21] sm:$0xff]
      %v2621 = vld [vmem:[%s2600 + $0x31] sm:$0xff]
      %v2622 = vld [vmem:[%s2600 + $0x41] sm:$0xff]
      %v2623 = vld [vmem:[%s2600 + $0x51] sm:$0xff]
      %v2624 = vld [vmem:[%s2600 + $0x61] sm:$0xff]
      %v2625 = vld [vmem:[%s2600 + $0x71] sm:$0xff]
      %2634 = vrot.lane.b32.xlu0 %v2560, 32
      %v2635 = vpop.permute.xlu0 %2634
      %2636 = vrot.lane.b32.xlu0 %v2561, 32
      %v2637 = vpop.permute.xlu0 %2636
      %2638 = vrot.lane.b32.xlu0 %v2562, 32
      %v2639 = vpop.permute.xlu0 %2638
      %2640 = vrot.lane.b32.xlu0 %v2563, 32
      %v2641 = vpop.permute.xlu0 %2640
      %2642 = vrot.lane.b32.xlu0 %v2564, 32
      %v2643 = vpop.permute.xlu0 %2642
      %2644 = vrot.lane.b32.xlu0 %v2565, 32
      %v2645 = vpop.permute.xlu0 %2644
      %2646 = vrot.lane.b32.xlu0 %v2566, 32
      %v2647 = vpop.permute.xlu0 %2646
      %2648 = vrot.lane.b32.xlu0 %v2567, 32
      %v2649 = vpop.permute.xlu0 %2648
      %2666 = vrot.lane.b32.xlu0 %v2568, 64
      %v2667 = vpop.permute.xlu0 %2666
      %2668 = vrot.lane.b32.xlu0 %v2569, 64
      %v2669 = vpop.permute.xlu0 %2668
      %2670 = vrot.lane.b32.xlu0 %v2570, 64
      %v2671 = vpop.permute.xlu0 %2670
      %2672 = vrot.lane.b32.xlu0 %v2571, 64
      %v2673 = vpop.permute.xlu0 %2672
      %2674 = vrot.lane.b32.xlu0 %v2572, 64
      %v2675 = vpop.permute.xlu0 %2674
      %2676 = vrot.lane.b32.xlu0 %v2573, 64
      %v2677 = vpop.permute.xlu0 %2676
      %2678 = vrot.lane.b32.xlu0 %v2574, 64
      %v2679 = vpop.permute.xlu0 %2678
      %2680 = vrot.lane.b32.xlu0 %v2575, 64
      %v2681 = vpop.permute.xlu0 %2680
      %2698 = vrot.lane.b32.xlu0 %v2576, 96
      %v2699 = vpop.permute.xlu0 %2698
      %2700 = vrot.lane.b32.xlu0 %v2577, 96
      %v2701 = vpop.permute.xlu0 %2700
      %2702 = vrot.lane.b32.xlu0 %v2578, 96
      %v2703 = vpop.permute.xlu0 %2702
      %2704 = vrot.lane.b32.xlu0 %v2579, 96
      %v2705 = vpop.permute.xlu0 %2704
      %2706 = vrot.lane.b32.xlu0 %v2580, 96
      %v2707 = vpop.permute.xlu0 %2706
      %2708 = vrot.lane.b32.xlu0 %v2581, 96
      %v2709 = vpop.permute.xlu0 %2708
      %2710 = vrot.lane.b32.xlu0 %v2582, 96
      %v2711 = vpop.permute.xlu0 %2710
      %2712 = vrot.lane.b32.xlu0 %v2583, 96
      %v2713 = vpop.permute.xlu0 %2712
      %2730 = vrot.lane.b32.xlu0 %v2592, 32
      %v2731 = vpop.permute.xlu0 %2730
      %2732 = vrot.lane.b32.xlu0 %v2593, 32
      %v2733 = vpop.permute.xlu0 %2732
      %2734 = vrot.lane.b32.xlu0 %v2594, 32
      %v2735 = vpop.permute.xlu0 %2734
      %2736 = vrot.lane.b32.xlu0 %v2595, 32
      %v2737 = vpop.permute.xlu0 %2736
      %2738 = vrot.lane.b32.xlu0 %v2596, 32
      %v2739 = vpop.permute.xlu0 %2738
      %2740 = vrot.lane.b32.xlu0 %v2597, 32
      %v2741 = vpop.permute.xlu0 %2740
      %2742 = vrot.lane.b32.xlu0 %v2598, 32
      %v2743 = vpop.permute.xlu0 %2742
      %2744 = vrot.lane.b32.xlu0 %v2599, 32
      %v2745 = vpop.permute.xlu0 %2744
      %2762 = vrot.lane.b32.xlu0 %v2601, 64
      %v2763 = vpop.permute.xlu0 %2762
      %2764 = vrot.lane.b32.xlu0 %v2602, 64
      %v2765 = vpop.permute.xlu0 %2764
      %2766 = vrot.lane.b32.xlu0 %v2603, 64
      %v2767 = vpop.permute.xlu0 %2766
      %2768 = vrot.lane.b32.xlu0 %v2604, 64
      %v2769 = vpop.permute.xlu0 %2768
      %2770 = vrot.lane.b32.xlu0 %v2605, 64
      %v2771 = vpop.permute.xlu0 %2770
      %2772 = vrot.lane.b32.xlu0 %v2606, 64
      %v2773 = vpop.permute.xlu0 %2772
      %2774 = vrot.lane.b32.xlu0 %v2607, 64
      %v2775 = vpop.permute.xlu0 %2774
      %2776 = vrot.lane.b32.xlu0 %v2608, 64
      %v2777 = vpop.permute.xlu0 %2776
      %2794 = vrot.lane.b32.xlu0 %v2610, 96
      %v2795 = vpop.permute.xlu0 %2794
      %2796 = vrot.lane.b32.xlu0 %v2611, 96
      %v2797 = vpop.permute.xlu0 %2796
      %2798 = vrot.lane.b32.xlu0 %v2612, 96
      %v2799 = vpop.permute.xlu0 %2798
      %2800 = vrot.lane.b32.xlu0 %v2613, 96
      %v2801 = vpop.permute.xlu0 %2800
      %2802 = vrot.lane.b32.xlu0 %v2614, 96
      %v2803 = vpop.permute.xlu0 %2802
      %2804 = vrot.lane.b32.xlu0 %v2615, 96
      %v2805 = vpop.permute.xlu0 %2804
      %2806 = vrot.lane.b32.xlu0 %v2616, 96
      %v2807 = vpop.permute.xlu0 %2806
      %2808 = vrot.lane.b32.xlu0 %v2617, 96
      %v2809 = vpop.permute.xlu0 %2808
      %v2818 = vsel %vm409, %v2552, %v2635
      %v2819 = vsel %vm409, %v2553, %v2637
      %v2820 = vsel %vm409, %v2554, %v2639
      %v2821 = vsel %vm409, %v2555, %v2641
      %v2822 = vsel %vm409, %v2556, %v2643
      %v2823 = vsel %vm409, %v2557, %v2645
      %v2824 = vsel %vm409, %v2558, %v2647
      %v2825 = vsel %vm409, %v2559, %v2649
      %v2826 = vsel %vm713, %v2818, %v2667
      %v2827 = vsel %vm713, %v2819, %v2669
      %v2828 = vsel %vm713, %v2820, %v2671
      %v2829 = vsel %vm713, %v2821, %v2673
      %v2830 = vsel %vm713, %v2822, %v2675
      %v2831 = vsel %vm713, %v2823, %v2677
      %v2832 = vsel %vm713, %v2824, %v2679
      %v2833 = vsel %vm713, %v2825, %v2681
      %v2834 = vsel %vm722, %v2826, %v2699
      %v2835 = vsel %vm722, %v2827, %v2701
      %v2836 = vsel %vm722, %v2828, %v2703
      %v2837 = vsel %vm722, %v2829, %v2705
      %v2838 = vsel %vm722, %v2830, %v2707
      %v2839 = vsel %vm722, %v2831, %v2709
      %v2840 = vsel %vm722, %v2832, %v2711
      %v2841 = vsel %vm722, %v2833, %v2713
      %v2842 = vsel %vm409, %v2584, %v2731
      %v2843 = vsel %vm409, %v2585, %v2733
      %v2844 = vsel %vm409, %v2586, %v2735
      %v2845 = vsel %vm409, %v2587, %v2737
      %v2846 = vsel %vm409, %v2588, %v2739
      %v2847 = vsel %vm409, %v2589, %v2741
      %v2848 = vsel %vm409, %v2590, %v2743
      %v2849 = vsel %vm409, %v2591, %v2745
      %v2850 = vsel %vm713, %v2842, %v2763
      %v2851 = vsel %vm713, %v2843, %v2765
      %v2852 = vsel %vm713, %v2844, %v2767
      %v2853 = vsel %vm713, %v2845, %v2769
      %v2854 = vsel %vm713, %v2846, %v2771
      %v2855 = vsel %vm713, %v2847, %v2773
      %v2856 = vsel %vm713, %v2848, %v2775
      %v2857 = vsel %vm713, %v2849, %v2777
      %v2858 = vsel %vm722, %v2850, %v2795
      %v2859 = vsel %vm722, %v2851, %v2797
      %v2860 = vsel %vm722, %v2852, %v2799
      %v2861 = vsel %vm722, %v2853, %v2801
      %v2862 = vsel %vm722, %v2854, %v2803
      %v2863 = vsel %vm722, %v2855, %v2805
      %v2864 = vsel %vm722, %v2856, %v2807
      %v2865 = vsel %vm722, %v2857, %v2809
      %v2866 = vpack.c.bf16 %v2835, %v2834
      %v2867 = vpack.c.bf16 %v2859, %v2858
      %v2868 = vpack.c.bf16 %v2619, %v2618
      %v2869 = vpack.c.bf16 %v2837, %v2836
      %v2870 = vpack.c.bf16 %v2861, %v2860
      %v2871 = vpack.c.bf16 %v2621, %v2620
      %v2872 = vpack.c.bf16 %v2839, %v2838
      %v2873 = vpack.c.bf16 %v2863, %v2862
      %v2874 = vpack.c.bf16 %v2623, %v2622
      %v2875 = vpack.c.bf16 %v2841, %v2840
      %v2876 = vpack.c.bf16 %v2865, %v2864
      %v2877 = vpack.c.bf16 %v2625, %v2624
      %v2878 = vld [vmem:[%s6] sm:$0xf]
      %v2879 = vld [vmem:[%s6 + $0x4] sm:$0xf]
      %v2880 = vld [vmem:[%s6 + $0x8] sm:$0xf]
      %v2881 = vld [vmem:[%s6 + $0xc] sm:$0xf]
      %v2882 = vld [vmem:[%s6 + $0x10] sm:$0xf]
      %v2883 = vld [vmem:[%s6 + $0x14] sm:$0xf]
      %v2884 = vld [vmem:[%s6 + $0x18] sm:$0xf]
      %v2885 = vld [vmem:[%s6 + $0x1c] sm:$0xf]
      %v2886 = vld [vmem:[%s6 + $0x20] sm:$0xf]
      %v2887 = vld [vmem:[%s6 + $0x24] sm:$0xf]
      %v2888 = vld [vmem:[%s6 + $0x28] sm:$0xf]
      %v2889 = vld [vmem:[%s6 + $0x2c] sm:$0xf]
      %v2890 = vld [vmem:[%s6 + $0x30] sm:$0xf]
      %v2891 = vld [vmem:[%s6 + $0x34] sm:$0xf]
      %v2892 = vld [vmem:[%s6 + $0x38] sm:$0xf]
      %v2893 = vld [vmem:[%s6 + $0x3c] sm:$0xf]
      %v2894 = vld [vmem:[%s6 + $0x40] sm:$0xf]
      %v2895 = vld [vmem:[%s6 + $0x44] sm:$0xf]
      %v2896 = vld [vmem:[%s6 + $0x48] sm:$0xf]
      %v2897 = vld [vmem:[%s6 + $0x4c] sm:$0xf]
      %v2898 = vld [vmem:[%s6 + $0x50] sm:$0xf]
      %v2899 = vld [vmem:[%s6 + $0x54] sm:$0xf]
      %v2900 = vld [vmem:[%s6 + $0x58] sm:$0xf]
      %v2901 = vld [vmem:[%s6 + $0x5c] sm:$0xf]
      %v2902 = vld [vmem:[%s6 + $0x60] sm:$0xf]
      %v2903 = vld [vmem:[%s6 + $0x64] sm:$0xf]
      %v2904 = vld [vmem:[%s6 + $0x68] sm:$0xf]
      %v2905 = vld [vmem:[%s6 + $0x6c] sm:$0xf]
      %v2906 = vld [vmem:[%s6 + $0x70] sm:$0xf]
      %v2907 = vld [vmem:[%s6 + $0x74] sm:$0xf]
      %v2908 = vld [vmem:[%s6 + $0x78] sm:$0xf]
      %v2909 = vld [vmem:[%s6 + $0x7c] sm:$0xf]
      %v2910 = vld [vmem:[%s6 + $0x80] sm:$0xf]
      %v2911 = vld [vmem:[%s6 + $0x84] sm:$0xf]
      %v2912 = vld [vmem:[%s6 + $0x88] sm:$0xf]
      %v2913 = vld [vmem:[%s6 + $0x8c] sm:$0xf]
      %v2914 = vld [vmem:[%s7] sm:$0x1]
      %v2916 = vlaneseq
      %v2917 = vshrl.u32 %v2916, 7
      %v2918 = vsub.s32 0, %v2917
      %v2919 = vrot.slane %v2914, %v2918
      %v2957 = vunpack.c.l.b16 %v2878
      %v2958 = vunpack.c.l.b16 %v2879
      %v2959 = vunpack.c.l.b16 %v2880
      %v2960 = vunpack.c.l.b16 %v2881
      %v2961 = vunpack.c.l.b16 %v2882
      %v2962 = vunpack.c.l.b16 %v2883
      %v2963 = vunpack.c.l.b16 %v2884
      %v2964 = vunpack.c.l.b16 %v2885
      %v2965 = vunpack.c.l.b16 %v2886
      %v2966 = vunpack.c.l.b16 %v2887
      %v2967 = vunpack.c.l.b16 %v2888
      %v2968 = vunpack.c.l.b16 %v2889
      %v2969 = vunpack.c.l.b16 %v2890
      %v2970 = vunpack.c.l.b16 %v2891
      %v2971 = vunpack.c.l.b16 %v2892
      %v2972 = vunpack.c.l.b16 %v2893
      %v2973 = vunpack.c.l.b16 %v2894
      %v2974 = vunpack.c.l.b16 %v2895
      %v2975 = vunpack.c.l.b16 %v2896
      %v2976 = vunpack.c.l.b16 %v2897
      %v2977 = vunpack.c.l.b16 %v2898
      %v2978 = vunpack.c.l.b16 %v2899
      %v2979 = vunpack.c.l.b16 %v2900
      %v2980 = vunpack.c.l.b16 %v2901
      %v2981 = vunpack.c.l.b16 %v2902
      %v2982 = vunpack.c.l.b16 %v2903
      %v2983 = vunpack.c.l.b16 %v2904
      %v2984 = vunpack.c.l.b16 %v2905
      %v2985 = vunpack.c.l.b16 %v2906
      %v2986 = vunpack.c.l.b16 %v2907
      %v2987 = vunpack.c.l.b16 %v2908
      %v2988 = vunpack.c.l.b16 %v2909
      %v2989 = vunpack.c.l.b16 %v2910
      %v2990 = vunpack.c.l.b16 %v2911
      %v2991 = vunpack.c.l.b16 %v2912
      %v2992 = vunpack.c.l.b16 %v2913
      %v2993 = vpack.c.b16 %v2958, %v2957
      %v2994 = vpack.c.b16 %v2960, %v2959
      %v2995 = vpack.c.b16 %v2962, %v2961
      %v2996 = vpack.c.b16 %v2964, %v2963
      %v2997 = vpack.c.b16 %v2966, %v2965
      %v2998 = vpack.c.b16 %v2968, %v2967
      %v2999 = vpack.c.b16 %v2970, %v2969
      %v3000 = vpack.c.b16 %v2972, %v2971
      %v3001 = vpack.c.b16 %v2974, %v2973
      %v3002 = vpack.c.b16 %v2976, %v2975
      %v3003 = vpack.c.b16 %v2978, %v2977
      %v3004 = vpack.c.b16 %v2980, %v2979
      %v3005 = vpack.c.b16 %v2982, %v2981
      %v3006 = vpack.c.b16 %v2984, %v2983
      %v3007 = vpack.c.b16 %v2986, %v2985
      %v3008 = vpack.c.b16 %v2988, %v2987
      %v3009 = vpack.c.b16 %v2990, %v2989
      %v3010 = vpack.c.b16 %v2992, %v2991
      %v3030 = vsel %vm409, %v2868, 0
      %v3033 = vsel %vm409, %v2871, 0
      %v3036 = vsel %vm409, %v2874, 0
      %v3039 = vsel %vm409, %v2877, 0
      %3041 = vmatprep.subr.bf16.mxu0 0
      %3042 = vmatpush1.bf16.msra.mxu0 %v2993
      %3043 = vmatprep.subr.bf16.mxu0 0
      %3044 = vmatpush1.bf16.msra.mxu0 %v2994
      %3045 = vmatprep.subr.bf16.mxu0 0
      %3046 = vmatpush1.bf16.msra.mxu0 %v2995
      %3047 = vmatprep.subr.bf16.mxu0 0
      %3048 = vmatpush1.bf16.msra.mxu0 %v2996
      %3049 = vmatprep.subr.bf16.mxu0 0
      %3050 = vmatpush1.bf16.msra.mxu0 %v2997
      %3051 = vmatprep.subr.bf16.mxu0 0
      %3052 = vmatpush1.bf16.msra.mxu0 %v2998
      %3053 = vmatprep.subr.bf16.mxu0 0
      %3054 = vmatpush1.bf16.msra.mxu0 %v2999
      %3055 = vmatprep.subr.bf16.mxu0 0
      %3056 = vmatpush1.bf16.msra.mxu0 %v3000
      %3057 = vmatprep.subr.bf16.mxu0 0
      %3058 = vmatpush1.bf16.msra.mxu0 %v3001
      %3059 = vmatprep.subr.bf16.mxu0 0
      %3060 = vmatpush1.bf16.msra.mxu0 %v3002
      %3061 = vmatprep.subr.bf16.mxu0 0
      %3062 = vmatpush1.bf16.msra.mxu0 %v3003
      %3063 = vmatprep.subr.bf16.mxu0 0
      %3064 = vmatpush1.bf16.msra.mxu0 %v3004
      %3065 = vmatprep.subr.bf16.mxu0 0
      %3066 = vmatpush1.bf16.msra.mxu0 %v3005
      %3067 = vmatprep.subr.bf16.mxu0 0
      %3068 = vmatpush1.bf16.msra.mxu0 %v3006
      %3069 = vmatprep.subr.bf16.mxu0 0
      %3070 = vmatpush1.bf16.msra.mxu0 %v3007
      %3071 = vmatprep.subr.bf16.mxu0 0
      %3072 = vmatpush1.bf16.msra.mxu0 %v3008
      %3073 = vmatprep.mubr.bf16.mxu0 %v2867
      %3074 = vmatmul.mubr.bf16.gmra.mrb[0].mxu0 %v2866
      %v3075 = vpop.f32.mrb[0].mxu0
      %v3076 = vadd.f32 %v2919, %v3075
      %v3077 = vpop.f32.mrb[0].mxu0
      %v3078 = vpop.f32.mrb[0].mxu0
      %v3079 = vadd.f32 %v2919, %v3078
      %v3080 = vpop.f32.mrb[0].mxu0
      %3081 = vmatprep.mubr.bf16.mxu0 %v2870
      %3082 = vmatmul.mubr.bf16.gmra.mrb[0].mxu0 %v2869
      %v3083 = vpop.f32.mrb[0].mxu0
      %v3084 = vadd.f32 %v2919, %v3083
      %v3085 = vpop.f32.mrb[0].mxu0
      %v3086 = vpop.f32.mrb[0].mxu0
      %v3087 = vadd.f32 %v2919, %v3086
      %v3088 = vpop.f32.mrb[0].mxu0
      %3089 = vmatprep.mubr.bf16.mxu0 %v2873
      %3090 = vmatmul.mubr.bf16.gmra.mrb[0].mxu0 %v2872
      %v3091 = vpop.f32.mrb[0].mxu0
      %v3092 = vadd.f32 %v2919, %v3091
      %v3093 = vpop.f32.mrb[0].mxu0
      %v3094 = vpop.f32.mrb[0].mxu0
      %v3095 = vadd.f32 %v2919, %v3094
      %v3096 = vpop.f32.mrb[0].mxu0
      %3097 = vmatprep.mubr.bf16.mxu0 %v2876
      %3098 = vmatmul.mubr.bf16.gmra.mrb[0].mxu0 %v2875
      %v3099 = vpop.f32.mrb[0].mxu0
      %v3100 = vadd.f32 %v2919, %v3099
      %v3101 = vpop.f32.mrb[0].mxu0
      %v3102 = vpop.f32.mrb[0].mxu0
      %v3103 = vadd.f32 %v2919, %v3102
      %v3104 = vpop.f32.mrb[0].mxu0
      %3105 = vdwg.mxu0
      %3106 = vmatprep.subr.bf16.mxu0 0
      %3107 = vmatpush1.bf16.msra.mxu0 %v3009
      %3108 = vmatprep.subr.bf16.mxu0 0
      %3109 = vmatpush1.bf16.msra.mxu0 %v3010
      %3110 = vmatprep.subr.bf16.mxu0 0
      %3111 = vmatpush1.bf16.msra.mxu0 0
      %3112 = vmatprep.subr.bf16.mxu0 0
      %3113 = vmatpush1.bf16.msra.mxu0 0
      %3114 = vmatprep.subr.bf16.mxu0 0
      %3115 = vmatpush1.bf16.msra.mxu0 0
      %3116 = vmatprep.subr.bf16.mxu0 0
      %3117 = vmatpush1.bf16.msra.mxu0 0
      %3118 = vmatprep.subr.bf16.mxu0 0
      %3119 = vmatpush1.bf16.msra.mxu0 0
      %3120 = vmatprep.subr.bf16.mxu0 0
      %3121 = vmatpush1.bf16.msra.mxu0 0
      %3122 = vmatprep.subr.bf16.mxu0 0
      %3123 = vmatpush1.bf16.msra.mxu0 0
      %3124 = vmatprep.subr.bf16.mxu0 0
      %3125 = vmatpush1.bf16.msra.mxu0 0
      %3126 = vmatprep.subr.bf16.mxu0 0
      %3127 = vmatpush1.bf16.msra.mxu0 0
      %3128 = vmatprep.subr.bf16.mxu0 0
      %3129 = vmatpush1.bf16.msra.mxu0 0
      %3130 = vmatprep.subr.bf16.mxu0 0
      %3131 = vmatpush1.bf16.msra.mxu0 0
      %3132 = vmatprep.subr.bf16.mxu0 0
      %3133 = vmatpush1.bf16.msra.mxu0 0
      %3134 = vmatprep.subr.bf16.mxu0 0
      %3135 = vmatpush1.bf16.msra.mxu0 0
      %3136 = vmatprep.subr.bf16.mxu0 0
      %3137 = vmatpush1.bf16.msra.mxu0 0
      %3138 = vmatprep.mubr.bf16.mxu0 0
      %3139 = vmatmul.mubr.bf16.gmra.mrb[0].mxu0 %v3030
      %v3140 = vpop.f32.mrb[0].mxu0
      %v3141 = vadd.f32 %v3076, %v3140
      %v3142 = vpop.f32.mrb[0].mxu0
      %v3143 = vpop.f32.mrb[0].mxu0
      %v3144 = vadd.f32 %v3079, %v3143
      %v3145 = vpop.f32.mrb[0].mxu0
      %3146 = vmatprep.mubr.bf16.mxu0 0
      %3147 = vmatmul.mubr.bf16.gmra.mrb[0].mxu0 %v3033
      %v3148 = vpop.f32.mrb[0].mxu0
      %v3149 = vadd.f32 %v3084, %v3148
      %v3150 = vpop.f32.mrb[0].mxu0
      %v3151 = vpop.f32.mrb[0].mxu0
      %v3152 = vadd.f32 %v3087, %v3151
      %v3153 = vpop.f32.mrb[0].mxu0
      %3154 = vmatprep.mubr.bf16.mxu0 0
      %3155 = vmatmul.mubr.bf16.gmra.mrb[0].mxu0 %v3036
      %v3156 = vpop.f32.mrb[0].mxu0
      %v3157 = vadd.f32 %v3092, %v3156
      %v3158 = vpop.f32.mrb[0].mxu0
      %v3159 = vpop.f32.mrb[0].mxu0
      %v3160 = vadd.f32 %v3095, %v3159
      %v3161 = vpop.f32.mrb[0].mxu0
      %3162 = vmatprep.mubr.bf16.mxu0 0
      %3163 = vmatmul.mubr.bf16.gmra.mrb[0].mxu0 %v3039
      %v3164 = vpop.f32.mrb[0].mxu0
      %v3165 = vadd.f32 %v3100, %v3164
      %v3166 = vpop.f32.mrb[0].mxu0
      %v3167 = vpop.f32.mrb[0].mxu0
      %v3168 = vadd.f32 %v3103, %v3167
      %v3169 = vpop.f32.mrb[0].mxu0
      %3170 = vdwg.mxu0
      %v3171 = vtanh.pop %v3141
      %v3172 = vtanh.pop %v3144
      %v3173 = vtanh.pop %v3149
      %v3174 = vtanh.pop %v3152
      %v3175 = vtanh.pop %v3157
      %v3176 = vtanh.pop %v3160
      %v3177 = vtanh.pop %v3165
      %v3178 = vtanh.pop %v3168
      %s3179 = scalar_lea.vmem %s353, 128
      %3180 = vst.msk [vmem:[%s3179] sm:$0xff] %vm1909, %v3171
      %3181 = vst.msk [vmem:[%s3179 + $0x8] sm:$0xff] %vm1909, %v3172
      %3182 = vst.msk [vmem:[%s3179 + $0x10] sm:$0xff] %vm1909, %v3173
      %3183 = vst.msk [vmem:[%s3179 + $0x18] sm:$0xff] %vm1909, %v3174
      %3184 = vst.msk [vmem:[%s3179 + $0x20] sm:$0xff] %vm1909, %v3175
      %3185 = vst.msk [vmem:[%s3179 + $0x28] sm:$0xff] %vm1909, %v3176
      %3186 = vst.msk [vmem:[%s3179 + $0x30] sm:$0xff] %vm1909, %v3177
      %3187 = vst.msk [vmem:[%s3179 + $0x38] sm:$0xff] %vm1909, %v3178
      %v3188 = vld [vmem:[%s1166 + $0x1] sm:$0xff]
      %v3189 = vld [vmem:[%s1166 + $0x11] sm:$0xff]
      %v3190 = vld [vmem:[%s1166 + $0x21] sm:$0xff]
      %v3191 = vld [vmem:[%s1166 + $0x31] sm:$0xff]
      %v3192 = vld [vmem:[%s1166 + $0x41] sm:$0xff]
      %v3193 = vld [vmem:[%s1166 + $0x51] sm:$0xff]
      %v3194 = vld [vmem:[%s1166 + $0x61] sm:$0xff]
      %v3195 = vld [vmem:[%s1166 + $0x71] sm:$0xff]
      %v3196 = vld [vmem:[%s1207 + $0x1] sm:$0xff]
      %v3197 = vld [vmem:[%s1207 + $0x11] sm:$0xff]
      %v3198 = vld [vmem:[%s1207 + $0x21] sm:$0xff]
      %v3199 = vld [vmem:[%s1207 + $0x31] sm:$0xff]
      %v3200 = vld [vmem:[%s1207 + $0x41] sm:$0xff]
      %v3201 = vld [vmem:[%s1207 + $0x51] sm:$0xff]
      %v3202 = vld [vmem:[%s1207 + $0x61] sm:$0xff]
      %v3203 = vld [vmem:[%s1207 + $0x71] sm:$0xff]
      %v3204 = vld [vmem:[%s1166 + $0x2] sm:$0xff]
      %v3205 = vld [vmem:[%s1166 + $0x12] sm:$0xff]
      %v3206 = vld [vmem:[%s1166 + $0x22] sm:$0xff]
      %v3207 = vld [vmem:[%s1166 + $0x32] sm:$0xff]
      %v3208 = vld [vmem:[%s1166 + $0x42] sm:$0xff]
      %v3209 = vld [vmem:[%s1166 + $0x52] sm:$0xff]
      %v3210 = vld [vmem:[%s1166 + $0x62] sm:$0xff]
      %v3211 = vld [vmem:[%s1166 + $0x72] sm:$0xff]
      %v3212 = vld [vmem:[%s1240 + $0x1] sm:$0xff]
      %v3213 = vld [vmem:[%s1240 + $0x11] sm:$0xff]
      %v3214 = vld [vmem:[%s1240 + $0x21] sm:$0xff]
      %v3215 = vld [vmem:[%s1240 + $0x31] sm:$0xff]
      %v3216 = vld [vmem:[%s1240 + $0x41] sm:$0xff]
      %v3217 = vld [vmem:[%s1240 + $0x51] sm:$0xff]
      %v3218 = vld [vmem:[%s1240 + $0x61] sm:$0xff]
      %v3219 = vld [vmem:[%s1240 + $0x71] sm:$0xff]
      %v3220 = vld [vmem:[%s1273 + $0x1] sm:$0xff]
      %v3221 = vld [vmem:[%s1273 + $0x11] sm:$0xff]
      %v3222 = vld [vmem:[%s1273 + $0x21] sm:$0xff]
      %v3223 = vld [vmem:[%s1273 + $0x31] sm:$0xff]
      %v3224 = vld [vmem:[%s1273 + $0x41] sm:$0xff]
      %v3225 = vld [vmem:[%s1273 + $0x51] sm:$0xff]
      %v3226 = vld [vmem:[%s1273 + $0x61] sm:$0xff]
      %v3227 = vld [vmem:[%s1273 + $0x71] sm:$0xff]
      %v3228 = vld [vmem:[%s1240 + $0x2] sm:$0xff]
      %v3229 = vld [vmem:[%s1240 + $0x12] sm:$0xff]
      %v3230 = vld [vmem:[%s1240 + $0x22] sm:$0xff]
      %v3231 = vld [vmem:[%s1240 + $0x32] sm:$0xff]
      %v3232 = vld [vmem:[%s1240 + $0x42] sm:$0xff]
      %v3233 = vld [vmem:[%s1240 + $0x52] sm:$0xff]
      %v3234 = vld [vmem:[%s1240 + $0x62] sm:$0xff]
      %v3235 = vld [vmem:[%s1240 + $0x72] sm:$0xff]
      %v3236 = vld [vmem:[%s2609 + $0x1] sm:$0xff]
      %v3237 = vld [vmem:[%s2609 + $0x11] sm:$0xff]
      %v3238 = vld [vmem:[%s2609 + $0x21] sm:$0xff]
      %v3239 = vld [vmem:[%s2609 + $0x31] sm:$0xff]
      %v3240 = vld [vmem:[%s2609 + $0x41] sm:$0xff]
      %v3241 = vld [vmem:[%s2609 + $0x51] sm:$0xff]
      %v3242 = vld [vmem:[%s2609 + $0x61] sm:$0xff]
      %v3243 = vld [vmem:[%s2609 + $0x71] sm:$0xff]
      %v3244 = vld [vmem:[%s2600 + $0x1] sm:$0xff]
      %v3245 = vld [vmem:[%s2600 + $0x11] sm:$0xff]
      %v3246 = vld [vmem:[%s2600 + $0x21] sm:$0xff]
      %v3247 = vld [vmem:[%s2600 + $0x31] sm:$0xff]
      %v3248 = vld [vmem:[%s2600 + $0x41] sm:$0xff]
      %v3249 = vld [vmem:[%s2600 + $0x51] sm:$0xff]
      %v3250 = vld [vmem:[%s2600 + $0x61] sm:$0xff]
      %v3251 = vld [vmem:[%s2600 + $0x71] sm:$0xff]
      %v3252 = vld [vmem:[%s2609 + $0x2] sm:$0xff]
      %v3253 = vld [vmem:[%s2609 + $0x12] sm:$0xff]
      %v3254 = vld [vmem:[%s2609 + $0x22] sm:$0xff]
      %v3255 = vld [vmem:[%s2609 + $0x32] sm:$0xff]
      %v3256 = vld [vmem:[%s2609 + $0x42] sm:$0xff]
      %v3257 = vld [vmem:[%s2609 + $0x52] sm:$0xff]
      %v3258 = vld [vmem:[%s2609 + $0x62] sm:$0xff]
      %v3259 = vld [vmem:[%s2609 + $0x72] sm:$0xff]
      %3268 = vrot.lane.b32.xlu0 %v3196, 32
      %v3269 = vpop.permute.xlu0 %3268
      %3270 = vrot.lane.b32.xlu0 %v3197, 32
      %v3271 = vpop.permute.xlu0 %3270
      %3272 = vrot.lane.b32.xlu0 %v3198, 32
      %v3273 = vpop.permute.xlu0 %3272
      %3274 = vrot.lane.b32.xlu0 %v3199, 32
      %v3275 = vpop.permute.xlu0 %3274
      %3276 = vrot.lane.b32.xlu0 %v3200, 32
      %v3277 = vpop.permute.xlu0 %3276
      %3278 = vrot.lane.b32.xlu0 %v3201, 32
      %v3279 = vpop.permute.xlu0 %3278
      %3280 = vrot.lane.b32.xlu0 %v3202, 32
      %v3281 = vpop.permute.xlu0 %3280
      %3282 = vrot.lane.b32.xlu0 %v3203, 32
      %v3283 = vpop.permute.xlu0 %3282
      %3300 = vrot.lane.b32.xlu0 %v3204, 64
      %v3301 = vpop.permute.xlu0 %3300
      %3302 = vrot.lane.b32.xlu0 %v3205, 64
      %v3303 = vpop.permute.xlu0 %3302
      %3304 = vrot.lane.b32.xlu0 %v3206, 64
      %v3305 = vpop.permute.xlu0 %3304
      %3306 = vrot.lane.b32.xlu0 %v3207, 64
      %v3307 = vpop.permute.xlu0 %3306
      %3308 = vrot.lane.b32.xlu0 %v3208, 64
      %v3309 = vpop.permute.xlu0 %3308
      %3310 = vrot.lane.b32.xlu0 %v3209, 64
      %v3311 = vpop.permute.xlu0 %3310
      %3312 = vrot.lane.b32.xlu0 %v3210, 64
      %v3313 = vpop.permute.xlu0 %3312
      %3314 = vrot.lane.b32.xlu0 %v3211, 64
      %v3315 = vpop.permute.xlu0 %3314
      %3332 = vrot.lane.b32.xlu0 %v3212, 96
      %v3333 = vpop.permute.xlu0 %3332
      %3334 = vrot.lane.b32.xlu0 %v3213, 96
      %v3335 = vpop.permute.xlu0 %3334
      %3336 = vrot.lane.b32.xlu0 %v3214, 96
      %v3337 = vpop.permute.xlu0 %3336
      %3338 = vrot.lane.b32.xlu0 %v3215, 96
      %v3339 = vpop.permute.xlu0 %3338
      %3340 = vrot.lane.b32.xlu0 %v3216, 96
      %v3341 = vpop.permute.xlu0 %3340
      %3342 = vrot.lane.b32.xlu0 %v3217, 96
      %v3343 = vpop.permute.xlu0 %3342
      %3344 = vrot.lane.b32.xlu0 %v3218, 96
      %v3345 = vpop.permute.xlu0 %3344
      %3346 = vrot.lane.b32.xlu0 %v3219, 96
      %v3347 = vpop.permute.xlu0 %3346
      %3364 = vrot.lane.b32.xlu0 %v3228, 32
      %v3365 = vpop.permute.xlu0 %3364
      %3366 = vrot.lane.b32.xlu0 %v3229, 32
      %v3367 = vpop.permute.xlu0 %3366
      %3368 = vrot.lane.b32.xlu0 %v3230, 32
      %v3369 = vpop.permute.xlu0 %3368
      %3370 = vrot.lane.b32.xlu0 %v3231, 32
      %v3371 = vpop.permute.xlu0 %3370
      %3372 = vrot.lane.b32.xlu0 %v3232, 32
      %v3373 = vpop.permute.xlu0 %3372
      %3374 = vrot.lane.b32.xlu0 %v3233, 32
      %v3375 = vpop.permute.xlu0 %3374
      %3376 = vrot.lane.b32.xlu0 %v3234, 32
      %v3377 = vpop.permute.xlu0 %3376
      %3378 = vrot.lane.b32.xlu0 %v3235, 32
      %v3379 = vpop.permute.xlu0 %3378
      %3396 = vrot.lane.b32.xlu0 %v3236, 64
      %v3397 = vpop.permute.xlu0 %3396
      %3398 = vrot.lane.b32.xlu0 %v3237, 64
      %v3399 = vpop.permute.xlu0 %3398
      %3400 = vrot.lane.b32.xlu0 %v3238, 64
      %v3401 = vpop.permute.xlu0 %3400
      %3402 = vrot.lane.b32.xlu0 %v3239, 64
      %v3403 = vpop.permute.xlu0 %3402
      %3404 = vrot.lane.b32.xlu0 %v3240, 64
      %v3405 = vpop.permute.xlu0 %3404
      %3406 = vrot.lane.b32.xlu0 %v3241, 64
      %v3407 = vpop.permute.xlu0 %3406
      %3408 = vrot.lane.b32.xlu0 %v3242, 64
      %v3409 = vpop.permute.xlu0 %3408
      %3410 = vrot.lane.b32.xlu0 %v3243, 64
      %v3411 = vpop.permute.xlu0 %3410
      %3428 = vrot.lane.b32.xlu0 %v3244, 96
      %v3429 = vpop.permute.xlu0 %3428
      %3430 = vrot.lane.b32.xlu0 %v3245, 96
      %v3431 = vpop.permute.xlu0 %3430
      %3432 = vrot.lane.b32.xlu0 %v3246, 96
      %v3433 = vpop.permute.xlu0 %3432
      %3434 = vrot.lane.b32.xlu0 %v3247, 96
      %v3435 = vpop.permute.xlu0 %3434
      %3436 = vrot.lane.b32.xlu0 %v3248, 96
      %v3437 = vpop.permute.xlu0 %3436
      %3438 = vrot.lane.b32.xlu0 %v3249, 96
      %v3439 = vpop.permute.xlu0 %3438
      %3440 = vrot.lane.b32.xlu0 %v3250, 96
      %v3441 = vpop.permute.xlu0 %3440
      %3442 = vrot.lane.b32.xlu0 %v3251, 96
      %v3443 = vpop.permute.xlu0 %3442
      %v3452 = vsel %vm409, %v3188, %v3269
      %v3453 = vsel %vm409, %v3189, %v3271
      %v3454 = vsel %vm409, %v3190, %v3273
      %v3455 = vsel %vm409, %v3191, %v3275
      %v3456 = vsel %vm409, %v3192, %v3277
      %v3457 = vsel %vm409, %v3193, %v3279
      %v3458 = vsel %vm409, %v3194, %v3281
      %v3459 = vsel %vm409, %v3195, %v3283
      %v3460 = vsel %vm713, %v3452, %v3301
      %v3461 = vsel %vm713, %v3453, %v3303
      %v3462 = vsel %vm713, %v3454, %v3305
      %v3463 = vsel %vm713, %v3455, %v3307
      %v3464 = vsel %vm713, %v3456, %v3309
      %v3465 = vsel %vm713, %v3457, %v3311
      %v3466 = vsel %vm713, %v3458, %v3313
      %v3467 = vsel %vm713, %v3459, %v3315
      %v3468 = vsel %vm722, %v3460, %v3333
      %v3469 = vsel %vm722, %v3461, %v3335
      %v3470 = vsel %vm722, %v3462, %v3337
      %v3471 = vsel %vm722, %v3463, %v3339
      %v3472 = vsel %vm722, %v3464, %v3341
      %v3473 = vsel %vm722, %v3465, %v3343
      %v3474 = vsel %vm722, %v3466, %v3345
      %v3475 = vsel %vm722, %v3467, %v3347
      %v3476 = vsel %vm409, %v3220, %v3365
      %v3477 = vsel %vm409, %v3221, %v3367
      %v3478 = vsel %vm409, %v3222, %v3369
      %v3479 = vsel %vm409, %v3223, %v3371
      %v3480 = vsel %vm409, %v3224, %v3373
      %v3481 = vsel %vm409, %v3225, %v3375
      %v3482 = vsel %vm409, %v3226, %v3377
      %v3483 = vsel %vm409, %v3227, %v3379
      %v3484 = vsel %vm713, %v3476, %v3397
      %v3485 = vsel %vm713, %v3477, %v3399
      %v3486 = vsel %vm713, %v3478, %v3401
      %v3487 = vsel %vm713, %v3479, %v3403
      %v3488 = vsel %vm713, %v3480, %v3405
      %v3489 = vsel %vm713, %v3481, %v3407
      %v3490 = vsel %vm713, %v3482, %v3409
      %v3491 = vsel %vm713, %v3483, %v3411
      %v3492 = vsel %vm722, %v3484, %v3429
      %v3493 = vsel %vm722, %v3485, %v3431
      %v3494 = vsel %vm722, %v3486, %v3433
      %v3495 = vsel %vm722, %v3487, %v3435
      %v3496 = vsel %vm722, %v3488, %v3437
      %v3497 = vsel %vm722, %v3489, %v3439
      %v3498 = vsel %vm722, %v3490, %v3441
      %v3499 = vsel %vm722, %v3491, %v3443
      %v3500 = vpack.c.bf16 %v3469, %v3468
      %v3501 = vpack.c.bf16 %v3493, %v3492
      %v3502 = vpack.c.bf16 %v3253, %v3252
      %v3503 = vpack.c.bf16 %v3471, %v3470
      %v3504 = vpack.c.bf16 %v3495, %v3494
      %v3505 = vpack.c.bf16 %v3255, %v3254
      %v3506 = vpack.c.bf16 %v3473, %v3472
      %v3507 = vpack.c.bf16 %v3497, %v3496
      %v3508 = vpack.c.bf16 %v3257, %v3256
      %v3509 = vpack.c.bf16 %v3475, %v3474
      %v3510 = vpack.c.bf16 %v3499, %v3498
      %v3511 = vpack.c.bf16 %v3259, %v3258
      %v3512 = vld [vmem:[%s6] sm:$0xf]
      %v3513 = vld [vmem:[%s6 + $0x4] sm:$0xf]
      %v3514 = vld [vmem:[%s6 + $0x8] sm:$0xf]
      %v3515 = vld [vmem:[%s6 + $0xc] sm:$0xf]
      %v3516 = vld [vmem:[%s6 + $0x10] sm:$0xf]
      %v3517 = vld [vmem:[%s6 + $0x14] sm:$0xf]
      %v3518 = vld [vmem:[%s6 + $0x18] sm:$0xf]
      %v3519 = vld [vmem:[%s6 + $0x1c] sm:$0xf]
      %v3520 = vld [vmem:[%s6 + $0x20] sm:$0xf]
      %v3521 = vld [vmem:[%s6 + $0x24] sm:$0xf]
      %v3522 = vld [vmem:[%s6 + $0x28] sm:$0xf]
      %v3523 = vld [vmem:[%s6 + $0x2c] sm:$0xf]
      %v3524 = vld [vmem:[%s6 + $0x30] sm:$0xf]
      %v3525 = vld [vmem:[%s6 + $0x34] sm:$0xf]
      %v3526 = vld [vmem:[%s6 + $0x38] sm:$0xf]
      %v3527 = vld [vmem:[%s6 + $0x3c] sm:$0xf]
      %v3528 = vld [vmem:[%s6 + $0x40] sm:$0xf]
      %v3529 = vld [vmem:[%s6 + $0x44] sm:$0xf]
      %v3530 = vld [vmem:[%s6 + $0x48] sm:$0xf]
      %v3531 = vld [vmem:[%s6 + $0x4c] sm:$0xf]
      %v3532 = vld [vmem:[%s6 + $0x50] sm:$0xf]
      %v3533 = vld [vmem:[%s6 + $0x54] sm:$0xf]
      %v3534 = vld [vmem:[%s6 + $0x58] sm:$0xf]
      %v3535 = vld [vmem:[%s6 + $0x5c] sm:$0xf]
      %v3536 = vld [vmem:[%s6 + $0x60] sm:$0xf]
      %v3537 = vld [vmem:[%s6 + $0x64] sm:$0xf]
      %v3538 = vld [vmem:[%s6 + $0x68] sm:$0xf]
      %v3539 = vld [vmem:[%s6 + $0x6c] sm:$0xf]
      %v3540 = vld [vmem:[%s6 + $0x70] sm:$0xf]
      %v3541 = vld [vmem:[%s6 + $0x74] sm:$0xf]
      %v3542 = vld [vmem:[%s6 + $0x78] sm:$0xf]
      %v3543 = vld [vmem:[%s6 + $0x7c] sm:$0xf]
      %v3544 = vld [vmem:[%s6 + $0x80] sm:$0xf]
      %v3545 = vld [vmem:[%s6 + $0x84] sm:$0xf]
      %v3546 = vld [vmem:[%s6 + $0x88] sm:$0xf]
      %v3547 = vld [vmem:[%s6 + $0x8c] sm:$0xf]
      %v3548 = vld [vmem:[%s7] sm:$0x1]
      %v3550 = vlaneseq
      %v3551 = vshrl.u32 %v3550, 7
      %v3552 = vsub.s32 0, %v3551
      %v3553 = vrot.slane %v3548, %v3552
      %v3591 = vunpack.c.l.b16 %v3512
      %v3592 = vunpack.c.l.b16 %v3513
      %v3593 = vunpack.c.l.b16 %v3514
      %v3594 = vunpack.c.l.b16 %v3515
      %v3595 = vunpack.c.l.b16 %v3516
      %v3596 = vunpack.c.l.b16 %v3517
      %v3597 = vunpack.c.l.b16 %v3518
      %v3598 = vunpack.c.l.b16 %v3519
      %v3599 = vunpack.c.l.b16 %v3520
      %v3600 = vunpack.c.l.b16 %v3521
      %v3601 = vunpack.c.l.b16 %v3522
      %v3602 = vunpack.c.l.b16 %v3523
      %v3603 = vunpack.c.l.b16 %v3524
      %v3604 = vunpack.c.l.b16 %v3525
      %v3605 = vunpack.c.l.b16 %v3526
      %v3606 = vunpack.c.l.b16 %v3527
      %v3607 = vunpack.c.l.b16 %v3528
      %v3608 = vunpack.c.l.b16 %v3529
      %v3609 = vunpack.c.l.b16 %v3530
      %v3610 = vunpack.c.l.b16 %v3531
      %v3611 = vunpack.c.l.b16 %v3532
      %v3612 = vunpack.c.l.b16 %v3533
      %v3613 = vunpack.c.l.b16 %v3534
      %v3614 = vunpack.c.l.b16 %v3535
      %v3615 = vunpack.c.l.b16 %v3536
      %v3616 = vunpack.c.l.b16 %v3537
      %v3617 = vunpack.c.l.b16 %v3538
      %v3618 = vunpack.c.l.b16 %v3539
      %v3619 = vunpack.c.l.b16 %v3540
      %v3620 = vunpack.c.l.b16 %v3541
      %v3621 = vunpack.c.l.b16 %v3542
      %v3622 = vunpack.c.l.b16 %v3543
      %v3623 = vunpack.c.l.b16 %v3544
      %v3624 = vunpack.c.l.b16 %v3545
      %v3625 = vunpack.c.l.b16 %v3546
      %v3626 = vunpack.c.l.b16 %v3547
      %v3627 = vpack.c.b16 %v3592, %v3591
      %v3628 = vpack.c.b16 %v3594, %v3593
      %v3629 = vpack.c.b16 %v3596, %v3595
      %v3630 = vpack.c.b16 %v3598, %v3597
      %v3631 = vpack.c.b16 %v3600, %v3599
      %v3632 = vpack.c.b16 %v3602, %v3601
      %v3633 = vpack.c.b16 %v3604, %v3603
      %v3634 = vpack.c.b16 %v3606, %v3605
      %v3635 = vpack.c.b16 %v3608, %v3607
      %v3636 = vpack.c.b16 %v3610, %v3609
      %v3637 = vpack.c.b16 %v3612, %v3611
      %v3638 = vpack.c.b16 %v3614, %v3613
      %v3639 = vpack.c.b16 %v3616, %v3615
      %v3640 = vpack.c.b16 %v3618, %v3617
      %v3641 = vpack.c.b16 %v3620, %v3619
      %v3642 = vpack.c.b16 %v3622, %v3621
      %v3643 = vpack.c.b16 %v3624, %v3623
      %v3644 = vpack.c.b16 %v3626, %v3625
      %v3664 = vsel %vm409, %v3502, 0
      %v3667 = vsel %vm409, %v3505, 0
      %v3670 = vsel %vm409, %v3508, 0
      %v3673 = vsel %vm409, %v3511, 0
      %3675 = vmatprep.subr.bf16.mxu0 0
      %3676 = vmatpush1.bf16.msra.mxu0 %v3627
      %3677 = vmatprep.subr.bf16.mxu0 0
      %3678 = vmatpush1.bf16.msra.mxu0 %v3628
      %3679 = vmatprep.subr.bf16.mxu0 0
      %3680 = vmatpush1.bf16.msra.mxu0 %v3629
      %3681 = vmatprep.subr.bf16.mxu0 0
      %3682 = vmatpush1.bf16.msra.mxu0 %v3630
      %3683 = vmatprep.subr.bf16.mxu0 0
      %3684 = vmatpush1.bf16.msra.mxu0 %v3631
      %3685 = vmatprep.subr.bf16.mxu0 0
      %3686 = vmatpush1.bf16.msra.mxu0 %v3632
      %3687 = vmatprep.subr.bf16.mxu0 0
      %3688 = vmatpush1.bf16.msra.mxu0 %v3633
      %3689 = vmatprep.subr.bf16.mxu0 0
      %3690 = vmatpush1.bf16.msra.mxu0 %v3634
      %3691 = vmatprep.subr.bf16.mxu0 0
      %3692 = vmatpush1.bf16.msra.mxu0 %v3635
      %3693 = vmatprep.subr.bf16.mxu0 0
      %3694 = vmatpush1.bf16.msra.mxu0 %v3636
      %3695 = vmatprep.subr.bf16.mxu0 0
      %3696 = vmatpush1.bf16.msra.mxu0 %v3637
      %3697 = vmatprep.subr.bf16.mxu0 0
      %3698 = vmatpush1.bf16.msra.mxu0 %v3638
      %3699 = vmatprep.subr.bf16.mxu0 0
      %3700 = vmatpush1.bf16.msra.mxu0 %v3639
      %3701 = vmatprep.subr.bf16.mxu0 0
      %3702 = vmatpush1.bf16.msra.mxu0 %v3640
      %3703 = vmatprep.subr.bf16.mxu0 0
      %3704 = vmatpush1.bf16.msra.mxu0 %v3641
      %3705 = vmatprep.subr.bf16.mxu0 0
      %3706 = vmatpush1.bf16.msra.mxu0 %v3642
      %3707 = vmatprep.mubr.bf16.mxu0 %v3501
      %3708 = vmatmul.mubr.bf16.gmra.mrb[0].mxu0 %v3500
      %v3709 = vpop.f32.mrb[0].mxu0
      %v3710 = vadd.f32 %v3553, %v3709
      %v3711 = vpop.f32.mrb[0].mxu0
      %v3712 = vpop.f32.mrb[0].mxu0
      %v3713 = vadd.f32 %v3553, %v3712
      %v3714 = vpop.f32.mrb[0].mxu0
      %3715 = vmatprep.mubr.bf16.mxu0 %v3504
      %3716 = vmatmul.mubr.bf16.gmra.mrb[0].mxu0 %v3503
      %v3717 = vpop.f32.mrb[0].mxu0
      %v3718 = vadd.f32 %v3553, %v3717
      %v3719 = vpop.f32.mrb[0].mxu0
      %v3720 = vpop.f32.mrb[0].mxu0
      %v3721 = vadd.f32 %v3553, %v3720
      %v3722 = vpop.f32.mrb[0].mxu0
      %3723 = vmatprep.mubr.bf16.mxu0 %v3507
      %3724 = vmatmul.mubr.bf16.gmra.mrb[0].mxu0 %v3506
      %v3725 = vpop.f32.mrb[0].mxu0
      %v3726 = vadd.f32 %v3553, %v3725
      %v3727 = vpop.f32.mrb[0].mxu0
      %v3728 = vpop.f32.mrb[0].mxu0
      %v3729 = vadd.f32 %v3553, %v3728
      %v3730 = vpop.f32.mrb[0].mxu0
      %3731 = vmatprep.mubr.bf16.mxu0 %v3510
      %3732 = vmatmul.mubr.bf16.gmra.mrb[0].mxu0 %v3509
      %v3733 = vpop.f32.mrb[0].mxu0
      %v3734 = vadd.f32 %v3553, %v3733
      %v3735 = vpop.f32.mrb[0].mxu0
      %v3736 = vpop.f32.mrb[0].mxu0
      %v3737 = vadd.f32 %v3553, %v3736
      %v3738 = vpop.f32.mrb[0].mxu0
      %3739 = vdwg.mxu0
      %3740 = vmatprep.subr.bf16.mxu0 0
      %3741 = vmatpush1.bf16.msra.mxu0 %v3643
      %3742 = vmatprep.subr.bf16.mxu0 0
      %3743 = vmatpush1.bf16.msra.mxu0 %v3644
      %3744 = vmatprep.subr.bf16.mxu0 0
      %3745 = vmatpush1.bf16.msra.mxu0 0
      %3746 = vmatprep.subr.bf16.mxu0 0
      %3747 = vmatpush1.bf16.msra.mxu0 0
      %3748 = vmatprep.subr.bf16.mxu0 0
      %3749 = vmatpush1.bf16.msra.mxu0 0
      %3750 = vmatprep.subr.bf16.mxu0 0
      %3751 = vmatpush1.bf16.msra.mxu0 0
      %3752 = vmatprep.subr.bf16.mxu0 0
      %3753 = vmatpush1.bf16.msra.mxu0 0
      %3754 = vmatprep.subr.bf16.mxu0 0
      %3755 = vmatpush1.bf16.msra.mxu0 0
      %3756 = vmatprep.subr.bf16.mxu0 0
      %3757 = vmatpush1.bf16.msra.mxu0 0
      %3758 = vmatprep.subr.bf16.mxu0 0
      %3759 = vmatpush1.bf16.msra.mxu0 0
      %3760 = vmatprep.subr.bf16.mxu0 0
      %3761 = vmatpush1.bf16.msra.mxu0 0
      %3762 = vmatprep.subr.bf16.mxu0 0
      %3763 = vmatpush1.bf16.msra.mxu0 0
      %3764 = vmatprep.subr.bf16.mxu0 0
      %3765 = vmatpush1.bf16.msra.mxu0 0
      %3766 = vmatprep.subr.bf16.mxu0 0
      %3767 = vmatpush1.bf16.msra.mxu0 0
      %3768 = vmatprep.subr.bf16.mxu0 0
      %3769 = vmatpush1.bf16.msra.mxu0 0
      %3770 = vmatprep.subr.bf16.mxu0 0
      %3771 = vmatpush1.bf16.msra.mxu0 0
      %3772 = vmatprep.mubr.bf16.mxu0 0
      %3773 = vmatmul.mubr.bf16.gmra.mrb[0].mxu0 %v3664
      %v3774 = vpop.f32.mrb[0].mxu0
      %v3775 = vadd.f32 %v3710, %v3774
      %v3776 = vpop.f32.mrb[0].mxu0
      %v3777 = vpop.f32.mrb[0].mxu0
      %v3778 = vadd.f32 %v3713, %v3777
      %v3779 = vpop.f32.mrb[0].mxu0
      %3780 = vmatprep.mubr.bf16.mxu0 0
      %3781 = vmatmul.mubr.bf16.gmra.mrb[0].mxu0 %v3667
      %v3782 = vpop.f32.mrb[0].mxu0
      %v3783 = vadd.f32 %v3718, %v3782
      %v3784 = vpop.f32.mrb[0].mxu0
      %v3785 = vpop.f32.mrb[0].mxu0
      %v3786 = vadd.f32 %v3721, %v3785
      %v3787 = vpop.f32.mrb[0].mxu0
      %3788 = vmatprep.mubr.bf16.mxu0 0
      %3789 = vmatmul.mubr.bf16.gmra.mrb[0].mxu0 %v3670
      %v3790 = vpop.f32.mrb[0].mxu0
      %v3791 = vadd.f32 %v3726, %v3790
      %v3792 = vpop.f32.mrb[0].mxu0
      %v3793 = vpop.f32.mrb[0].mxu0
      %v3794 = vadd.f32 %v3729, %v3793
      %v3795 = vpop.f32.mrb[0].mxu0
      %3796 = vmatprep.mubr.bf16.mxu0 0
      %3797 = vmatmul.mubr.bf16.gmra.mrb[0].mxu0 %v3673
      %v3798 = vpop.f32.mrb[0].mxu0
      %v3799 = vadd.f32 %v3734, %v3798
      %v3800 = vpop.f32.mrb[0].mxu0
      %v3801 = vpop.f32.mrb[0].mxu0
      %v3802 = vadd.f32 %v3737, %v3801
      %v3803 = vpop.f32.mrb[0].mxu0
      %3804 = vdwg.mxu0
      %v3805 = vtanh.pop %v3775
      %v3806 = vtanh.pop %v3778
      %v3807 = vtanh.pop %v3783
      %v3808 = vtanh.pop %v3786
      %v3809 = vtanh.pop %v3791
      %v3810 = vtanh.pop %v3794
      %v3811 = vtanh.pop %v3799
      %v3812 = vtanh.pop %v3802
      %s3813 = scalar_lea.vmem %s353, 192
      %3814 = vst.msk [vmem:[%s3813] sm:$0xff] %vm1909, %v3805
      %3815 = vst.msk [vmem:[%s3813 + $0x8] sm:$0xff] %vm1909, %v3806
      %3816 = vst.msk [vmem:[%s3813 + $0x10] sm:$0xff] %vm1909, %v3807
      %3817 = vst.msk [vmem:[%s3813 + $0x18] sm:$0xff] %vm1909, %v3808
      %3818 = vst.msk [vmem:[%s3813 + $0x20] sm:$0xff] %vm1909, %v3809
      %3819 = vst.msk [vmem:[%s3813 + $0x28] sm:$0xff] %vm1909, %v3810
      %3820 = vst.msk [vmem:[%s3813 + $0x30] sm:$0xff] %vm1909, %v3811
      %3821 = vst.msk [vmem:[%s3813 + $0x38] sm:$0xff] %vm1909, %v3812
      %p3822 = scmp.lt.s32.totalorder %s21, 1
      %s3823 = scalar_select %p3822, %s21, 1
      %s3824 = smul.addr %s3823, 32
      %s3825 = smul.addr %s3824, 8
      %s3826 = scalar_lea.vmem %s9, %s3825
      // Predicated region
      $region57: #{mynet_forward.5} parent=55 // pred_check
        %p3827 = pneg %p238
      $region58: #{mynet_forward.5} parent=55 // pred_check_branch
        %3829 = sbr.rel (%p3827) target = $region60
      $region59: #{mynet_forward.5} parent=55 // pred_region
        _
      $region60: #{mynet_forward.5} parent=55 // pred_fallthru
        _
    $region56: #{mynet_forward.5} parent=5 // pred_fallthru
      _
    %p3830 = scmp.le.s32.totalorder 2, %s16
    // Predicated region
    $region61: #{mynet_forward.5} parent=5 // pred_check
      %p3831 = pneg %p3830
    $region62: #{mynet_forward.5} parent=5 // pred_check_branch
      %3833 = sbr.rel (%p3831) target = $region64
    $region63: #{mynet_forward.5} parent=5 // pred_region
      %s3834 = ssub.s32 %s16, 2
      // Predicated region
      $region65: #{mynet_forward.5} parent=63 // pred_check
        %p3835 = pneg %p244
      $region66: #{mynet_forward.5} parent=63 // pred_check_branch
        %3837 = sbr.rel (%p3835) target = $region68
      $region67: #{mynet_forward.5} parent=63 // pred_region
        %p3838 = scmp.lt.s32.totalorder %s22, 1
        %s3839 = scalar_select %p3838, %s22, 1
        %s3840 = smul.addr %s3839, 32
        %s3841 = smul.addr %s3840, 8
        %s3842 = scalar_lea.vmem %s9, %s3841
      $region68: #{mynet_forward.5} parent=63 // pred_fallthru
        _
    $region64: #{mynet_forward.5} parent=5 // pred_fallthru
      _
  $region6: #{mynet_forward.5} parent=0 // loop_footer
    %s20 = sadd.s32 1, %s16
  $region7: #{mynet_forward.5} parent=0 // loop_footer_branch
    %15 = sbr.rel target = $region3
  $region8: #{mynet_forward.5} parent=0 // loop_exit
    _

</llo_original>
